<compile_context>
chip_gen: v7x
topology: tpu7x:2x2x1
jax: 0.10.0
libtpu: 0.0.40
codegen_flags: <defaults>
</compile_context>

<pallas_src>
import jax
import jax.numpy as jnp
from jax.experimental import pallas as pl
from jax.experimental.pallas import tpu as pltpu

# ---- real _netG dims from the PyTorch module ----
Z_DIM = 100
EEG_DIM = 1000
H_DIM = 1500
X_DIM = 1000
LEAKY_SLOPE = 0.01          # nn.LeakyReLU() default negative_slope
BATCH = 64                  # rows per call (review: 64-256)


def _round_up(n, m):
    return ((n + m - 1) // m) * m


IN_DIM = Z_DIM + EEG_DIM            # 1100
IN_PAD = _round_up(IN_DIM, 128)     # 1152
H_PAD = _round_up(H_DIM, 128)       # 1536
OUT_PAD = _round_up(X_DIM, 128)     # 1024


def _netg_mlp_kernel(x_ref, w1_ref, b1_ref, w2_ref, b2_ref, o_ref):
    """Fused 2-layer MLP: tanh(leaky_relu(x @ W1 + b1) @ W2 + b2).

    x / W1 / W2 are bf16 (full-rate MXU, halved HBM traffic); accumulation,
    bias adds, LeakyReLU and tanh are f32 on the VPU/EUP.
    """
    h = jnp.dot(x_ref[...], w1_ref[...], preferred_element_type=jnp.float32)
    h = h + b1_ref[...]                                   # f32 bias add
    h = jnp.where(h > 0, h, LEAKY_SLOPE * h)              # LeakyReLU (f32 VPU)
    y = jnp.dot(h.astype(jnp.bfloat16), w2_ref[...],
                preferred_element_type=jnp.float32)
    y = y + b2_ref[...]
    o_ref[...] = jnp.tanh(y).astype(o_ref.dtype)          # Tanh (f32 EUP)


@jax.jit
def netg_forward(z, c, params):
    """Pallas equivalent of _netG.forward(z, c) -> (output, real_eeg)."""
    w1p, b1p, w2p, b2p = params          # padded, weights bf16, biases f32
    B = z.shape[0]
    B_pad = _round_up(max(B, 8), 8)

    # Single K=IN_PAD MXU pass: concat [z, c], zero-pad to padded dims, bf16.
    x = jnp.concatenate([z, c], axis=1)
    x = jnp.pad(x, ((0, B_pad - B), (0, IN_PAD - IN_DIM)))
    x = x.astype(jnp.bfloat16)

    flops = 2 * B_pad * (IN_PAD * H_PAD + H_PAD * OUT_PAD)
    bytes_accessed = (x.size * 2 + w1p.size * 2 + w2p.size * 2
                      + b1p.size * 4 + b2p.size * 4 + B_pad * OUT_PAD * 4)

    vmem_spec = pl.BlockSpec(memory_space=pltpu.MemorySpace.VMEM)
    out_p = pl.pallas_call(
        _netg_mlp_kernel,
        out_shape=jax.ShapeDtypeStruct((B_pad, OUT_PAD), jnp.float32),
        in_specs=[vmem_spec] * 5,        # whole arrays VMEM-resident, no grid
        out_specs=vmem_spec,
        compiler_params=pltpu.CompilerParams(
            # ~8 MB actual footprint; explicit limit keeps the whole-arrays-in-
            # VMEM strategy valid against v7x's 64 MiB physical VMEM.
            vmem_limit_bytes=32 * 1024 * 1024),
        cost_estimate=pl.CostEstimate(
            flops=flops,
            transcendentals=B_pad * OUT_PAD,   # one tanh per output element
            bytes_accessed=bytes_accessed),
    )(x, w1p, b1p, w2p, b2p)

    return out_p[:B, :X_DIM], c


def init_params(key, weight_dtype=jnp.bfloat16):
    """Deterministic synthetic params (kaiming-uniform-ish, like nn.Linear).

    Weights are stored pre-transposed as (in, out) and zero-padded to
    128-aligned feature dims; padded rows/cols are zero so padded hidden units
    and padded output columns contribute nothing.
    """
    k1, k2, k3, k4 = jax.random.split(key, 4)
    bnd1 = 1.0 / (IN_DIM ** 0.5)
    bnd2 = 1.0 / (H_DIM ** 0.5)
    w1 = jax.random.uniform(k1, (IN_DIM, H_DIM), jnp.float32, -bnd1, bnd1)
    b1 = jax.random.uniform(k2, (H_DIM,), jnp.float32, -bnd1, bnd1)
    w2 = jax.random.uniform(k3, (H_DIM, X_DIM), jnp.float32, -bnd2, bnd2)
    b2 = jax.random.uniform(k4, (X_DIM,), jnp.float32, -bnd2, bnd2)

    w1p = jnp.zeros((IN_PAD, H_PAD), weight_dtype).at[:IN_DIM, :H_DIM].set(
        w1.astype(weight_dtype))
    b1p = jnp.zeros((1, H_PAD), jnp.float32).at[0, :H_DIM].set(b1)
    w2p = jnp.zeros((H_PAD, OUT_PAD), weight_dtype).at[:H_DIM, :X_DIM].set(
        w2.astype(weight_dtype))
    b2p = jnp.zeros((1, OUT_PAD), jnp.float32).at[0, :X_DIM].set(b2)
    return w1p, b1p, w2p, b2p


if __name__ == "__main__":
    key = jax.random.PRNGKey(0)
    kz, kc, kp = jax.random.split(key, 3)

    z = jax.random.normal(kz, (BATCH, Z_DIM), jnp.float32)
    c = jax.random.normal(kc, (BATCH, EEG_DIM), jnp.float32)
    params = init_params(kp)

    out, real_eeg = netg_forward(z, c, params)
    jax.block_until_ready((out, real_eeg))

    # Plain-JAX reference with identical bf16 rounding of matmul operands and
    # f32 accumulation / element-wise math (slices the padded params back to
    # the logical 1100/1500/1000 dims, so padding correctness is tested too).
    w1p, b1p, w2p, b2p = params
    w1f = w1p[:IN_DIM, :H_DIM].astype(jnp.float32)
    w2f = w2p[:H_DIM, :X_DIM].astype(jnp.float32)
    b1f = b1p[0, :H_DIM]
    b2f = b2p[0, :X_DIM]
    x = jnp.concatenate([z, c], axis=1)
    xb = x.astype(jnp.bfloat16).astype(jnp.float32)
    h = xb @ w1f + b1f
    h = jnp.where(h > 0, h, LEAKY_SLOPE * h)
    hb = h.astype(jnp.bfloat16).astype(jnp.float32)
    ref = jnp.tanh(hb @ w2f + b2f)

    assert out.shape == (BATCH, X_DIM)
    assert real_eeg.shape == (BATCH, EEG_DIM)
    assert jnp.allclose(out, ref, atol=2e-4, rtol=2e-4), (
        float(jnp.max(jnp.abs(out - ref))))
    assert jnp.array_equal(real_eeg, c)

    print("KERNEL_OK")
</pallas_src>

<mosaic_0001>
module attributes {stable_mosaic.version = 11 : i64} {
  func.func @_netg_mlp_kernel(%arg0: memref<64x1152xbf16, #tpu.memory_space<vmem>>, %arg1: memref<1152x1536xbf16, #tpu.memory_space<vmem>>, %arg2: memref<1x1536xf32, #tpu.memory_space<vmem>>, %arg3: memref<1536x1024xbf16, #tpu.memory_space<vmem>>, %arg4: memref<1x1024xf32, #tpu.memory_space<vmem>>, %arg5: memref<64x1024xf32, #tpu.memory_space<vmem>>) attributes {dimension_semantics = [], scalar_prefetch = 0 : i64, scratch_operands = 0 : i64, tpu.core_type = #tpu.core_type<tc>} {
    %c0 = arith.constant 0 : index
    %c0_0 = arith.constant 0 : index
    %0 = vector.load %arg0[%c0, %c0_0] : memref<64x1152xbf16, #tpu.memory_space<vmem>>, vector<64x1152xbf16>
    %c0_1 = arith.constant 0 : index
    %c0_2 = arith.constant 0 : index
    %1 = vector.load %arg1[%c0_1, %c0_2] : memref<1152x1536xbf16, #tpu.memory_space<vmem>>, vector<1152x1536xbf16>
    %cst = arith.constant dense<0.000000e+00> : vector<64x1536xf32>
    %2 = tpu.matmul %0, %1, %cst {dimension_numbers = #tpu.dot_dimension_numbers<[1], [0], [0], [1], [0, 0, 1, 1], [], []>} : vector<64x1152xbf16>, vector<1152x1536xbf16>, vector<64x1536xf32> -> vector<64x1536xf32>
    %c0_3 = arith.constant 0 : index
    %c0_4 = arith.constant 0 : index
    %3 = vector.load %arg2[%c0_3, %c0_4] : memref<1x1536xf32, #tpu.memory_space<vmem>>, vector<1x1536xf32>
    %4 = vector.broadcast %3 : vector<1x1536xf32> to vector<64x1536xf32>
    %5 = arith.addf %2, %4 : vector<64x1536xf32>
    %cst_5 = arith.constant 0.000000e+00 : f32
    %6 = vector.broadcast %cst_5 : f32 to vector<64x1536xf32>
    %7 = arith.cmpf ogt, %5, %6 : vector<64x1536xf32>
    %cst_6 = arith.constant 0.00999999977 : f32
    %8 = vector.broadcast %cst_6 : f32 to vector<64x1536xf32>
    %9 = arith.mulf %8, %5 : vector<64x1536xf32>
    %10 = arith.select %7, %5, %9 : vector<64x1536xi1>, vector<64x1536xf32>
    %11 = arith.truncf %10 : vector<64x1536xf32> to vector<64x1536xbf16>
    %c0_7 = arith.constant 0 : index
    %c0_8 = arith.constant 0 : index
    %12 = vector.load %arg3[%c0_7, %c0_8] : memref<1536x1024xbf16, #tpu.memory_space<vmem>>, vector<1536x1024xbf16>
    %cst_9 = arith.constant dense<0.000000e+00> : vector<64x1024xf32>
    %13 = tpu.matmul %11, %12, %cst_9 {dimension_numbers = #tpu.dot_dimension_numbers<[1], [0], [0], [1], [0, 0, 1, 1], [], []>} : vector<64x1536xbf16>, vector<1536x1024xbf16>, vector<64x1024xf32> -> vector<64x1024xf32>
    %c0_10 = arith.constant 0 : index
    %c0_11 = arith.constant 0 : index
    %14 = vector.load %arg4[%c0_10, %c0_11] : memref<1x1024xf32, #tpu.memory_space<vmem>>, vector<1x1024xf32>
    %15 = vector.broadcast %14 : vector<1x1024xf32> to vector<64x1024xf32>
    %16 = arith.addf %13, %15 : vector<64x1024xf32>
    %17 = math.tanh %16 : vector<64x1024xf32>
    %c0_12 = arith.constant 0 : index
    %c0_13 = arith.constant 0 : index
    %18 = vector.load %arg5[%c0_12, %c0_13] : memref<64x1024xf32, #tpu.memory_space<vmem>>, vector<64x1024xf32>
    tpu.vector_store %arg5[%c0_12, %c0_13], %17 {strides = array<i32>} : memref<64x1024xf32, #tpu.memory_space<vmem>>, vector<64x1024xf32>,
    return
  }
}

</mosaic_0001>

<llo_original>
// kernel: netg_forward.1
$region0: #{netg_forward.1}
  #allocation0 [shape = 'u32[]', space=smem, size = 0x4, offset = 0x4, fixed_abs, tag = 'smem constant byte address 0x4 - core index']
  #allocation1 [shape = 'u32[144,128]{1,0:T(1,128)}', space=vmem, size = 0x12000, scoped, tag = 'internal scratch']
  %s0 = inlined_call_operand.vmem [shape: bf16[64,1152], index: 0, kind: input, shape index: {}]
  %s1 = inlined_call_operand.hbm [shape: bf16[1152,1536], index: 1, kind: input, shape index: {}]
  %s2 = inlined_call_operand.hbm [shape: f32[1,1536], index: 2, kind: input, shape index: {}]
  %s3 = inlined_call_operand.hbm [shape: bf16[1536,1024], index: 3, kind: input, shape index: {}]
  %s4 = inlined_call_operand.hbm [shape: f32[1,1024], index: 4, kind: input, shape index: {}]
  %s5 = inlined_call_operand.hbm [shape: f32[64,1024], index: 5, kind: output, shape index: {}]
  %s6 = sld [smem:[#allocation0]]
  $region46: #{netg_forward.1} parent=0
    _
  %s8 = ssub.s32 1, %s6
  %s9 = scalar_select 0, %s8, %s6
  $region1: #{netg_forward.1} parent=0
    #allocation2 [shape = 'u8[3538944]{0}', space=vmem, size = 0x360000, scoped, tag = 'input window, operand 1, single buffered']
    #allocation3 [shape = 's32[1]{0}', space=sflag, size = 0x4, scoped, tag = 'scoped memory for netg_forward.1']
    #allocation4 [shape = 's32[1]{0}', space=sflag, size = 0x4, scoped, tag = 'scoped memory for netg_forward.1']
    #allocation5 [shape = 'u8[6144]{0}', space=vmem, size = 0x1800, scoped, tag = 'input window, operand 2, single buffered']
    #allocation6 [shape = 's32[1]{0}', space=sflag, size = 0x4, scoped, tag = 'scoped memory for netg_forward.1']
    #allocation7 [shape = 'u8[3145728]{0}', space=vmem, size = 0x300000, scoped, tag = 'input window, operand 3, single buffered']
    #allocation8 [shape = 'u8[4096]{0}', space=vmem, size = 0x1000, scoped, tag = 'input window, operand 4, single buffered']
    #allocation9 [shape = 's32[1]{0}', space=sflag, size = 0x4, scoped, tag = 'scoped memory for netg_forward.1']
    #allocation10 [shape = 'u8[262144]{0}', space=vmem, size = 0x40000, scoped, tag = 'output window, operand 0, single buffered']
    %10 = vsyncpa [#allocation3], 0
    %11 = vsyncpa [#allocation6], 0
    %12 = vsyncpa [#allocation9], 0
    %13 = vsyncpa [#allocation4], 0
    // Predicated region
    $region2: #{netg_forward.1} parent=1 // pred_check
      _
    $region3: #{netg_forward.1} parent=1 // pred_check_branch
      %15 = sbr.rel (0) target = $region5
    $region4: #{netg_forward.1} parent=1 // pred_region
      _
    $region5: #{netg_forward.1} parent=1 // pred_fallthru
      _
    // Predicated region
    $region6: #{netg_forward.1} parent=1 // pred_check
      _
    $region7: #{netg_forward.1} parent=1 // pred_check_branch
      %17 = sbr.rel (0) target = $region9
    $region8: #{netg_forward.1} parent=1 // pred_region
      %s19 = ssub.s32 110592, 110592
      %20 = vsyncadd [#allocation3], %s19
      %s21 = sshll.u32 [#allocation2], 4
      %s22 = int_to_ptr.vmem [resolvable:$true] %s21
      %27 = dma.hbm_to_vmem [thread:$0]  %s1, 110592, %s22, [#allocation3], 768, 768, 48
    $region9: #{netg_forward.1} parent=1 // pred_fallthru
      _
    // Predicated region
    $region10: #{netg_forward.1} parent=1 // pred_check
      _
    $region11: #{netg_forward.1} parent=1 // pred_check_branch
      %29 = sbr.rel (0) target = $region13
    $region12: #{netg_forward.1} parent=1 // pred_region
      %s31 = ssub.s32 192, 192
      %32 = vsyncadd [#allocation6], %s31
      %s34 = sshll.u32 [#allocation5], 4
      %s35 = int_to_ptr.vmem [resolvable:$true] %s34
      %37 = dma.hbm_to_vmem [thread:$0]  %s2, 192, %s35, [#allocation6]
    $region13: #{netg_forward.1} parent=1 // pred_fallthru
      _
    // Predicated region
    $region14: #{netg_forward.1} parent=1 // pred_check
      _
    $region15: #{netg_forward.1} parent=1 // pred_check_branch
      %39 = sbr.rel (0) target = $region17
    $region16: #{netg_forward.1} parent=1 // pred_region
      %s41 = ssub.s32 98304, 98304
      %42 = vsyncadd [#allocation6], %s41
      %s43 = sshll.u32 [#allocation7], 4
      %s44 = int_to_ptr.vmem [resolvable:$true] %s43
      %49 = dma.hbm_to_vmem [thread:$0]  %s3, 98304, %s44, [#allocation6], 512, 512, 32
    $region17: #{netg_forward.1} parent=1 // pred_fallthru
      _
    // Predicated region
    $region18: #{netg_forward.1} parent=1 // pred_check
      _
    $region19: #{netg_forward.1} parent=1 // pred_check_branch
      %51 = sbr.rel (0) target = $region21
    $region20: #{netg_forward.1} parent=1 // pred_region
      %s53 = ssub.s32 128, 128
      %54 = vsyncadd [#allocation9], %s53
      %s56 = sshll.u32 [#allocation8], 4
      %s57 = int_to_ptr.vmem [resolvable:$true] %s56
      %59 = dma.hbm_to_vmem [thread:$0]  %s4, 128, %s57, [#allocation9]
    $region21: #{netg_forward.1} parent=1 // pred_fallthru
      _
    // Predicated region
    $region22: #{netg_forward.1} parent=1 // pred_check
      _
    $region23: #{netg_forward.1} parent=1 // pred_check_branch
      %61 = sbr.rel (0) target = $region25
    $region24: #{netg_forward.1} parent=1 // pred_region
      %62 = dma.done [#allocation3], 110592
    $region25: #{netg_forward.1} parent=1 // pred_fallthru
      _
    // Predicated region
    $region26: #{netg_forward.1} parent=1 // pred_check
      _
    $region27: #{netg_forward.1} parent=1 // pred_check_branch
      %64 = sbr.rel (0) target = $region29
    $region28: #{netg_forward.1} parent=1 // pred_region
      %65 = dma.done [#allocation6], 192
    $region29: #{netg_forward.1} parent=1 // pred_fallthru
      _
    // Predicated region
    $region30: #{netg_forward.1} parent=1 // pred_check
      _
    $region31: #{netg_forward.1} parent=1 // pred_check_branch
      %67 = sbr.rel (0) target = $region33
    $region32: #{netg_forward.1} parent=1 // pred_region
      %68 = dma.done [#allocation6], 98304
    $region33: #{netg_forward.1} parent=1 // pred_fallthru
      _
    // Predicated region
    $region34: #{netg_forward.1} parent=1 // pred_check
      _
    $region35: #{netg_forward.1} parent=1 // pred_check_branch
      %70 = sbr.rel (0) target = $region37
    $region36: #{netg_forward.1} parent=1 // pred_region
      %71 = dma.done [#allocation9], 128
    $region37: #{netg_forward.1} parent=1 // pred_fallthru
      _
    %v73 = vld [vmem:[%s0] sm:$0xff]
    %v74 = vld [vmem:[%s0 + $0x8] sm:$0xff]
    %v75 = vld [vmem:[%s0 + $0x10] sm:$0xff]
    %v76 = vld [vmem:[%s0 + $0x18] sm:$0xff]
    %v77 = vld [vmem:[%s0 + $0x20] sm:$0xf]
    %v78 = vld [vmem:[%s0 + $0x24] sm:$0xff]
    %v79 = vld [vmem:[%s0 + $0x2c] sm:$0xff]
    %v80 = vld [vmem:[%s0 + $0x34] sm:$0xff]
    %v81 = vld [vmem:[%s0 + $0x3c] sm:$0xff]
    %v82 = vld [vmem:[%s0 + $0x44] sm:$0xf]
    %v83 = vld [vmem:[%s0 + $0x48] sm:$0xff]
    %v84 = vld [vmem:[%s0 + $0x50] sm:$0xff]
    %v85 = vld [vmem:[%s0 + $0x58] sm:$0xff]
    %v86 = vld [vmem:[%s0 + $0x60] sm:$0xff]
    %v87 = vld [vmem:[%s0 + $0x68] sm:$0xf]
    %v88 = vld [vmem:[%s0 + $0x6c] sm:$0xff]
    %v89 = vld [vmem:[%s0 + $0x74] sm:$0xff]
    %v90 = vld [vmem:[%s0 + $0x7c] sm:$0xff]
    %v91 = vld [vmem:[%s0 + $0x84] sm:$0xff]
    %v92 = vld [vmem:[%s0 + $0x8c] sm:$0xf]
    %v93 = vld [vmem:[%s0 + $0x90] sm:$0xff]
    %v94 = vld [vmem:[%s0 + $0x98] sm:$0xff]
    %v95 = vld [vmem:[%s0 + $0xa0] sm:$0xff]
    %v96 = vld [vmem:[%s0 + $0xa8] sm:$0xff]
    %v97 = vld [vmem:[%s0 + $0xb0] sm:$0xf]
    %v98 = vld [vmem:[%s0 + $0xb4] sm:$0xff]
    %v99 = vld [vmem:[%s0 + $0xbc] sm:$0xff]
    %v100 = vld [vmem:[%s0 + $0xc4] sm:$0xff]
    %v101 = vld [vmem:[%s0 + $0xcc] sm:$0xff]
    %v102 = vld [vmem:[%s0 + $0xd4] sm:$0xf]
    %v103 = vld [vmem:[%s0 + $0xd8] sm:$0xff]
    %v104 = vld [vmem:[%s0 + $0xe0] sm:$0xff]
    %v105 = vld [vmem:[%s0 + $0xe8] sm:$0xff]
    %v106 = vld [vmem:[%s0 + $0xf0] sm:$0xff]
    %v107 = vld [vmem:[%s0 + $0xf8] sm:$0xf]
    %v108 = vld [vmem:[%s0 + $0xfc] sm:$0xff]
    %v109 = vld [vmem:[%s0 + $0x104] sm:$0xff]
    %v110 = vld [vmem:[%s0 + $0x10c] sm:$0xff]
    %v111 = vld [vmem:[%s0 + $0x114] sm:$0xff]
    %v112 = vld [vmem:[%s0 + $0x11c] sm:$0xf]
    %v113 = vld [vmem:[#allocation2] sm:$0xff]
    %v114 = vld [vmem:[#allocation2 + $0x8] sm:$0xff]
    %v115 = vld [vmem:[#allocation2 + $0x10] sm:$0xff]
    %v116 = vld [vmem:[#allocation2 + $0x18] sm:$0xff]
    %v117 = vld [vmem:[#allocation2 + $0x20] sm:$0xff]
    %v118 = vld [vmem:[#allocation2 + $0x28] sm:$0xff]
    %v119 = vld [vmem:[#allocation2 + $0x30] sm:$0xff]
    %v120 = vld [vmem:[#allocation2 + $0x38] sm:$0xff]
    %v121 = vld [vmem:[#allocation2 + $0x40] sm:$0xff]
    %v122 = vld [vmem:[#allocation2 + $0x48] sm:$0xff]
    %v123 = vld [vmem:[#allocation2 + $0x50] sm:$0xff]
    %v124 = vld [vmem:[#allocation2 + $0x58] sm:$0xff]
    %v125 = vld [vmem:[#allocation2 + $0x60] sm:$0xff]
    %v126 = vld [vmem:[#allocation2 + $0x68] sm:$0xff]
    %v127 = vld [vmem:[#allocation2 + $0x70] sm:$0xff]
    %v128 = vld [vmem:[#allocation2 + $0x78] sm:$0xff]
    %v129 = vld [vmem:[#allocation2 + $0x80] sm:$0xff]
    %v130 = vld [vmem:[#allocation2 + $0x88] sm:$0xff]
    %v131 = vld [vmem:[#allocation2 + $0x90] sm:$0xff]
    %v132 = vld [vmem:[#allocation2 + $0x98] sm:$0xff]
    %v133 = vld [vmem:[#allocation2 + $0xa0] sm:$0xff]
    %v134 = vld [vmem:[#allocation2 + $0xa8] sm:$0xff]
    %v135 = vld [vmem:[#allocation2 + $0xb0] sm:$0xff]
    %v136 = vld [vmem:[#allocation2 + $0xb8] sm:$0xff]
    %v137 = vld [vmem:[#allocation2 + $0xc0] sm:$0xff]
    %v138 = vld [vmem:[#allocation2 + $0xc8] sm:$0xff]
    %v139 = vld [vmem:[#allocation2 + $0xd0] sm:$0xff]
    %v140 = vld [vmem:[#allocation2 + $0xd8] sm:$0xff]
    %v141 = vld [vmem:[#allocation2 + $0xe0] sm:$0xff]
    %v142 = vld [vmem:[#allocation2 + $0xe8] sm:$0xff]
    %v143 = vld [vmem:[#allocation2 + $0xf0] sm:$0xff]
    %v144 = vld [vmem:[#allocation2 + $0xf8] sm:$0xff]
    %v145 = vld [vmem:[#allocation2 + $0x100] sm:$0xff]
    %v146 = vld [vmem:[#allocation2 + $0x108] sm:$0xff]
    %v147 = vld [vmem:[#allocation2 + $0x110] sm:$0xff]
    %v148 = vld [vmem:[#allocation2 + $0x118] sm:$0xff]
    %v149 = vld [vmem:[#allocation2 + $0x120] sm:$0xff]
    %v150 = vld [vmem:[#allocation2 + $0x128] sm:$0xff]
    %v151 = vld [vmem:[#allocation2 + $0x130] sm:$0xff]
    %v152 = vld [vmem:[#allocation2 + $0x138] sm:$0xff]
    %v153 = vld [vmem:[#allocation2 + $0x140] sm:$0xff]
    %v154 = vld [vmem:[#allocation2 + $0x148] sm:$0xff]
    %v155 = vld [vmem:[#allocation2 + $0x150] sm:$0xff]
    %v156 = vld [vmem:[#allocation2 + $0x158] sm:$0xff]
    %v157 = vld [vmem:[#allocation2 + $0x160] sm:$0xff]
    %v158 = vld [vmem:[#allocation2 + $0x168] sm:$0xff]
    %v159 = vld [vmem:[#allocation2 + $0x170] sm:$0xff]
    %v160 = vld [vmem:[#allocation2 + $0x178] sm:$0xff]
    %v161 = vld [vmem:[#allocation2 + $0x180] sm:$0xff]
    %v162 = vld [vmem:[#allocation2 + $0x188] sm:$0xff]
    %v163 = vld [vmem:[#allocation2 + $0x190] sm:$0xff]
    %v164 = vld [vmem:[#allocation2 + $0x198] sm:$0xff]
    %v165 = vld [vmem:[#allocation2 + $0x1a0] sm:$0xff]
    %v166 = vld [vmem:[#allocation2 + $0x1a8] sm:$0xff]
    %v167 = vld [vmem:[#allocation2 + $0x1b0] sm:$0xff]
    %v168 = vld [vmem:[#allocation2 + $0x1b8] sm:$0xff]
    %v169 = vld [vmem:[#allocation2 + $0x1c0] sm:$0xff]
    %v170 = vld [vmem:[#allocation2 + $0x1c8] sm:$0xff]
    %v171 = vld [vmem:[#allocation2 + $0x1d0] sm:$0xff]
    %v172 = vld [vmem:[#allocation2 + $0x1d8] sm:$0xff]
    %v173 = vld [vmem:[#allocation2 + $0x1e0] sm:$0xff]
    %v174 = vld [vmem:[#allocation2 + $0x1e8] sm:$0xff]
    %v175 = vld [vmem:[#allocation2 + $0x1f0] sm:$0xff]
    %v176 = vld [vmem:[#allocation2 + $0x1f8] sm:$0xff]
    %v177 = vld [vmem:[#allocation2 + $0x200] sm:$0xff]
    %v178 = vld [vmem:[#allocation2 + $0x208] sm:$0xff]
    %v179 = vld [vmem:[#allocation2 + $0x210] sm:$0xff]
    %v180 = vld [vmem:[#allocation2 + $0x218] sm:$0xff]
    %v181 = vld [vmem:[#allocation2 + $0x220] sm:$0xff]
    %v182 = vld [vmem:[#allocation2 + $0x228] sm:$0xff]
    %v183 = vld [vmem:[#allocation2 + $0x230] sm:$0xff]
    %v184 = vld [vmem:[#allocation2 + $0x238] sm:$0xff]
    %v185 = vld [vmem:[#allocation2 + $0x240] sm:$0xff]
    %v186 = vld [vmem:[#allocation2 + $0x248] sm:$0xff]
    %v187 = vld [vmem:[#allocation2 + $0x250] sm:$0xff]
    %v188 = vld [vmem:[#allocation2 + $0x258] sm:$0xff]
    %v189 = vld [vmem:[#allocation2 + $0x260] sm:$0xff]
    %v190 = vld [vmem:[#allocation2 + $0x268] sm:$0xff]
    %v191 = vld [vmem:[#allocation2 + $0x270] sm:$0xff]
    %v192 = vld [vmem:[#allocation2 + $0x278] sm:$0xff]
    %v193 = vld [vmem:[#allocation2 + $0x280] sm:$0xff]
    %v194 = vld [vmem:[#allocation2 + $0x288] sm:$0xff]
    %v195 = vld [vmem:[#allocation2 + $0x290] sm:$0xff]
    %v196 = vld [vmem:[#allocation2 + $0x298] sm:$0xff]
    %v197 = vld [vmem:[#allocation2 + $0x2a0] sm:$0xff]
    %v198 = vld [vmem:[#allocation2 + $0x2a8] sm:$0xff]
    %v199 = vld [vmem:[#allocation2 + $0x2b0] sm:$0xff]
    %v200 = vld [vmem:[#allocation2 + $0x2b8] sm:$0xff]
    %v201 = vld [vmem:[#allocation2 + $0x2c0] sm:$0xff]
    %v202 = vld [vmem:[#allocation2 + $0x2c8] sm:$0xff]
    %v203 = vld [vmem:[#allocation2 + $0x2d0] sm:$0xff]
    %v204 = vld [vmem:[#allocation2 + $0x2d8] sm:$0xff]
    %v205 = vld [vmem:[#allocation2 + $0x2e0] sm:$0xff]
    %v206 = vld [vmem:[#allocation2 + $0x2e8] sm:$0xff]
    %v207 = vld [vmem:[#allocation2 + $0x2f0] sm:$0xff]
    %v208 = vld [vmem:[#allocation2 + $0x2f8] sm:$0xff]
    %v209 = vld [vmem:[#allocation2 + $0x300] sm:$0xff]
    %v210 = vld [vmem:[#allocation2 + $0x308] sm:$0xff]
    %v211 = vld [vmem:[#allocation2 + $0x310] sm:$0xff]
    %v212 = vld [vmem:[#allocation2 + $0x318] sm:$0xff]
    %v213 = vld [vmem:[#allocation2 + $0x320] sm:$0xff]
    %v214 = vld [vmem:[#allocation2 + $0x328] sm:$0xff]
    %v215 = vld [vmem:[#allocation2 + $0x330] sm:$0xff]
    %v216 = vld [vmem:[#allocation2 + $0x338] sm:$0xff]
    %v217 = vld [vmem:[#allocation2 + $0x340] sm:$0xff]
    %v218 = vld [vmem:[#allocation2 + $0x348] sm:$0xff]
    %v219 = vld [vmem:[#allocation2 + $0x350] sm:$0xff]
    %v220 = vld [vmem:[#allocation2 + $0x358] sm:$0xff]
    %v221 = vld [vmem:[#allocation2 + $0x360] sm:$0xff]
    %v222 = vld [vmem:[#allocation2 + $0x368] sm:$0xff]
    %v223 = vld [vmem:[#allocation2 + $0x370] sm:$0xff]
    %v224 = vld [vmem:[#allocation2 + $0x378] sm:$0xff]
    %v225 = vld [vmem:[#allocation2 + $0x380] sm:$0xff]
    %v226 = vld [vmem:[#allocation2 + $0x388] sm:$0xff]
    %v227 = vld [vmem:[#allocation2 + $0x390] sm:$0xff]
    %v228 = vld [vmem:[#allocation2 + $0x398] sm:$0xff]
    %v229 = vld [vmem:[#allocation2 + $0x3a0] sm:$0xff]
    %v230 = vld [vmem:[#allocation2 + $0x3a8] sm:$0xff]
    %v231 = vld [vmem:[#allocation2 + $0x3b0] sm:$0xff]
    %v232 = vld [vmem:[#allocation2 + $0x3b8] sm:$0xff]
    %v233 = vld [vmem:[#allocation2 + $0x3c0] sm:$0xff]
    %v234 = vld [vmem:[#allocation2 + $0x3c8] sm:$0xff]
    %v235 = vld [vmem:[#allocation2 + $0x3d0] sm:$0xff]
    %v236 = vld [vmem:[#allocation2 + $0x3d8] sm:$0xff]
    %v237 = vld [vmem:[#allocation2 + $0x3e0] sm:$0xff]
    %v238 = vld [vmem:[#allocation2 + $0x3e8] sm:$0xff]
    %v239 = vld [vmem:[#allocation2 + $0x3f0] sm:$0xff]
    %v240 = vld [vmem:[#allocation2 + $0x3f8] sm:$0xff]
    %v241 = vld [vmem:[#allocation2 + $0x400] sm:$0xff]
    %v242 = vld [vmem:[#allocation2 + $0x408] sm:$0xff]
    %v243 = vld [vmem:[#allocation2 + $0x410] sm:$0xff]
    %v244 = vld [vmem:[#allocation2 + $0x418] sm:$0xff]
    %v245 = vld [vmem:[#allocation2 + $0x420] sm:$0xff]
    %v246 = vld [vmem:[#allocation2 + $0x428] sm:$0xff]
    %v247 = vld [vmem:[#allocation2 + $0x430] sm:$0xff]
    %v248 = vld [vmem:[#allocation2 + $0x438] sm:$0xff]
    %v249 = vld [vmem:[#allocation2 + $0x440] sm:$0xff]
    %v250 = vld [vmem:[#allocation2 + $0x448] sm:$0xff]
    %v251 = vld [vmem:[#allocation2 + $0x450] sm:$0xff]
    %v252 = vld [vmem:[#allocation2 + $0x458] sm:$0xff]
    %v253 = vld [vmem:[#allocation2 + $0x460] sm:$0xff]
    %v254 = vld [vmem:[#allocation2 + $0x468] sm:$0xff]
    %v255 = vld [vmem:[#allocation2 + $0x470] sm:$0xff]
    %v256 = vld [vmem:[#allocation2 + $0x478] sm:$0xff]
    %v257 = vld [vmem:[#allocation2 + $0x480] sm:$0xff]
    %v258 = vld [vmem:[#allocation2 + $0x488] sm:$0xff]
    %v259 = vld [vmem:[#allocation2 + $0x490] sm:$0xff]
    %v260 = vld [vmem:[#allocation2 + $0x498] sm:$0xff]
    %v261 = vld [vmem:[#allocation2 + $0x4a0] sm:$0xff]
    %v262 = vld [vmem:[#allocation2 + $0x4a8] sm:$0xff]
    %v263 = vld [vmem:[#allocation2 + $0x4b0] sm:$0xff]
    %v264 = vld [vmem:[#allocation2 + $0x4b8] sm:$0xff]
    %v265 = vld [vmem:[#allocation2 + $0x4c0] sm:$0xff]
    %v266 = vld [vmem:[#allocation2 + $0x4c8] sm:$0xff]
    %v267 = vld [vmem:[#allocation2 + $0x4d0] sm:$0xff]
    %v268 = vld [vmem:[#allocation2 + $0x4d8] sm:$0xff]
    %v269 = vld [vmem:[#allocation2 + $0x4e0] sm:$0xff]
    %v270 = vld [vmem:[#allocation2 + $0x4e8] sm:$0xff]
    %v271 = vld [vmem:[#allocation2 + $0x4f0] sm:$0xff]
    %v272 = vld [vmem:[#allocation2 + $0x4f8] sm:$0xff]
    %v273 = vld [vmem:[#allocation2 + $0x500] sm:$0xff]
    %v274 = vld [vmem:[#allocation2 + $0x508] sm:$0xff]
    %v275 = vld [vmem:[#allocation2 + $0x510] sm:$0xff]
    %v276 = vld [vmem:[#allocation2 + $0x518] sm:$0xff]
    %v277 = vld [vmem:[#allocation2 + $0x520] sm:$0xff]
    %v278 = vld [vmem:[#allocation2 + $0x528] sm:$0xff]
    %v279 = vld [vmem:[#allocation2 + $0x530] sm:$0xff]
    %v280 = vld [vmem:[#allocation2 + $0x538] sm:$0xff]
    %v281 = vld [vmem:[#allocation2 + $0x540] sm:$0xff]
    %v282 = vld [vmem:[#allocation2 + $0x548] sm:$0xff]
    %v283 = vld [vmem:[#allocation2 + $0x550] sm:$0xff]
    %v284 = vld [vmem:[#allocation2 + $0x558] sm:$0xff]
    %v285 = vld [vmem:[#allocation2 + $0x560] sm:$0xff]
    %v286 = vld [vmem:[#allocation2 + $0x568] sm:$0xff]
    %v287 = vld [vmem:[#allocation2 + $0x570] sm:$0xff]
    %v288 = vld [vmem:[#allocation2 + $0x578] sm:$0xff]
    %v289 = vld [vmem:[#allocation2 + $0x580] sm:$0xff]
    %v290 = vld [vmem:[#allocation2 + $0x588] sm:$0xff]
    %v291 = vld [vmem:[#allocation2 + $0x590] sm:$0xff]
    %v292 = vld [vmem:[#allocation2 + $0x598] sm:$0xff]
    %v293 = vld [vmem:[#allocation2 + $0x5a0] sm:$0xff]
    %v294 = vld [vmem:[#allocation2 + $0x5a8] sm:$0xff]
    %v295 = vld [vmem:[#allocation2 + $0x5b0] sm:$0xff]
    %v296 = vld [vmem:[#allocation2 + $0x5b8] sm:$0xff]
    %v297 = vld [vmem:[#allocation2 + $0x5c0] sm:$0xff]
    %v298 = vld [vmem:[#allocation2 + $0x5c8] sm:$0xff]
    %v299 = vld [vmem:[#allocation2 + $0x5d0] sm:$0xff]
    %v300 = vld [vmem:[#allocation2 + $0x5d8] sm:$0xff]
    %v301 = vld [vmem:[#allocation2 + $0x5e0] sm:$0xff]
    %v302 = vld [vmem:[#allocation2 + $0x5e8] sm:$0xff]
    %v303 = vld [vmem:[#allocation2 + $0x5f0] sm:$0xff]
    %v304 = vld [vmem:[#allocation2 + $0x5f8] sm:$0xff]
    %v305 = vld [vmem:[#allocation2 + $0x600] sm:$0xff]
    %v306 = vld [vmem:[#allocation2 + $0x608] sm:$0xff]
    %v307 = vld [vmem:[#allocation2 + $0x610] sm:$0xff]
    %v308 = vld [vmem:[#allocation2 + $0x618] sm:$0xff]
    %v309 = vld [vmem:[#allocation2 + $0x620] sm:$0xff]
    %v310 = vld [vmem:[#allocation2 + $0x628] sm:$0xff]
    %v311 = vld [vmem:[#allocation2 + $0x630] sm:$0xff]
    %v312 = vld [vmem:[#allocation2 + $0x638] sm:$0xff]
    %v313 = vld [vmem:[#allocation2 + $0x640] sm:$0xff]
    %v314 = vld [vmem:[#allocation2 + $0x648] sm:$0xff]
    %v315 = vld [vmem:[#allocation2 + $0x650] sm:$0xff]
    %v316 = vld [vmem:[#allocation2 + $0x658] sm:$0xff]
    %v317 = vld [vmem:[#allocation2 + $0x660] sm:$0xff]
    %v318 = vld [vmem:[#allocation2 + $0x668] sm:$0xff]
    %v319 = vld [vmem:[#allocation2 + $0x670] sm:$0xff]
    %v320 = vld [vmem:[#allocation2 + $0x678] sm:$0xff]
    %v321 = vld [vmem:[#allocation2 + $0x680] sm:$0xff]
    %v322 = vld [vmem:[#allocation2 + $0x688] sm:$0xff]
    %v323 = vld [vmem:[#allocation2 + $0x690] sm:$0xff]
    %v324 = vld [vmem:[#allocation2 + $0x698] sm:$0xff]
    %v325 = vld [vmem:[#allocation2 + $0x6a0] sm:$0xff]
    %v326 = vld [vmem:[#allocation2 + $0x6a8] sm:$0xff]
    %v327 = vld [vmem:[#allocation2 + $0x6b0] sm:$0xff]
    %v328 = vld [vmem:[#allocation2 + $0x6b8] sm:$0xff]
    %v329 = vld [vmem:[#allocation2 + $0x6c0] sm:$0xff]
    %v330 = vld [vmem:[#allocation2 + $0x6c8] sm:$0xff]
    %v331 = vld [vmem:[#allocation2 + $0x6d0] sm:$0xff]
    %v332 = vld [vmem:[#allocation2 + $0x6d8] sm:$0xff]
    %v333 = vld [vmem:[#allocation2 + $0x6e0] sm:$0xff]
    %v334 = vld [vmem:[#allocation2 + $0x6e8] sm:$0xff]
    %v335 = vld [vmem:[#allocation2 + $0x6f0] sm:$0xff]
    %v336 = vld [vmem:[#allocation2 + $0x6f8] sm:$0xff]
    %v337 = vld [vmem:[#allocation2 + $0x700] sm:$0xff]
    %v338 = vld [vmem:[#allocation2 + $0x708] sm:$0xff]
    %v339 = vld [vmem:[#allocation2 + $0x710] sm:$0xff]
    %v340 = vld [vmem:[#allocation2 + $0x718] sm:$0xff]
    %v341 = vld [vmem:[#allocation2 + $0x720] sm:$0xff]
    %v342 = vld [vmem:[#allocation2 + $0x728] sm:$0xff]
    %v343 = vld [vmem:[#allocation2 + $0x730] sm:$0xff]
    %v344 = vld [vmem:[#allocation2 + $0x738] sm:$0xff]
    %v345 = vld [vmem:[#allocation2 + $0x740] sm:$0xff]
    %v346 = vld [vmem:[#allocation2 + $0x748] sm:$0xff]
    %v347 = vld [vmem:[#allocation2 + $0x750] sm:$0xff]
    %v348 = vld [vmem:[#allocation2 + $0x758] sm:$0xff]
    %v349 = vld [vmem:[#allocation2 + $0x760] sm:$0xff]
    %v350 = vld [vmem:[#allocation2 + $0x768] sm:$0xff]
    %v351 = vld [vmem:[#allocation2 + $0x770] sm:$0xff]
    %v352 = vld [vmem:[#allocation2 + $0x778] sm:$0xff]
    %v353 = vld [vmem:[#allocation2 + $0x780] sm:$0xff]
    %v354 = vld [vmem:[#allocation2 + $0x788] sm:$0xff]
    %v355 = vld [vmem:[#allocation2 + $0x790] sm:$0xff]
    %v356 = vld [vmem:[#allocation2 + $0x798] sm:$0xff]
    %v357 = vld [vmem:[#allocation2 + $0x7a0] sm:$0xff]
    %v358 = vld [vmem:[#allocation2 + $0x7a8] sm:$0xff]
    %v359 = vld [vmem:[#allocation2 + $0x7b0] sm:$0xff]
    %v360 = vld [vmem:[#allocation2 + $0x7b8] sm:$0xff]
    %v361 = vld [vmem:[#allocation2 + $0x7c0] sm:$0xff]
    %v362 = vld [vmem:[#allocation2 + $0x7c8] sm:$0xff]
    %v363 = vld [vmem:[#allocation2 + $0x7d0] sm:$0xff]
    %v364 = vld [vmem:[#allocation2 + $0x7d8] sm:$0xff]
    %v365 = vld [vmem:[#allocation2 + $0x7e0] sm:$0xff]
    %v366 = vld [vmem:[#allocation2 + $0x7e8] sm:$0xff]
    %v367 = vld [vmem:[#allocation2 + $0x7f0] sm:$0xff]
    %v368 = vld [vmem:[#allocation2 + $0x7f8] sm:$0xff]
    %v369 = vld [vmem:[#allocation2 + $0x800] sm:$0xff]
    %v370 = vld [vmem:[#allocation2 + $0x808] sm:$0xff]
    %v371 = vld [vmem:[#allocation2 + $0x810] sm:$0xff]
    %v372 = vld [vmem:[#allocation2 + $0x818] sm:$0xff]
    %v373 = vld [vmem:[#allocation2 + $0x820] sm:$0xff]
    %v374 = vld [vmem:[#allocation2 + $0x828] sm:$0xff]
    %v375 = vld [vmem:[#allocation2 + $0x830] sm:$0xff]
    %v376 = vld [vmem:[#allocation2 + $0x838] sm:$0xff]
    %v377 = vld [vmem:[#allocation2 + $0x840] sm:$0xff]
    %v378 = vld [vmem:[#allocation2 + $0x848] sm:$0xff]
    %v379 = vld [vmem:[#allocation2 + $0x850] sm:$0xff]
    %v380 = vld [vmem:[#allocation2 + $0x858] sm:$0xff]
    %v381 = vld [vmem:[#allocation2 + $0x860] sm:$0xff]
    %v382 = vld [vmem:[#allocation2 + $0x868] sm:$0xff]
    %v383 = vld [vmem:[#allocation2 + $0x870] sm:$0xff]
    %v384 = vld [vmem:[#allocation2 + $0x878] sm:$0xff]
    %v385 = vld [vmem:[#allocation2 + $0x880] sm:$0xff]
    %v386 = vld [vmem:[#allocation2 + $0x888] sm:$0xff]
    %v387 = vld [vmem:[#allocation2 + $0x890] sm:$0xff]
    %v388 = vld [vmem:[#allocation2 + $0x898] sm:$0xff]
    %v389 = vld [vmem:[#allocation2 + $0x8a0] sm:$0xff]
    %v390 = vld [vmem:[#allocation2 + $0x8a8] sm:$0xff]
    %v391 = vld [vmem:[#allocation2 + $0x8b0] sm:$0xff]
    %v392 = vld [vmem:[#allocation2 + $0x8b8] sm:$0xff]
    %v393 = vld [vmem:[#allocation2 + $0x8c0] sm:$0xff]
    %v394 = vld [vmem:[#allocation2 + $0x8c8] sm:$0xff]
    %v395 = vld [vmem:[#allocation2 + $0x8d0] sm:$0xff]
    %v396 = vld [vmem:[#allocation2 + $0x8d8] sm:$0xff]
    %v397 = vld [vmem:[#allocation2 + $0x8e0] sm:$0xff]
    %v398 = vld [vmem:[#allocation2 + $0x8e8] sm:$0xff]
    %v399 = vld [vmem:[#allocation2 + $0x8f0] sm:$0xff]
    %v400 = vld [vmem:[#allocation2 + $0x8f8] sm:$0xff]
    %v401 = vld [vmem:[#allocation2 + $0x900] sm:$0xff]
    %v402 = vld [vmem:[#allocation2 + $0x908] sm:$0xff]
    %v403 = vld [vmem:[#allocation2 + $0x910] sm:$0xff]
    %v404 = vld [vmem:[#allocation2 + $0x918] sm:$0xff]
    %v405 = vld [vmem:[#allocation2 + $0x920] sm:$0xff]
    %v406 = vld [vmem:[#allocation2 + $0x928] sm:$0xff]
    %v407 = vld [vmem:[#allocation2 + $0x930] sm:$0xff]
    %v408 = vld [vmem:[#allocation2 + $0x938] sm:$0xff]
    %v409 = vld [vmem:[#allocation2 + $0x940] sm:$0xff]
    %v410 = vld [vmem:[#allocation2 + $0x948] sm:$0xff]
    %v411 = vld [vmem:[#allocation2 + $0x950] sm:$0xff]
    %v412 = vld [vmem:[#allocation2 + $0x958] sm:$0xff]
    %v413 = vld [vmem:[#allocation2 + $0x960] sm:$0xff]
    %v414 = vld [vmem:[#allocation2 + $0x968] sm:$0xff]
    %v415 = vld [vmem:[#allocation2 + $0x970] sm:$0xff]
    %v416 = vld [vmem:[#allocation2 + $0x978] sm:$0xff]
    %v417 = vld [vmem:[#allocation2 + $0x980] sm:$0xff]
    %v418 = vld [vmem:[#allocation2 + $0x988] sm:$0xff]
    %v419 = vld [vmem:[#allocation2 + $0x990] sm:$0xff]
    %v420 = vld [vmem:[#allocation2 + $0x998] sm:$0xff]
    %v421 = vld [vmem:[#allocation2 + $0x9a0] sm:$0xff]
    %v422 = vld [vmem:[#allocation2 + $0x9a8] sm:$0xff]
    %v423 = vld [vmem:[#allocation2 + $0x9b0] sm:$0xff]
    %v424 = vld [vmem:[#allocation2 + $0x9b8] sm:$0xff]
    %v425 = vld [vmem:[#allocation2 + $0x9c0] sm:$0xff]
    %v426 = vld [vmem:[#allocation2 + $0x9c8] sm:$0xff]
    %v427 = vld [vmem:[#allocation2 + $0x9d0] sm:$0xff]
    %v428 = vld [vmem:[#allocation2 + $0x9d8] sm:$0xff]
    %v429 = vld [vmem:[#allocation2 + $0x9e0] sm:$0xff]
    %v430 = vld [vmem:[#allocation2 + $0x9e8] sm:$0xff]
    %v431 = vld [vmem:[#allocation2 + $0x9f0] sm:$0xff]
    %v432 = vld [vmem:[#allocation2 + $0x9f8] sm:$0xff]
    %v433 = vld [vmem:[#allocation2 + $0xa00] sm:$0xff]
    %v434 = vld [vmem:[#allocation2 + $0xa08] sm:$0xff]
    %v435 = vld [vmem:[#allocation2 + $0xa10] sm:$0xff]
    %v436 = vld [vmem:[#allocation2 + $0xa18] sm:$0xff]
    %v437 = vld [vmem:[#allocation2 + $0xa20] sm:$0xff]
    %v438 = vld [vmem:[#allocation2 + $0xa28] sm:$0xff]
    %v439 = vld [vmem:[#allocation2 + $0xa30] sm:$0xff]
    %v440 = vld [vmem:[#allocation2 + $0xa38] sm:$0xff]
    %v441 = vld [vmem:[#allocation2 + $0xa40] sm:$0xff]
    %v442 = vld [vmem:[#allocation2 + $0xa48] sm:$0xff]
    %v443 = vld [vmem:[#allocation2 + $0xa50] sm:$0xff]
    %v444 = vld [vmem:[#allocation2 + $0xa58] sm:$0xff]
    %v445 = vld [vmem:[#allocation2 + $0xa60] sm:$0xff]
    %v446 = vld [vmem:[#allocation2 + $0xa68] sm:$0xff]
    %v447 = vld [vmem:[#allocation2 + $0xa70] sm:$0xff]
    %v448 = vld [vmem:[#allocation2 + $0xa78] sm:$0xff]
    %v449 = vld [vmem:[#allocation2 + $0xa80] sm:$0xff]
    %v450 = vld [vmem:[#allocation2 + $0xa88] sm:$0xff]
    %v451 = vld [vmem:[#allocation2 + $0xa90] sm:$0xff]
    %v452 = vld [vmem:[#allocation2 + $0xa98] sm:$0xff]
    %v453 = vld [vmem:[#allocation2 + $0xaa0] sm:$0xff]
    %v454 = vld [vmem:[#allocation2 + $0xaa8] sm:$0xff]
    %v455 = vld [vmem:[#allocation2 + $0xab0] sm:$0xff]
    %v456 = vld [vmem:[#allocation2 + $0xab8] sm:$0xff]
    %v457 = vld [vmem:[#allocation2 + $0xac0] sm:$0xff]
    %v458 = vld [vmem:[#allocation2 + $0xac8] sm:$0xff]
    %v459 = vld [vmem:[#allocation2 + $0xad0] sm:$0xff]
    %v460 = vld [vmem:[#allocation2 + $0xad8] sm:$0xff]
    %v461 = vld [vmem:[#allocation2 + $0xae0] sm:$0xff]
    %v462 = vld [vmem:[#allocation2 + $0xae8] sm:$0xff]
    %v463 = vld [vmem:[#allocation2 + $0xaf0] sm:$0xff]
    %v464 = vld [vmem:[#allocation2 + $0xaf8] sm:$0xff]
    %v465 = vld [vmem:[#allocation2 + $0xb00] sm:$0xff]
    %v466 = vld [vmem:[#allocation2 + $0xb08] sm:$0xff]
    %v467 = vld [vmem:[#allocation2 + $0xb10] sm:$0xff]
    %v468 = vld [vmem:[#allocation2 + $0xb18] sm:$0xff]
    %v469 = vld [vmem:[#allocation2 + $0xb20] sm:$0xff]
    %v470 = vld [vmem:[#allocation2 + $0xb28] sm:$0xff]
    %v471 = vld [vmem:[#allocation2 + $0xb30] sm:$0xff]
    %v472 = vld [vmem:[#allocation2 + $0xb38] sm:$0xff]
    %v473 = vld [vmem:[#allocation2 + $0xb40] sm:$0xff]
    %v474 = vld [vmem:[#allocation2 + $0xb48] sm:$0xff]
    %v475 = vld [vmem:[#allocation2 + $0xb50] sm:$0xff]
    %v476 = vld [vmem:[#allocation2 + $0xb58] sm:$0xff]
    %v477 = vld [vmem:[#allocation2 + $0xb60] sm:$0xff]
    %v478 = vld [vmem:[#allocation2 + $0xb68] sm:$0xff]
    %v479 = vld [vmem:[#allocation2 + $0xb70] sm:$0xff]
    %v480 = vld [vmem:[#allocation2 + $0xb78] sm:$0xff]
    %v481 = vld [vmem:[#allocation2 + $0xb80] sm:$0xff]
    %v482 = vld [vmem:[#allocation2 + $0xb88] sm:$0xff]
    %v483 = vld [vmem:[#allocation2 + $0xb90] sm:$0xff]
    %v484 = vld [vmem:[#allocation2 + $0xb98] sm:$0xff]
    %v485 = vld [vmem:[#allocation2 + $0xba0] sm:$0xff]
    %v486 = vld [vmem:[#allocation2 + $0xba8] sm:$0xff]
    %v487 = vld [vmem:[#allocation2 + $0xbb0] sm:$0xff]
    %v488 = vld [vmem:[#allocation2 + $0xbb8] sm:$0xff]
    %v489 = vld [vmem:[#allocation2 + $0xbc0] sm:$0xff]
    %v490 = vld [vmem:[#allocation2 + $0xbc8] sm:$0xff]
    %v491 = vld [vmem:[#allocation2 + $0xbd0] sm:$0xff]
    %v492 = vld [vmem:[#allocation2 + $0xbd8] sm:$0xff]
    %v493 = vld [vmem:[#allocation2 + $0xbe0] sm:$0xff]
    %v494 = vld [vmem:[#allocation2 + $0xbe8] sm:$0xff]
    %v495 = vld [vmem:[#allocation2 + $0xbf0] sm:$0xff]
    %v496 = vld [vmem:[#allocation2 + $0xbf8] sm:$0xff]
    %v497 = vld [vmem:[#allocation2 + $0xc00] sm:$0xff]
    %v498 = vld [vmem:[#allocation2 + $0xc08] sm:$0xff]
    %v499 = vld [vmem:[#allocation2 + $0xc10] sm:$0xff]
    %v500 = vld [vmem:[#allocation2 + $0xc18] sm:$0xff]
    %v501 = vld [vmem:[#allocation2 + $0xc20] sm:$0xff]
    %v502 = vld [vmem:[#allocation2 + $0xc28] sm:$0xff]
    %v503 = vld [vmem:[#allocation2 + $0xc30] sm:$0xff]
    %v504 = vld [vmem:[#allocation2 + $0xc38] sm:$0xff]
    %v505 = vld [vmem:[#allocation2 + $0xc40] sm:$0xff]
    %v506 = vld [vmem:[#allocation2 + $0xc48] sm:$0xff]
    %v507 = vld [vmem:[#allocation2 + $0xc50] sm:$0xff]
    %v508 = vld [vmem:[#allocation2 + $0xc58] sm:$0xff]
    %v509 = vld [vmem:[#allocation2 + $0xc60] sm:$0xff]
    %v510 = vld [vmem:[#allocation2 + $0xc68] sm:$0xff]
    %v511 = vld [vmem:[#allocation2 + $0xc70] sm:$0xff]
    %v512 = vld [vmem:[#allocation2 + $0xc78] sm:$0xff]
    %v513 = vld [vmem:[#allocation2 + $0xc80] sm:$0xff]
    %v514 = vld [vmem:[#allocation2 + $0xc88] sm:$0xff]
    %v515 = vld [vmem:[#allocation2 + $0xc90] sm:$0xff]
    %v516 = vld [vmem:[#allocation2 + $0xc98] sm:$0xff]
    %v517 = vld [vmem:[#allocation2 + $0xca0] sm:$0xff]
    %v518 = vld [vmem:[#allocation2 + $0xca8] sm:$0xff]
    %v519 = vld [vmem:[#allocation2 + $0xcb0] sm:$0xff]
    %v520 = vld [vmem:[#allocation2 + $0xcb8] sm:$0xff]
    %v521 = vld [vmem:[#allocation2 + $0xcc0] sm:$0xff]
    %v522 = vld [vmem:[#allocation2 + $0xcc8] sm:$0xff]
    %v523 = vld [vmem:[#allocation2 + $0xcd0] sm:$0xff]
    %v524 = vld [vmem:[#allocation2 + $0xcd8] sm:$0xff]
    %v525 = vld [vmem:[#allocation2 + $0xce0] sm:$0xff]
    %v526 = vld [vmem:[#allocation2 + $0xce8] sm:$0xff]
    %v527 = vld [vmem:[#allocation2 + $0xcf0] sm:$0xff]
    %v528 = vld [vmem:[#allocation2 + $0xcf8] sm:$0xff]
    %v529 = vld [vmem:[#allocation2 + $0xd00] sm:$0xff]
    %v530 = vld [vmem:[#allocation2 + $0xd08] sm:$0xff]
    %v531 = vld [vmem:[#allocation2 + $0xd10] sm:$0xff]
    %v532 = vld [vmem:[#allocation2 + $0xd18] sm:$0xff]
    %v533 = vld [vmem:[#allocation2 + $0xd20] sm:$0xff]
    %v534 = vld [vmem:[#allocation2 + $0xd28] sm:$0xff]
    %v535 = vld [vmem:[#allocation2 + $0xd30] sm:$0xff]
    %v536 = vld [vmem:[#allocation2 + $0xd38] sm:$0xff]
    %v537 = vld [vmem:[#allocation2 + $0xd40] sm:$0xff]
    %v538 = vld [vmem:[#allocation2 + $0xd48] sm:$0xff]
    %v539 = vld [vmem:[#allocation2 + $0xd50] sm:$0xff]
    %v540 = vld [vmem:[#allocation2 + $0xd58] sm:$0xff]
    %v541 = vld [vmem:[#allocation2 + $0xd60] sm:$0xff]
    %v542 = vld [vmem:[#allocation2 + $0xd68] sm:$0xff]
    %v543 = vld [vmem:[#allocation2 + $0xd70] sm:$0xff]
    %v544 = vld [vmem:[#allocation2 + $0xd78] sm:$0xff]
    %v545 = vld [vmem:[#allocation2 + $0xd80] sm:$0xff]
    %v546 = vld [vmem:[#allocation2 + $0xd88] sm:$0xff]
    %v547 = vld [vmem:[#allocation2 + $0xd90] sm:$0xff]
    %v548 = vld [vmem:[#allocation2 + $0xd98] sm:$0xff]
    %v549 = vld [vmem:[#allocation2 + $0xda0] sm:$0xff]
    %v550 = vld [vmem:[#allocation2 + $0xda8] sm:$0xff]
    %v551 = vld [vmem:[#allocation2 + $0xdb0] sm:$0xff]
    %v552 = vld [vmem:[#allocation2 + $0xdb8] sm:$0xff]
    %v553 = vld [vmem:[#allocation2 + $0xdc0] sm:$0xff]
    %v554 = vld [vmem:[#allocation2 + $0xdc8] sm:$0xff]
    %v555 = vld [vmem:[#allocation2 + $0xdd0] sm:$0xff]
    %v556 = vld [vmem:[#allocation2 + $0xdd8] sm:$0xff]
    %v557 = vld [vmem:[#allocation2 + $0xde0] sm:$0xff]
    %v558 = vld [vmem:[#allocation2 + $0xde8] sm:$0xff]
    %v559 = vld [vmem:[#allocation2 + $0xdf0] sm:$0xff]
    %v560 = vld [vmem:[#allocation2 + $0xdf8] sm:$0xff]
    %v561 = vld [vmem:[#allocation2 + $0xe00] sm:$0xff]
    %v562 = vld [vmem:[#allocation2 + $0xe08] sm:$0xff]
    %v563 = vld [vmem:[#allocation2 + $0xe10] sm:$0xff]
    %v564 = vld [vmem:[#allocation2 + $0xe18] sm:$0xff]
    %v565 = vld [vmem:[#allocation2 + $0xe20] sm:$0xff]
    %v566 = vld [vmem:[#allocation2 + $0xe28] sm:$0xff]
    %v567 = vld [vmem:[#allocation2 + $0xe30] sm:$0xff]
    %v568 = vld [vmem:[#allocation2 + $0xe38] sm:$0xff]
    %v569 = vld [vmem:[#allocation2 + $0xe40] sm:$0xff]
    %v570 = vld [vmem:[#allocation2 + $0xe48] sm:$0xff]
    %v571 = vld [vmem:[#allocation2 + $0xe50] sm:$0xff]
    %v572 = vld [vmem:[#allocation2 + $0xe58] sm:$0xff]
    %v573 = vld [vmem:[#allocation2 + $0xe60] sm:$0xff]
    %v574 = vld [vmem:[#allocation2 + $0xe68] sm:$0xff]
    %v575 = vld [vmem:[#allocation2 + $0xe70] sm:$0xff]
    %v576 = vld [vmem:[#allocation2 + $0xe78] sm:$0xff]
    %v577 = vld [vmem:[#allocation2 + $0xe80] sm:$0xff]
    %v578 = vld [vmem:[#allocation2 + $0xe88] sm:$0xff]
    %v579 = vld [vmem:[#allocation2 + $0xe90] sm:$0xff]
    %v580 = vld [vmem:[#allocation2 + $0xe98] sm:$0xff]
    %v581 = vld [vmem:[#allocation2 + $0xea0] sm:$0xff]
    %v582 = vld [vmem:[#allocation2 + $0xea8] sm:$0xff]
    %v583 = vld [vmem:[#allocation2 + $0xeb0] sm:$0xff]
    %v584 = vld [vmem:[#allocation2 + $0xeb8] sm:$0xff]
    %v585 = vld [vmem:[#allocation2 + $0xec0] sm:$0xff]
    %v586 = vld [vmem:[#allocation2 + $0xec8] sm:$0xff]
    %v587 = vld [vmem:[#allocation2 + $0xed0] sm:$0xff]
    %v588 = vld [vmem:[#allocation2 + $0xed8] sm:$0xff]
    %v589 = vld [vmem:[#allocation2 + $0xee0] sm:$0xff]
    %v590 = vld [vmem:[#allocation2 + $0xee8] sm:$0xff]
    %v591 = vld [vmem:[#allocation2 + $0xef0] sm:$0xff]
    %v592 = vld [vmem:[#allocation2 + $0xef8] sm:$0xff]
    %v593 = vld [vmem:[#allocation2 + $0xf00] sm:$0xff]
    %v594 = vld [vmem:[#allocation2 + $0xf08] sm:$0xff]
    %v595 = vld [vmem:[#allocation2 + $0xf10] sm:$0xff]
    %v596 = vld [vmem:[#allocation2 + $0xf18] sm:$0xff]
    %v597 = vld [vmem:[#allocation2 + $0xf20] sm:$0xff]
    %v598 = vld [vmem:[#allocation2 + $0xf28] sm:$0xff]
    %v599 = vld [vmem:[#allocation2 + $0xf30] sm:$0xff]
    %v600 = vld [vmem:[#allocation2 + $0xf38] sm:$0xff]
    %v601 = vld [vmem:[#allocation2 + $0xf40] sm:$0xff]
    %v602 = vld [vmem:[#allocation2 + $0xf48] sm:$0xff]
    %v603 = vld [vmem:[#allocation2 + $0xf50] sm:$0xff]
    %v604 = vld [vmem:[#allocation2 + $0xf58] sm:$0xff]
    %v605 = vld [vmem:[#allocation2 + $0xf60] sm:$0xff]
    %v606 = vld [vmem:[#allocation2 + $0xf68] sm:$0xff]
    %v607 = vld [vmem:[#allocation2 + $0xf70] sm:$0xff]
    %v608 = vld [vmem:[#allocation2 + $0xf78] sm:$0xff]
    %v609 = vld [vmem:[#allocation2 + $0xf80] sm:$0xff]
    %v610 = vld [vmem:[#allocation2 + $0xf88] sm:$0xff]
    %v611 = vld [vmem:[#allocation2 + $0xf90] sm:$0xff]
    %v612 = vld [vmem:[#allocation2 + $0xf98] sm:$0xff]
    %v613 = vld [vmem:[#allocation2 + $0xfa0] sm:$0xff]
    %v614 = vld [vmem:[#allocation2 + $0xfa8] sm:$0xff]
    %v615 = vld [vmem:[#allocation2 + $0xfb0] sm:$0xff]
    %v616 = vld [vmem:[#allocation2 + $0xfb8] sm:$0xff]
    %v617 = vld [vmem:[#allocation2 + $0xfc0] sm:$0xff]
    %v618 = vld [vmem:[#allocation2 + $0xfc8] sm:$0xff]
    %v619 = vld [vmem:[#allocation2 + $0xfd0] sm:$0xff]
    %v620 = vld [vmem:[#allocation2 + $0xfd8] sm:$0xff]
    %v621 = vld [vmem:[#allocation2 + $0xfe0] sm:$0xff]
    %v622 = vld [vmem:[#allocation2 + $0xfe8] sm:$0xff]
    %v623 = vld [vmem:[#allocation2 + $0xff0] sm:$0xff]
    %v624 = vld [vmem:[#allocation2 + $0xff8] sm:$0xff]
    %v625 = vld [vmem:[#allocation2 + $0x1000] sm:$0xff]
    %v626 = vld [vmem:[#allocation2 + $0x1008] sm:$0xff]
    %v627 = vld [vmem:[#allocation2 + $0x1010] sm:$0xff]
    %v628 = vld [vmem:[#allocation2 + $0x1018] sm:$0xff]
    %v629 = vld [vmem:[#allocation2 + $0x1020] sm:$0xff]
    %v630 = vld [vmem:[#allocation2 + $0x1028] sm:$0xff]
    %v631 = vld [vmem:[#allocation2 + $0x1030] sm:$0xff]
    %v632 = vld [vmem:[#allocation2 + $0x1038] sm:$0xff]
    %v633 = vld [vmem:[#allocation2 + $0x1040] sm:$0xff]
    %v634 = vld [vmem:[#allocation2 + $0x1048] sm:$0xff]
    %v635 = vld [vmem:[#allocation2 + $0x1050] sm:$0xff]
    %v636 = vld [vmem:[#allocation2 + $0x1058] sm:$0xff]
    %v637 = vld [vmem:[#allocation2 + $0x1060] sm:$0xff]
    %v638 = vld [vmem:[#allocation2 + $0x1068] sm:$0xff]
    %v639 = vld [vmem:[#allocation2 + $0x1070] sm:$0xff]
    %v640 = vld [vmem:[#allocation2 + $0x1078] sm:$0xff]
    %v641 = vld [vmem:[#allocation2 + $0x1080] sm:$0xff]
    %v642 = vld [vmem:[#allocation2 + $0x1088] sm:$0xff]
    %v643 = vld [vmem:[#allocation2 + $0x1090] sm:$0xff]
    %v644 = vld [vmem:[#allocation2 + $0x1098] sm:$0xff]
    %v645 = vld [vmem:[#allocation2 + $0x10a0] sm:$0xff]
    %v646 = vld [vmem:[#allocation2 + $0x10a8] sm:$0xff]
    %v647 = vld [vmem:[#allocation2 + $0x10b0] sm:$0xff]
    %v648 = vld [vmem:[#allocation2 + $0x10b8] sm:$0xff]
    %v649 = vld [vmem:[#allocation2 + $0x10c0] sm:$0xff]
    %v650 = vld [vmem:[#allocation2 + $0x10c8] sm:$0xff]
    %v651 = vld [vmem:[#allocation2 + $0x10d0] sm:$0xff]
    %v652 = vld [vmem:[#allocation2 + $0x10d8] sm:$0xff]
    %v653 = vld [vmem:[#allocation2 + $0x10e0] sm:$0xff]
    %v654 = vld [vmem:[#allocation2 + $0x10e8] sm:$0xff]
    %v655 = vld [vmem:[#allocation2 + $0x10f0] sm:$0xff]
    %v656 = vld [vmem:[#allocation2 + $0x10f8] sm:$0xff]
    %v657 = vld [vmem:[#allocation2 + $0x1100] sm:$0xff]
    %v658 = vld [vmem:[#allocation2 + $0x1108] sm:$0xff]
    %v659 = vld [vmem:[#allocation2 + $0x1110] sm:$0xff]
    %v660 = vld [vmem:[#allocation2 + $0x1118] sm:$0xff]
    %v661 = vld [vmem:[#allocation2 + $0x1120] sm:$0xff]
    %v662 = vld [vmem:[#allocation2 + $0x1128] sm:$0xff]
    %v663 = vld [vmem:[#allocation2 + $0x1130] sm:$0xff]
    %v664 = vld [vmem:[#allocation2 + $0x1138] sm:$0xff]
    %v665 = vld [vmem:[#allocation2 + $0x1140] sm:$0xff]
    %v666 = vld [vmem:[#allocation2 + $0x1148] sm:$0xff]
    %v667 = vld [vmem:[#allocation2 + $0x1150] sm:$0xff]
    %v668 = vld [vmem:[#allocation2 + $0x1158] sm:$0xff]
    %v669 = vld [vmem:[#allocation2 + $0x1160] sm:$0xff]
    %v670 = vld [vmem:[#allocation2 + $0x1168] sm:$0xff]
    %v671 = vld [vmem:[#allocation2 + $0x1170] sm:$0xff]
    %v672 = vld [vmem:[#allocation2 + $0x1178] sm:$0xff]
    %v673 = vld [vmem:[#allocation2 + $0x1180] sm:$0xff]
    %v674 = vld [vmem:[#allocation2 + $0x1188] sm:$0xff]
    %v675 = vld [vmem:[#allocation2 + $0x1190] sm:$0xff]
    %v676 = vld [vmem:[#allocation2 + $0x1198] sm:$0xff]
    %v677 = vld [vmem:[#allocation2 + $0x11a0] sm:$0xff]
    %v678 = vld [vmem:[#allocation2 + $0x11a8] sm:$0xff]
    %v679 = vld [vmem:[#allocation2 + $0x11b0] sm:$0xff]
    %v680 = vld [vmem:[#allocation2 + $0x11b8] sm:$0xff]
    %v681 = vld [vmem:[#allocation2 + $0x11c0] sm:$0xff]
    %v682 = vld [vmem:[#allocation2 + $0x11c8] sm:$0xff]
    %v683 = vld [vmem:[#allocation2 + $0x11d0] sm:$0xff]
    %v684 = vld [vmem:[#allocation2 + $0x11d8] sm:$0xff]
    %v685 = vld [vmem:[#allocation2 + $0x11e0] sm:$0xff]
    %v686 = vld [vmem:[#allocation2 + $0x11e8] sm:$0xff]
    %v687 = vld [vmem:[#allocation2 + $0x11f0] sm:$0xff]
    %v688 = vld [vmem:[#allocation2 + $0x11f8] sm:$0xff]
    %v689 = vld [vmem:[#allocation2 + $0x1200] sm:$0xff]
    %v690 = vld [vmem:[#allocation2 + $0x1208] sm:$0xff]
    %v691 = vld [vmem:[#allocation2 + $0x1210] sm:$0xff]
    %v692 = vld [vmem:[#allocation2 + $0x1218] sm:$0xff]
    %v693 = vld [vmem:[#allocation2 + $0x1220] sm:$0xff]
    %v694 = vld [vmem:[#allocation2 + $0x1228] sm:$0xff]
    %v695 = vld [vmem:[#allocation2 + $0x1230] sm:$0xff]
    %v696 = vld [vmem:[#allocation2 + $0x1238] sm:$0xff]
    %v697 = vld [vmem:[#allocation2 + $0x1240] sm:$0xff]
    %v698 = vld [vmem:[#allocation2 + $0x1248] sm:$0xff]
    %v699 = vld [vmem:[#allocation2 + $0x1250] sm:$0xff]
    %v700 = vld [vmem:[#allocation2 + $0x1258] sm:$0xff]
    %v701 = vld [vmem:[#allocation2 + $0x1260] sm:$0xff]
    %v702 = vld [vmem:[#allocation2 + $0x1268] sm:$0xff]
    %v703 = vld [vmem:[#allocation2 + $0x1270] sm:$0xff]
    %v704 = vld [vmem:[#allocation2 + $0x1278] sm:$0xff]
    %v705 = vld [vmem:[#allocation2 + $0x1280] sm:$0xff]
    %v706 = vld [vmem:[#allocation2 + $0x1288] sm:$0xff]
    %v707 = vld [vmem:[#allocation2 + $0x1290] sm:$0xff]
    %v708 = vld [vmem:[#allocation2 + $0x1298] sm:$0xff]
    %v709 = vld [vmem:[#allocation2 + $0x12a0] sm:$0xff]
    %v710 = vld [vmem:[#allocation2 + $0x12a8] sm:$0xff]
    %v711 = vld [vmem:[#allocation2 + $0x12b0] sm:$0xff]
    %v712 = vld [vmem:[#allocation2 + $0x12b8] sm:$0xff]
    %v713 = vld [vmem:[#allocation2 + $0x12c0] sm:$0xff]
    %v714 = vld [vmem:[#allocation2 + $0x12c8] sm:$0xff]
    %v715 = vld [vmem:[#allocation2 + $0x12d0] sm:$0xff]
    %v716 = vld [vmem:[#allocation2 + $0x12d8] sm:$0xff]
    %v717 = vld [vmem:[#allocation2 + $0x12e0] sm:$0xff]
    %v718 = vld [vmem:[#allocation2 + $0x12e8] sm:$0xff]
    %v719 = vld [vmem:[#allocation2 + $0x12f0] sm:$0xff]
    %v720 = vld [vmem:[#allocation2 + $0x12f8] sm:$0xff]
    %v721 = vld [vmem:[#allocation2 + $0x1300] sm:$0xff]
    %v722 = vld [vmem:[#allocation2 + $0x1308] sm:$0xff]
    %v723 = vld [vmem:[#allocation2 + $0x1310] sm:$0xff]
    %v724 = vld [vmem:[#allocation2 + $0x1318] sm:$0xff]
    %v725 = vld [vmem:[#allocation2 + $0x1320] sm:$0xff]
    %v726 = vld [vmem:[#allocation2 + $0x1328] sm:$0xff]
    %v727 = vld [vmem:[#allocation2 + $0x1330] sm:$0xff]
    %v728 = vld [vmem:[#allocation2 + $0x1338] sm:$0xff]
    %v729 = vld [vmem:[#allocation2 + $0x1340] sm:$0xff]
    %v730 = vld [vmem:[#allocation2 + $0x1348] sm:$0xff]
    %v731 = vld [vmem:[#allocation2 + $0x1350] sm:$0xff]
    %v732 = vld [vmem:[#allocation2 + $0x1358] sm:$0xff]
    %v733 = vld [vmem:[#allocation2 + $0x1360] sm:$0xff]
    %v734 = vld [vmem:[#allocation2 + $0x1368] sm:$0xff]
    %v735 = vld [vmem:[#allocation2 + $0x1370] sm:$0xff]
    %v736 = vld [vmem:[#allocation2 + $0x1378] sm:$0xff]
    %v737 = vld [vmem:[#allocation2 + $0x1380] sm:$0xff]
    %v738 = vld [vmem:[#allocation2 + $0x1388] sm:$0xff]
    %v739 = vld [vmem:[#allocation2 + $0x1390] sm:$0xff]
    %v740 = vld [vmem:[#allocation2 + $0x1398] sm:$0xff]
    %v741 = vld [vmem:[#allocation2 + $0x13a0] sm:$0xff]
    %v742 = vld [vmem:[#allocation2 + $0x13a8] sm:$0xff]
    %v743 = vld [vmem:[#allocation2 + $0x13b0] sm:$0xff]
    %v744 = vld [vmem:[#allocation2 + $0x13b8] sm:$0xff]
    %v745 = vld [vmem:[#allocation2 + $0x13c0] sm:$0xff]
    %v746 = vld [vmem:[#allocation2 + $0x13c8] sm:$0xff]
    %v747 = vld [vmem:[#allocation2 + $0x13d0] sm:$0xff]
    %v748 = vld [vmem:[#allocation2 + $0x13d8] sm:$0xff]
    %v749 = vld [vmem:[#allocation2 + $0x13e0] sm:$0xff]
    %v750 = vld [vmem:[#allocation2 + $0x13e8] sm:$0xff]
    %v751 = vld [vmem:[#allocation2 + $0x13f0] sm:$0xff]
    %v752 = vld [vmem:[#allocation2 + $0x13f8] sm:$0xff]
    %v753 = vld [vmem:[#allocation2 + $0x1400] sm:$0xff]
    %v754 = vld [vmem:[#allocation2 + $0x1408] sm:$0xff]
    %v755 = vld [vmem:[#allocation2 + $0x1410] sm:$0xff]
    %v756 = vld [vmem:[#allocation2 + $0x1418] sm:$0xff]
    %v757 = vld [vmem:[#allocation2 + $0x1420] sm:$0xff]
    %v758 = vld [vmem:[#allocation2 + $0x1428] sm:$0xff]
    %v759 = vld [vmem:[#allocation2 + $0x1430] sm:$0xff]
    %v760 = vld [vmem:[#allocation2 + $0x1438] sm:$0xff]
    %v761 = vld [vmem:[#allocation2 + $0x1440] sm:$0xff]
    %v762 = vld [vmem:[#allocation2 + $0x1448] sm:$0xff]
    %v763 = vld [vmem:[#allocation2 + $0x1450] sm:$0xff]
    %v764 = vld [vmem:[#allocation2 + $0x1458] sm:$0xff]
    %v765 = vld [vmem:[#allocation2 + $0x1460] sm:$0xff]
    %v766 = vld [vmem:[#allocation2 + $0x1468] sm:$0xff]
    %v767 = vld [vmem:[#allocation2 + $0x1470] sm:$0xff]
    %v768 = vld [vmem:[#allocation2 + $0x1478] sm:$0xff]
    %v769 = vld [vmem:[#allocation2 + $0x1480] sm:$0xff]
    %v770 = vld [vmem:[#allocation2 + $0x1488] sm:$0xff]
    %v771 = vld [vmem:[#allocation2 + $0x1490] sm:$0xff]
    %v772 = vld [vmem:[#allocation2 + $0x1498] sm:$0xff]
    %v773 = vld [vmem:[#allocation2 + $0x14a0] sm:$0xff]
    %v774 = vld [vmem:[#allocation2 + $0x14a8] sm:$0xff]
    %v775 = vld [vmem:[#allocation2 + $0x14b0] sm:$0xff]
    %v776 = vld [vmem:[#allocation2 + $0x14b8] sm:$0xff]
    %v777 = vld [vmem:[#allocation2 + $0x14c0] sm:$0xff]
    %v778 = vld [vmem:[#allocation2 + $0x14c8] sm:$0xff]
    %v779 = vld [vmem:[#allocation2 + $0x14d0] sm:$0xff]
    %v780 = vld [vmem:[#allocation2 + $0x14d8] sm:$0xff]
    %v781 = vld [vmem:[#allocation2 + $0x14e0] sm:$0xff]
    %v782 = vld [vmem:[#allocation2 + $0x14e8] sm:$0xff]
    %v783 = vld [vmem:[#allocation2 + $0x14f0] sm:$0xff]
    %v784 = vld [vmem:[#allocation2 + $0x14f8] sm:$0xff]
    %v785 = vld [vmem:[#allocation2 + $0x1500] sm:$0xff]
    %v786 = vld [vmem:[#allocation2 + $0x1508] sm:$0xff]
    %v787 = vld [vmem:[#allocation2 + $0x1510] sm:$0xff]
    %v788 = vld [vmem:[#allocation2 + $0x1518] sm:$0xff]
    %v789 = vld [vmem:[#allocation2 + $0x1520] sm:$0xff]
    %v790 = vld [vmem:[#allocation2 + $0x1528] sm:$0xff]
    %v791 = vld [vmem:[#allocation2 + $0x1530] sm:$0xff]
    %v792 = vld [vmem:[#allocation2 + $0x1538] sm:$0xff]
    %v793 = vld [vmem:[#allocation2 + $0x1540] sm:$0xff]
    %v794 = vld [vmem:[#allocation2 + $0x1548] sm:$0xff]
    %v795 = vld [vmem:[#allocation2 + $0x1550] sm:$0xff]
    %v796 = vld [vmem:[#allocation2 + $0x1558] sm:$0xff]
    %v797 = vld [vmem:[#allocation2 + $0x1560] sm:$0xff]
    %v798 = vld [vmem:[#allocation2 + $0x1568] sm:$0xff]
    %v799 = vld [vmem:[#allocation2 + $0x1570] sm:$0xff]
    %v800 = vld [vmem:[#allocation2 + $0x1578] sm:$0xff]
    %v801 = vld [vmem:[#allocation2 + $0x1580] sm:$0xff]
    %v802 = vld [vmem:[#allocation2 + $0x1588] sm:$0xff]
    %v803 = vld [vmem:[#allocation2 + $0x1590] sm:$0xff]
    %v804 = vld [vmem:[#allocation2 + $0x1598] sm:$0xff]
    %v805 = vld [vmem:[#allocation2 + $0x15a0] sm:$0xff]
    %v806 = vld [vmem:[#allocation2 + $0x15a8] sm:$0xff]
    %v807 = vld [vmem:[#allocation2 + $0x15b0] sm:$0xff]
    %v808 = vld [vmem:[#allocation2 + $0x15b8] sm:$0xff]
    %v809 = vld [vmem:[#allocation2 + $0x15c0] sm:$0xff]
    %v810 = vld [vmem:[#allocation2 + $0x15c8] sm:$0xff]
    %v811 = vld [vmem:[#allocation2 + $0x15d0] sm:$0xff]
    %v812 = vld [vmem:[#allocation2 + $0x15d8] sm:$0xff]
    %v813 = vld [vmem:[#allocation2 + $0x15e0] sm:$0xff]
    %v814 = vld [vmem:[#allocation2 + $0x15e8] sm:$0xff]
    %v815 = vld [vmem:[#allocation2 + $0x15f0] sm:$0xff]
    %v816 = vld [vmem:[#allocation2 + $0x15f8] sm:$0xff]
    %v817 = vld [vmem:[#allocation2 + $0x1600] sm:$0xff]
    %v818 = vld [vmem:[#allocation2 + $0x1608] sm:$0xff]
    %v819 = vld [vmem:[#allocation2 + $0x1610] sm:$0xff]
    %v820 = vld [vmem:[#allocation2 + $0x1618] sm:$0xff]
    %v821 = vld [vmem:[#allocation2 + $0x1620] sm:$0xff]
    %v822 = vld [vmem:[#allocation2 + $0x1628] sm:$0xff]
    %v823 = vld [vmem:[#allocation2 + $0x1630] sm:$0xff]
    %v824 = vld [vmem:[#allocation2 + $0x1638] sm:$0xff]
    %v825 = vld [vmem:[#allocation2 + $0x1640] sm:$0xff]
    %v826 = vld [vmem:[#allocation2 + $0x1648] sm:$0xff]
    %v827 = vld [vmem:[#allocation2 + $0x1650] sm:$0xff]
    %v828 = vld [vmem:[#allocation2 + $0x1658] sm:$0xff]
    %v829 = vld [vmem:[#allocation2 + $0x1660] sm:$0xff]
    %v830 = vld [vmem:[#allocation2 + $0x1668] sm:$0xff]
    %v831 = vld [vmem:[#allocation2 + $0x1670] sm:$0xff]
    %v832 = vld [vmem:[#allocation2 + $0x1678] sm:$0xff]
    %v833 = vld [vmem:[#allocation2 + $0x1680] sm:$0xff]
    %v834 = vld [vmem:[#allocation2 + $0x1688] sm:$0xff]
    %v835 = vld [vmem:[#allocation2 + $0x1690] sm:$0xff]
    %v836 = vld [vmem:[#allocation2 + $0x1698] sm:$0xff]
    %v837 = vld [vmem:[#allocation2 + $0x16a0] sm:$0xff]
    %v838 = vld [vmem:[#allocation2 + $0x16a8] sm:$0xff]
    %v839 = vld [vmem:[#allocation2 + $0x16b0] sm:$0xff]
    %v840 = vld [vmem:[#allocation2 + $0x16b8] sm:$0xff]
    %v841 = vld [vmem:[#allocation2 + $0x16c0] sm:$0xff]
    %v842 = vld [vmem:[#allocation2 + $0x16c8] sm:$0xff]
    %v843 = vld [vmem:[#allocation2 + $0x16d0] sm:$0xff]
    %v844 = vld [vmem:[#allocation2 + $0x16d8] sm:$0xff]
    %v845 = vld [vmem:[#allocation2 + $0x16e0] sm:$0xff]
    %v846 = vld [vmem:[#allocation2 + $0x16e8] sm:$0xff]
    %v847 = vld [vmem:[#allocation2 + $0x16f0] sm:$0xff]
    %v848 = vld [vmem:[#allocation2 + $0x16f8] sm:$0xff]
    %v849 = vld [vmem:[#allocation2 + $0x1700] sm:$0xff]
    %v850 = vld [vmem:[#allocation2 + $0x1708] sm:$0xff]
    %v851 = vld [vmem:[#allocation2 + $0x1710] sm:$0xff]
    %v852 = vld [vmem:[#allocation2 + $0x1718] sm:$0xff]
    %v853 = vld [vmem:[#allocation2 + $0x1720] sm:$0xff]
    %v854 = vld [vmem:[#allocation2 + $0x1728] sm:$0xff]
    %v855 = vld [vmem:[#allocation2 + $0x1730] sm:$0xff]
    %v856 = vld [vmem:[#allocation2 + $0x1738] sm:$0xff]
    %v857 = vld [vmem:[#allocation2 + $0x1740] sm:$0xff]
    %v858 = vld [vmem:[#allocation2 + $0x1748] sm:$0xff]
    %v859 = vld [vmem:[#allocation2 + $0x1750] sm:$0xff]
    %v860 = vld [vmem:[#allocation2 + $0x1758] sm:$0xff]
    %v861 = vld [vmem:[#allocation2 + $0x1760] sm:$0xff]
    %v862 = vld [vmem:[#allocation2 + $0x1768] sm:$0xff]
    %v863 = vld [vmem:[#allocation2 + $0x1770] sm:$0xff]
    %v864 = vld [vmem:[#allocation2 + $0x1778] sm:$0xff]
    %v865 = vld [vmem:[#allocation2 + $0x1780] sm:$0xff]
    %v866 = vld [vmem:[#allocation2 + $0x1788] sm:$0xff]
    %v867 = vld [vmem:[#allocation2 + $0x1790] sm:$0xff]
    %v868 = vld [vmem:[#allocation2 + $0x1798] sm:$0xff]
    %v869 = vld [vmem:[#allocation2 + $0x17a0] sm:$0xff]
    %v870 = vld [vmem:[#allocation2 + $0x17a8] sm:$0xff]
    %v871 = vld [vmem:[#allocation2 + $0x17b0] sm:$0xff]
    %v872 = vld [vmem:[#allocation2 + $0x17b8] sm:$0xff]
    %v873 = vld [vmem:[#allocation2 + $0x17c0] sm:$0xff]
    %v874 = vld [vmem:[#allocation2 + $0x17c8] sm:$0xff]
    %v875 = vld [vmem:[#allocation2 + $0x17d0] sm:$0xff]
    %v876 = vld [vmem:[#allocation2 + $0x17d8] sm:$0xff]
    %v877 = vld [vmem:[#allocation2 + $0x17e0] sm:$0xff]
    %v878 = vld [vmem:[#allocation2 + $0x17e8] sm:$0xff]
    %v879 = vld [vmem:[#allocation2 + $0x17f0] sm:$0xff]
    %v880 = vld [vmem:[#allocation2 + $0x17f8] sm:$0xff]
    %v881 = vld [vmem:[#allocation2 + $0x1800] sm:$0xff]
    %v882 = vld [vmem:[#allocation2 + $0x1808] sm:$0xff]
    %v883 = vld [vmem:[#allocation2 + $0x1810] sm:$0xff]
    %v884 = vld [vmem:[#allocation2 + $0x1818] sm:$0xff]
    %v885 = vld [vmem:[#allocation2 + $0x1820] sm:$0xff]
    %v886 = vld [vmem:[#allocation2 + $0x1828] sm:$0xff]
    %v887 = vld [vmem:[#allocation2 + $0x1830] sm:$0xff]
    %v888 = vld [vmem:[#allocation2 + $0x1838] sm:$0xff]
    %v889 = vld [vmem:[#allocation2 + $0x1840] sm:$0xff]
    %v890 = vld [vmem:[#allocation2 + $0x1848] sm:$0xff]
    %v891 = vld [vmem:[#allocation2 + $0x1850] sm:$0xff]
    %v892 = vld [vmem:[#allocation2 + $0x1858] sm:$0xff]
    %v893 = vld [vmem:[#allocation2 + $0x1860] sm:$0xff]
    %v894 = vld [vmem:[#allocation2 + $0x1868] sm:$0xff]
    %v895 = vld [vmem:[#allocation2 + $0x1870] sm:$0xff]
    %v896 = vld [vmem:[#allocation2 + $0x1878] sm:$0xff]
    %v897 = vld [vmem:[#allocation2 + $0x1880] sm:$0xff]
    %v898 = vld [vmem:[#allocation2 + $0x1888] sm:$0xff]
    %v899 = vld [vmem:[#allocation2 + $0x1890] sm:$0xff]
    %v900 = vld [vmem:[#allocation2 + $0x1898] sm:$0xff]
    %v901 = vld [vmem:[#allocation2 + $0x18a0] sm:$0xff]
    %v902 = vld [vmem:[#allocation2 + $0x18a8] sm:$0xff]
    %v903 = vld [vmem:[#allocation2 + $0x18b0] sm:$0xff]
    %v904 = vld [vmem:[#allocation2 + $0x18b8] sm:$0xff]
    %v905 = vld [vmem:[#allocation2 + $0x18c0] sm:$0xff]
    %v906 = vld [vmem:[#allocation2 + $0x18c8] sm:$0xff]
    %v907 = vld [vmem:[#allocation2 + $0x18d0] sm:$0xff]
    %v908 = vld [vmem:[#allocation2 + $0x18d8] sm:$0xff]
    %v909 = vld [vmem:[#allocation2 + $0x18e0] sm:$0xff]
    %v910 = vld [vmem:[#allocation2 + $0x18e8] sm:$0xff]
    %v911 = vld [vmem:[#allocation2 + $0x18f0] sm:$0xff]
    %v912 = vld [vmem:[#allocation2 + $0x18f8] sm:$0xff]
    %v913 = vld [vmem:[#allocation2 + $0x1900] sm:$0xff]
    %v914 = vld [vmem:[#allocation2 + $0x1908] sm:$0xff]
    %v915 = vld [vmem:[#allocation2 + $0x1910] sm:$0xff]
    %v916 = vld [vmem:[#allocation2 + $0x1918] sm:$0xff]
    %v917 = vld [vmem:[#allocation2 + $0x1920] sm:$0xff]
    %v918 = vld [vmem:[#allocation2 + $0x1928] sm:$0xff]
    %v919 = vld [vmem:[#allocation2 + $0x1930] sm:$0xff]
    %v920 = vld [vmem:[#allocation2 + $0x1938] sm:$0xff]
    %v921 = vld [vmem:[#allocation2 + $0x1940] sm:$0xff]
    %v922 = vld [vmem:[#allocation2 + $0x1948] sm:$0xff]
    %v923 = vld [vmem:[#allocation2 + $0x1950] sm:$0xff]
    %v924 = vld [vmem:[#allocation2 + $0x1958] sm:$0xff]
    %v925 = vld [vmem:[#allocation2 + $0x1960] sm:$0xff]
    %v926 = vld [vmem:[#allocation2 + $0x1968] sm:$0xff]
    %v927 = vld [vmem:[#allocation2 + $0x1970] sm:$0xff]
    %v928 = vld [vmem:[#allocation2 + $0x1978] sm:$0xff]
    %v929 = vld [vmem:[#allocation2 + $0x1980] sm:$0xff]
    %v930 = vld [vmem:[#allocation2 + $0x1988] sm:$0xff]
    %v931 = vld [vmem:[#allocation2 + $0x1990] sm:$0xff]
    %v932 = vld [vmem:[#allocation2 + $0x1998] sm:$0xff]
    %v933 = vld [vmem:[#allocation2 + $0x19a0] sm:$0xff]
    %v934 = vld [vmem:[#allocation2 + $0x19a8] sm:$0xff]
    %v935 = vld [vmem:[#allocation2 + $0x19b0] sm:$0xff]
    %v936 = vld [vmem:[#allocation2 + $0x19b8] sm:$0xff]
    %v937 = vld [vmem:[#allocation2 + $0x19c0] sm:$0xff]
    %v938 = vld [vmem:[#allocation2 + $0x19c8] sm:$0xff]
    %v939 = vld [vmem:[#allocation2 + $0x19d0] sm:$0xff]
    %v940 = vld [vmem:[#allocation2 + $0x19d8] sm:$0xff]
    %v941 = vld [vmem:[#allocation2 + $0x19e0] sm:$0xff]
    %v942 = vld [vmem:[#allocation2 + $0x19e8] sm:$0xff]
    %v943 = vld [vmem:[#allocation2 + $0x19f0] sm:$0xff]
    %v944 = vld [vmem:[#allocation2 + $0x19f8] sm:$0xff]
    %v945 = vld [vmem:[#allocation2 + $0x1a00] sm:$0xff]
    %v946 = vld [vmem:[#allocation2 + $0x1a08] sm:$0xff]
    %v947 = vld [vmem:[#allocation2 + $0x1a10] sm:$0xff]
    %v948 = vld [vmem:[#allocation2 + $0x1a18] sm:$0xff]
    %v949 = vld [vmem:[#allocation2 + $0x1a20] sm:$0xff]
    %v950 = vld [vmem:[#allocation2 + $0x1a28] sm:$0xff]
    %v951 = vld [vmem:[#allocation2 + $0x1a30] sm:$0xff]
    %v952 = vld [vmem:[#allocation2 + $0x1a38] sm:$0xff]
    %v953 = vld [vmem:[#allocation2 + $0x1a40] sm:$0xff]
    %v954 = vld [vmem:[#allocation2 + $0x1a48] sm:$0xff]
    %v955 = vld [vmem:[#allocation2 + $0x1a50] sm:$0xff]
    %v956 = vld [vmem:[#allocation2 + $0x1a58] sm:$0xff]
    %v957 = vld [vmem:[#allocation2 + $0x1a60] sm:$0xff]
    %v958 = vld [vmem:[#allocation2 + $0x1a68] sm:$0xff]
    %v959 = vld [vmem:[#allocation2 + $0x1a70] sm:$0xff]
    %v960 = vld [vmem:[#allocation2 + $0x1a78] sm:$0xff]
    %v961 = vld [vmem:[#allocation2 + $0x1a80] sm:$0xff]
    %v962 = vld [vmem:[#allocation2 + $0x1a88] sm:$0xff]
    %v963 = vld [vmem:[#allocation2 + $0x1a90] sm:$0xff]
    %v964 = vld [vmem:[#allocation2 + $0x1a98] sm:$0xff]
    %v965 = vld [vmem:[#allocation2 + $0x1aa0] sm:$0xff]
    %v966 = vld [vmem:[#allocation2 + $0x1aa8] sm:$0xff]
    %v967 = vld [vmem:[#allocation2 + $0x1ab0] sm:$0xff]
    %v968 = vld [vmem:[#allocation2 + $0x1ab8] sm:$0xff]
    %v969 = vld [vmem:[#allocation2 + $0x1ac0] sm:$0xff]
    %v970 = vld [vmem:[#allocation2 + $0x1ac8] sm:$0xff]
    %v971 = vld [vmem:[#allocation2 + $0x1ad0] sm:$0xff]
    %v972 = vld [vmem:[#allocation2 + $0x1ad8] sm:$0xff]
    %v973 = vld [vmem:[#allocation2 + $0x1ae0] sm:$0xff]
    %v974 = vld [vmem:[#allocation2 + $0x1ae8] sm:$0xff]
    %v975 = vld [vmem:[#allocation2 + $0x1af0] sm:$0xff]
    %v976 = vld [vmem:[#allocation2 + $0x1af8] sm:$0xff]
    %v977 = vld [vmem:[#allocation5] sm:$0xff]
    %v978 = vld [vmem:[#allocation5 + $0x8] sm:$0xf]
    %v981 = vlaneseq
    %v982 = vshrl.u32 %v981, 7
    %v983 = vsub.s32 0, %v982
    %v984 = vrot.slane %v977, %v983
    %v985 = vlaneseq
    %v986 = vshrl.u32 %v985, 7
    %v987 = vsub.s32 1, %v986
    %v988 = vrot.slane %v977, %v987
    %v989 = vlaneseq
    %v990 = vshrl.u32 %v989, 7
    %v991 = vsub.s32 2, %v990
    %v992 = vrot.slane %v977, %v991
    %v993 = vlaneseq
    %v994 = vshrl.u32 %v993, 7
    %v995 = vsub.s32 3, %v994
    %v996 = vrot.slane %v977, %v995
    %v997 = vlaneseq
    %v998 = vshrl.u32 %v997, 7
    %v999 = vsub.s32 4, %v998
    %v1000 = vrot.slane %v977, %v999
    %v1001 = vlaneseq
    %v1002 = vshrl.u32 %v1001, 7
    %v1003 = vsub.s32 5, %v1002
    %v1004 = vrot.slane %v977, %v1003
    %v1005 = vlaneseq
    %v1006 = vshrl.u32 %v1005, 7
    %v1007 = vsub.s32 6, %v1006
    %v1008 = vrot.slane %v977, %v1007
    %v1009 = vlaneseq
    %v1010 = vshrl.u32 %v1009, 7
    %v1011 = vsub.s32 7, %v1010
    %v1012 = vrot.slane %v977, %v1011
    %v1013 = vlaneseq
    %v1014 = vshrl.u32 %v1013, 7
    %v1015 = vsub.s32 0, %v1014
    %v1016 = vrot.slane %v978, %v1015
    %v1017 = vlaneseq
    %v1018 = vshrl.u32 %v1017, 7
    %v1019 = vsub.s32 1, %v1018
    %v1020 = vrot.slane %v978, %v1019
    %v1021 = vlaneseq
    %v1022 = vshrl.u32 %v1021, 7
    %v1023 = vsub.s32 2, %v1022
    %v1024 = vrot.slane %v978, %v1023
    %v1025 = vlaneseq
    %v1026 = vshrl.u32 %v1025, 7
    %v1027 = vsub.s32 3, %v1026
    %v1028 = vrot.slane %v978, %v1027
    %v1081 = vunpack.c.l.b16 %v73
    %v1082 = vunpack.c.h.b16 %v73
    %v1083 = vunpack.c.l.b16 %v74
    %v1084 = vunpack.c.h.b16 %v74
    %v1085 = vunpack.c.l.b16 %v75
    %v1086 = vunpack.c.h.b16 %v75
    %v1087 = vunpack.c.l.b16 %v76
    %v1088 = vunpack.c.h.b16 %v76
    %v1089 = vunpack.c.l.b16 %v77
    %v1090 = vunpack.c.l.b16 %v78
    %v1091 = vunpack.c.h.b16 %v78
    %v1092 = vunpack.c.l.b16 %v79
    %v1093 = vunpack.c.h.b16 %v79
    %v1094 = vunpack.c.l.b16 %v80
    %v1095 = vunpack.c.h.b16 %v80
    %v1096 = vunpack.c.l.b16 %v81
    %v1097 = vunpack.c.h.b16 %v81
    %v1098 = vunpack.c.l.b16 %v82
    %v1099 = vunpack.c.l.b16 %v83
    %v1100 = vunpack.c.h.b16 %v83
    %v1101 = vunpack.c.l.b16 %v84
    %v1102 = vunpack.c.h.b16 %v84
    %v1103 = vunpack.c.l.b16 %v85
    %v1104 = vunpack.c.h.b16 %v85
    %v1105 = vunpack.c.l.b16 %v86
    %v1106 = vunpack.c.h.b16 %v86
    %v1107 = vunpack.c.l.b16 %v87
    %v1108 = vunpack.c.l.b16 %v88
    %v1109 = vunpack.c.h.b16 %v88
    %v1110 = vunpack.c.l.b16 %v89
    %v1111 = vunpack.c.h.b16 %v89
    %v1112 = vunpack.c.l.b16 %v90
    %v1113 = vunpack.c.h.b16 %v90
    %v1114 = vunpack.c.l.b16 %v91
    %v1115 = vunpack.c.h.b16 %v91
    %v1116 = vunpack.c.l.b16 %v92
    %v1117 = vunpack.c.l.b16 %v93
    %v1118 = vunpack.c.h.b16 %v93
    %v1119 = vunpack.c.l.b16 %v94
    %v1120 = vunpack.c.h.b16 %v94
    %v1121 = vunpack.c.l.b16 %v95
    %v1122 = vunpack.c.h.b16 %v95
    %v1123 = vunpack.c.l.b16 %v96
    %v1124 = vunpack.c.h.b16 %v96
    %v1125 = vunpack.c.l.b16 %v97
    %v1126 = vunpack.c.l.b16 %v98
    %v1127 = vunpack.c.h.b16 %v98
    %v1128 = vunpack.c.l.b16 %v99
    %v1129 = vunpack.c.h.b16 %v99
    %v1130 = vunpack.c.l.b16 %v100
    %v1131 = vunpack.c.h.b16 %v100
    %v1132 = vunpack.c.l.b16 %v101
    %v1133 = vunpack.c.h.b16 %v101
    %v1134 = vunpack.c.l.b16 %v102
    %v1135 = vunpack.c.l.b16 %v103
    %v1136 = vunpack.c.h.b16 %v103
    %v1137 = vunpack.c.l.b16 %v104
    %v1138 = vunpack.c.h.b16 %v104
    %v1139 = vunpack.c.l.b16 %v105
    %v1140 = vunpack.c.h.b16 %v105
    %v1141 = vunpack.c.l.b16 %v106
    %v1142 = vunpack.c.h.b16 %v106
    %v1143 = vunpack.c.l.b16 %v107
    %v1144 = vunpack.c.l.b16 %v108
    %v1145 = vunpack.c.h.b16 %v108
    %v1146 = vunpack.c.l.b16 %v109
    %v1147 = vunpack.c.h.b16 %v109
    %v1148 = vunpack.c.l.b16 %v110
    %v1149 = vunpack.c.h.b16 %v110
    %v1150 = vunpack.c.l.b16 %v111
    %v1151 = vunpack.c.h.b16 %v111
    %v1152 = vunpack.c.l.b16 %v112
    %v1153 = vpack.c.b16 %v1090, %v1081
    %v1154 = vpack.c.b16 %v1091, %v1082
    %v1155 = vpack.c.b16 %v1092, %v1083
    %v1156 = vpack.c.b16 %v1093, %v1084
    %v1157 = vpack.c.b16 %v1094, %v1085
    %v1158 = vpack.c.b16 %v1095, %v1086
    %v1159 = vpack.c.b16 %v1096, %v1087
    %v1160 = vpack.c.b16 %v1097, %v1088
    %v1161 = vpack.c.b16 %v1098, %v1089
    %v1162 = vpack.c.b16 %v1108, %v1099
    %v1163 = vpack.c.b16 %v1109, %v1100
    %v1164 = vpack.c.b16 %v1110, %v1101
    %v1165 = vpack.c.b16 %v1111, %v1102
    %v1166 = vpack.c.b16 %v1112, %v1103
    %v1167 = vpack.c.b16 %v1113, %v1104
    %v1168 = vpack.c.b16 %v1114, %v1105
    %v1169 = vpack.c.b16 %v1115, %v1106
    %v1170 = vpack.c.b16 %v1116, %v1107
    %v1171 = vpack.c.b16 %v1126, %v1117
    %v1172 = vpack.c.b16 %v1127, %v1118
    %v1173 = vpack.c.b16 %v1128, %v1119
    %v1174 = vpack.c.b16 %v1129, %v1120
    %v1175 = vpack.c.b16 %v1130, %v1121
    %v1176 = vpack.c.b16 %v1131, %v1122
    %v1177 = vpack.c.b16 %v1132, %v1123
    %v1178 = vpack.c.b16 %v1133, %v1124
    %v1179 = vpack.c.b16 %v1134, %v1125
    %v1180 = vpack.c.b16 %v1144, %v1135
    %v1181 = vpack.c.b16 %v1145, %v1136
    %v1182 = vpack.c.b16 %v1146, %v1137
    %v1183 = vpack.c.b16 %v1147, %v1138
    %v1184 = vpack.c.b16 %v1148, %v1139
    %v1185 = vpack.c.b16 %v1149, %v1140
    %v1186 = vpack.c.b16 %v1150, %v1141
    %v1187 = vpack.c.b16 %v1151, %v1142
    %v1188 = vpack.c.b16 %v1152, %v1143
    %v2089 = vunpack.c.l.b16 %v113
    %v2090 = vunpack.c.h.b16 %v113
    %v2091 = vunpack.c.l.b16 %v114
    %v2092 = vunpack.c.h.b16 %v114
    %v2093 = vunpack.c.l.b16 %v115
    %v2094 = vunpack.c.h.b16 %v115
    %v2095 = vunpack.c.l.b16 %v116
    %v2096 = vunpack.c.h.b16 %v116
    %v2097 = vunpack.c.l.b16 %v117
    %v2098 = vunpack.c.h.b16 %v117
    %v2099 = vunpack.c.l.b16 %v118
    %v2100 = vunpack.c.h.b16 %v118
    %v2101 = vunpack.c.l.b16 %v119
    %v2102 = vunpack.c.h.b16 %v119
    %v2103 = vunpack.c.l.b16 %v120
    %v2104 = vunpack.c.h.b16 %v120
    %v2105 = vunpack.c.l.b16 %v121
    %v2106 = vunpack.c.h.b16 %v121
    %v2107 = vunpack.c.l.b16 %v122
    %v2108 = vunpack.c.h.b16 %v122
    %v2109 = vunpack.c.l.b16 %v123
    %v2110 = vunpack.c.h.b16 %v123
    %v2111 = vunpack.c.l.b16 %v124
    %v2112 = vunpack.c.h.b16 %v124
    %v2113 = vunpack.c.l.b16 %v125
    %v2114 = vunpack.c.h.b16 %v125
    %v2115 = vunpack.c.l.b16 %v126
    %v2116 = vunpack.c.h.b16 %v126
    %v2117 = vunpack.c.l.b16 %v127
    %v2118 = vunpack.c.h.b16 %v127
    %v2119 = vunpack.c.l.b16 %v128
    %v2120 = vunpack.c.h.b16 %v128
    %v2121 = vunpack.c.l.b16 %v129
    %v2122 = vunpack.c.h.b16 %v129
    %v2123 = vunpack.c.l.b16 %v130
    %v2124 = vunpack.c.h.b16 %v130
    %v2125 = vunpack.c.l.b16 %v131
    %v2126 = vunpack.c.h.b16 %v131
    %v2127 = vunpack.c.l.b16 %v132
    %v2128 = vunpack.c.h.b16 %v132
    %v2129 = vunpack.c.l.b16 %v133
    %v2130 = vunpack.c.h.b16 %v133
    %v2131 = vunpack.c.l.b16 %v134
    %v2132 = vunpack.c.h.b16 %v134
    %v2133 = vunpack.c.l.b16 %v135
    %v2134 = vunpack.c.h.b16 %v135
    %v2135 = vunpack.c.l.b16 %v136
    %v2136 = vunpack.c.h.b16 %v136
    %v2137 = vunpack.c.l.b16 %v137
    %v2138 = vunpack.c.h.b16 %v137
    %v2139 = vunpack.c.l.b16 %v138
    %v2140 = vunpack.c.h.b16 %v138
    %v2141 = vunpack.c.l.b16 %v139
    %v2142 = vunpack.c.h.b16 %v139
    %v2143 = vunpack.c.l.b16 %v140
    %v2144 = vunpack.c.h.b16 %v140
    %v2145 = vunpack.c.l.b16 %v141
    %v2146 = vunpack.c.h.b16 %v141
    %v2147 = vunpack.c.l.b16 %v142
    %v2148 = vunpack.c.h.b16 %v142
    %v2149 = vunpack.c.l.b16 %v143
    %v2150 = vunpack.c.h.b16 %v143
    %v2151 = vunpack.c.l.b16 %v144
    %v2152 = vunpack.c.h.b16 %v144
    %v2153 = vunpack.c.l.b16 %v145
    %v2154 = vunpack.c.h.b16 %v145
    %v2155 = vunpack.c.l.b16 %v146
    %v2156 = vunpack.c.h.b16 %v146
    %v2157 = vunpack.c.l.b16 %v147
    %v2158 = vunpack.c.h.b16 %v147
    %v2159 = vunpack.c.l.b16 %v148
    %v2160 = vunpack.c.h.b16 %v148
    %v2161 = vunpack.c.l.b16 %v149
    %v2162 = vunpack.c.h.b16 %v149
    %v2163 = vunpack.c.l.b16 %v150
    %v2164 = vunpack.c.h.b16 %v150
    %v2165 = vunpack.c.l.b16 %v151
    %v2166 = vunpack.c.h.b16 %v151
    %v2167 = vunpack.c.l.b16 %v152
    %v2168 = vunpack.c.h.b16 %v152
    %v2169 = vunpack.c.l.b16 %v153
    %v2170 = vunpack.c.h.b16 %v153
    %v2171 = vunpack.c.l.b16 %v154
    %v2172 = vunpack.c.h.b16 %v154
    %v2173 = vunpack.c.l.b16 %v155
    %v2174 = vunpack.c.h.b16 %v155
    %v2175 = vunpack.c.l.b16 %v156
    %v2176 = vunpack.c.h.b16 %v156
    %v2177 = vunpack.c.l.b16 %v157
    %v2178 = vunpack.c.h.b16 %v157
    %v2179 = vunpack.c.l.b16 %v158
    %v2180 = vunpack.c.h.b16 %v158
    %v2181 = vunpack.c.l.b16 %v159
    %v2182 = vunpack.c.h.b16 %v159
    %v2183 = vunpack.c.l.b16 %v160
    %v2184 = vunpack.c.h.b16 %v160
    %v2185 = vunpack.c.l.b16 %v161
    %v2186 = vunpack.c.h.b16 %v161
    %v2187 = vunpack.c.l.b16 %v162
    %v2188 = vunpack.c.h.b16 %v162
    %v2189 = vunpack.c.l.b16 %v163
    %v2190 = vunpack.c.h.b16 %v163
    %v2191 = vunpack.c.l.b16 %v164
    %v2192 = vunpack.c.h.b16 %v164
    %v2193 = vunpack.c.l.b16 %v165
    %v2194 = vunpack.c.h.b16 %v165
    %v2195 = vunpack.c.l.b16 %v166
    %v2196 = vunpack.c.h.b16 %v166
    %v2197 = vunpack.c.l.b16 %v167
    %v2198 = vunpack.c.h.b16 %v167
    %v2199 = vunpack.c.l.b16 %v168
    %v2200 = vunpack.c.h.b16 %v168
    %v2201 = vunpack.c.l.b16 %v169
    %v2202 = vunpack.c.h.b16 %v169
    %v2203 = vunpack.c.l.b16 %v170
    %v2204 = vunpack.c.h.b16 %v170
    %v2205 = vunpack.c.l.b16 %v171
    %v2206 = vunpack.c.h.b16 %v171
    %v2207 = vunpack.c.l.b16 %v172
    %v2208 = vunpack.c.h.b16 %v172
    %v2209 = vunpack.c.l.b16 %v173
    %v2210 = vunpack.c.h.b16 %v173
    %v2211 = vunpack.c.l.b16 %v174
    %v2212 = vunpack.c.h.b16 %v174
    %v2213 = vunpack.c.l.b16 %v175
    %v2214 = vunpack.c.h.b16 %v175
    %v2215 = vunpack.c.l.b16 %v176
    %v2216 = vunpack.c.h.b16 %v176
    %v2217 = vunpack.c.l.b16 %v177
    %v2218 = vunpack.c.h.b16 %v177
    %v2219 = vunpack.c.l.b16 %v178
    %v2220 = vunpack.c.h.b16 %v178
    %v2221 = vunpack.c.l.b16 %v179
    %v2222 = vunpack.c.h.b16 %v179
    %v2223 = vunpack.c.l.b16 %v180
    %v2224 = vunpack.c.h.b16 %v180
    %v2225 = vunpack.c.l.b16 %v181
    %v2226 = vunpack.c.h.b16 %v181
    %v2227 = vunpack.c.l.b16 %v182
    %v2228 = vunpack.c.h.b16 %v182
    %v2229 = vunpack.c.l.b16 %v183
    %v2230 = vunpack.c.h.b16 %v183
    %v2231 = vunpack.c.l.b16 %v184
    %v2232 = vunpack.c.h.b16 %v184
    %v2233 = vunpack.c.l.b16 %v185
    %v2234 = vunpack.c.h.b16 %v185
    %v2235 = vunpack.c.l.b16 %v186
    %v2236 = vunpack.c.h.b16 %v186
    %v2237 = vunpack.c.l.b16 %v187
    %v2238 = vunpack.c.h.b16 %v187
    %v2239 = vunpack.c.l.b16 %v188
    %v2240 = vunpack.c.h.b16 %v188
    %v2241 = vunpack.c.l.b16 %v189
    %v2242 = vunpack.c.h.b16 %v189
    %v2243 = vunpack.c.l.b16 %v190
    %v2244 = vunpack.c.h.b16 %v190
    %v2245 = vunpack.c.l.b16 %v191
    %v2246 = vunpack.c.h.b16 %v191
    %v2247 = vunpack.c.l.b16 %v192
    %v2248 = vunpack.c.h.b16 %v192
    %v2249 = vunpack.c.l.b16 %v193
    %v2250 = vunpack.c.h.b16 %v193
    %v2251 = vunpack.c.l.b16 %v194
    %v2252 = vunpack.c.h.b16 %v194
    %v2253 = vunpack.c.l.b16 %v195
    %v2254 = vunpack.c.h.b16 %v195
    %v2255 = vunpack.c.l.b16 %v196
    %v2256 = vunpack.c.h.b16 %v196
    %v2257 = vunpack.c.l.b16 %v197
    %v2258 = vunpack.c.h.b16 %v197
    %v2259 = vunpack.c.l.b16 %v198
    %v2260 = vunpack.c.h.b16 %v198
    %v2261 = vunpack.c.l.b16 %v199
    %v2262 = vunpack.c.h.b16 %v199
    %v2263 = vunpack.c.l.b16 %v200
    %v2264 = vunpack.c.h.b16 %v200
    %v2265 = vunpack.c.l.b16 %v201
    %v2266 = vunpack.c.h.b16 %v201
    %v2267 = vunpack.c.l.b16 %v202
    %v2268 = vunpack.c.h.b16 %v202
    %v2269 = vunpack.c.l.b16 %v203
    %v2270 = vunpack.c.h.b16 %v203
    %v2271 = vunpack.c.l.b16 %v204
    %v2272 = vunpack.c.h.b16 %v204
    %v2273 = vunpack.c.l.b16 %v205
    %v2274 = vunpack.c.h.b16 %v205
    %v2275 = vunpack.c.l.b16 %v206
    %v2276 = vunpack.c.h.b16 %v206
    %v2277 = vunpack.c.l.b16 %v207
    %v2278 = vunpack.c.h.b16 %v207
    %v2279 = vunpack.c.l.b16 %v208
    %v2280 = vunpack.c.h.b16 %v208
    %v2281 = vunpack.c.l.b16 %v209
    %v2282 = vunpack.c.h.b16 %v209
    %v2283 = vunpack.c.l.b16 %v210
    %v2284 = vunpack.c.h.b16 %v210
    %v2285 = vunpack.c.l.b16 %v211
    %v2286 = vunpack.c.h.b16 %v211
    %v2287 = vunpack.c.l.b16 %v212
    %v2288 = vunpack.c.h.b16 %v212
    %v2289 = vunpack.c.l.b16 %v213
    %v2290 = vunpack.c.h.b16 %v213
    %v2291 = vunpack.c.l.b16 %v214
    %v2292 = vunpack.c.h.b16 %v214
    %v2293 = vunpack.c.l.b16 %v215
    %v2294 = vunpack.c.h.b16 %v215
    %v2295 = vunpack.c.l.b16 %v216
    %v2296 = vunpack.c.h.b16 %v216
    %v2297 = vunpack.c.l.b16 %v217
    %v2298 = vunpack.c.h.b16 %v217
    %v2299 = vunpack.c.l.b16 %v218
    %v2300 = vunpack.c.h.b16 %v218
    %v2301 = vunpack.c.l.b16 %v219
    %v2302 = vunpack.c.h.b16 %v219
    %v2303 = vunpack.c.l.b16 %v220
    %v2304 = vunpack.c.h.b16 %v220
    %v2305 = vunpack.c.l.b16 %v221
    %v2306 = vunpack.c.h.b16 %v221
    %v2307 = vunpack.c.l.b16 %v222
    %v2308 = vunpack.c.h.b16 %v222
    %v2309 = vunpack.c.l.b16 %v223
    %v2310 = vunpack.c.h.b16 %v223
    %v2311 = vunpack.c.l.b16 %v224
    %v2312 = vunpack.c.h.b16 %v224
    %v2313 = vunpack.c.l.b16 %v225
    %v2314 = vunpack.c.h.b16 %v225
    %v2315 = vunpack.c.l.b16 %v226
    %v2316 = vunpack.c.h.b16 %v226
    %v2317 = vunpack.c.l.b16 %v227
    %v2318 = vunpack.c.h.b16 %v227
    %v2319 = vunpack.c.l.b16 %v228
    %v2320 = vunpack.c.h.b16 %v228
    %v2321 = vunpack.c.l.b16 %v229
    %v2322 = vunpack.c.h.b16 %v229
    %v2323 = vunpack.c.l.b16 %v230
    %v2324 = vunpack.c.h.b16 %v230
    %v2325 = vunpack.c.l.b16 %v231
    %v2326 = vunpack.c.h.b16 %v231
    %v2327 = vunpack.c.l.b16 %v232
    %v2328 = vunpack.c.h.b16 %v232
    %v2329 = vunpack.c.l.b16 %v233
    %v2330 = vunpack.c.h.b16 %v233
    %v2331 = vunpack.c.l.b16 %v234
    %v2332 = vunpack.c.h.b16 %v234
    %v2333 = vunpack.c.l.b16 %v235
    %v2334 = vunpack.c.h.b16 %v235
    %v2335 = vunpack.c.l.b16 %v236
    %v2336 = vunpack.c.h.b16 %v236
    %v2337 = vunpack.c.l.b16 %v237
    %v2338 = vunpack.c.h.b16 %v237
    %v2339 = vunpack.c.l.b16 %v238
    %v2340 = vunpack.c.h.b16 %v238
    %v2341 = vunpack.c.l.b16 %v239
    %v2342 = vunpack.c.h.b16 %v239
    %v2343 = vunpack.c.l.b16 %v240
    %v2344 = vunpack.c.h.b16 %v240
    %v2345 = vunpack.c.l.b16 %v241
    %v2346 = vunpack.c.h.b16 %v241
    %v2347 = vunpack.c.l.b16 %v242
    %v2348 = vunpack.c.h.b16 %v242
    %v2349 = vunpack.c.l.b16 %v243
    %v2350 = vunpack.c.h.b16 %v243
    %v2351 = vunpack.c.l.b16 %v244
    %v2352 = vunpack.c.h.b16 %v244
    %v2353 = vunpack.c.l.b16 %v245
    %v2354 = vunpack.c.h.b16 %v245
    %v2355 = vunpack.c.l.b16 %v246
    %v2356 = vunpack.c.h.b16 %v246
    %v2357 = vunpack.c.l.b16 %v247
    %v2358 = vunpack.c.h.b16 %v247
    %v2359 = vunpack.c.l.b16 %v248
    %v2360 = vunpack.c.h.b16 %v248
    %v2361 = vunpack.c.l.b16 %v249
    %v2362 = vunpack.c.h.b16 %v249
    %v2363 = vunpack.c.l.b16 %v250
    %v2364 = vunpack.c.h.b16 %v250
    %v2365 = vunpack.c.l.b16 %v251
    %v2366 = vunpack.c.h.b16 %v251
    %v2367 = vunpack.c.l.b16 %v252
    %v2368 = vunpack.c.h.b16 %v252
    %v2369 = vunpack.c.l.b16 %v253
    %v2370 = vunpack.c.h.b16 %v253
    %v2371 = vunpack.c.l.b16 %v254
    %v2372 = vunpack.c.h.b16 %v254
    %v2373 = vunpack.c.l.b16 %v255
    %v2374 = vunpack.c.h.b16 %v255
    %v2375 = vunpack.c.l.b16 %v256
    %v2376 = vunpack.c.h.b16 %v256
    %v2377 = vunpack.c.l.b16 %v257
    %v2378 = vunpack.c.h.b16 %v257
    %v2379 = vunpack.c.l.b16 %v258
    %v2380 = vunpack.c.h.b16 %v258
    %v2381 = vunpack.c.l.b16 %v259
    %v2382 = vunpack.c.h.b16 %v259
    %v2383 = vunpack.c.l.b16 %v260
    %v2384 = vunpack.c.h.b16 %v260
    %v2385 = vunpack.c.l.b16 %v261
    %v2386 = vunpack.c.h.b16 %v261
    %v2387 = vunpack.c.l.b16 %v262
    %v2388 = vunpack.c.h.b16 %v262
    %v2389 = vunpack.c.l.b16 %v263
    %v2390 = vunpack.c.h.b16 %v263
    %v2391 = vunpack.c.l.b16 %v264
    %v2392 = vunpack.c.h.b16 %v264
    %v2393 = vunpack.c.l.b16 %v265
    %v2394 = vunpack.c.h.b16 %v265
    %v2395 = vunpack.c.l.b16 %v266
    %v2396 = vunpack.c.h.b16 %v266
    %v2397 = vunpack.c.l.b16 %v267
    %v2398 = vunpack.c.h.b16 %v267
    %v2399 = vunpack.c.l.b16 %v268
    %v2400 = vunpack.c.h.b16 %v268
    %v2401 = vunpack.c.l.b16 %v269
    %v2402 = vunpack.c.h.b16 %v269
    %v2403 = vunpack.c.l.b16 %v270
    %v2404 = vunpack.c.h.b16 %v270
    %v2405 = vunpack.c.l.b16 %v271
    %v2406 = vunpack.c.h.b16 %v271
    %v2407 = vunpack.c.l.b16 %v272
    %v2408 = vunpack.c.h.b16 %v272
    %v2409 = vunpack.c.l.b16 %v273
    %v2410 = vunpack.c.h.b16 %v273
    %v2411 = vunpack.c.l.b16 %v274
    %v2412 = vunpack.c.h.b16 %v274
    %v2413 = vunpack.c.l.b16 %v275
    %v2414 = vunpack.c.h.b16 %v275
    %v2415 = vunpack.c.l.b16 %v276
    %v2416 = vunpack.c.h.b16 %v276
    %v2417 = vunpack.c.l.b16 %v277
    %v2418 = vunpack.c.h.b16 %v277
    %v2419 = vunpack.c.l.b16 %v278
    %v2420 = vunpack.c.h.b16 %v278
    %v2421 = vunpack.c.l.b16 %v279
    %v2422 = vunpack.c.h.b16 %v279
    %v2423 = vunpack.c.l.b16 %v280
    %v2424 = vunpack.c.h.b16 %v280
    %v2425 = vunpack.c.l.b16 %v281
    %v2426 = vunpack.c.h.b16 %v281
    %v2427 = vunpack.c.l.b16 %v282
    %v2428 = vunpack.c.h.b16 %v282
    %v2429 = vunpack.c.l.b16 %v283
    %v2430 = vunpack.c.h.b16 %v283
    %v2431 = vunpack.c.l.b16 %v284
    %v2432 = vunpack.c.h.b16 %v284
    %v2433 = vunpack.c.l.b16 %v285
    %v2434 = vunpack.c.h.b16 %v285
    %v2435 = vunpack.c.l.b16 %v286
    %v2436 = vunpack.c.h.b16 %v286
    %v2437 = vunpack.c.l.b16 %v287
    %v2438 = vunpack.c.h.b16 %v287
    %v2439 = vunpack.c.l.b16 %v288
    %v2440 = vunpack.c.h.b16 %v288
    %v2441 = vunpack.c.l.b16 %v289
    %v2442 = vunpack.c.h.b16 %v289
    %v2443 = vunpack.c.l.b16 %v290
    %v2444 = vunpack.c.h.b16 %v290
    %v2445 = vunpack.c.l.b16 %v291
    %v2446 = vunpack.c.h.b16 %v291
    %v2447 = vunpack.c.l.b16 %v292
    %v2448 = vunpack.c.h.b16 %v292
    %v2449 = vunpack.c.l.b16 %v293
    %v2450 = vunpack.c.h.b16 %v293
    %v2451 = vunpack.c.l.b16 %v294
    %v2452 = vunpack.c.h.b16 %v294
    %v2453 = vunpack.c.l.b16 %v295
    %v2454 = vunpack.c.h.b16 %v295
    %v2455 = vunpack.c.l.b16 %v296
    %v2456 = vunpack.c.h.b16 %v296
    %v2457 = vunpack.c.l.b16 %v297
    %v2458 = vunpack.c.h.b16 %v297
    %v2459 = vunpack.c.l.b16 %v298
    %v2460 = vunpack.c.h.b16 %v298
    %v2461 = vunpack.c.l.b16 %v299
    %v2462 = vunpack.c.h.b16 %v299
    %v2463 = vunpack.c.l.b16 %v300
    %v2464 = vunpack.c.h.b16 %v300
    %v2465 = vunpack.c.l.b16 %v301
    %v2466 = vunpack.c.h.b16 %v301
    %v2467 = vunpack.c.l.b16 %v302
    %v2468 = vunpack.c.h.b16 %v302
    %v2469 = vunpack.c.l.b16 %v303
    %v2470 = vunpack.c.h.b16 %v303
    %v2471 = vunpack.c.l.b16 %v304
    %v2472 = vunpack.c.h.b16 %v304
    %v2473 = vunpack.c.l.b16 %v305
    %v2474 = vunpack.c.h.b16 %v305
    %v2475 = vunpack.c.l.b16 %v306
    %v2476 = vunpack.c.h.b16 %v306
    %v2477 = vunpack.c.l.b16 %v307
    %v2478 = vunpack.c.h.b16 %v307
    %v2479 = vunpack.c.l.b16 %v308
    %v2480 = vunpack.c.h.b16 %v308
    %v2481 = vunpack.c.l.b16 %v309
    %v2482 = vunpack.c.h.b16 %v309
    %v2483 = vunpack.c.l.b16 %v310
    %v2484 = vunpack.c.h.b16 %v310
    %v2485 = vunpack.c.l.b16 %v311
    %v2486 = vunpack.c.h.b16 %v311
    %v2487 = vunpack.c.l.b16 %v312
    %v2488 = vunpack.c.h.b16 %v312
    %v2489 = vunpack.c.l.b16 %v313
    %v2490 = vunpack.c.h.b16 %v313
    %v2491 = vunpack.c.l.b16 %v314
    %v2492 = vunpack.c.h.b16 %v314
    %v2493 = vunpack.c.l.b16 %v315
    %v2494 = vunpack.c.h.b16 %v315
    %v2495 = vunpack.c.l.b16 %v316
    %v2496 = vunpack.c.h.b16 %v316
    %v2497 = vunpack.c.l.b16 %v317
    %v2498 = vunpack.c.h.b16 %v317
    %v2499 = vunpack.c.l.b16 %v318
    %v2500 = vunpack.c.h.b16 %v318
    %v2501 = vunpack.c.l.b16 %v319
    %v2502 = vunpack.c.h.b16 %v319
    %v2503 = vunpack.c.l.b16 %v320
    %v2504 = vunpack.c.h.b16 %v320
    %v2505 = vunpack.c.l.b16 %v321
    %v2506 = vunpack.c.h.b16 %v321
    %v2507 = vunpack.c.l.b16 %v322
    %v2508 = vunpack.c.h.b16 %v322
    %v2509 = vunpack.c.l.b16 %v323
    %v2510 = vunpack.c.h.b16 %v323
    %v2511 = vunpack.c.l.b16 %v324
    %v2512 = vunpack.c.h.b16 %v324
    %v2513 = vunpack.c.l.b16 %v325
    %v2514 = vunpack.c.h.b16 %v325
    %v2515 = vunpack.c.l.b16 %v326
    %v2516 = vunpack.c.h.b16 %v326
    %v2517 = vunpack.c.l.b16 %v327
    %v2518 = vunpack.c.h.b16 %v327
    %v2519 = vunpack.c.l.b16 %v328
    %v2520 = vunpack.c.h.b16 %v328
    %v2521 = vunpack.c.l.b16 %v329
    %v2522 = vunpack.c.h.b16 %v329
    %v2523 = vunpack.c.l.b16 %v330
    %v2524 = vunpack.c.h.b16 %v330
    %v2525 = vunpack.c.l.b16 %v331
    %v2526 = vunpack.c.h.b16 %v331
    %v2527 = vunpack.c.l.b16 %v332
    %v2528 = vunpack.c.h.b16 %v332
    %v2529 = vunpack.c.l.b16 %v333
    %v2530 = vunpack.c.h.b16 %v333
    %v2531 = vunpack.c.l.b16 %v334
    %v2532 = vunpack.c.h.b16 %v334
    %v2533 = vunpack.c.l.b16 %v335
    %v2534 = vunpack.c.h.b16 %v335
    %v2535 = vunpack.c.l.b16 %v336
    %v2536 = vunpack.c.h.b16 %v336
    %v2537 = vunpack.c.l.b16 %v337
    %v2538 = vunpack.c.h.b16 %v337
    %v2539 = vunpack.c.l.b16 %v338
    %v2540 = vunpack.c.h.b16 %v338
    %v2541 = vunpack.c.l.b16 %v339
    %v2542 = vunpack.c.h.b16 %v339
    %v2543 = vunpack.c.l.b16 %v340
    %v2544 = vunpack.c.h.b16 %v340
    %v2545 = vunpack.c.l.b16 %v341
    %v2546 = vunpack.c.h.b16 %v341
    %v2547 = vunpack.c.l.b16 %v342
    %v2548 = vunpack.c.h.b16 %v342
    %v2549 = vunpack.c.l.b16 %v343
    %v2550 = vunpack.c.h.b16 %v343
    %v2551 = vunpack.c.l.b16 %v344
    %v2552 = vunpack.c.h.b16 %v344
    %v2553 = vunpack.c.l.b16 %v345
    %v2554 = vunpack.c.h.b16 %v345
    %v2555 = vunpack.c.l.b16 %v346
    %v2556 = vunpack.c.h.b16 %v346
    %v2557 = vunpack.c.l.b16 %v347
    %v2558 = vunpack.c.h.b16 %v347
    %v2559 = vunpack.c.l.b16 %v348
    %v2560 = vunpack.c.h.b16 %v348
    %v2561 = vunpack.c.l.b16 %v349
    %v2562 = vunpack.c.h.b16 %v349
    %v2563 = vunpack.c.l.b16 %v350
    %v2564 = vunpack.c.h.b16 %v350
    %v2565 = vunpack.c.l.b16 %v351
    %v2566 = vunpack.c.h.b16 %v351
    %v2567 = vunpack.c.l.b16 %v352
    %v2568 = vunpack.c.h.b16 %v352
    %v2569 = vunpack.c.l.b16 %v353
    %v2570 = vunpack.c.h.b16 %v353
    %v2571 = vunpack.c.l.b16 %v354
    %v2572 = vunpack.c.h.b16 %v354
    %v2573 = vunpack.c.l.b16 %v355
    %v2574 = vunpack.c.h.b16 %v355
    %v2575 = vunpack.c.l.b16 %v356
    %v2576 = vunpack.c.h.b16 %v356
    %v2577 = vunpack.c.l.b16 %v357
    %v2578 = vunpack.c.h.b16 %v357
    %v2579 = vunpack.c.l.b16 %v358
    %v2580 = vunpack.c.h.b16 %v358
    %v2581 = vunpack.c.l.b16 %v359
    %v2582 = vunpack.c.h.b16 %v359
    %v2583 = vunpack.c.l.b16 %v360
    %v2584 = vunpack.c.h.b16 %v360
    %v2585 = vunpack.c.l.b16 %v361
    %v2586 = vunpack.c.h.b16 %v361
    %v2587 = vunpack.c.l.b16 %v362
    %v2588 = vunpack.c.h.b16 %v362
    %v2589 = vunpack.c.l.b16 %v363
    %v2590 = vunpack.c.h.b16 %v363
    %v2591 = vunpack.c.l.b16 %v364
    %v2592 = vunpack.c.h.b16 %v364
    %v2593 = vunpack.c.l.b16 %v365
    %v2594 = vunpack.c.h.b16 %v365
    %v2595 = vunpack.c.l.b16 %v366
    %v2596 = vunpack.c.h.b16 %v366
    %v2597 = vunpack.c.l.b16 %v367
    %v2598 = vunpack.c.h.b16 %v367
    %v2599 = vunpack.c.l.b16 %v368
    %v2600 = vunpack.c.h.b16 %v368
    %v2601 = vunpack.c.l.b16 %v369
    %v2602 = vunpack.c.h.b16 %v369
    %v2603 = vunpack.c.l.b16 %v370
    %v2604 = vunpack.c.h.b16 %v370
    %v2605 = vunpack.c.l.b16 %v371
    %v2606 = vunpack.c.h.b16 %v371
    %v2607 = vunpack.c.l.b16 %v372
    %v2608 = vunpack.c.h.b16 %v372
    %v2609 = vunpack.c.l.b16 %v373
    %v2610 = vunpack.c.h.b16 %v373
    %v2611 = vunpack.c.l.b16 %v374
    %v2612 = vunpack.c.h.b16 %v374
    %v2613 = vunpack.c.l.b16 %v375
    %v2614 = vunpack.c.h.b16 %v375
    %v2615 = vunpack.c.l.b16 %v376
    %v2616 = vunpack.c.h.b16 %v376
    %v2617 = vunpack.c.l.b16 %v377
    %v2618 = vunpack.c.h.b16 %v377
    %v2619 = vunpack.c.l.b16 %v378
    %v2620 = vunpack.c.h.b16 %v378
    %v2621 = vunpack.c.l.b16 %v379
    %v2622 = vunpack.c.h.b16 %v379
    %v2623 = vunpack.c.l.b16 %v380
    %v2624 = vunpack.c.h.b16 %v380
    %v2625 = vunpack.c.l.b16 %v381
    %v2626 = vunpack.c.h.b16 %v381
    %v2627 = vunpack.c.l.b16 %v382
    %v2628 = vunpack.c.h.b16 %v382
    %v2629 = vunpack.c.l.b16 %v383
    %v2630 = vunpack.c.h.b16 %v383
    %v2631 = vunpack.c.l.b16 %v384
    %v2632 = vunpack.c.h.b16 %v384
    %v2633 = vunpack.c.l.b16 %v385
    %v2634 = vunpack.c.h.b16 %v385
    %v2635 = vunpack.c.l.b16 %v386
    %v2636 = vunpack.c.h.b16 %v386
    %v2637 = vunpack.c.l.b16 %v387
    %v2638 = vunpack.c.h.b16 %v387
    %v2639 = vunpack.c.l.b16 %v388
    %v2640 = vunpack.c.h.b16 %v388
    %v2641 = vunpack.c.l.b16 %v389
    %v2642 = vunpack.c.h.b16 %v389
    %v2643 = vunpack.c.l.b16 %v390
    %v2644 = vunpack.c.h.b16 %v390
    %v2645 = vunpack.c.l.b16 %v391
    %v2646 = vunpack.c.h.b16 %v391
    %v2647 = vunpack.c.l.b16 %v392
    %v2648 = vunpack.c.h.b16 %v392
    %v2649 = vunpack.c.l.b16 %v393
    %v2650 = vunpack.c.h.b16 %v393
    %v2651 = vunpack.c.l.b16 %v394
    %v2652 = vunpack.c.h.b16 %v394
    %v2653 = vunpack.c.l.b16 %v395
    %v2654 = vunpack.c.h.b16 %v395
    %v2655 = vunpack.c.l.b16 %v396
    %v2656 = vunpack.c.h.b16 %v396
    %v2657 = vunpack.c.l.b16 %v397
    %v2658 = vunpack.c.h.b16 %v397
    %v2659 = vunpack.c.l.b16 %v398
    %v2660 = vunpack.c.h.b16 %v398
    %v2661 = vunpack.c.l.b16 %v399
    %v2662 = vunpack.c.h.b16 %v399
    %v2663 = vunpack.c.l.b16 %v400
    %v2664 = vunpack.c.h.b16 %v400
    %v2665 = vunpack.c.l.b16 %v401
    %v2666 = vunpack.c.h.b16 %v401
    %v2667 = vunpack.c.l.b16 %v402
    %v2668 = vunpack.c.h.b16 %v402
    %v2669 = vunpack.c.l.b16 %v403
    %v2670 = vunpack.c.h.b16 %v403
    %v2671 = vunpack.c.l.b16 %v404
    %v2672 = vunpack.c.h.b16 %v404
    %v2673 = vunpack.c.l.b16 %v405
    %v2674 = vunpack.c.h.b16 %v405
    %v2675 = vunpack.c.l.b16 %v406
    %v2676 = vunpack.c.h.b16 %v406
    %v2677 = vunpack.c.l.b16 %v407
    %v2678 = vunpack.c.h.b16 %v407
    %v2679 = vunpack.c.l.b16 %v408
    %v2680 = vunpack.c.h.b16 %v408
    %v2681 = vunpack.c.l.b16 %v409
    %v2682 = vunpack.c.h.b16 %v409
    %v2683 = vunpack.c.l.b16 %v410
    %v2684 = vunpack.c.h.b16 %v410
    %v2685 = vunpack.c.l.b16 %v411
    %v2686 = vunpack.c.h.b16 %v411
    %v2687 = vunpack.c.l.b16 %v412
    %v2688 = vunpack.c.h.b16 %v412
    %v2689 = vunpack.c.l.b16 %v413
    %v2690 = vunpack.c.h.b16 %v413
    %v2691 = vunpack.c.l.b16 %v414
    %v2692 = vunpack.c.h.b16 %v414
    %v2693 = vunpack.c.l.b16 %v415
    %v2694 = vunpack.c.h.b16 %v415
    %v2695 = vunpack.c.l.b16 %v416
    %v2696 = vunpack.c.h.b16 %v416
    %v2697 = vunpack.c.l.b16 %v417
    %v2698 = vunpack.c.h.b16 %v417
    %v2699 = vunpack.c.l.b16 %v418
    %v2700 = vunpack.c.h.b16 %v418
    %v2701 = vunpack.c.l.b16 %v419
    %v2702 = vunpack.c.h.b16 %v419
    %v2703 = vunpack.c.l.b16 %v420
    %v2704 = vunpack.c.h.b16 %v420
    %v2705 = vunpack.c.l.b16 %v421
    %v2706 = vunpack.c.h.b16 %v421
    %v2707 = vunpack.c.l.b16 %v422
    %v2708 = vunpack.c.h.b16 %v422
    %v2709 = vunpack.c.l.b16 %v423
    %v2710 = vunpack.c.h.b16 %v423
    %v2711 = vunpack.c.l.b16 %v424
    %v2712 = vunpack.c.h.b16 %v424
    %v2713 = vunpack.c.l.b16 %v425
    %v2714 = vunpack.c.h.b16 %v425
    %v2715 = vunpack.c.l.b16 %v426
    %v2716 = vunpack.c.h.b16 %v426
    %v2717 = vunpack.c.l.b16 %v427
    %v2718 = vunpack.c.h.b16 %v427
    %v2719 = vunpack.c.l.b16 %v428
    %v2720 = vunpack.c.h.b16 %v428
    %v2721 = vunpack.c.l.b16 %v429
    %v2722 = vunpack.c.h.b16 %v429
    %v2723 = vunpack.c.l.b16 %v430
    %v2724 = vunpack.c.h.b16 %v430
    %v2725 = vunpack.c.l.b16 %v431
    %v2726 = vunpack.c.h.b16 %v431
    %v2727 = vunpack.c.l.b16 %v432
    %v2728 = vunpack.c.h.b16 %v432
    %v2729 = vunpack.c.l.b16 %v433
    %v2730 = vunpack.c.h.b16 %v433
    %v2731 = vunpack.c.l.b16 %v434
    %v2732 = vunpack.c.h.b16 %v434
    %v2733 = vunpack.c.l.b16 %v435
    %v2734 = vunpack.c.h.b16 %v435
    %v2735 = vunpack.c.l.b16 %v436
    %v2736 = vunpack.c.h.b16 %v436
    %v2737 = vunpack.c.l.b16 %v437
    %v2738 = vunpack.c.h.b16 %v437
    %v2739 = vunpack.c.l.b16 %v438
    %v2740 = vunpack.c.h.b16 %v438
    %v2741 = vunpack.c.l.b16 %v439
    %v2742 = vunpack.c.h.b16 %v439
    %v2743 = vunpack.c.l.b16 %v440
    %v2744 = vunpack.c.h.b16 %v440
    %v2745 = vunpack.c.l.b16 %v441
    %v2746 = vunpack.c.h.b16 %v441
    %v2747 = vunpack.c.l.b16 %v442
    %v2748 = vunpack.c.h.b16 %v442
    %v2749 = vunpack.c.l.b16 %v443
    %v2750 = vunpack.c.h.b16 %v443
    %v2751 = vunpack.c.l.b16 %v444
    %v2752 = vunpack.c.h.b16 %v444
    %v2753 = vunpack.c.l.b16 %v445
    %v2754 = vunpack.c.h.b16 %v445
    %v2755 = vunpack.c.l.b16 %v446
    %v2756 = vunpack.c.h.b16 %v446
    %v2757 = vunpack.c.l.b16 %v447
    %v2758 = vunpack.c.h.b16 %v447
    %v2759 = vunpack.c.l.b16 %v448
    %v2760 = vunpack.c.h.b16 %v448
    %v2761 = vunpack.c.l.b16 %v449
    %v2762 = vunpack.c.h.b16 %v449
    %v2763 = vunpack.c.l.b16 %v450
    %v2764 = vunpack.c.h.b16 %v450
    %v2765 = vunpack.c.l.b16 %v451
    %v2766 = vunpack.c.h.b16 %v451
    %v2767 = vunpack.c.l.b16 %v452
    %v2768 = vunpack.c.h.b16 %v452
    %v2769 = vunpack.c.l.b16 %v453
    %v2770 = vunpack.c.h.b16 %v453
    %v2771 = vunpack.c.l.b16 %v454
    %v2772 = vunpack.c.h.b16 %v454
    %v2773 = vunpack.c.l.b16 %v455
    %v2774 = vunpack.c.h.b16 %v455
    %v2775 = vunpack.c.l.b16 %v456
    %v2776 = vunpack.c.h.b16 %v456
    %v2777 = vunpack.c.l.b16 %v457
    %v2778 = vunpack.c.h.b16 %v457
    %v2779 = vunpack.c.l.b16 %v458
    %v2780 = vunpack.c.h.b16 %v458
    %v2781 = vunpack.c.l.b16 %v459
    %v2782 = vunpack.c.h.b16 %v459
    %v2783 = vunpack.c.l.b16 %v460
    %v2784 = vunpack.c.h.b16 %v460
    %v2785 = vunpack.c.l.b16 %v461
    %v2786 = vunpack.c.h.b16 %v461
    %v2787 = vunpack.c.l.b16 %v462
    %v2788 = vunpack.c.h.b16 %v462
    %v2789 = vunpack.c.l.b16 %v463
    %v2790 = vunpack.c.h.b16 %v463
    %v2791 = vunpack.c.l.b16 %v464
    %v2792 = vunpack.c.h.b16 %v464
    %v2793 = vunpack.c.l.b16 %v465
    %v2794 = vunpack.c.h.b16 %v465
    %v2795 = vunpack.c.l.b16 %v466
    %v2796 = vunpack.c.h.b16 %v466
    %v2797 = vunpack.c.l.b16 %v467
    %v2798 = vunpack.c.h.b16 %v467
    %v2799 = vunpack.c.l.b16 %v468
    %v2800 = vunpack.c.h.b16 %v468
    %v2801 = vunpack.c.l.b16 %v469
    %v2802 = vunpack.c.h.b16 %v469
    %v2803 = vunpack.c.l.b16 %v470
    %v2804 = vunpack.c.h.b16 %v470
    %v2805 = vunpack.c.l.b16 %v471
    %v2806 = vunpack.c.h.b16 %v471
    %v2807 = vunpack.c.l.b16 %v472
    %v2808 = vunpack.c.h.b16 %v472
    %v2809 = vunpack.c.l.b16 %v473
    %v2810 = vunpack.c.h.b16 %v473
    %v2811 = vunpack.c.l.b16 %v474
    %v2812 = vunpack.c.h.b16 %v474
    %v2813 = vunpack.c.l.b16 %v475
    %v2814 = vunpack.c.h.b16 %v475
    %v2815 = vunpack.c.l.b16 %v476
    %v2816 = vunpack.c.h.b16 %v476
    %v2817 = vunpack.c.l.b16 %v477
    %v2818 = vunpack.c.h.b16 %v477
    %v2819 = vunpack.c.l.b16 %v478
    %v2820 = vunpack.c.h.b16 %v478
    %v2821 = vunpack.c.l.b16 %v479
    %v2822 = vunpack.c.h.b16 %v479
    %v2823 = vunpack.c.l.b16 %v480
    %v2824 = vunpack.c.h.b16 %v480
    %v2825 = vunpack.c.l.b16 %v481
    %v2826 = vunpack.c.h.b16 %v481
    %v2827 = vunpack.c.l.b16 %v482
    %v2828 = vunpack.c.h.b16 %v482
    %v2829 = vunpack.c.l.b16 %v483
    %v2830 = vunpack.c.h.b16 %v483
    %v2831 = vunpack.c.l.b16 %v484
    %v2832 = vunpack.c.h.b16 %v484
    %v2833 = vunpack.c.l.b16 %v485
    %v2834 = vunpack.c.h.b16 %v485
    %v2835 = vunpack.c.l.b16 %v486
    %v2836 = vunpack.c.h.b16 %v486
    %v2837 = vunpack.c.l.b16 %v487
    %v2838 = vunpack.c.h.b16 %v487
    %v2839 = vunpack.c.l.b16 %v488
    %v2840 = vunpack.c.h.b16 %v488
    %v2841 = vunpack.c.l.b16 %v489
    %v2842 = vunpack.c.h.b16 %v489
    %v2843 = vunpack.c.l.b16 %v490
    %v2844 = vunpack.c.h.b16 %v490
    %v2845 = vunpack.c.l.b16 %v491
    %v2846 = vunpack.c.h.b16 %v491
    %v2847 = vunpack.c.l.b16 %v492
    %v2848 = vunpack.c.h.b16 %v492
    %v2849 = vunpack.c.l.b16 %v493
    %v2850 = vunpack.c.h.b16 %v493
    %v2851 = vunpack.c.l.b16 %v494
    %v2852 = vunpack.c.h.b16 %v494
    %v2853 = vunpack.c.l.b16 %v495
    %v2854 = vunpack.c.h.b16 %v495
    %v2855 = vunpack.c.l.b16 %v496
    %v2856 = vunpack.c.h.b16 %v496
    %v2857 = vunpack.c.l.b16 %v497
    %v2858 = vunpack.c.h.b16 %v497
    %v2859 = vunpack.c.l.b16 %v498
    %v2860 = vunpack.c.h.b16 %v498
    %v2861 = vunpack.c.l.b16 %v499
    %v2862 = vunpack.c.h.b16 %v499
    %v2863 = vunpack.c.l.b16 %v500
    %v2864 = vunpack.c.h.b16 %v500
    %v2865 = vunpack.c.l.b16 %v501
    %v2866 = vunpack.c.h.b16 %v501
    %v2867 = vunpack.c.l.b16 %v502
    %v2868 = vunpack.c.h.b16 %v502
    %v2869 = vunpack.c.l.b16 %v503
    %v2870 = vunpack.c.h.b16 %v503
    %v2871 = vunpack.c.l.b16 %v504
    %v2872 = vunpack.c.h.b16 %v504
    %v2873 = vunpack.c.l.b16 %v505
    %v2874 = vunpack.c.h.b16 %v505
    %v2875 = vunpack.c.l.b16 %v506
    %v2876 = vunpack.c.h.b16 %v506
    %v2877 = vunpack.c.l.b16 %v507
    %v2878 = vunpack.c.h.b16 %v507
    %v2879 = vunpack.c.l.b16 %v508
    %v2880 = vunpack.c.h.b16 %v508
    %v2881 = vunpack.c.l.b16 %v509
    %v2882 = vunpack.c.h.b16 %v509
    %v2883 = vunpack.c.l.b16 %v510
    %v2884 = vunpack.c.h.b16 %v510
    %v2885 = vunpack.c.l.b16 %v511
    %v2886 = vunpack.c.h.b16 %v511
    %v2887 = vunpack.c.l.b16 %v512
    %v2888 = vunpack.c.h.b16 %v512
    %v2889 = vunpack.c.l.b16 %v513
    %v2890 = vunpack.c.h.b16 %v513
    %v2891 = vunpack.c.l.b16 %v514
    %v2892 = vunpack.c.h.b16 %v514
    %v2893 = vunpack.c.l.b16 %v515
    %v2894 = vunpack.c.h.b16 %v515
    %v2895 = vunpack.c.l.b16 %v516
    %v2896 = vunpack.c.h.b16 %v516
    %v2897 = vunpack.c.l.b16 %v517
    %v2898 = vunpack.c.h.b16 %v517
    %v2899 = vunpack.c.l.b16 %v518
    %v2900 = vunpack.c.h.b16 %v518
    %v2901 = vunpack.c.l.b16 %v519
    %v2902 = vunpack.c.h.b16 %v519
    %v2903 = vunpack.c.l.b16 %v520
    %v2904 = vunpack.c.h.b16 %v520
    %v2905 = vunpack.c.l.b16 %v521
    %v2906 = vunpack.c.h.b16 %v521
    %v2907 = vunpack.c.l.b16 %v522
    %v2908 = vunpack.c.h.b16 %v522
    %v2909 = vunpack.c.l.b16 %v523
    %v2910 = vunpack.c.h.b16 %v523
    %v2911 = vunpack.c.l.b16 %v524
    %v2912 = vunpack.c.h.b16 %v524
    %v2913 = vunpack.c.l.b16 %v525
    %v2914 = vunpack.c.h.b16 %v525
    %v2915 = vunpack.c.l.b16 %v526
    %v2916 = vunpack.c.h.b16 %v526
    %v2917 = vunpack.c.l.b16 %v527
    %v2918 = vunpack.c.h.b16 %v527
    %v2919 = vunpack.c.l.b16 %v528
    %v2920 = vunpack.c.h.b16 %v528
    %v2921 = vunpack.c.l.b16 %v529
    %v2922 = vunpack.c.h.b16 %v529
    %v2923 = vunpack.c.l.b16 %v530
    %v2924 = vunpack.c.h.b16 %v530
    %v2925 = vunpack.c.l.b16 %v531
    %v2926 = vunpack.c.h.b16 %v531
    %v2927 = vunpack.c.l.b16 %v532
    %v2928 = vunpack.c.h.b16 %v532
    %v2929 = vunpack.c.l.b16 %v533
    %v2930 = vunpack.c.h.b16 %v533
    %v2931 = vunpack.c.l.b16 %v534
    %v2932 = vunpack.c.h.b16 %v534
    %v2933 = vunpack.c.l.b16 %v535
    %v2934 = vunpack.c.h.b16 %v535
    %v2935 = vunpack.c.l.b16 %v536
    %v2936 = vunpack.c.h.b16 %v536
    %v2937 = vunpack.c.l.b16 %v537
    %v2938 = vunpack.c.h.b16 %v537
    %v2939 = vunpack.c.l.b16 %v538
    %v2940 = vunpack.c.h.b16 %v538
    %v2941 = vunpack.c.l.b16 %v539
    %v2942 = vunpack.c.h.b16 %v539
    %v2943 = vunpack.c.l.b16 %v540
    %v2944 = vunpack.c.h.b16 %v540
    %v2945 = vunpack.c.l.b16 %v541
    %v2946 = vunpack.c.h.b16 %v541
    %v2947 = vunpack.c.l.b16 %v542
    %v2948 = vunpack.c.h.b16 %v542
    %v2949 = vunpack.c.l.b16 %v543
    %v2950 = vunpack.c.h.b16 %v543
    %v2951 = vunpack.c.l.b16 %v544
    %v2952 = vunpack.c.h.b16 %v544
    %v2953 = vunpack.c.l.b16 %v545
    %v2954 = vunpack.c.h.b16 %v545
    %v2955 = vunpack.c.l.b16 %v546
    %v2956 = vunpack.c.h.b16 %v546
    %v2957 = vunpack.c.l.b16 %v547
    %v2958 = vunpack.c.h.b16 %v547
    %v2959 = vunpack.c.l.b16 %v548
    %v2960 = vunpack.c.h.b16 %v548
    %v2961 = vunpack.c.l.b16 %v549
    %v2962 = vunpack.c.h.b16 %v549
    %v2963 = vunpack.c.l.b16 %v550
    %v2964 = vunpack.c.h.b16 %v550
    %v2965 = vunpack.c.l.b16 %v551
    %v2966 = vunpack.c.h.b16 %v551
    %v2967 = vunpack.c.l.b16 %v552
    %v2968 = vunpack.c.h.b16 %v552
    %v2969 = vunpack.c.l.b16 %v553
    %v2970 = vunpack.c.h.b16 %v553
    %v2971 = vunpack.c.l.b16 %v554
    %v2972 = vunpack.c.h.b16 %v554
    %v2973 = vunpack.c.l.b16 %v555
    %v2974 = vunpack.c.h.b16 %v555
    %v2975 = vunpack.c.l.b16 %v556
    %v2976 = vunpack.c.h.b16 %v556
    %v2977 = vunpack.c.l.b16 %v557
    %v2978 = vunpack.c.h.b16 %v557
    %v2979 = vunpack.c.l.b16 %v558
    %v2980 = vunpack.c.h.b16 %v558
    %v2981 = vunpack.c.l.b16 %v559
    %v2982 = vunpack.c.h.b16 %v559
    %v2983 = vunpack.c.l.b16 %v560
    %v2984 = vunpack.c.h.b16 %v560
    %v2985 = vunpack.c.l.b16 %v561
    %v2986 = vunpack.c.h.b16 %v561
    %v2987 = vunpack.c.l.b16 %v562
    %v2988 = vunpack.c.h.b16 %v562
    %v2989 = vunpack.c.l.b16 %v563
    %v2990 = vunpack.c.h.b16 %v563
    %v2991 = vunpack.c.l.b16 %v564
    %v2992 = vunpack.c.h.b16 %v564
    %v2993 = vunpack.c.l.b16 %v565
    %v2994 = vunpack.c.h.b16 %v565
    %v2995 = vunpack.c.l.b16 %v566
    %v2996 = vunpack.c.h.b16 %v566
    %v2997 = vunpack.c.l.b16 %v567
    %v2998 = vunpack.c.h.b16 %v567
    %v2999 = vunpack.c.l.b16 %v568
    %v3000 = vunpack.c.h.b16 %v568
    %v3001 = vunpack.c.l.b16 %v569
    %v3002 = vunpack.c.h.b16 %v569
    %v3003 = vunpack.c.l.b16 %v570
    %v3004 = vunpack.c.h.b16 %v570
    %v3005 = vunpack.c.l.b16 %v571
    %v3006 = vunpack.c.h.b16 %v571
    %v3007 = vunpack.c.l.b16 %v572
    %v3008 = vunpack.c.h.b16 %v572
    %v3009 = vunpack.c.l.b16 %v573
    %v3010 = vunpack.c.h.b16 %v573
    %v3011 = vunpack.c.l.b16 %v574
    %v3012 = vunpack.c.h.b16 %v574
    %v3013 = vunpack.c.l.b16 %v575
    %v3014 = vunpack.c.h.b16 %v575
    %v3015 = vunpack.c.l.b16 %v576
    %v3016 = vunpack.c.h.b16 %v576
    %v3017 = vunpack.c.l.b16 %v577
    %v3018 = vunpack.c.h.b16 %v577
    %v3019 = vunpack.c.l.b16 %v578
    %v3020 = vunpack.c.h.b16 %v578
    %v3021 = vunpack.c.l.b16 %v579
    %v3022 = vunpack.c.h.b16 %v579
    %v3023 = vunpack.c.l.b16 %v580
    %v3024 = vunpack.c.h.b16 %v580
    %v3025 = vunpack.c.l.b16 %v581
    %v3026 = vunpack.c.h.b16 %v581
    %v3027 = vunpack.c.l.b16 %v582
    %v3028 = vunpack.c.h.b16 %v582
    %v3029 = vunpack.c.l.b16 %v583
    %v3030 = vunpack.c.h.b16 %v583
    %v3031 = vunpack.c.l.b16 %v584
    %v3032 = vunpack.c.h.b16 %v584
    %v3033 = vunpack.c.l.b16 %v585
    %v3034 = vunpack.c.h.b16 %v585
    %v3035 = vunpack.c.l.b16 %v586
    %v3036 = vunpack.c.h.b16 %v586
    %v3037 = vunpack.c.l.b16 %v587
    %v3038 = vunpack.c.h.b16 %v587
    %v3039 = vunpack.c.l.b16 %v588
    %v3040 = vunpack.c.h.b16 %v588
    %v3041 = vunpack.c.l.b16 %v589
    %v3042 = vunpack.c.h.b16 %v589
    %v3043 = vunpack.c.l.b16 %v590
    %v3044 = vunpack.c.h.b16 %v590
    %v3045 = vunpack.c.l.b16 %v591
    %v3046 = vunpack.c.h.b16 %v591
    %v3047 = vunpack.c.l.b16 %v592
    %v3048 = vunpack.c.h.b16 %v592
    %v3049 = vunpack.c.l.b16 %v593
    %v3050 = vunpack.c.h.b16 %v593
    %v3051 = vunpack.c.l.b16 %v594
    %v3052 = vunpack.c.h.b16 %v594
    %v3053 = vunpack.c.l.b16 %v595
    %v3054 = vunpack.c.h.b16 %v595
    %v3055 = vunpack.c.l.b16 %v596
    %v3056 = vunpack.c.h.b16 %v596
    %v3057 = vunpack.c.l.b16 %v597
    %v3058 = vunpack.c.h.b16 %v597
    %v3059 = vunpack.c.l.b16 %v598
    %v3060 = vunpack.c.h.b16 %v598
    %v3061 = vunpack.c.l.b16 %v599
    %v3062 = vunpack.c.h.b16 %v599
    %v3063 = vunpack.c.l.b16 %v600
    %v3064 = vunpack.c.h.b16 %v600
    %v3065 = vunpack.c.l.b16 %v601
    %v3066 = vunpack.c.h.b16 %v601
    %v3067 = vunpack.c.l.b16 %v602
    %v3068 = vunpack.c.h.b16 %v602
    %v3069 = vunpack.c.l.b16 %v603
    %v3070 = vunpack.c.h.b16 %v603
    %v3071 = vunpack.c.l.b16 %v604
    %v3072 = vunpack.c.h.b16 %v604
    %v3073 = vunpack.c.l.b16 %v605
    %v3074 = vunpack.c.h.b16 %v605
    %v3075 = vunpack.c.l.b16 %v606
    %v3076 = vunpack.c.h.b16 %v606
    %v3077 = vunpack.c.l.b16 %v607
    %v3078 = vunpack.c.h.b16 %v607
    %v3079 = vunpack.c.l.b16 %v608
    %v3080 = vunpack.c.h.b16 %v608
    %v3081 = vunpack.c.l.b16 %v609
    %v3082 = vunpack.c.h.b16 %v609
    %v3083 = vunpack.c.l.b16 %v610
    %v3084 = vunpack.c.h.b16 %v610
    %v3085 = vunpack.c.l.b16 %v611
    %v3086 = vunpack.c.h.b16 %v611
    %v3087 = vunpack.c.l.b16 %v612
    %v3088 = vunpack.c.h.b16 %v612
    %v3089 = vunpack.c.l.b16 %v613
    %v3090 = vunpack.c.h.b16 %v613
    %v3091 = vunpack.c.l.b16 %v614
    %v3092 = vunpack.c.h.b16 %v614
    %v3093 = vunpack.c.l.b16 %v615
    %v3094 = vunpack.c.h.b16 %v615
    %v3095 = vunpack.c.l.b16 %v616
    %v3096 = vunpack.c.h.b16 %v616
    %v3097 = vunpack.c.l.b16 %v617
    %v3098 = vunpack.c.h.b16 %v617
    %v3099 = vunpack.c.l.b16 %v618
    %v3100 = vunpack.c.h.b16 %v618
    %v3101 = vunpack.c.l.b16 %v619
    %v3102 = vunpack.c.h.b16 %v619
    %v3103 = vunpack.c.l.b16 %v620
    %v3104 = vunpack.c.h.b16 %v620
    %v3105 = vunpack.c.l.b16 %v621
    %v3106 = vunpack.c.h.b16 %v621
    %v3107 = vunpack.c.l.b16 %v622
    %v3108 = vunpack.c.h.b16 %v622
    %v3109 = vunpack.c.l.b16 %v623
    %v3110 = vunpack.c.h.b16 %v623
    %v3111 = vunpack.c.l.b16 %v624
    %v3112 = vunpack.c.h.b16 %v624
    %v3113 = vunpack.c.l.b16 %v625
    %v3114 = vunpack.c.h.b16 %v625
    %v3115 = vunpack.c.l.b16 %v626
    %v3116 = vunpack.c.h.b16 %v626
    %v3117 = vunpack.c.l.b16 %v627
    %v3118 = vunpack.c.h.b16 %v627
    %v3119 = vunpack.c.l.b16 %v628
    %v3120 = vunpack.c.h.b16 %v628
    %v3121 = vunpack.c.l.b16 %v629
    %v3122 = vunpack.c.h.b16 %v629
    %v3123 = vunpack.c.l.b16 %v630
    %v3124 = vunpack.c.h.b16 %v630
    %v3125 = vunpack.c.l.b16 %v631
    %v3126 = vunpack.c.h.b16 %v631
    %v3127 = vunpack.c.l.b16 %v632
    %v3128 = vunpack.c.h.b16 %v632
    %v3129 = vunpack.c.l.b16 %v633
    %v3130 = vunpack.c.h.b16 %v633
    %v3131 = vunpack.c.l.b16 %v634
    %v3132 = vunpack.c.h.b16 %v634
    %v3133 = vunpack.c.l.b16 %v635
    %v3134 = vunpack.c.h.b16 %v635
    %v3135 = vunpack.c.l.b16 %v636
    %v3136 = vunpack.c.h.b16 %v636
    %v3137 = vunpack.c.l.b16 %v637
    %v3138 = vunpack.c.h.b16 %v637
    %v3139 = vunpack.c.l.b16 %v638
    %v3140 = vunpack.c.h.b16 %v638
    %v3141 = vunpack.c.l.b16 %v639
    %v3142 = vunpack.c.h.b16 %v639
    %v3143 = vunpack.c.l.b16 %v640
    %v3144 = vunpack.c.h.b16 %v640
    %v3145 = vunpack.c.l.b16 %v641
    %v3146 = vunpack.c.h.b16 %v641
    %v3147 = vunpack.c.l.b16 %v642
    %v3148 = vunpack.c.h.b16 %v642
    %v3149 = vunpack.c.l.b16 %v643
    %v3150 = vunpack.c.h.b16 %v643
    %v3151 = vunpack.c.l.b16 %v644
    %v3152 = vunpack.c.h.b16 %v644
    %v3153 = vunpack.c.l.b16 %v645
    %v3154 = vunpack.c.h.b16 %v645
    %v3155 = vunpack.c.l.b16 %v646
    %v3156 = vunpack.c.h.b16 %v646
    %v3157 = vunpack.c.l.b16 %v647
    %v3158 = vunpack.c.h.b16 %v647
    %v3159 = vunpack.c.l.b16 %v648
    %v3160 = vunpack.c.h.b16 %v648
    %v3161 = vunpack.c.l.b16 %v649
    %v3162 = vunpack.c.h.b16 %v649
    %v3163 = vunpack.c.l.b16 %v650
    %v3164 = vunpack.c.h.b16 %v650
    %v3165 = vunpack.c.l.b16 %v651
    %v3166 = vunpack.c.h.b16 %v651
    %v3167 = vunpack.c.l.b16 %v652
    %v3168 = vunpack.c.h.b16 %v652
    %v3169 = vunpack.c.l.b16 %v653
    %v3170 = vunpack.c.h.b16 %v653
    %v3171 = vunpack.c.l.b16 %v654
    %v3172 = vunpack.c.h.b16 %v654
    %v3173 = vunpack.c.l.b16 %v655
    %v3174 = vunpack.c.h.b16 %v655
    %v3175 = vunpack.c.l.b16 %v656
    %v3176 = vunpack.c.h.b16 %v656
    %v3177 = vunpack.c.l.b16 %v657
    %v3178 = vunpack.c.h.b16 %v657
    %v3179 = vunpack.c.l.b16 %v658
    %v3180 = vunpack.c.h.b16 %v658
    %v3181 = vunpack.c.l.b16 %v659
    %v3182 = vunpack.c.h.b16 %v659
    %v3183 = vunpack.c.l.b16 %v660
    %v3184 = vunpack.c.h.b16 %v660
    %v3185 = vunpack.c.l.b16 %v661
    %v3186 = vunpack.c.h.b16 %v661
    %v3187 = vunpack.c.l.b16 %v662
    %v3188 = vunpack.c.h.b16 %v662
    %v3189 = vunpack.c.l.b16 %v663
    %v3190 = vunpack.c.h.b16 %v663
    %v3191 = vunpack.c.l.b16 %v664
    %v3192 = vunpack.c.h.b16 %v664
    %v3193 = vunpack.c.l.b16 %v665
    %v3194 = vunpack.c.h.b16 %v665
    %v3195 = vunpack.c.l.b16 %v666
    %v3196 = vunpack.c.h.b16 %v666
    %v3197 = vunpack.c.l.b16 %v667
    %v3198 = vunpack.c.h.b16 %v667
    %v3199 = vunpack.c.l.b16 %v668
    %v3200 = vunpack.c.h.b16 %v668
    %v3201 = vunpack.c.l.b16 %v669
    %v3202 = vunpack.c.h.b16 %v669
    %v3203 = vunpack.c.l.b16 %v670
    %v3204 = vunpack.c.h.b16 %v670
    %v3205 = vunpack.c.l.b16 %v671
    %v3206 = vunpack.c.h.b16 %v671
    %v3207 = vunpack.c.l.b16 %v672
    %v3208 = vunpack.c.h.b16 %v672
    %v3209 = vunpack.c.l.b16 %v673
    %v3210 = vunpack.c.h.b16 %v673
    %v3211 = vunpack.c.l.b16 %v674
    %v3212 = vunpack.c.h.b16 %v674
    %v3213 = vunpack.c.l.b16 %v675
    %v3214 = vunpack.c.h.b16 %v675
    %v3215 = vunpack.c.l.b16 %v676
    %v3216 = vunpack.c.h.b16 %v676
    %v3217 = vunpack.c.l.b16 %v677
    %v3218 = vunpack.c.h.b16 %v677
    %v3219 = vunpack.c.l.b16 %v678
    %v3220 = vunpack.c.h.b16 %v678
    %v3221 = vunpack.c.l.b16 %v679
    %v3222 = vunpack.c.h.b16 %v679
    %v3223 = vunpack.c.l.b16 %v680
    %v3224 = vunpack.c.h.b16 %v680
    %v3225 = vunpack.c.l.b16 %v681
    %v3226 = vunpack.c.h.b16 %v681
    %v3227 = vunpack.c.l.b16 %v682
    %v3228 = vunpack.c.h.b16 %v682
    %v3229 = vunpack.c.l.b16 %v683
    %v3230 = vunpack.c.h.b16 %v683
    %v3231 = vunpack.c.l.b16 %v684
    %v3232 = vunpack.c.h.b16 %v684
    %v3233 = vunpack.c.l.b16 %v685
    %v3234 = vunpack.c.h.b16 %v685
    %v3235 = vunpack.c.l.b16 %v686
    %v3236 = vunpack.c.h.b16 %v686
    %v3237 = vunpack.c.l.b16 %v687
    %v3238 = vunpack.c.h.b16 %v687
    %v3239 = vunpack.c.l.b16 %v688
    %v3240 = vunpack.c.h.b16 %v688
    %v3241 = vunpack.c.l.b16 %v689
    %v3242 = vunpack.c.h.b16 %v689
    %v3243 = vunpack.c.l.b16 %v690
    %v3244 = vunpack.c.h.b16 %v690
    %v3245 = vunpack.c.l.b16 %v691
    %v3246 = vunpack.c.h.b16 %v691
    %v3247 = vunpack.c.l.b16 %v692
    %v3248 = vunpack.c.h.b16 %v692
    %v3249 = vunpack.c.l.b16 %v693
    %v3250 = vunpack.c.h.b16 %v693
    %v3251 = vunpack.c.l.b16 %v694
    %v3252 = vunpack.c.h.b16 %v694
    %v3253 = vunpack.c.l.b16 %v695
    %v3254 = vunpack.c.h.b16 %v695
    %v3255 = vunpack.c.l.b16 %v696
    %v3256 = vunpack.c.h.b16 %v696
    %v3257 = vunpack.c.l.b16 %v697
    %v3258 = vunpack.c.h.b16 %v697
    %v3259 = vunpack.c.l.b16 %v698
    %v3260 = vunpack.c.h.b16 %v698
    %v3261 = vunpack.c.l.b16 %v699
    %v3262 = vunpack.c.h.b16 %v699
    %v3263 = vunpack.c.l.b16 %v700
    %v3264 = vunpack.c.h.b16 %v700
    %v3265 = vunpack.c.l.b16 %v701
    %v3266 = vunpack.c.h.b16 %v701
    %v3267 = vunpack.c.l.b16 %v702
    %v3268 = vunpack.c.h.b16 %v702
    %v3269 = vunpack.c.l.b16 %v703
    %v3270 = vunpack.c.h.b16 %v703
    %v3271 = vunpack.c.l.b16 %v704
    %v3272 = vunpack.c.h.b16 %v704
    %v3273 = vunpack.c.l.b16 %v705
    %v3274 = vunpack.c.h.b16 %v705
    %v3275 = vunpack.c.l.b16 %v706
    %v3276 = vunpack.c.h.b16 %v706
    %v3277 = vunpack.c.l.b16 %v707
    %v3278 = vunpack.c.h.b16 %v707
    %v3279 = vunpack.c.l.b16 %v708
    %v3280 = vunpack.c.h.b16 %v708
    %v3281 = vunpack.c.l.b16 %v709
    %v3282 = vunpack.c.h.b16 %v709
    %v3283 = vunpack.c.l.b16 %v710
    %v3284 = vunpack.c.h.b16 %v710
    %v3285 = vunpack.c.l.b16 %v711
    %v3286 = vunpack.c.h.b16 %v711
    %v3287 = vunpack.c.l.b16 %v712
    %v3288 = vunpack.c.h.b16 %v712
    %v3289 = vunpack.c.l.b16 %v713
    %v3290 = vunpack.c.h.b16 %v713
    %v3291 = vunpack.c.l.b16 %v714
    %v3292 = vunpack.c.h.b16 %v714
    %v3293 = vunpack.c.l.b16 %v715
    %v3294 = vunpack.c.h.b16 %v715
    %v3295 = vunpack.c.l.b16 %v716
    %v3296 = vunpack.c.h.b16 %v716
    %v3297 = vunpack.c.l.b16 %v717
    %v3298 = vunpack.c.h.b16 %v717
    %v3299 = vunpack.c.l.b16 %v718
    %v3300 = vunpack.c.h.b16 %v718
    %v3301 = vunpack.c.l.b16 %v719
    %v3302 = vunpack.c.h.b16 %v719
    %v3303 = vunpack.c.l.b16 %v720
    %v3304 = vunpack.c.h.b16 %v720
    %v3305 = vunpack.c.l.b16 %v721
    %v3306 = vunpack.c.h.b16 %v721
    %v3307 = vunpack.c.l.b16 %v722
    %v3308 = vunpack.c.h.b16 %v722
    %v3309 = vunpack.c.l.b16 %v723
    %v3310 = vunpack.c.h.b16 %v723
    %v3311 = vunpack.c.l.b16 %v724
    %v3312 = vunpack.c.h.b16 %v724
    %v3313 = vunpack.c.l.b16 %v725
    %v3314 = vunpack.c.h.b16 %v725
    %v3315 = vunpack.c.l.b16 %v726
    %v3316 = vunpack.c.h.b16 %v726
    %v3317 = vunpack.c.l.b16 %v727
    %v3318 = vunpack.c.h.b16 %v727
    %v3319 = vunpack.c.l.b16 %v728
    %v3320 = vunpack.c.h.b16 %v728
    %v3321 = vunpack.c.l.b16 %v729
    %v3322 = vunpack.c.h.b16 %v729
    %v3323 = vunpack.c.l.b16 %v730
    %v3324 = vunpack.c.h.b16 %v730
    %v3325 = vunpack.c.l.b16 %v731
    %v3326 = vunpack.c.h.b16 %v731
    %v3327 = vunpack.c.l.b16 %v732
    %v3328 = vunpack.c.h.b16 %v732
    %v3329 = vunpack.c.l.b16 %v733
    %v3330 = vunpack.c.h.b16 %v733
    %v3331 = vunpack.c.l.b16 %v734
    %v3332 = vunpack.c.h.b16 %v734
    %v3333 = vunpack.c.l.b16 %v735
    %v3334 = vunpack.c.h.b16 %v735
    %v3335 = vunpack.c.l.b16 %v736
    %v3336 = vunpack.c.h.b16 %v736
    %v3337 = vunpack.c.l.b16 %v737
    %v3338 = vunpack.c.h.b16 %v737
    %v3339 = vunpack.c.l.b16 %v738
    %v3340 = vunpack.c.h.b16 %v738
    %v3341 = vunpack.c.l.b16 %v739
    %v3342 = vunpack.c.h.b16 %v739
    %v3343 = vunpack.c.l.b16 %v740
    %v3344 = vunpack.c.h.b16 %v740
    %v3345 = vunpack.c.l.b16 %v741
    %v3346 = vunpack.c.h.b16 %v741
    %v3347 = vunpack.c.l.b16 %v742
    %v3348 = vunpack.c.h.b16 %v742
    %v3349 = vunpack.c.l.b16 %v743
    %v3350 = vunpack.c.h.b16 %v743
    %v3351 = vunpack.c.l.b16 %v744
    %v3352 = vunpack.c.h.b16 %v744
    %v3353 = vunpack.c.l.b16 %v745
    %v3354 = vunpack.c.h.b16 %v745
    %v3355 = vunpack.c.l.b16 %v746
    %v3356 = vunpack.c.h.b16 %v746
    %v3357 = vunpack.c.l.b16 %v747
    %v3358 = vunpack.c.h.b16 %v747
    %v3359 = vunpack.c.l.b16 %v748
    %v3360 = vunpack.c.h.b16 %v748
    %v3361 = vunpack.c.l.b16 %v749
    %v3362 = vunpack.c.h.b16 %v749
    %v3363 = vunpack.c.l.b16 %v750
    %v3364 = vunpack.c.h.b16 %v750
    %v3365 = vunpack.c.l.b16 %v751
    %v3366 = vunpack.c.h.b16 %v751
    %v3367 = vunpack.c.l.b16 %v752
    %v3368 = vunpack.c.h.b16 %v752
    %v3369 = vunpack.c.l.b16 %v753
    %v3370 = vunpack.c.h.b16 %v753
    %v3371 = vunpack.c.l.b16 %v754
    %v3372 = vunpack.c.h.b16 %v754
    %v3373 = vunpack.c.l.b16 %v755
    %v3374 = vunpack.c.h.b16 %v755
    %v3375 = vunpack.c.l.b16 %v756
    %v3376 = vunpack.c.h.b16 %v756
    %v3377 = vunpack.c.l.b16 %v757
    %v3378 = vunpack.c.h.b16 %v757
    %v3379 = vunpack.c.l.b16 %v758
    %v3380 = vunpack.c.h.b16 %v758
    %v3381 = vunpack.c.l.b16 %v759
    %v3382 = vunpack.c.h.b16 %v759
    %v3383 = vunpack.c.l.b16 %v760
    %v3384 = vunpack.c.h.b16 %v760
    %v3385 = vunpack.c.l.b16 %v761
    %v3386 = vunpack.c.h.b16 %v761
    %v3387 = vunpack.c.l.b16 %v762
    %v3388 = vunpack.c.h.b16 %v762
    %v3389 = vunpack.c.l.b16 %v763
    %v3390 = vunpack.c.h.b16 %v763
    %v3391 = vunpack.c.l.b16 %v764
    %v3392 = vunpack.c.h.b16 %v764
    %v3393 = vunpack.c.l.b16 %v765
    %v3394 = vunpack.c.h.b16 %v765
    %v3395 = vunpack.c.l.b16 %v766
    %v3396 = vunpack.c.h.b16 %v766
    %v3397 = vunpack.c.l.b16 %v767
    %v3398 = vunpack.c.h.b16 %v767
    %v3399 = vunpack.c.l.b16 %v768
    %v3400 = vunpack.c.h.b16 %v768
    %v3401 = vunpack.c.l.b16 %v769
    %v3402 = vunpack.c.h.b16 %v769
    %v3403 = vunpack.c.l.b16 %v770
    %v3404 = vunpack.c.h.b16 %v770
    %v3405 = vunpack.c.l.b16 %v771
    %v3406 = vunpack.c.h.b16 %v771
    %v3407 = vunpack.c.l.b16 %v772
    %v3408 = vunpack.c.h.b16 %v772
    %v3409 = vunpack.c.l.b16 %v773
    %v3410 = vunpack.c.h.b16 %v773
    %v3411 = vunpack.c.l.b16 %v774
    %v3412 = vunpack.c.h.b16 %v774
    %v3413 = vunpack.c.l.b16 %v775
    %v3414 = vunpack.c.h.b16 %v775
    %v3415 = vunpack.c.l.b16 %v776
    %v3416 = vunpack.c.h.b16 %v776
    %v3417 = vunpack.c.l.b16 %v777
    %v3418 = vunpack.c.h.b16 %v777
    %v3419 = vunpack.c.l.b16 %v778
    %v3420 = vunpack.c.h.b16 %v778
    %v3421 = vunpack.c.l.b16 %v779
    %v3422 = vunpack.c.h.b16 %v779
    %v3423 = vunpack.c.l.b16 %v780
    %v3424 = vunpack.c.h.b16 %v780
    %v3425 = vunpack.c.l.b16 %v781
    %v3426 = vunpack.c.h.b16 %v781
    %v3427 = vunpack.c.l.b16 %v782
    %v3428 = vunpack.c.h.b16 %v782
    %v3429 = vunpack.c.l.b16 %v783
    %v3430 = vunpack.c.h.b16 %v783
    %v3431 = vunpack.c.l.b16 %v784
    %v3432 = vunpack.c.h.b16 %v784
    %v3433 = vunpack.c.l.b16 %v785
    %v3434 = vunpack.c.h.b16 %v785
    %v3435 = vunpack.c.l.b16 %v786
    %v3436 = vunpack.c.h.b16 %v786
    %v3437 = vunpack.c.l.b16 %v787
    %v3438 = vunpack.c.h.b16 %v787
    %v3439 = vunpack.c.l.b16 %v788
    %v3440 = vunpack.c.h.b16 %v788
    %v3441 = vunpack.c.l.b16 %v789
    %v3442 = vunpack.c.h.b16 %v789
    %v3443 = vunpack.c.l.b16 %v790
    %v3444 = vunpack.c.h.b16 %v790
    %v3445 = vunpack.c.l.b16 %v791
    %v3446 = vunpack.c.h.b16 %v791
    %v3447 = vunpack.c.l.b16 %v792
    %v3448 = vunpack.c.h.b16 %v792
    %v3449 = vunpack.c.l.b16 %v793
    %v3450 = vunpack.c.h.b16 %v793
    %v3451 = vunpack.c.l.b16 %v794
    %v3452 = vunpack.c.h.b16 %v794
    %v3453 = vunpack.c.l.b16 %v795
    %v3454 = vunpack.c.h.b16 %v795
    %v3455 = vunpack.c.l.b16 %v796
    %v3456 = vunpack.c.h.b16 %v796
    %v3457 = vunpack.c.l.b16 %v797
    %v3458 = vunpack.c.h.b16 %v797
    %v3459 = vunpack.c.l.b16 %v798
    %v3460 = vunpack.c.h.b16 %v798
    %v3461 = vunpack.c.l.b16 %v799
    %v3462 = vunpack.c.h.b16 %v799
    %v3463 = vunpack.c.l.b16 %v800
    %v3464 = vunpack.c.h.b16 %v800
    %v3465 = vunpack.c.l.b16 %v801
    %v3466 = vunpack.c.h.b16 %v801
    %v3467 = vunpack.c.l.b16 %v802
    %v3468 = vunpack.c.h.b16 %v802
    %v3469 = vunpack.c.l.b16 %v803
    %v3470 = vunpack.c.h.b16 %v803
    %v3471 = vunpack.c.l.b16 %v804
    %v3472 = vunpack.c.h.b16 %v804
    %v3473 = vunpack.c.l.b16 %v805
    %v3474 = vunpack.c.h.b16 %v805
    %v3475 = vunpack.c.l.b16 %v806
    %v3476 = vunpack.c.h.b16 %v806
    %v3477 = vunpack.c.l.b16 %v807
    %v3478 = vunpack.c.h.b16 %v807
    %v3479 = vunpack.c.l.b16 %v808
    %v3480 = vunpack.c.h.b16 %v808
    %v3481 = vunpack.c.l.b16 %v809
    %v3482 = vunpack.c.h.b16 %v809
    %v3483 = vunpack.c.l.b16 %v810
    %v3484 = vunpack.c.h.b16 %v810
    %v3485 = vunpack.c.l.b16 %v811
    %v3486 = vunpack.c.h.b16 %v811
    %v3487 = vunpack.c.l.b16 %v812
    %v3488 = vunpack.c.h.b16 %v812
    %v3489 = vunpack.c.l.b16 %v813
    %v3490 = vunpack.c.h.b16 %v813
    %v3491 = vunpack.c.l.b16 %v814
    %v3492 = vunpack.c.h.b16 %v814
    %v3493 = vunpack.c.l.b16 %v815
    %v3494 = vunpack.c.h.b16 %v815
    %v3495 = vunpack.c.l.b16 %v816
    %v3496 = vunpack.c.h.b16 %v816
    %v3497 = vunpack.c.l.b16 %v817
    %v3498 = vunpack.c.h.b16 %v817
    %v3499 = vunpack.c.l.b16 %v818
    %v3500 = vunpack.c.h.b16 %v818
    %v3501 = vunpack.c.l.b16 %v819
    %v3502 = vunpack.c.h.b16 %v819
    %v3503 = vunpack.c.l.b16 %v820
    %v3504 = vunpack.c.h.b16 %v820
    %v3505 = vunpack.c.l.b16 %v821
    %v3506 = vunpack.c.h.b16 %v821
    %v3507 = vunpack.c.l.b16 %v822
    %v3508 = vunpack.c.h.b16 %v822
    %v3509 = vunpack.c.l.b16 %v823
    %v3510 = vunpack.c.h.b16 %v823
    %v3511 = vunpack.c.l.b16 %v824
    %v3512 = vunpack.c.h.b16 %v824
    %v3513 = vunpack.c.l.b16 %v825
    %v3514 = vunpack.c.h.b16 %v825
    %v3515 = vunpack.c.l.b16 %v826
    %v3516 = vunpack.c.h.b16 %v826
    %v3517 = vunpack.c.l.b16 %v827
    %v3518 = vunpack.c.h.b16 %v827
    %v3519 = vunpack.c.l.b16 %v828
    %v3520 = vunpack.c.h.b16 %v828
    %v3521 = vunpack.c.l.b16 %v829
    %v3522 = vunpack.c.h.b16 %v829
    %v3523 = vunpack.c.l.b16 %v830
    %v3524 = vunpack.c.h.b16 %v830
    %v3525 = vunpack.c.l.b16 %v831
    %v3526 = vunpack.c.h.b16 %v831
    %v3527 = vunpack.c.l.b16 %v832
    %v3528 = vunpack.c.h.b16 %v832
    %v3529 = vunpack.c.l.b16 %v833
    %v3530 = vunpack.c.h.b16 %v833
    %v3531 = vunpack.c.l.b16 %v834
    %v3532 = vunpack.c.h.b16 %v834
    %v3533 = vunpack.c.l.b16 %v835
    %v3534 = vunpack.c.h.b16 %v835
    %v3535 = vunpack.c.l.b16 %v836
    %v3536 = vunpack.c.h.b16 %v836
    %v3537 = vunpack.c.l.b16 %v837
    %v3538 = vunpack.c.h.b16 %v837
    %v3539 = vunpack.c.l.b16 %v838
    %v3540 = vunpack.c.h.b16 %v838
    %v3541 = vunpack.c.l.b16 %v839
    %v3542 = vunpack.c.h.b16 %v839
    %v3543 = vunpack.c.l.b16 %v840
    %v3544 = vunpack.c.h.b16 %v840
    %v3545 = vunpack.c.l.b16 %v841
    %v3546 = vunpack.c.h.b16 %v841
    %v3547 = vunpack.c.l.b16 %v842
    %v3548 = vunpack.c.h.b16 %v842
    %v3549 = vunpack.c.l.b16 %v843
    %v3550 = vunpack.c.h.b16 %v843
    %v3551 = vunpack.c.l.b16 %v844
    %v3552 = vunpack.c.h.b16 %v844
    %v3553 = vunpack.c.l.b16 %v845
    %v3554 = vunpack.c.h.b16 %v845
    %v3555 = vunpack.c.l.b16 %v846
    %v3556 = vunpack.c.h.b16 %v846
    %v3557 = vunpack.c.l.b16 %v847
    %v3558 = vunpack.c.h.b16 %v847
    %v3559 = vunpack.c.l.b16 %v848
    %v3560 = vunpack.c.h.b16 %v848
    %v3561 = vunpack.c.l.b16 %v849
    %v3562 = vunpack.c.h.b16 %v849
    %v3563 = vunpack.c.l.b16 %v850
    %v3564 = vunpack.c.h.b16 %v850
    %v3565 = vunpack.c.l.b16 %v851
    %v3566 = vunpack.c.h.b16 %v851
    %v3567 = vunpack.c.l.b16 %v852
    %v3568 = vunpack.c.h.b16 %v852
    %v3569 = vunpack.c.l.b16 %v853
    %v3570 = vunpack.c.h.b16 %v853
    %v3571 = vunpack.c.l.b16 %v854
    %v3572 = vunpack.c.h.b16 %v854
    %v3573 = vunpack.c.l.b16 %v855
    %v3574 = vunpack.c.h.b16 %v855
    %v3575 = vunpack.c.l.b16 %v856
    %v3576 = vunpack.c.h.b16 %v856
    %v3577 = vunpack.c.l.b16 %v857
    %v3578 = vunpack.c.h.b16 %v857
    %v3579 = vunpack.c.l.b16 %v858
    %v3580 = vunpack.c.h.b16 %v858
    %v3581 = vunpack.c.l.b16 %v859
    %v3582 = vunpack.c.h.b16 %v859
    %v3583 = vunpack.c.l.b16 %v860
    %v3584 = vunpack.c.h.b16 %v860
    %v3585 = vunpack.c.l.b16 %v861
    %v3586 = vunpack.c.h.b16 %v861
    %v3587 = vunpack.c.l.b16 %v862
    %v3588 = vunpack.c.h.b16 %v862
    %v3589 = vunpack.c.l.b16 %v863
    %v3590 = vunpack.c.h.b16 %v863
    %v3591 = vunpack.c.l.b16 %v864
    %v3592 = vunpack.c.h.b16 %v864
    %v3593 = vunpack.c.l.b16 %v865
    %v3594 = vunpack.c.h.b16 %v865
    %v3595 = vunpack.c.l.b16 %v866
    %v3596 = vunpack.c.h.b16 %v866
    %v3597 = vunpack.c.l.b16 %v867
    %v3598 = vunpack.c.h.b16 %v867
    %v3599 = vunpack.c.l.b16 %v868
    %v3600 = vunpack.c.h.b16 %v868
    %v3601 = vunpack.c.l.b16 %v869
    %v3602 = vunpack.c.h.b16 %v869
    %v3603 = vunpack.c.l.b16 %v870
    %v3604 = vunpack.c.h.b16 %v870
    %v3605 = vunpack.c.l.b16 %v871
    %v3606 = vunpack.c.h.b16 %v871
    %v3607 = vunpack.c.l.b16 %v872
    %v3608 = vunpack.c.h.b16 %v872
    %v3609 = vunpack.c.l.b16 %v873
    %v3610 = vunpack.c.h.b16 %v873
    %v3611 = vunpack.c.l.b16 %v874
    %v3612 = vunpack.c.h.b16 %v874
    %v3613 = vunpack.c.l.b16 %v875
    %v3614 = vunpack.c.h.b16 %v875
    %v3615 = vunpack.c.l.b16 %v876
    %v3616 = vunpack.c.h.b16 %v876
    %v3617 = vunpack.c.l.b16 %v877
    %v3618 = vunpack.c.h.b16 %v877
    %v3619 = vunpack.c.l.b16 %v878
    %v3620 = vunpack.c.h.b16 %v878
    %v3621 = vunpack.c.l.b16 %v879
    %v3622 = vunpack.c.h.b16 %v879
    %v3623 = vunpack.c.l.b16 %v880
    %v3624 = vunpack.c.h.b16 %v880
    %v3625 = vunpack.c.l.b16 %v881
    %v3626 = vunpack.c.h.b16 %v881
    %v3627 = vunpack.c.l.b16 %v882
    %v3628 = vunpack.c.h.b16 %v882
    %v3629 = vunpack.c.l.b16 %v883
    %v3630 = vunpack.c.h.b16 %v883
    %v3631 = vunpack.c.l.b16 %v884
    %v3632 = vunpack.c.h.b16 %v884
    %v3633 = vunpack.c.l.b16 %v885
    %v3634 = vunpack.c.h.b16 %v885
    %v3635 = vunpack.c.l.b16 %v886
    %v3636 = vunpack.c.h.b16 %v886
    %v3637 = vunpack.c.l.b16 %v887
    %v3638 = vunpack.c.h.b16 %v887
    %v3639 = vunpack.c.l.b16 %v888
    %v3640 = vunpack.c.h.b16 %v888
    %v3641 = vunpack.c.l.b16 %v889
    %v3642 = vunpack.c.h.b16 %v889
    %v3643 = vunpack.c.l.b16 %v890
    %v3644 = vunpack.c.h.b16 %v890
    %v3645 = vunpack.c.l.b16 %v891
    %v3646 = vunpack.c.h.b16 %v891
    %v3647 = vunpack.c.l.b16 %v892
    %v3648 = vunpack.c.h.b16 %v892
    %v3649 = vunpack.c.l.b16 %v893
    %v3650 = vunpack.c.h.b16 %v893
    %v3651 = vunpack.c.l.b16 %v894
    %v3652 = vunpack.c.h.b16 %v894
    %v3653 = vunpack.c.l.b16 %v895
    %v3654 = vunpack.c.h.b16 %v895
    %v3655 = vunpack.c.l.b16 %v896
    %v3656 = vunpack.c.h.b16 %v896
    %v3657 = vunpack.c.l.b16 %v897
    %v3658 = vunpack.c.h.b16 %v897
    %v3659 = vunpack.c.l.b16 %v898
    %v3660 = vunpack.c.h.b16 %v898
    %v3661 = vunpack.c.l.b16 %v899
    %v3662 = vunpack.c.h.b16 %v899
    %v3663 = vunpack.c.l.b16 %v900
    %v3664 = vunpack.c.h.b16 %v900
    %v3665 = vunpack.c.l.b16 %v901
    %v3666 = vunpack.c.h.b16 %v901
    %v3667 = vunpack.c.l.b16 %v902
    %v3668 = vunpack.c.h.b16 %v902
    %v3669 = vunpack.c.l.b16 %v903
    %v3670 = vunpack.c.h.b16 %v903
    %v3671 = vunpack.c.l.b16 %v904
    %v3672 = vunpack.c.h.b16 %v904
    %v3673 = vunpack.c.l.b16 %v905
    %v3674 = vunpack.c.h.b16 %v905
    %v3675 = vunpack.c.l.b16 %v906
    %v3676 = vunpack.c.h.b16 %v906
    %v3677 = vunpack.c.l.b16 %v907
    %v3678 = vunpack.c.h.b16 %v907
    %v3679 = vunpack.c.l.b16 %v908
    %v3680 = vunpack.c.h.b16 %v908
    %v3681 = vunpack.c.l.b16 %v909
    %v3682 = vunpack.c.h.b16 %v909
    %v3683 = vunpack.c.l.b16 %v910
    %v3684 = vunpack.c.h.b16 %v910
    %v3685 = vunpack.c.l.b16 %v911
    %v3686 = vunpack.c.h.b16 %v911
    %v3687 = vunpack.c.l.b16 %v912
    %v3688 = vunpack.c.h.b16 %v912
    %v3689 = vunpack.c.l.b16 %v913
    %v3690 = vunpack.c.h.b16 %v913
    %v3691 = vunpack.c.l.b16 %v914
    %v3692 = vunpack.c.h.b16 %v914
    %v3693 = vunpack.c.l.b16 %v915
    %v3694 = vunpack.c.h.b16 %v915
    %v3695 = vunpack.c.l.b16 %v916
    %v3696 = vunpack.c.h.b16 %v916
    %v3697 = vunpack.c.l.b16 %v917
    %v3698 = vunpack.c.h.b16 %v917
    %v3699 = vunpack.c.l.b16 %v918
    %v3700 = vunpack.c.h.b16 %v918
    %v3701 = vunpack.c.l.b16 %v919
    %v3702 = vunpack.c.h.b16 %v919
    %v3703 = vunpack.c.l.b16 %v920
    %v3704 = vunpack.c.h.b16 %v920
    %v3705 = vunpack.c.l.b16 %v921
    %v3706 = vunpack.c.h.b16 %v921
    %v3707 = vunpack.c.l.b16 %v922
    %v3708 = vunpack.c.h.b16 %v922
    %v3709 = vunpack.c.l.b16 %v923
    %v3710 = vunpack.c.h.b16 %v923
    %v3711 = vunpack.c.l.b16 %v924
    %v3712 = vunpack.c.h.b16 %v924
    %v3713 = vunpack.c.l.b16 %v925
    %v3714 = vunpack.c.h.b16 %v925
    %v3715 = vunpack.c.l.b16 %v926
    %v3716 = vunpack.c.h.b16 %v926
    %v3717 = vunpack.c.l.b16 %v927
    %v3718 = vunpack.c.h.b16 %v927
    %v3719 = vunpack.c.l.b16 %v928
    %v3720 = vunpack.c.h.b16 %v928
    %v3721 = vunpack.c.l.b16 %v929
    %v3722 = vunpack.c.h.b16 %v929
    %v3723 = vunpack.c.l.b16 %v930
    %v3724 = vunpack.c.h.b16 %v930
    %v3725 = vunpack.c.l.b16 %v931
    %v3726 = vunpack.c.h.b16 %v931
    %v3727 = vunpack.c.l.b16 %v932
    %v3728 = vunpack.c.h.b16 %v932
    %v3729 = vunpack.c.l.b16 %v933
    %v3730 = vunpack.c.h.b16 %v933
    %v3731 = vunpack.c.l.b16 %v934
    %v3732 = vunpack.c.h.b16 %v934
    %v3733 = vunpack.c.l.b16 %v935
    %v3734 = vunpack.c.h.b16 %v935
    %v3735 = vunpack.c.l.b16 %v936
    %v3736 = vunpack.c.h.b16 %v936
    %v3737 = vunpack.c.l.b16 %v937
    %v3738 = vunpack.c.h.b16 %v937
    %v3739 = vunpack.c.l.b16 %v938
    %v3740 = vunpack.c.h.b16 %v938
    %v3741 = vunpack.c.l.b16 %v939
    %v3742 = vunpack.c.h.b16 %v939
    %v3743 = vunpack.c.l.b16 %v940
    %v3744 = vunpack.c.h.b16 %v940
    %v3745 = vunpack.c.l.b16 %v941
    %v3746 = vunpack.c.h.b16 %v941
    %v3747 = vunpack.c.l.b16 %v942
    %v3748 = vunpack.c.h.b16 %v942
    %v3749 = vunpack.c.l.b16 %v943
    %v3750 = vunpack.c.h.b16 %v943
    %v3751 = vunpack.c.l.b16 %v944
    %v3752 = vunpack.c.h.b16 %v944
    %v3753 = vunpack.c.l.b16 %v945
    %v3754 = vunpack.c.h.b16 %v945
    %v3755 = vunpack.c.l.b16 %v946
    %v3756 = vunpack.c.h.b16 %v946
    %v3757 = vunpack.c.l.b16 %v947
    %v3758 = vunpack.c.h.b16 %v947
    %v3759 = vunpack.c.l.b16 %v948
    %v3760 = vunpack.c.h.b16 %v948
    %v3761 = vunpack.c.l.b16 %v949
    %v3762 = vunpack.c.h.b16 %v949
    %v3763 = vunpack.c.l.b16 %v950
    %v3764 = vunpack.c.h.b16 %v950
    %v3765 = vunpack.c.l.b16 %v951
    %v3766 = vunpack.c.h.b16 %v951
    %v3767 = vunpack.c.l.b16 %v952
    %v3768 = vunpack.c.h.b16 %v952
    %v3769 = vunpack.c.l.b16 %v953
    %v3770 = vunpack.c.h.b16 %v953
    %v3771 = vunpack.c.l.b16 %v954
    %v3772 = vunpack.c.h.b16 %v954
    %v3773 = vunpack.c.l.b16 %v955
    %v3774 = vunpack.c.h.b16 %v955
    %v3775 = vunpack.c.l.b16 %v956
    %v3776 = vunpack.c.h.b16 %v956
    %v3777 = vunpack.c.l.b16 %v957
    %v3778 = vunpack.c.h.b16 %v957
    %v3779 = vunpack.c.l.b16 %v958
    %v3780 = vunpack.c.h.b16 %v958
    %v3781 = vunpack.c.l.b16 %v959
    %v3782 = vunpack.c.h.b16 %v959
    %v3783 = vunpack.c.l.b16 %v960
    %v3784 = vunpack.c.h.b16 %v960
    %v3785 = vunpack.c.l.b16 %v961
    %v3786 = vunpack.c.h.b16 %v961
    %v3787 = vunpack.c.l.b16 %v962
    %v3788 = vunpack.c.h.b16 %v962
    %v3789 = vunpack.c.l.b16 %v963
    %v3790 = vunpack.c.h.b16 %v963
    %v3791 = vunpack.c.l.b16 %v964
    %v3792 = vunpack.c.h.b16 %v964
    %v3793 = vunpack.c.l.b16 %v965
    %v3794 = vunpack.c.h.b16 %v965
    %v3795 = vunpack.c.l.b16 %v966
    %v3796 = vunpack.c.h.b16 %v966
    %v3797 = vunpack.c.l.b16 %v967
    %v3798 = vunpack.c.h.b16 %v967
    %v3799 = vunpack.c.l.b16 %v968
    %v3800 = vunpack.c.h.b16 %v968
    %v3801 = vunpack.c.l.b16 %v969
    %v3802 = vunpack.c.h.b16 %v969
    %v3803 = vunpack.c.l.b16 %v970
    %v3804 = vunpack.c.h.b16 %v970
    %v3805 = vunpack.c.l.b16 %v971
    %v3806 = vunpack.c.h.b16 %v971
    %v3807 = vunpack.c.l.b16 %v972
    %v3808 = vunpack.c.h.b16 %v972
    %v3809 = vunpack.c.l.b16 %v973
    %v3810 = vunpack.c.h.b16 %v973
    %v3811 = vunpack.c.l.b16 %v974
    %v3812 = vunpack.c.h.b16 %v974
    %v3813 = vunpack.c.l.b16 %v975
    %v3814 = vunpack.c.h.b16 %v975
    %v3815 = vunpack.c.l.b16 %v976
    %v3816 = vunpack.c.h.b16 %v976
    %v3817 = vpack.c.b16 %v2101, %v2089
    %v3818 = vpack.c.b16 %v2102, %v2090
    %v3819 = vpack.c.b16 %v2103, %v2091
    %v3820 = vpack.c.b16 %v2104, %v2092
    %v3821 = vpack.c.b16 %v2105, %v2093
    %v3822 = vpack.c.b16 %v2106, %v2094
    %v3823 = vpack.c.b16 %v2107, %v2095
    %v3824 = vpack.c.b16 %v2108, %v2096
    %v3825 = vpack.c.b16 %v2109, %v2097
    %v3826 = vpack.c.b16 %v2110, %v2098
    %v3827 = vpack.c.b16 %v2111, %v2099
    %v3828 = vpack.c.b16 %v2112, %v2100
    %v3829 = vpack.c.b16 %v2125, %v2113
    %v3830 = vpack.c.b16 %v2126, %v2114
    %v3831 = vpack.c.b16 %v2127, %v2115
    %v3832 = vpack.c.b16 %v2128, %v2116
    %v3833 = vpack.c.b16 %v2129, %v2117
    %v3834 = vpack.c.b16 %v2130, %v2118
    %v3835 = vpack.c.b16 %v2131, %v2119
    %v3836 = vpack.c.b16 %v2132, %v2120
    %v3837 = vpack.c.b16 %v2133, %v2121
    %v3838 = vpack.c.b16 %v2134, %v2122
    %v3839 = vpack.c.b16 %v2135, %v2123
    %v3840 = vpack.c.b16 %v2136, %v2124
    %v3841 = vpack.c.b16 %v2149, %v2137
    %v3842 = vpack.c.b16 %v2150, %v2138
    %v3843 = vpack.c.b16 %v2151, %v2139
    %v3844 = vpack.c.b16 %v2152, %v2140
    %v3845 = vpack.c.b16 %v2153, %v2141
    %v3846 = vpack.c.b16 %v2154, %v2142
    %v3847 = vpack.c.b16 %v2155, %v2143
    %v3848 = vpack.c.b16 %v2156, %v2144
    %v3849 = vpack.c.b16 %v2157, %v2145
    %v3850 = vpack.c.b16 %v2158, %v2146
    %v3851 = vpack.c.b16 %v2159, %v2147
    %v3852 = vpack.c.b16 %v2160, %v2148
    %v3853 = vpack.c.b16 %v2173, %v2161
    %v3854 = vpack.c.b16 %v2174, %v2162
    %v3855 = vpack.c.b16 %v2175, %v2163
    %v3856 = vpack.c.b16 %v2176, %v2164
    %v3857 = vpack.c.b16 %v2177, %v2165
    %v3858 = vpack.c.b16 %v2178, %v2166
    %v3859 = vpack.c.b16 %v2179, %v2167
    %v3860 = vpack.c.b16 %v2180, %v2168
    %v3861 = vpack.c.b16 %v2181, %v2169
    %v3862 = vpack.c.b16 %v2182, %v2170
    %v3863 = vpack.c.b16 %v2183, %v2171
    %v3864 = vpack.c.b16 %v2184, %v2172
    %v3865 = vpack.c.b16 %v2197, %v2185
    %v3866 = vpack.c.b16 %v2198, %v2186
    %v3867 = vpack.c.b16 %v2199, %v2187
    %v3868 = vpack.c.b16 %v2200, %v2188
    %v3869 = vpack.c.b16 %v2201, %v2189
    %v3870 = vpack.c.b16 %v2202, %v2190
    %v3871 = vpack.c.b16 %v2203, %v2191
    %v3872 = vpack.c.b16 %v2204, %v2192
    %v3873 = vpack.c.b16 %v2205, %v2193
    %v3874 = vpack.c.b16 %v2206, %v2194
    %v3875 = vpack.c.b16 %v2207, %v2195
    %v3876 = vpack.c.b16 %v2208, %v2196
    %v3877 = vpack.c.b16 %v2221, %v2209
    %v3878 = vpack.c.b16 %v2222, %v2210
    %v3879 = vpack.c.b16 %v2223, %v2211
    %v3880 = vpack.c.b16 %v2224, %v2212
    %v3881 = vpack.c.b16 %v2225, %v2213
    %v3882 = vpack.c.b16 %v2226, %v2214
    %v3883 = vpack.c.b16 %v2227, %v2215
    %v3884 = vpack.c.b16 %v2228, %v2216
    %v3885 = vpack.c.b16 %v2229, %v2217
    %v3886 = vpack.c.b16 %v2230, %v2218
    %v3887 = vpack.c.b16 %v2231, %v2219
    %v3888 = vpack.c.b16 %v2232, %v2220
    %v3889 = vpack.c.b16 %v2245, %v2233
    %v3890 = vpack.c.b16 %v2246, %v2234
    %v3891 = vpack.c.b16 %v2247, %v2235
    %v3892 = vpack.c.b16 %v2248, %v2236
    %v3893 = vpack.c.b16 %v2249, %v2237
    %v3894 = vpack.c.b16 %v2250, %v2238
    %v3895 = vpack.c.b16 %v2251, %v2239
    %v3896 = vpack.c.b16 %v2252, %v2240
    %v3897 = vpack.c.b16 %v2253, %v2241
    %v3898 = vpack.c.b16 %v2254, %v2242
    %v3899 = vpack.c.b16 %v2255, %v2243
    %v3900 = vpack.c.b16 %v2256, %v2244
    %v3901 = vpack.c.b16 %v2269, %v2257
    %v3902 = vpack.c.b16 %v2270, %v2258
    %v3903 = vpack.c.b16 %v2271, %v2259
    %v3904 = vpack.c.b16 %v2272, %v2260
    %v3905 = vpack.c.b16 %v2273, %v2261
    %v3906 = vpack.c.b16 %v2274, %v2262
    %v3907 = vpack.c.b16 %v2275, %v2263
    %v3908 = vpack.c.b16 %v2276, %v2264
    %v3909 = vpack.c.b16 %v2277, %v2265
    %v3910 = vpack.c.b16 %v2278, %v2266
    %v3911 = vpack.c.b16 %v2279, %v2267
    %v3912 = vpack.c.b16 %v2280, %v2268
    %v3913 = vpack.c.b16 %v2293, %v2281
    %v3914 = vpack.c.b16 %v2294, %v2282
    %v3915 = vpack.c.b16 %v2295, %v2283
    %v3916 = vpack.c.b16 %v2296, %v2284
    %v3917 = vpack.c.b16 %v2297, %v2285
    %v3918 = vpack.c.b16 %v2298, %v2286
    %v3919 = vpack.c.b16 %v2299, %v2287
    %v3920 = vpack.c.b16 %v2300, %v2288
    %v3921 = vpack.c.b16 %v2301, %v2289
    %v3922 = vpack.c.b16 %v2302, %v2290
    %v3923 = vpack.c.b16 %v2303, %v2291
    %v3924 = vpack.c.b16 %v2304, %v2292
    %v3925 = vpack.c.b16 %v2317, %v2305
    %v3926 = vpack.c.b16 %v2318, %v2306
    %v3927 = vpack.c.b16 %v2319, %v2307
    %v3928 = vpack.c.b16 %v2320, %v2308
    %v3929 = vpack.c.b16 %v2321, %v2309
    %v3930 = vpack.c.b16 %v2322, %v2310
    %v3931 = vpack.c.b16 %v2323, %v2311
    %v3932 = vpack.c.b16 %v2324, %v2312
    %v3933 = vpack.c.b16 %v2325, %v2313
    %v3934 = vpack.c.b16 %v2326, %v2314
    %v3935 = vpack.c.b16 %v2327, %v2315
    %v3936 = vpack.c.b16 %v2328, %v2316
    %v3937 = vpack.c.b16 %v2341, %v2329
    %v3938 = vpack.c.b16 %v2342, %v2330
    %v3939 = vpack.c.b16 %v2343, %v2331
    %v3940 = vpack.c.b16 %v2344, %v2332
    %v3941 = vpack.c.b16 %v2345, %v2333
    %v3942 = vpack.c.b16 %v2346, %v2334
    %v3943 = vpack.c.b16 %v2347, %v2335
    %v3944 = vpack.c.b16 %v2348, %v2336
    %v3945 = vpack.c.b16 %v2349, %v2337
    %v3946 = vpack.c.b16 %v2350, %v2338
    %v3947 = vpack.c.b16 %v2351, %v2339
    %v3948 = vpack.c.b16 %v2352, %v2340
    %v3949 = vpack.c.b16 %v2365, %v2353
    %v3950 = vpack.c.b16 %v2366, %v2354
    %v3951 = vpack.c.b16 %v2367, %v2355
    %v3952 = vpack.c.b16 %v2368, %v2356
    %v3953 = vpack.c.b16 %v2369, %v2357
    %v3954 = vpack.c.b16 %v2370, %v2358
    %v3955 = vpack.c.b16 %v2371, %v2359
    %v3956 = vpack.c.b16 %v2372, %v2360
    %v3957 = vpack.c.b16 %v2373, %v2361
    %v3958 = vpack.c.b16 %v2374, %v2362
    %v3959 = vpack.c.b16 %v2375, %v2363
    %v3960 = vpack.c.b16 %v2376, %v2364
    %v3961 = vpack.c.b16 %v2389, %v2377
    %v3962 = vpack.c.b16 %v2390, %v2378
    %v3963 = vpack.c.b16 %v2391, %v2379
    %v3964 = vpack.c.b16 %v2392, %v2380
    %v3965 = vpack.c.b16 %v2393, %v2381
    %v3966 = vpack.c.b16 %v2394, %v2382
    %v3967 = vpack.c.b16 %v2395, %v2383
    %v3968 = vpack.c.b16 %v2396, %v2384
    %v3969 = vpack.c.b16 %v2397, %v2385
    %v3970 = vpack.c.b16 %v2398, %v2386
    %v3971 = vpack.c.b16 %v2399, %v2387
    %v3972 = vpack.c.b16 %v2400, %v2388
    %v3973 = vpack.c.b16 %v2413, %v2401
    %v3974 = vpack.c.b16 %v2414, %v2402
    %v3975 = vpack.c.b16 %v2415, %v2403
    %v3976 = vpack.c.b16 %v2416, %v2404
    %v3977 = vpack.c.b16 %v2417, %v2405
    %v3978 = vpack.c.b16 %v2418, %v2406
    %v3979 = vpack.c.b16 %v2419, %v2407
    %v3980 = vpack.c.b16 %v2420, %v2408
    %v3981 = vpack.c.b16 %v2421, %v2409
    %v3982 = vpack.c.b16 %v2422, %v2410
    %v3983 = vpack.c.b16 %v2423, %v2411
    %v3984 = vpack.c.b16 %v2424, %v2412
    %v3985 = vpack.c.b16 %v2437, %v2425
    %v3986 = vpack.c.b16 %v2438, %v2426
    %v3987 = vpack.c.b16 %v2439, %v2427
    %v3988 = vpack.c.b16 %v2440, %v2428
    %v3989 = vpack.c.b16 %v2441, %v2429
    %v3990 = vpack.c.b16 %v2442, %v2430
    %v3991 = vpack.c.b16 %v2443, %v2431
    %v3992 = vpack.c.b16 %v2444, %v2432
    %v3993 = vpack.c.b16 %v2445, %v2433
    %v3994 = vpack.c.b16 %v2446, %v2434
    %v3995 = vpack.c.b16 %v2447, %v2435
    %v3996 = vpack.c.b16 %v2448, %v2436
    %v3997 = vpack.c.b16 %v2461, %v2449
    %v3998 = vpack.c.b16 %v2462, %v2450
    %v3999 = vpack.c.b16 %v2463, %v2451
    %v4000 = vpack.c.b16 %v2464, %v2452
    %v4001 = vpack.c.b16 %v2465, %v2453
    %v4002 = vpack.c.b16 %v2466, %v2454
    %v4003 = vpack.c.b16 %v2467, %v2455
    %v4004 = vpack.c.b16 %v2468, %v2456
    %v4005 = vpack.c.b16 %v2469, %v2457
    %v4006 = vpack.c.b16 %v2470, %v2458
    %v4007 = vpack.c.b16 %v2471, %v2459
    %v4008 = vpack.c.b16 %v2472, %v2460
    %v4009 = vpack.c.b16 %v2485, %v2473
    %v4010 = vpack.c.b16 %v2486, %v2474
    %v4011 = vpack.c.b16 %v2487, %v2475
    %v4012 = vpack.c.b16 %v2488, %v2476
    %v4013 = vpack.c.b16 %v2489, %v2477
    %v4014 = vpack.c.b16 %v2490, %v2478
    %v4015 = vpack.c.b16 %v2491, %v2479
    %v4016 = vpack.c.b16 %v2492, %v2480
    %v4017 = vpack.c.b16 %v2493, %v2481
    %v4018 = vpack.c.b16 %v2494, %v2482
    %v4019 = vpack.c.b16 %v2495, %v2483
    %v4020 = vpack.c.b16 %v2496, %v2484
    %v4021 = vpack.c.b16 %v2509, %v2497
    %v4022 = vpack.c.b16 %v2510, %v2498
    %v4023 = vpack.c.b16 %v2511, %v2499
    %v4024 = vpack.c.b16 %v2512, %v2500
    %v4025 = vpack.c.b16 %v2513, %v2501
    %v4026 = vpack.c.b16 %v2514, %v2502
    %v4027 = vpack.c.b16 %v2515, %v2503
    %v4028 = vpack.c.b16 %v2516, %v2504
    %v4029 = vpack.c.b16 %v2517, %v2505
    %v4030 = vpack.c.b16 %v2518, %v2506
    %v4031 = vpack.c.b16 %v2519, %v2507
    %v4032 = vpack.c.b16 %v2520, %v2508
    %v4033 = vpack.c.b16 %v2533, %v2521
    %v4034 = vpack.c.b16 %v2534, %v2522
    %v4035 = vpack.c.b16 %v2535, %v2523
    %v4036 = vpack.c.b16 %v2536, %v2524
    %v4037 = vpack.c.b16 %v2537, %v2525
    %v4038 = vpack.c.b16 %v2538, %v2526
    %v4039 = vpack.c.b16 %v2539, %v2527
    %v4040 = vpack.c.b16 %v2540, %v2528
    %v4041 = vpack.c.b16 %v2541, %v2529
    %v4042 = vpack.c.b16 %v2542, %v2530
    %v4043 = vpack.c.b16 %v2543, %v2531
    %v4044 = vpack.c.b16 %v2544, %v2532
    %v4045 = vpack.c.b16 %v2557, %v2545
    %v4046 = vpack.c.b16 %v2558, %v2546
    %v4047 = vpack.c.b16 %v2559, %v2547
    %v4048 = vpack.c.b16 %v2560, %v2548
    %v4049 = vpack.c.b16 %v2561, %v2549
    %v4050 = vpack.c.b16 %v2562, %v2550
    %v4051 = vpack.c.b16 %v2563, %v2551
    %v4052 = vpack.c.b16 %v2564, %v2552
    %v4053 = vpack.c.b16 %v2565, %v2553
    %v4054 = vpack.c.b16 %v2566, %v2554
    %v4055 = vpack.c.b16 %v2567, %v2555
    %v4056 = vpack.c.b16 %v2568, %v2556
    %v4057 = vpack.c.b16 %v2581, %v2569
    %v4058 = vpack.c.b16 %v2582, %v2570
    %v4059 = vpack.c.b16 %v2583, %v2571
    %v4060 = vpack.c.b16 %v2584, %v2572
    %v4061 = vpack.c.b16 %v2585, %v2573
    %v4062 = vpack.c.b16 %v2586, %v2574
    %v4063 = vpack.c.b16 %v2587, %v2575
    %v4064 = vpack.c.b16 %v2588, %v2576
    %v4065 = vpack.c.b16 %v2589, %v2577
    %v4066 = vpack.c.b16 %v2590, %v2578
    %v4067 = vpack.c.b16 %v2591, %v2579
    %v4068 = vpack.c.b16 %v2592, %v2580
    %v4069 = vpack.c.b16 %v2605, %v2593
    %v4070 = vpack.c.b16 %v2606, %v2594
    %v4071 = vpack.c.b16 %v2607, %v2595
    %v4072 = vpack.c.b16 %v2608, %v2596
    %v4073 = vpack.c.b16 %v2609, %v2597
    %v4074 = vpack.c.b16 %v2610, %v2598
    %v4075 = vpack.c.b16 %v2611, %v2599
    %v4076 = vpack.c.b16 %v2612, %v2600
    %v4077 = vpack.c.b16 %v2613, %v2601
    %v4078 = vpack.c.b16 %v2614, %v2602
    %v4079 = vpack.c.b16 %v2615, %v2603
    %v4080 = vpack.c.b16 %v2616, %v2604
    %v4081 = vpack.c.b16 %v2629, %v2617
    %v4082 = vpack.c.b16 %v2630, %v2618
    %v4083 = vpack.c.b16 %v2631, %v2619
    %v4084 = vpack.c.b16 %v2632, %v2620
    %v4085 = vpack.c.b16 %v2633, %v2621
    %v4086 = vpack.c.b16 %v2634, %v2622
    %v4087 = vpack.c.b16 %v2635, %v2623
    %v4088 = vpack.c.b16 %v2636, %v2624
    %v4089 = vpack.c.b16 %v2637, %v2625
    %v4090 = vpack.c.b16 %v2638, %v2626
    %v4091 = vpack.c.b16 %v2639, %v2627
    %v4092 = vpack.c.b16 %v2640, %v2628
    %v4093 = vpack.c.b16 %v2653, %v2641
    %v4094 = vpack.c.b16 %v2654, %v2642
    %v4095 = vpack.c.b16 %v2655, %v2643
    %v4096 = vpack.c.b16 %v2656, %v2644
    %v4097 = vpack.c.b16 %v2657, %v2645
    %v4098 = vpack.c.b16 %v2658, %v2646
    %v4099 = vpack.c.b16 %v2659, %v2647
    %v4100 = vpack.c.b16 %v2660, %v2648
    %v4101 = vpack.c.b16 %v2661, %v2649
    %v4102 = vpack.c.b16 %v2662, %v2650
    %v4103 = vpack.c.b16 %v2663, %v2651
    %v4104 = vpack.c.b16 %v2664, %v2652
    %v4105 = vpack.c.b16 %v2677, %v2665
    %v4106 = vpack.c.b16 %v2678, %v2666
    %v4107 = vpack.c.b16 %v2679, %v2667
    %v4108 = vpack.c.b16 %v2680, %v2668
    %v4109 = vpack.c.b16 %v2681, %v2669
    %v4110 = vpack.c.b16 %v2682, %v2670
    %v4111 = vpack.c.b16 %v2683, %v2671
    %v4112 = vpack.c.b16 %v2684, %v2672
    %v4113 = vpack.c.b16 %v2685, %v2673
    %v4114 = vpack.c.b16 %v2686, %v2674
    %v4115 = vpack.c.b16 %v2687, %v2675
    %v4116 = vpack.c.b16 %v2688, %v2676
    %v4117 = vpack.c.b16 %v2701, %v2689
    %v4118 = vpack.c.b16 %v2702, %v2690
    %v4119 = vpack.c.b16 %v2703, %v2691
    %v4120 = vpack.c.b16 %v2704, %v2692
    %v4121 = vpack.c.b16 %v2705, %v2693
    %v4122 = vpack.c.b16 %v2706, %v2694
    %v4123 = vpack.c.b16 %v2707, %v2695
    %v4124 = vpack.c.b16 %v2708, %v2696
    %v4125 = vpack.c.b16 %v2709, %v2697
    %v4126 = vpack.c.b16 %v2710, %v2698
    %v4127 = vpack.c.b16 %v2711, %v2699
    %v4128 = vpack.c.b16 %v2712, %v2700
    %v4129 = vpack.c.b16 %v2725, %v2713
    %v4130 = vpack.c.b16 %v2726, %v2714
    %v4131 = vpack.c.b16 %v2727, %v2715
    %v4132 = vpack.c.b16 %v2728, %v2716
    %v4133 = vpack.c.b16 %v2729, %v2717
    %v4134 = vpack.c.b16 %v2730, %v2718
    %v4135 = vpack.c.b16 %v2731, %v2719
    %v4136 = vpack.c.b16 %v2732, %v2720
    %v4137 = vpack.c.b16 %v2733, %v2721
    %v4138 = vpack.c.b16 %v2734, %v2722
    %v4139 = vpack.c.b16 %v2735, %v2723
    %v4140 = vpack.c.b16 %v2736, %v2724
    %v4141 = vpack.c.b16 %v2749, %v2737
    %v4142 = vpack.c.b16 %v2750, %v2738
    %v4143 = vpack.c.b16 %v2751, %v2739
    %v4144 = vpack.c.b16 %v2752, %v2740
    %v4145 = vpack.c.b16 %v2753, %v2741
    %v4146 = vpack.c.b16 %v2754, %v2742
    %v4147 = vpack.c.b16 %v2755, %v2743
    %v4148 = vpack.c.b16 %v2756, %v2744
    %v4149 = vpack.c.b16 %v2757, %v2745
    %v4150 = vpack.c.b16 %v2758, %v2746
    %v4151 = vpack.c.b16 %v2759, %v2747
    %v4152 = vpack.c.b16 %v2760, %v2748
    %v4153 = vpack.c.b16 %v2773, %v2761
    %v4154 = vpack.c.b16 %v2774, %v2762
    %v4155 = vpack.c.b16 %v2775, %v2763
    %v4156 = vpack.c.b16 %v2776, %v2764
    %v4157 = vpack.c.b16 %v2777, %v2765
    %v4158 = vpack.c.b16 %v2778, %v2766
    %v4159 = vpack.c.b16 %v2779, %v2767
    %v4160 = vpack.c.b16 %v2780, %v2768
    %v4161 = vpack.c.b16 %v2781, %v2769
    %v4162 = vpack.c.b16 %v2782, %v2770
    %v4163 = vpack.c.b16 %v2783, %v2771
    %v4164 = vpack.c.b16 %v2784, %v2772
    %v4165 = vpack.c.b16 %v2797, %v2785
    %v4166 = vpack.c.b16 %v2798, %v2786
    %v4167 = vpack.c.b16 %v2799, %v2787
    %v4168 = vpack.c.b16 %v2800, %v2788
    %v4169 = vpack.c.b16 %v2801, %v2789
    %v4170 = vpack.c.b16 %v2802, %v2790
    %v4171 = vpack.c.b16 %v2803, %v2791
    %v4172 = vpack.c.b16 %v2804, %v2792
    %v4173 = vpack.c.b16 %v2805, %v2793
    %v4174 = vpack.c.b16 %v2806, %v2794
    %v4175 = vpack.c.b16 %v2807, %v2795
    %v4176 = vpack.c.b16 %v2808, %v2796
    %v4177 = vpack.c.b16 %v2821, %v2809
    %v4178 = vpack.c.b16 %v2822, %v2810
    %v4179 = vpack.c.b16 %v2823, %v2811
    %v4180 = vpack.c.b16 %v2824, %v2812
    %v4181 = vpack.c.b16 %v2825, %v2813
    %v4182 = vpack.c.b16 %v2826, %v2814
    %v4183 = vpack.c.b16 %v2827, %v2815
    %v4184 = vpack.c.b16 %v2828, %v2816
    %v4185 = vpack.c.b16 %v2829, %v2817
    %v4186 = vpack.c.b16 %v2830, %v2818
    %v4187 = vpack.c.b16 %v2831, %v2819
    %v4188 = vpack.c.b16 %v2832, %v2820
    %v4189 = vpack.c.b16 %v2845, %v2833
    %v4190 = vpack.c.b16 %v2846, %v2834
    %v4191 = vpack.c.b16 %v2847, %v2835
    %v4192 = vpack.c.b16 %v2848, %v2836
    %v4193 = vpack.c.b16 %v2849, %v2837
    %v4194 = vpack.c.b16 %v2850, %v2838
    %v4195 = vpack.c.b16 %v2851, %v2839
    %v4196 = vpack.c.b16 %v2852, %v2840
    %v4197 = vpack.c.b16 %v2853, %v2841
    %v4198 = vpack.c.b16 %v2854, %v2842
    %v4199 = vpack.c.b16 %v2855, %v2843
    %v4200 = vpack.c.b16 %v2856, %v2844
    %v4201 = vpack.c.b16 %v2869, %v2857
    %v4202 = vpack.c.b16 %v2870, %v2858
    %v4203 = vpack.c.b16 %v2871, %v2859
    %v4204 = vpack.c.b16 %v2872, %v2860
    %v4205 = vpack.c.b16 %v2873, %v2861
    %v4206 = vpack.c.b16 %v2874, %v2862
    %v4207 = vpack.c.b16 %v2875, %v2863
    %v4208 = vpack.c.b16 %v2876, %v2864
    %v4209 = vpack.c.b16 %v2877, %v2865
    %v4210 = vpack.c.b16 %v2878, %v2866
    %v4211 = vpack.c.b16 %v2879, %v2867
    %v4212 = vpack.c.b16 %v2880, %v2868
    %v4213 = vpack.c.b16 %v2893, %v2881
    %v4214 = vpack.c.b16 %v2894, %v2882
    %v4215 = vpack.c.b16 %v2895, %v2883
    %v4216 = vpack.c.b16 %v2896, %v2884
    %v4217 = vpack.c.b16 %v2897, %v2885
    %v4218 = vpack.c.b16 %v2898, %v2886
    %v4219 = vpack.c.b16 %v2899, %v2887
    %v4220 = vpack.c.b16 %v2900, %v2888
    %v4221 = vpack.c.b16 %v2901, %v2889
    %v4222 = vpack.c.b16 %v2902, %v2890
    %v4223 = vpack.c.b16 %v2903, %v2891
    %v4224 = vpack.c.b16 %v2904, %v2892
    %v4225 = vpack.c.b16 %v2917, %v2905
    %v4226 = vpack.c.b16 %v2918, %v2906
    %v4227 = vpack.c.b16 %v2919, %v2907
    %v4228 = vpack.c.b16 %v2920, %v2908
    %v4229 = vpack.c.b16 %v2921, %v2909
    %v4230 = vpack.c.b16 %v2922, %v2910
    %v4231 = vpack.c.b16 %v2923, %v2911
    %v4232 = vpack.c.b16 %v2924, %v2912
    %v4233 = vpack.c.b16 %v2925, %v2913
    %v4234 = vpack.c.b16 %v2926, %v2914
    %v4235 = vpack.c.b16 %v2927, %v2915
    %v4236 = vpack.c.b16 %v2928, %v2916
    %v4237 = vpack.c.b16 %v2941, %v2929
    %v4238 = vpack.c.b16 %v2942, %v2930
    %v4239 = vpack.c.b16 %v2943, %v2931
    %v4240 = vpack.c.b16 %v2944, %v2932
    %v4241 = vpack.c.b16 %v2945, %v2933
    %v4242 = vpack.c.b16 %v2946, %v2934
    %v4243 = vpack.c.b16 %v2947, %v2935
    %v4244 = vpack.c.b16 %v2948, %v2936
    %v4245 = vpack.c.b16 %v2949, %v2937
    %v4246 = vpack.c.b16 %v2950, %v2938
    %v4247 = vpack.c.b16 %v2951, %v2939
    %v4248 = vpack.c.b16 %v2952, %v2940
    %v4249 = vpack.c.b16 %v2965, %v2953
    %v4250 = vpack.c.b16 %v2966, %v2954
    %v4251 = vpack.c.b16 %v2967, %v2955
    %v4252 = vpack.c.b16 %v2968, %v2956
    %v4253 = vpack.c.b16 %v2969, %v2957
    %v4254 = vpack.c.b16 %v2970, %v2958
    %v4255 = vpack.c.b16 %v2971, %v2959
    %v4256 = vpack.c.b16 %v2972, %v2960
    %v4257 = vpack.c.b16 %v2973, %v2961
    %v4258 = vpack.c.b16 %v2974, %v2962
    %v4259 = vpack.c.b16 %v2975, %v2963
    %v4260 = vpack.c.b16 %v2976, %v2964
    %v4261 = vpack.c.b16 %v2989, %v2977
    %v4262 = vpack.c.b16 %v2990, %v2978
    %v4263 = vpack.c.b16 %v2991, %v2979
    %v4264 = vpack.c.b16 %v2992, %v2980
    %v4265 = vpack.c.b16 %v2993, %v2981
    %v4266 = vpack.c.b16 %v2994, %v2982
    %v4267 = vpack.c.b16 %v2995, %v2983
    %v4268 = vpack.c.b16 %v2996, %v2984
    %v4269 = vpack.c.b16 %v2997, %v2985
    %v4270 = vpack.c.b16 %v2998, %v2986
    %v4271 = vpack.c.b16 %v2999, %v2987
    %v4272 = vpack.c.b16 %v3000, %v2988
    %v4273 = vpack.c.b16 %v3013, %v3001
    %v4274 = vpack.c.b16 %v3014, %v3002
    %v4275 = vpack.c.b16 %v3015, %v3003
    %v4276 = vpack.c.b16 %v3016, %v3004
    %v4277 = vpack.c.b16 %v3017, %v3005
    %v4278 = vpack.c.b16 %v3018, %v3006
    %v4279 = vpack.c.b16 %v3019, %v3007
    %v4280 = vpack.c.b16 %v3020, %v3008
    %v4281 = vpack.c.b16 %v3021, %v3009
    %v4282 = vpack.c.b16 %v3022, %v3010
    %v4283 = vpack.c.b16 %v3023, %v3011
    %v4284 = vpack.c.b16 %v3024, %v3012
    %v4285 = vpack.c.b16 %v3037, %v3025
    %v4286 = vpack.c.b16 %v3038, %v3026
    %v4287 = vpack.c.b16 %v3039, %v3027
    %v4288 = vpack.c.b16 %v3040, %v3028
    %v4289 = vpack.c.b16 %v3041, %v3029
    %v4290 = vpack.c.b16 %v3042, %v3030
    %v4291 = vpack.c.b16 %v3043, %v3031
    %v4292 = vpack.c.b16 %v3044, %v3032
    %v4293 = vpack.c.b16 %v3045, %v3033
    %v4294 = vpack.c.b16 %v3046, %v3034
    %v4295 = vpack.c.b16 %v3047, %v3035
    %v4296 = vpack.c.b16 %v3048, %v3036
    %v4297 = vpack.c.b16 %v3061, %v3049
    %v4298 = vpack.c.b16 %v3062, %v3050
    %v4299 = vpack.c.b16 %v3063, %v3051
    %v4300 = vpack.c.b16 %v3064, %v3052
    %v4301 = vpack.c.b16 %v3065, %v3053
    %v4302 = vpack.c.b16 %v3066, %v3054
    %v4303 = vpack.c.b16 %v3067, %v3055
    %v4304 = vpack.c.b16 %v3068, %v3056
    %v4305 = vpack.c.b16 %v3069, %v3057
    %v4306 = vpack.c.b16 %v3070, %v3058
    %v4307 = vpack.c.b16 %v3071, %v3059
    %v4308 = vpack.c.b16 %v3072, %v3060
    %v4309 = vpack.c.b16 %v3085, %v3073
    %v4310 = vpack.c.b16 %v3086, %v3074
    %v4311 = vpack.c.b16 %v3087, %v3075
    %v4312 = vpack.c.b16 %v3088, %v3076
    %v4313 = vpack.c.b16 %v3089, %v3077
    %v4314 = vpack.c.b16 %v3090, %v3078
    %v4315 = vpack.c.b16 %v3091, %v3079
    %v4316 = vpack.c.b16 %v3092, %v3080
    %v4317 = vpack.c.b16 %v3093, %v3081
    %v4318 = vpack.c.b16 %v3094, %v3082
    %v4319 = vpack.c.b16 %v3095, %v3083
    %v4320 = vpack.c.b16 %v3096, %v3084
    %v4321 = vpack.c.b16 %v3109, %v3097
    %v4322 = vpack.c.b16 %v3110, %v3098
    %v4323 = vpack.c.b16 %v3111, %v3099
    %v4324 = vpack.c.b16 %v3112, %v3100
    %v4325 = vpack.c.b16 %v3113, %v3101
    %v4326 = vpack.c.b16 %v3114, %v3102
    %v4327 = vpack.c.b16 %v3115, %v3103
    %v4328 = vpack.c.b16 %v3116, %v3104
    %v4329 = vpack.c.b16 %v3117, %v3105
    %v4330 = vpack.c.b16 %v3118, %v3106
    %v4331 = vpack.c.b16 %v3119, %v3107
    %v4332 = vpack.c.b16 %v3120, %v3108
    %v4333 = vpack.c.b16 %v3133, %v3121
    %v4334 = vpack.c.b16 %v3134, %v3122
    %v4335 = vpack.c.b16 %v3135, %v3123
    %v4336 = vpack.c.b16 %v3136, %v3124
    %v4337 = vpack.c.b16 %v3137, %v3125
    %v4338 = vpack.c.b16 %v3138, %v3126
    %v4339 = vpack.c.b16 %v3139, %v3127
    %v4340 = vpack.c.b16 %v3140, %v3128
    %v4341 = vpack.c.b16 %v3141, %v3129
    %v4342 = vpack.c.b16 %v3142, %v3130
    %v4343 = vpack.c.b16 %v3143, %v3131
    %v4344 = vpack.c.b16 %v3144, %v3132
    %v4345 = vpack.c.b16 %v3157, %v3145
    %v4346 = vpack.c.b16 %v3158, %v3146
    %v4347 = vpack.c.b16 %v3159, %v3147
    %v4348 = vpack.c.b16 %v3160, %v3148
    %v4349 = vpack.c.b16 %v3161, %v3149
    %v4350 = vpack.c.b16 %v3162, %v3150
    %v4351 = vpack.c.b16 %v3163, %v3151
    %v4352 = vpack.c.b16 %v3164, %v3152
    %v4353 = vpack.c.b16 %v3165, %v3153
    %v4354 = vpack.c.b16 %v3166, %v3154
    %v4355 = vpack.c.b16 %v3167, %v3155
    %v4356 = vpack.c.b16 %v3168, %v3156
    %v4357 = vpack.c.b16 %v3181, %v3169
    %v4358 = vpack.c.b16 %v3182, %v3170
    %v4359 = vpack.c.b16 %v3183, %v3171
    %v4360 = vpack.c.b16 %v3184, %v3172
    %v4361 = vpack.c.b16 %v3185, %v3173
    %v4362 = vpack.c.b16 %v3186, %v3174
    %v4363 = vpack.c.b16 %v3187, %v3175
    %v4364 = vpack.c.b16 %v3188, %v3176
    %v4365 = vpack.c.b16 %v3189, %v3177
    %v4366 = vpack.c.b16 %v3190, %v3178
    %v4367 = vpack.c.b16 %v3191, %v3179
    %v4368 = vpack.c.b16 %v3192, %v3180
    %v4369 = vpack.c.b16 %v3205, %v3193
    %v4370 = vpack.c.b16 %v3206, %v3194
    %v4371 = vpack.c.b16 %v3207, %v3195
    %v4372 = vpack.c.b16 %v3208, %v3196
    %v4373 = vpack.c.b16 %v3209, %v3197
    %v4374 = vpack.c.b16 %v3210, %v3198
    %v4375 = vpack.c.b16 %v3211, %v3199
    %v4376 = vpack.c.b16 %v3212, %v3200
    %v4377 = vpack.c.b16 %v3213, %v3201
    %v4378 = vpack.c.b16 %v3214, %v3202
    %v4379 = vpack.c.b16 %v3215, %v3203
    %v4380 = vpack.c.b16 %v3216, %v3204
    %v4381 = vpack.c.b16 %v3229, %v3217
    %v4382 = vpack.c.b16 %v3230, %v3218
    %v4383 = vpack.c.b16 %v3231, %v3219
    %v4384 = vpack.c.b16 %v3232, %v3220
    %v4385 = vpack.c.b16 %v3233, %v3221
    %v4386 = vpack.c.b16 %v3234, %v3222
    %v4387 = vpack.c.b16 %v3235, %v3223
    %v4388 = vpack.c.b16 %v3236, %v3224
    %v4389 = vpack.c.b16 %v3237, %v3225
    %v4390 = vpack.c.b16 %v3238, %v3226
    %v4391 = vpack.c.b16 %v3239, %v3227
    %v4392 = vpack.c.b16 %v3240, %v3228
    %v4393 = vpack.c.b16 %v3253, %v3241
    %v4394 = vpack.c.b16 %v3254, %v3242
    %v4395 = vpack.c.b16 %v3255, %v3243
    %v4396 = vpack.c.b16 %v3256, %v3244
    %v4397 = vpack.c.b16 %v3257, %v3245
    %v4398 = vpack.c.b16 %v3258, %v3246
    %v4399 = vpack.c.b16 %v3259, %v3247
    %v4400 = vpack.c.b16 %v3260, %v3248
    %v4401 = vpack.c.b16 %v3261, %v3249
    %v4402 = vpack.c.b16 %v3262, %v3250
    %v4403 = vpack.c.b16 %v3263, %v3251
    %v4404 = vpack.c.b16 %v3264, %v3252
    %v4405 = vpack.c.b16 %v3277, %v3265
    %v4406 = vpack.c.b16 %v3278, %v3266
    %v4407 = vpack.c.b16 %v3279, %v3267
    %v4408 = vpack.c.b16 %v3280, %v3268
    %v4409 = vpack.c.b16 %v3281, %v3269
    %v4410 = vpack.c.b16 %v3282, %v3270
    %v4411 = vpack.c.b16 %v3283, %v3271
    %v4412 = vpack.c.b16 %v3284, %v3272
    %v4413 = vpack.c.b16 %v3285, %v3273
    %v4414 = vpack.c.b16 %v3286, %v3274
    %v4415 = vpack.c.b16 %v3287, %v3275
    %v4416 = vpack.c.b16 %v3288, %v3276
    %v4417 = vpack.c.b16 %v3301, %v3289
    %v4418 = vpack.c.b16 %v3302, %v3290
    %v4419 = vpack.c.b16 %v3303, %v3291
    %v4420 = vpack.c.b16 %v3304, %v3292
    %v4421 = vpack.c.b16 %v3305, %v3293
    %v4422 = vpack.c.b16 %v3306, %v3294
    %v4423 = vpack.c.b16 %v3307, %v3295
    %v4424 = vpack.c.b16 %v3308, %v3296
    %v4425 = vpack.c.b16 %v3309, %v3297
    %v4426 = vpack.c.b16 %v3310, %v3298
    %v4427 = vpack.c.b16 %v3311, %v3299
    %v4428 = vpack.c.b16 %v3312, %v3300
    %v4429 = vpack.c.b16 %v3325, %v3313
    %v4430 = vpack.c.b16 %v3326, %v3314
    %v4431 = vpack.c.b16 %v3327, %v3315
    %v4432 = vpack.c.b16 %v3328, %v3316
    %v4433 = vpack.c.b16 %v3329, %v3317
    %v4434 = vpack.c.b16 %v3330, %v3318
    %v4435 = vpack.c.b16 %v3331, %v3319
    %v4436 = vpack.c.b16 %v3332, %v3320
    %v4437 = vpack.c.b16 %v3333, %v3321
    %v4438 = vpack.c.b16 %v3334, %v3322
    %v4439 = vpack.c.b16 %v3335, %v3323
    %v4440 = vpack.c.b16 %v3336, %v3324
    %v4441 = vpack.c.b16 %v3349, %v3337
    %v4442 = vpack.c.b16 %v3350, %v3338
    %v4443 = vpack.c.b16 %v3351, %v3339
    %v4444 = vpack.c.b16 %v3352, %v3340
    %v4445 = vpack.c.b16 %v3353, %v3341
    %v4446 = vpack.c.b16 %v3354, %v3342
    %v4447 = vpack.c.b16 %v3355, %v3343
    %v4448 = vpack.c.b16 %v3356, %v3344
    %v4449 = vpack.c.b16 %v3357, %v3345
    %v4450 = vpack.c.b16 %v3358, %v3346
    %v4451 = vpack.c.b16 %v3359, %v3347
    %v4452 = vpack.c.b16 %v3360, %v3348
    %v4453 = vpack.c.b16 %v3373, %v3361
    %v4454 = vpack.c.b16 %v3374, %v3362
    %v4455 = vpack.c.b16 %v3375, %v3363
    %v4456 = vpack.c.b16 %v3376, %v3364
    %v4457 = vpack.c.b16 %v3377, %v3365
    %v4458 = vpack.c.b16 %v3378, %v3366
    %v4459 = vpack.c.b16 %v3379, %v3367
    %v4460 = vpack.c.b16 %v3380, %v3368
    %v4461 = vpack.c.b16 %v3381, %v3369
    %v4462 = vpack.c.b16 %v3382, %v3370
    %v4463 = vpack.c.b16 %v3383, %v3371
    %v4464 = vpack.c.b16 %v3384, %v3372
    %v4465 = vpack.c.b16 %v3397, %v3385
    %v4466 = vpack.c.b16 %v3398, %v3386
    %v4467 = vpack.c.b16 %v3399, %v3387
    %v4468 = vpack.c.b16 %v3400, %v3388
    %v4469 = vpack.c.b16 %v3401, %v3389
    %v4470 = vpack.c.b16 %v3402, %v3390
    %v4471 = vpack.c.b16 %v3403, %v3391
    %v4472 = vpack.c.b16 %v3404, %v3392
    %v4473 = vpack.c.b16 %v3405, %v3393
    %v4474 = vpack.c.b16 %v3406, %v3394
    %v4475 = vpack.c.b16 %v3407, %v3395
    %v4476 = vpack.c.b16 %v3408, %v3396
    %v4477 = vpack.c.b16 %v3421, %v3409
    %v4478 = vpack.c.b16 %v3422, %v3410
    %v4479 = vpack.c.b16 %v3423, %v3411
    %v4480 = vpack.c.b16 %v3424, %v3412
    %v4481 = vpack.c.b16 %v3425, %v3413
    %v4482 = vpack.c.b16 %v3426, %v3414
    %v4483 = vpack.c.b16 %v3427, %v3415
    %v4484 = vpack.c.b16 %v3428, %v3416
    %v4485 = vpack.c.b16 %v3429, %v3417
    %v4486 = vpack.c.b16 %v3430, %v3418
    %v4487 = vpack.c.b16 %v3431, %v3419
    %v4488 = vpack.c.b16 %v3432, %v3420
    %v4489 = vpack.c.b16 %v3445, %v3433
    %v4490 = vpack.c.b16 %v3446, %v3434
    %v4491 = vpack.c.b16 %v3447, %v3435
    %v4492 = vpack.c.b16 %v3448, %v3436
    %v4493 = vpack.c.b16 %v3449, %v3437
    %v4494 = vpack.c.b16 %v3450, %v3438
    %v4495 = vpack.c.b16 %v3451, %v3439
    %v4496 = vpack.c.b16 %v3452, %v3440
    %v4497 = vpack.c.b16 %v3453, %v3441
    %v4498 = vpack.c.b16 %v3454, %v3442
    %v4499 = vpack.c.b16 %v3455, %v3443
    %v4500 = vpack.c.b16 %v3456, %v3444
    %v4501 = vpack.c.b16 %v3469, %v3457
    %v4502 = vpack.c.b16 %v3470, %v3458
    %v4503 = vpack.c.b16 %v3471, %v3459
    %v4504 = vpack.c.b16 %v3472, %v3460
    %v4505 = vpack.c.b16 %v3473, %v3461
    %v4506 = vpack.c.b16 %v3474, %v3462
    %v4507 = vpack.c.b16 %v3475, %v3463
    %v4508 = vpack.c.b16 %v3476, %v3464
    %v4509 = vpack.c.b16 %v3477, %v3465
    %v4510 = vpack.c.b16 %v3478, %v3466
    %v4511 = vpack.c.b16 %v3479, %v3467
    %v4512 = vpack.c.b16 %v3480, %v3468
    %v4513 = vpack.c.b16 %v3493, %v3481
    %v4514 = vpack.c.b16 %v3494, %v3482
    %v4515 = vpack.c.b16 %v3495, %v3483
    %v4516 = vpack.c.b16 %v3496, %v3484
    %v4517 = vpack.c.b16 %v3497, %v3485
    %v4518 = vpack.c.b16 %v3498, %v3486
    %v4519 = vpack.c.b16 %v3499, %v3487
    %v4520 = vpack.c.b16 %v3500, %v3488
    %v4521 = vpack.c.b16 %v3501, %v3489
    %v4522 = vpack.c.b16 %v3502, %v3490
    %v4523 = vpack.c.b16 %v3503, %v3491
    %v4524 = vpack.c.b16 %v3504, %v3492
    %v4525 = vpack.c.b16 %v3517, %v3505
    %v4526 = vpack.c.b16 %v3518, %v3506
    %v4527 = vpack.c.b16 %v3519, %v3507
    %v4528 = vpack.c.b16 %v3520, %v3508
    %v4529 = vpack.c.b16 %v3521, %v3509
    %v4530 = vpack.c.b16 %v3522, %v3510
    %v4531 = vpack.c.b16 %v3523, %v3511
    %v4532 = vpack.c.b16 %v3524, %v3512
    %v4533 = vpack.c.b16 %v3525, %v3513
    %v4534 = vpack.c.b16 %v3526, %v3514
    %v4535 = vpack.c.b16 %v3527, %v3515
    %v4536 = vpack.c.b16 %v3528, %v3516
    %v4537 = vpack.c.b16 %v3541, %v3529
    %v4538 = vpack.c.b16 %v3542, %v3530
    %v4539 = vpack.c.b16 %v3543, %v3531
    %v4540 = vpack.c.b16 %v3544, %v3532
    %v4541 = vpack.c.b16 %v3545, %v3533
    %v4542 = vpack.c.b16 %v3546, %v3534
    %v4543 = vpack.c.b16 %v3547, %v3535
    %v4544 = vpack.c.b16 %v3548, %v3536
    %v4545 = vpack.c.b16 %v3549, %v3537
    %v4546 = vpack.c.b16 %v3550, %v3538
    %v4547 = vpack.c.b16 %v3551, %v3539
    %v4548 = vpack.c.b16 %v3552, %v3540
    %v4549 = vpack.c.b16 %v3565, %v3553
    %v4550 = vpack.c.b16 %v3566, %v3554
    %v4551 = vpack.c.b16 %v3567, %v3555
    %v4552 = vpack.c.b16 %v3568, %v3556
    %v4553 = vpack.c.b16 %v3569, %v3557
    %v4554 = vpack.c.b16 %v3570, %v3558
    %v4555 = vpack.c.b16 %v3571, %v3559
    %v4556 = vpack.c.b16 %v3572, %v3560
    %v4557 = vpack.c.b16 %v3573, %v3561
    %v4558 = vpack.c.b16 %v3574, %v3562
    %v4559 = vpack.c.b16 %v3575, %v3563
    %v4560 = vpack.c.b16 %v3576, %v3564
    %v4561 = vpack.c.b16 %v3589, %v3577
    %v4562 = vpack.c.b16 %v3590, %v3578
    %v4563 = vpack.c.b16 %v3591, %v3579
    %v4564 = vpack.c.b16 %v3592, %v3580
    %v4565 = vpack.c.b16 %v3593, %v3581
    %v4566 = vpack.c.b16 %v3594, %v3582
    %v4567 = vpack.c.b16 %v3595, %v3583
    %v4568 = vpack.c.b16 %v3596, %v3584
    %v4569 = vpack.c.b16 %v3597, %v3585
    %v4570 = vpack.c.b16 %v3598, %v3586
    %v4571 = vpack.c.b16 %v3599, %v3587
    %v4572 = vpack.c.b16 %v3600, %v3588
    %v4573 = vpack.c.b16 %v3613, %v3601
    %v4574 = vpack.c.b16 %v3614, %v3602
    %v4575 = vpack.c.b16 %v3615, %v3603
    %v4576 = vpack.c.b16 %v3616, %v3604
    %v4577 = vpack.c.b16 %v3617, %v3605
    %v4578 = vpack.c.b16 %v3618, %v3606
    %v4579 = vpack.c.b16 %v3619, %v3607
    %v4580 = vpack.c.b16 %v3620, %v3608
    %v4581 = vpack.c.b16 %v3621, %v3609
    %v4582 = vpack.c.b16 %v3622, %v3610
    %v4583 = vpack.c.b16 %v3623, %v3611
    %v4584 = vpack.c.b16 %v3624, %v3612
    %v4585 = vpack.c.b16 %v3637, %v3625
    %v4586 = vpack.c.b16 %v3638, %v3626
    %v4587 = vpack.c.b16 %v3639, %v3627
    %v4588 = vpack.c.b16 %v3640, %v3628
    %v4589 = vpack.c.b16 %v3641, %v3629
    %v4590 = vpack.c.b16 %v3642, %v3630
    %v4591 = vpack.c.b16 %v3643, %v3631
    %v4592 = vpack.c.b16 %v3644, %v3632
    %v4593 = vpack.c.b16 %v3645, %v3633
    %v4594 = vpack.c.b16 %v3646, %v3634
    %v4595 = vpack.c.b16 %v3647, %v3635
    %v4596 = vpack.c.b16 %v3648, %v3636
    %v4597 = vpack.c.b16 %v3661, %v3649
    %v4598 = vpack.c.b16 %v3662, %v3650
    %v4599 = vpack.c.b16 %v3663, %v3651
    %v4600 = vpack.c.b16 %v3664, %v3652
    %v4601 = vpack.c.b16 %v3665, %v3653
    %v4602 = vpack.c.b16 %v3666, %v3654
    %v4603 = vpack.c.b16 %v3667, %v3655
    %v4604 = vpack.c.b16 %v3668, %v3656
    %v4605 = vpack.c.b16 %v3669, %v3657
    %v4606 = vpack.c.b16 %v3670, %v3658
    %v4607 = vpack.c.b16 %v3671, %v3659
    %v4608 = vpack.c.b16 %v3672, %v3660
    %v4609 = vpack.c.b16 %v3685, %v3673
    %v4610 = vpack.c.b16 %v3686, %v3674
    %v4611 = vpack.c.b16 %v3687, %v3675
    %v4612 = vpack.c.b16 %v3688, %v3676
    %v4613 = vpack.c.b16 %v3689, %v3677
    %v4614 = vpack.c.b16 %v3690, %v3678
    %v4615 = vpack.c.b16 %v3691, %v3679
    %v4616 = vpack.c.b16 %v3692, %v3680
    %v4617 = vpack.c.b16 %v3693, %v3681
    %v4618 = vpack.c.b16 %v3694, %v3682
    %v4619 = vpack.c.b16 %v3695, %v3683
    %v4620 = vpack.c.b16 %v3696, %v3684
    %v4621 = vpack.c.b16 %v3709, %v3697
    %v4622 = vpack.c.b16 %v3710, %v3698
    %v4623 = vpack.c.b16 %v3711, %v3699
    %v4624 = vpack.c.b16 %v3712, %v3700
    %v4625 = vpack.c.b16 %v3713, %v3701
    %v4626 = vpack.c.b16 %v3714, %v3702
    %v4627 = vpack.c.b16 %v3715, %v3703
    %v4628 = vpack.c.b16 %v3716, %v3704
    %v4629 = vpack.c.b16 %v3717, %v3705
    %v4630 = vpack.c.b16 %v3718, %v3706
    %v4631 = vpack.c.b16 %v3719, %v3707
    %v4632 = vpack.c.b16 %v3720, %v3708
    %v4633 = vpack.c.b16 %v3733, %v3721
    %v4634 = vpack.c.b16 %v3734, %v3722
    %v4635 = vpack.c.b16 %v3735, %v3723
    %v4636 = vpack.c.b16 %v3736, %v3724
    %v4637 = vpack.c.b16 %v3737, %v3725
    %v4638 = vpack.c.b16 %v3738, %v3726
    %v4639 = vpack.c.b16 %v3739, %v3727
    %v4640 = vpack.c.b16 %v3740, %v3728
    %v4641 = vpack.c.b16 %v3741, %v3729
    %v4642 = vpack.c.b16 %v3742, %v3730
    %v4643 = vpack.c.b16 %v3743, %v3731
    %v4644 = vpack.c.b16 %v3744, %v3732
    %v4645 = vpack.c.b16 %v3757, %v3745
    %v4646 = vpack.c.b16 %v3758, %v3746
    %v4647 = vpack.c.b16 %v3759, %v3747
    %v4648 = vpack.c.b16 %v3760, %v3748
    %v4649 = vpack.c.b16 %v3761, %v3749
    %v4650 = vpack.c.b16 %v3762, %v3750
    %v4651 = vpack.c.b16 %v3763, %v3751
    %v4652 = vpack.c.b16 %v3764, %v3752
    %v4653 = vpack.c.b16 %v3765, %v3753
    %v4654 = vpack.c.b16 %v3766, %v3754
    %v4655 = vpack.c.b16 %v3767, %v3755
    %v4656 = vpack.c.b16 %v3768, %v3756
    %v4657 = vpack.c.b16 %v3781, %v3769
    %v4658 = vpack.c.b16 %v3782, %v3770
    %v4659 = vpack.c.b16 %v3783, %v3771
    %v4660 = vpack.c.b16 %v3784, %v3772
    %v4661 = vpack.c.b16 %v3785, %v3773
    %v4662 = vpack.c.b16 %v3786, %v3774
    %v4663 = vpack.c.b16 %v3787, %v3775
    %v4664 = vpack.c.b16 %v3788, %v3776
    %v4665 = vpack.c.b16 %v3789, %v3777
    %v4666 = vpack.c.b16 %v3790, %v3778
    %v4667 = vpack.c.b16 %v3791, %v3779
    %v4668 = vpack.c.b16 %v3792, %v3780
    %v4669 = vpack.c.b16 %v3805, %v3793
    %v4670 = vpack.c.b16 %v3806, %v3794
    %v4671 = vpack.c.b16 %v3807, %v3795
    %v4672 = vpack.c.b16 %v3808, %v3796
    %v4673 = vpack.c.b16 %v3809, %v3797
    %v4674 = vpack.c.b16 %v3810, %v3798
    %v4675 = vpack.c.b16 %v3811, %v3799
    %v4676 = vpack.c.b16 %v3812, %v3800
    %v4677 = vpack.c.b16 %v3813, %v3801
    %v4678 = vpack.c.b16 %v3814, %v3802
    %v4679 = vpack.c.b16 %v3815, %v3803
    %v4680 = vpack.c.b16 %v3816, %v3804
    %5545 = vmatprep.subr.bf16.mxu0 %v3818
    %5546 = vmatpush1.bf16.msra.mxu0 %v3817
    %5547 = vmatprep.subr.bf16.mxu0 %v3830
    %5548 = vmatpush1.bf16.msra.mxu0 %v3829
    %5549 = vmatprep.subr.bf16.mxu0 %v3842
    %5550 = vmatpush1.bf16.msra.mxu0 %v3841
    %5551 = vmatprep.subr.bf16.mxu0 %v3854
    %5552 = vmatpush1.bf16.msra.mxu0 %v3853
    %5553 = vmatprep.subr.bf16.mxu0 %v3866
    %5554 = vmatpush1.bf16.msra.mxu0 %v3865
    %5555 = vmatprep.subr.bf16.mxu0 %v3878
    %5556 = vmatpush1.bf16.msra.mxu0 %v3877
    %5557 = vmatprep.subr.bf16.mxu0 %v3890
    %5558 = vmatpush1.bf16.msra.mxu0 %v3889
    %5559 = vmatprep.subr.bf16.mxu0 %v3902
    %5560 = vmatpush1.bf16.msra.mxu0 %v3901
    %5561 = vmatprep.subr.bf16.mxu0 %v3914
    %5562 = vmatpush1.bf16.msra.mxu0 %v3913
    %5563 = vmatprep.subr.bf16.mxu0 %v3926
    %5564 = vmatpush1.bf16.msra.mxu0 %v3925
    %5565 = vmatprep.subr.bf16.mxu0 %v3938
    %5566 = vmatpush1.bf16.msra.mxu0 %v3937
    %5567 = vmatprep.subr.bf16.mxu0 %v3950
    %5568 = vmatpush1.bf16.msra.mxu0 %v3949
    %5569 = vmatprep.subr.bf16.mxu0 %v3962
    %5570 = vmatpush1.bf16.msra.mxu0 %v3961
    %5571 = vmatprep.subr.bf16.mxu0 %v3974
    %5572 = vmatpush1.bf16.msra.mxu0 %v3973
    %5573 = vmatprep.subr.bf16.mxu0 %v3986
    %5574 = vmatpush1.bf16.msra.mxu0 %v3985
    %5575 = vmatprep.subr.bf16.mxu0 %v3998
    %5576 = vmatpush1.bf16.msra.mxu0 %v3997
    %5577 = vmatprep.mubr.bf16.mxu0 %v1154
    %5578 = vmatmul.mubr.bf16.gmra.mrb[0].mxu0 %v1153
    %v5579 = vpop.f32.mrb[0].mxu0
    %v5580 = vadd.f32 %v984, %v5579
    %v5581 = vpop.f32.mrb[0].mxu0
    %v5582 = vadd.f32 %v988, %v5581
    %v5583 = vpop.f32.mrb[0].mxu0
    %v5584 = vadd.f32 %v984, %v5583
    %v5585 = vpop.f32.mrb[0].mxu0
    %v5586 = vadd.f32 %v988, %v5585
    %5587 = vmatprep.mubr.bf16.mxu0 %v1163
    %5588 = vmatmul.mubr.bf16.gmra.mrb[0].mxu0 %v1162
    %v5589 = vpop.f32.mrb[0].mxu0
    %v5590 = vadd.f32 %v984, %v5589
    %v5591 = vpop.f32.mrb[0].mxu0
    %v5592 = vadd.f32 %v988, %v5591
    %v5593 = vpop.f32.mrb[0].mxu0
    %v5594 = vadd.f32 %v984, %v5593
    %v5595 = vpop.f32.mrb[0].mxu0
    %v5596 = vadd.f32 %v988, %v5595
    %5597 = vmatprep.mubr.bf16.mxu0 %v1172
    %5598 = vmatmul.mubr.bf16.gmra.mrb[0].mxu0 %v1171
    %v5599 = vpop.f32.mrb[0].mxu0
    %v5600 = vadd.f32 %v984, %v5599
    %v5601 = vpop.f32.mrb[0].mxu0
    %v5602 = vadd.f32 %v988, %v5601
    %v5603 = vpop.f32.mrb[0].mxu0
    %v5604 = vadd.f32 %v984, %v5603
    %v5605 = vpop.f32.mrb[0].mxu0
    %v5606 = vadd.f32 %v988, %v5605
    %5607 = vmatprep.mubr.bf16.mxu0 %v1181
    %5608 = vmatmul.mubr.bf16.gmra.mrb[0].mxu0 %v1180
    %v5609 = vpop.f32.mrb[0].mxu0
    %v5610 = vadd.f32 %v984, %v5609
    %v5611 = vpop.f32.mrb[0].mxu0
    %v5612 = vadd.f32 %v988, %v5611
    %v5613 = vpop.f32.mrb[0].mxu0
    %v5614 = vadd.f32 %v984, %v5613
    %v5615 = vpop.f32.mrb[0].mxu0
    %v5616 = vadd.f32 %v988, %v5615
    %5617 = vdwg.mxu0
    %5618 = vmatprep.subr.bf16.mxu0 %v4010
    %5619 = vmatpush1.bf16.msra.mxu0 %v4009
    %5620 = vmatprep.subr.bf16.mxu0 %v4022
    %5621 = vmatpush1.bf16.msra.mxu0 %v4021
    %5622 = vmatprep.subr.bf16.mxu0 %v4034
    %5623 = vmatpush1.bf16.msra.mxu0 %v4033
    %5624 = vmatprep.subr.bf16.mxu0 %v4046
    %5625 = vmatpush1.bf16.msra.mxu0 %v4045
    %5626 = vmatprep.subr.bf16.mxu0 %v4058
    %5627 = vmatpush1.bf16.msra.mxu0 %v4057
    %5628 = vmatprep.subr.bf16.mxu0 %v4070
    %5629 = vmatpush1.bf16.msra.mxu0 %v4069
    %5630 = vmatprep.subr.bf16.mxu0 %v4082
    %5631 = vmatpush1.bf16.msra.mxu0 %v4081
    %5632 = vmatprep.subr.bf16.mxu0 %v4094
    %5633 = vmatpush1.bf16.msra.mxu0 %v4093
    %5634 = vmatprep.subr.bf16.mxu0 %v4106
    %5635 = vmatpush1.bf16.msra.mxu0 %v4105
    %5636 = vmatprep.subr.bf16.mxu0 %v4118
    %5637 = vmatpush1.bf16.msra.mxu0 %v4117
    %5638 = vmatprep.subr.bf16.mxu0 %v4130
    %5639 = vmatpush1.bf16.msra.mxu0 %v4129
    %5640 = vmatprep.subr.bf16.mxu0 %v4142
    %5641 = vmatpush1.bf16.msra.mxu0 %v4141
    %5642 = vmatprep.subr.bf16.mxu0 %v4154
    %5643 = vmatpush1.bf16.msra.mxu0 %v4153
    %5644 = vmatprep.subr.bf16.mxu0 %v4166
    %5645 = vmatpush1.bf16.msra.mxu0 %v4165
    %5646 = vmatprep.subr.bf16.mxu0 %v4178
    %5647 = vmatpush1.bf16.msra.mxu0 %v4177
    %5648 = vmatprep.subr.bf16.mxu0 %v4190
    %5649 = vmatpush1.bf16.msra.mxu0 %v4189
    %5650 = vmatprep.mubr.bf16.mxu0 %v1156
    %5651 = vmatmul.mubr.bf16.gmra.mrb[0].mxu0 %v1155
    %v5652 = vpop.f32.mrb[0].mxu0
    %v5653 = vadd.f32 %v5580, %v5652
    %v5654 = vpop.f32.mrb[0].mxu0
    %v5655 = vadd.f32 %v5582, %v5654
    %v5656 = vpop.f32.mrb[0].mxu0
    %v5657 = vadd.f32 %v5584, %v5656
    %v5658 = vpop.f32.mrb[0].mxu0
    %v5659 = vadd.f32 %v5586, %v5658
    %5660 = vmatprep.mubr.bf16.mxu0 %v1165
    %5661 = vmatmul.mubr.bf16.gmra.mrb[0].mxu0 %v1164
    %v5662 = vpop.f32.mrb[0].mxu0
    %v5663 = vadd.f32 %v5590, %v5662
    %v5664 = vpop.f32.mrb[0].mxu0
    %v5665 = vadd.f32 %v5592, %v5664
    %v5666 = vpop.f32.mrb[0].mxu0
    %v5667 = vadd.f32 %v5594, %v5666
    %v5668 = vpop.f32.mrb[0].mxu0
    %v5669 = vadd.f32 %v5596, %v5668
    %5670 = vmatprep.mubr.bf16.mxu0 %v1174
    %5671 = vmatmul.mubr.bf16.gmra.mrb[0].mxu0 %v1173
    %v5672 = vpop.f32.mrb[0].mxu0
    %v5673 = vadd.f32 %v5600, %v5672
    %v5674 = vpop.f32.mrb[0].mxu0
    %v5675 = vadd.f32 %v5602, %v5674
    %v5676 = vpop.f32.mrb[0].mxu0
    %v5677 = vadd.f32 %v5604, %v5676
    %v5678 = vpop.f32.mrb[0].mxu0
    %v5679 = vadd.f32 %v5606, %v5678
    %5680 = vmatprep.mubr.bf16.mxu0 %v1183
    %5681 = vmatmul.mubr.bf16.gmra.mrb[0].mxu0 %v1182
    %v5682 = vpop.f32.mrb[0].mxu0
    %v5683 = vadd.f32 %v5610, %v5682
    %v5684 = vpop.f32.mrb[0].mxu0
    %v5685 = vadd.f32 %v5612, %v5684
    %v5686 = vpop.f32.mrb[0].mxu0
    %v5687 = vadd.f32 %v5614, %v5686
    %v5688 = vpop.f32.mrb[0].mxu0
    %v5689 = vadd.f32 %v5616, %v5688
    %5690 = vdwg.mxu0
    %5691 = vmatprep.subr.bf16.mxu0 %v4202
    %5692 = vmatpush1.bf16.msra.mxu0 %v4201
    %5693 = vmatprep.subr.bf16.mxu0 %v4214
    %5694 = vmatpush1.bf16.msra.mxu0 %v4213
    %5695 = vmatprep.subr.bf16.mxu0 %v4226
    %5696 = vmatpush1.bf16.msra.mxu0 %v4225
    %5697 = vmatprep.subr.bf16.mxu0 %v4238
    %5698 = vmatpush1.bf16.msra.mxu0 %v4237
    %5699 = vmatprep.subr.bf16.mxu0 %v4250
    %5700 = vmatpush1.bf16.msra.mxu0 %v4249
    %5701 = vmatprep.subr.bf16.mxu0 %v4262
    %5702 = vmatpush1.bf16.msra.mxu0 %v4261
    %5703 = vmatprep.subr.bf16.mxu0 %v4274
    %5704 = vmatpush1.bf16.msra.mxu0 %v4273
    %5705 = vmatprep.subr.bf16.mxu0 %v4286
    %5706 = vmatpush1.bf16.msra.mxu0 %v4285
    %5707 = vmatprep.subr.bf16.mxu0 %v4298
    %5708 = vmatpush1.bf16.msra.mxu0 %v4297
    %5709 = vmatprep.subr.bf16.mxu0 %v4310
    %5710 = vmatpush1.bf16.msra.mxu0 %v4309
    %5711 = vmatprep.subr.bf16.mxu0 %v4322
    %5712 = vmatpush1.bf16.msra.mxu0 %v4321
    %5713 = vmatprep.subr.bf16.mxu0 %v4334
    %5714 = vmatpush1.bf16.msra.mxu0 %v4333
    %5715 = vmatprep.subr.bf16.mxu0 %v4346
    %5716 = vmatpush1.bf16.msra.mxu0 %v4345
    %5717 = vmatprep.subr.bf16.mxu0 %v4358
    %5718 = vmatpush1.bf16.msra.mxu0 %v4357
    %5719 = vmatprep.subr.bf16.mxu0 %v4370
    %5720 = vmatpush1.bf16.msra.mxu0 %v4369
    %5721 = vmatprep.subr.bf16.mxu0 %v4382
    %5722 = vmatpush1.bf16.msra.mxu0 %v4381
    %5723 = vmatprep.mubr.bf16.mxu0 %v1158
    %5724 = vmatmul.mubr.bf16.gmra.mrb[0].mxu0 %v1157
    %v5725 = vpop.f32.mrb[0].mxu0
    %v5726 = vadd.f32 %v5653, %v5725
    %v5727 = vpop.f32.mrb[0].mxu0
    %v5728 = vadd.f32 %v5655, %v5727
    %v5729 = vpop.f32.mrb[0].mxu0
    %v5730 = vadd.f32 %v5657, %v5729
    %v5731 = vpop.f32.mrb[0].mxu0
    %v5732 = vadd.f32 %v5659, %v5731
    %5733 = vmatprep.mubr.bf16.mxu0 %v1167
    %5734 = vmatmul.mubr.bf16.gmra.mrb[0].mxu0 %v1166
    %v5735 = vpop.f32.mrb[0].mxu0
    %v5736 = vadd.f32 %v5663, %v5735
    %v5737 = vpop.f32.mrb[0].mxu0
    %v5738 = vadd.f32 %v5665, %v5737
    %v5739 = vpop.f32.mrb[0].mxu0
    %v5740 = vadd.f32 %v5667, %v5739
    %v5741 = vpop.f32.mrb[0].mxu0
    %v5742 = vadd.f32 %v5669, %v5741
    %5743 = vmatprep.mubr.bf16.mxu0 %v1176
    %5744 = vmatmul.mubr.bf16.gmra.mrb[0].mxu0 %v1175
    %v5745 = vpop.f32.mrb[0].mxu0
    %v5746 = vadd.f32 %v5673, %v5745
    %v5747 = vpop.f32.mrb[0].mxu0
    %v5748 = vadd.f32 %v5675, %v5747
    %v5749 = vpop.f32.mrb[0].mxu0
    %v5750 = vadd.f32 %v5677, %v5749
    %v5751 = vpop.f32.mrb[0].mxu0
    %v5752 = vadd.f32 %v5679, %v5751
    %5753 = vmatprep.mubr.bf16.mxu0 %v1185
    %5754 = vmatmul.mubr.bf16.gmra.mrb[0].mxu0 %v1184
    %v5755 = vpop.f32.mrb[0].mxu0
    %v5756 = vadd.f32 %v5683, %v5755
    %v5757 = vpop.f32.mrb[0].mxu0
    %v5758 = vadd.f32 %v5685, %v5757
    %v5759 = vpop.f32.mrb[0].mxu0
    %v5760 = vadd.f32 %v5687, %v5759
    %v5761 = vpop.f32.mrb[0].mxu0
    %v5762 = vadd.f32 %v5689, %v5761
    %5763 = vdwg.mxu0
    %5764 = vmatprep.subr.bf16.mxu0 %v4394
    %5765 = vmatpush1.bf16.msra.mxu0 %v4393
    %5766 = vmatprep.subr.bf16.mxu0 %v4406
    %5767 = vmatpush1.bf16.msra.mxu0 %v4405
    %5768 = vmatprep.subr.bf16.mxu0 %v4418
    %5769 = vmatpush1.bf16.msra.mxu0 %v4417
    %5770 = vmatprep.subr.bf16.mxu0 %v4430
    %5771 = vmatpush1.bf16.msra.mxu0 %v4429
    %5772 = vmatprep.subr.bf16.mxu0 %v4442
    %5773 = vmatpush1.bf16.msra.mxu0 %v4441
    %5774 = vmatprep.subr.bf16.mxu0 %v4454
    %5775 = vmatpush1.bf16.msra.mxu0 %v4453
    %5776 = vmatprep.subr.bf16.mxu0 %v4466
    %5777 = vmatpush1.bf16.msra.mxu0 %v4465
    %5778 = vmatprep.subr.bf16.mxu0 %v4478
    %5779 = vmatpush1.bf16.msra.mxu0 %v4477
    %5780 = vmatprep.subr.bf16.mxu0 %v4490
    %5781 = vmatpush1.bf16.msra.mxu0 %v4489
    %5782 = vmatprep.subr.bf16.mxu0 %v4502
    %5783 = vmatpush1.bf16.msra.mxu0 %v4501
    %5784 = vmatprep.subr.bf16.mxu0 %v4514
    %5785 = vmatpush1.bf16.msra.mxu0 %v4513
    %5786 = vmatprep.subr.bf16.mxu0 %v4526
    %5787 = vmatpush1.bf16.msra.mxu0 %v4525
    %5788 = vmatprep.subr.bf16.mxu0 %v4538
    %5789 = vmatpush1.bf16.msra.mxu0 %v4537
    %5790 = vmatprep.subr.bf16.mxu0 %v4550
    %5791 = vmatpush1.bf16.msra.mxu0 %v4549
    %5792 = vmatprep.subr.bf16.mxu0 %v4562
    %5793 = vmatpush1.bf16.msra.mxu0 %v4561
    %5794 = vmatprep.subr.bf16.mxu0 %v4574
    %5795 = vmatpush1.bf16.msra.mxu0 %v4573
    %5796 = vmatprep.mubr.bf16.mxu0 %v1160
    %5797 = vmatmul.mubr.bf16.gmra.mrb[0].mxu0 %v1159
    %v5798 = vpop.f32.mrb[0].mxu0
    %v5799 = vadd.f32 %v5726, %v5798
    %v5800 = vpop.f32.mrb[0].mxu0
    %v5801 = vadd.f32 %v5728, %v5800
    %v5802 = vpop.f32.mrb[0].mxu0
    %v5803 = vadd.f32 %v5730, %v5802
    %v5804 = vpop.f32.mrb[0].mxu0
    %v5805 = vadd.f32 %v5732, %v5804
    %5806 = vmatprep.mubr.bf16.mxu0 %v1169
    %5807 = vmatmul.mubr.bf16.gmra.mrb[0].mxu0 %v1168
    %v5808 = vpop.f32.mrb[0].mxu0
    %v5809 = vadd.f32 %v5736, %v5808
    %v5810 = vpop.f32.mrb[0].mxu0
    %v5811 = vadd.f32 %v5738, %v5810
    %v5812 = vpop.f32.mrb[0].mxu0
    %v5813 = vadd.f32 %v5740, %v5812
    %v5814 = vpop.f32.mrb[0].mxu0
    %v5815 = vadd.f32 %v5742, %v5814
    %5816 = vmatprep.mubr.bf16.mxu0 %v1178
    %5817 = vmatmul.mubr.bf16.gmra.mrb[0].mxu0 %v1177
    %v5818 = vpop.f32.mrb[0].mxu0
    %v5819 = vadd.f32 %v5746, %v5818
    %v5820 = vpop.f32.mrb[0].mxu0
    %v5821 = vadd.f32 %v5748, %v5820
    %v5822 = vpop.f32.mrb[0].mxu0
    %v5823 = vadd.f32 %v5750, %v5822
    %v5824 = vpop.f32.mrb[0].mxu0
    %v5825 = vadd.f32 %v5752, %v5824
    %5826 = vmatprep.mubr.bf16.mxu0 %v1187
    %5827 = vmatmul.mubr.bf16.gmra.mrb[0].mxu0 %v1186
    %v5828 = vpop.f32.mrb[0].mxu0
    %v5829 = vadd.f32 %v5756, %v5828
    %v5830 = vpop.f32.mrb[0].mxu0
    %v5831 = vadd.f32 %v5758, %v5830
    %v5832 = vpop.f32.mrb[0].mxu0
    %v5833 = vadd.f32 %v5760, %v5832
    %v5834 = vpop.f32.mrb[0].mxu0
    %v5835 = vadd.f32 %v5762, %v5834
    %5836 = vdwg.mxu0
    %5837 = vmatprep.subr.bf16.mxu0 %v4586
    %5838 = vmatpush1.bf16.msra.mxu0 %v4585
    %5839 = vmatprep.subr.bf16.mxu0 %v4598
    %5840 = vmatpush1.bf16.msra.mxu0 %v4597
    %5841 = vmatprep.subr.bf16.mxu0 %v4610
    %5842 = vmatpush1.bf16.msra.mxu0 %v4609
    %5843 = vmatprep.subr.bf16.mxu0 %v4622
    %5844 = vmatpush1.bf16.msra.mxu0 %v4621
    %5845 = vmatprep.subr.bf16.mxu0 %v4634
    %5846 = vmatpush1.bf16.msra.mxu0 %v4633
    %5847 = vmatprep.subr.bf16.mxu0 %v4646
    %5848 = vmatpush1.bf16.msra.mxu0 %v4645
    %5849 = vmatprep.subr.bf16.mxu0 %v4658
    %5850 = vmatpush1.bf16.msra.mxu0 %v4657
    %5851 = vmatprep.subr.bf16.mxu0 %v4670
    %5852 = vmatpush1.bf16.msra.mxu0 %v4669
    %5853 = vmatprep.subr.bf16.mxu0 0
    %5854 = vmatpush1.bf16.msra.mxu0 0
    %5855 = vmatprep.subr.bf16.mxu0 0
    %5856 = vmatpush1.bf16.msra.mxu0 0
    %5857 = vmatprep.subr.bf16.mxu0 0
    %5858 = vmatpush1.bf16.msra.mxu0 0
    %5859 = vmatprep.subr.bf16.mxu0 0
    %5860 = vmatpush1.bf16.msra.mxu0 0
    %5861 = vmatprep.subr.bf16.mxu0 0
    %5862 = vmatpush1.bf16.msra.mxu0 0
    %5863 = vmatprep.subr.bf16.mxu0 0
    %5864 = vmatpush1.bf16.msra.mxu0 0
    %5865 = vmatprep.subr.bf16.mxu0 0
    %5866 = vmatpush1.bf16.msra.mxu0 0
    %5867 = vmatprep.subr.bf16.mxu0 0
    %5868 = vmatpush1.bf16.msra.mxu0 0
    %5869 = vmatprep.mubr.bf16.mxu0 0
    %5870 = vmatmul.mubr.bf16.gmra.mrb[0].mxu0 %v1161
    %v5871 = vpop.f32.mrb[0].mxu0
    %v5872 = vadd.f32 %v5799, %v5871
    %v5873 = vpop.f32.mrb[0].mxu0
    %v5874 = vadd.f32 %v5801, %v5873
    %v5875 = vpop.f32.mrb[0].mxu0
    %v5876 = vadd.f32 %v5803, %v5875
    %v5877 = vpop.f32.mrb[0].mxu0
    %v5878 = vadd.f32 %v5805, %v5877
    %5879 = vmatprep.mubr.bf16.mxu0 0
    %5880 = vmatmul.mubr.bf16.gmra.mrb[0].mxu0 %v1170
    %v5881 = vpop.f32.mrb[0].mxu0
    %v5882 = vadd.f32 %v5809, %v5881
    %v5883 = vpop.f32.mrb[0].mxu0
    %v5884 = vadd.f32 %v5811, %v5883
    %v5885 = vpop.f32.mrb[0].mxu0
    %v5886 = vadd.f32 %v5813, %v5885
    %v5887 = vpop.f32.mrb[0].mxu0
    %v5888 = vadd.f32 %v5815, %v5887
    %5889 = vmatprep.mubr.bf16.mxu0 0
    %5890 = vmatmul.mubr.bf16.gmra.mrb[0].mxu0 %v1179
    %v5891 = vpop.f32.mrb[0].mxu0
    %v5892 = vadd.f32 %v5819, %v5891
    %v5893 = vpop.f32.mrb[0].mxu0
    %v5894 = vadd.f32 %v5821, %v5893
    %v5895 = vpop.f32.mrb[0].mxu0
    %v5896 = vadd.f32 %v5823, %v5895
    %v5897 = vpop.f32.mrb[0].mxu0
    %v5898 = vadd.f32 %v5825, %v5897
    %5899 = vmatprep.mubr.bf16.mxu0 0
    %5900 = vmatmul.mubr.bf16.gmra.mrb[0].mxu0 %v1188
    %v5901 = vpop.f32.mrb[0].mxu0
    %v5902 = vadd.f32 %v5829, %v5901
    %v5903 = vpop.f32.mrb[0].mxu0
    %v5904 = vadd.f32 %v5831, %v5903
    %v5905 = vpop.f32.mrb[0].mxu0
    %v5906 = vadd.f32 %v5833, %v5905
    %v5907 = vpop.f32.mrb[0].mxu0
    %v5908 = vadd.f32 %v5835, %v5907
    %5909 = vdwg.mxu0
    %5910 = vmatprep.subr.bf16.mxu0 %v3820
    %5911 = vmatpush1.bf16.msra.mxu0 %v3819
    %5912 = vmatprep.subr.bf16.mxu0 %v3832
    %5913 = vmatpush1.bf16.msra.mxu0 %v3831
    %5914 = vmatprep.subr.bf16.mxu0 %v3844
    %5915 = vmatpush1.bf16.msra.mxu0 %v3843
    %5916 = vmatprep.subr.bf16.mxu0 %v3856
    %5917 = vmatpush1.bf16.msra.mxu0 %v3855
    %5918 = vmatprep.subr.bf16.mxu0 %v3868
    %5919 = vmatpush1.bf16.msra.mxu0 %v3867
    %5920 = vmatprep.subr.bf16.mxu0 %v3880
    %5921 = vmatpush1.bf16.msra.mxu0 %v3879
    %5922 = vmatprep.subr.bf16.mxu0 %v3892
    %5923 = vmatpush1.bf16.msra.mxu0 %v3891
    %5924 = vmatprep.subr.bf16.mxu0 %v3904
    %5925 = vmatpush1.bf16.msra.mxu0 %v3903
    %5926 = vmatprep.subr.bf16.mxu0 %v3916
    %5927 = vmatpush1.bf16.msra.mxu0 %v3915
    %5928 = vmatprep.subr.bf16.mxu0 %v3928
    %5929 = vmatpush1.bf16.msra.mxu0 %v3927
    %5930 = vmatprep.subr.bf16.mxu0 %v3940
    %5931 = vmatpush1.bf16.msra.mxu0 %v3939
    %5932 = vmatprep.subr.bf16.mxu0 %v3952
    %5933 = vmatpush1.bf16.msra.mxu0 %v3951
    %5934 = vmatprep.subr.bf16.mxu0 %v3964
    %5935 = vmatpush1.bf16.msra.mxu0 %v3963
    %5936 = vmatprep.subr.bf16.mxu0 %v3976
    %5937 = vmatpush1.bf16.msra.mxu0 %v3975
    %5938 = vmatprep.subr.bf16.mxu0 %v3988
    %5939 = vmatpush1.bf16.msra.mxu0 %v3987
    %5940 = vmatprep.subr.bf16.mxu0 %v4000
    %5941 = vmatpush1.bf16.msra.mxu0 %v3999
    %5942 = vmatprep.mubr.bf16.mxu0 %v1154
    %5943 = vmatmul.mubr.bf16.gmra.mrb[0].mxu0 %v1153
    %v5944 = vpop.f32.mrb[0].mxu0
    %v5945 = vadd.f32 %v992, %v5944
    %v5946 = vpop.f32.mrb[0].mxu0
    %v5947 = vadd.f32 %v996, %v5946
    %v5948 = vpop.f32.mrb[0].mxu0
    %v5949 = vadd.f32 %v992, %v5948
    %v5950 = vpop.f32.mrb[0].mxu0
    %v5951 = vadd.f32 %v996, %v5950
    %5952 = vmatprep.mubr.bf16.mxu0 %v1163
    %5953 = vmatmul.mubr.bf16.gmra.mrb[0].mxu0 %v1162
    %v5954 = vpop.f32.mrb[0].mxu0
    %v5955 = vadd.f32 %v992, %v5954
    %v5956 = vpop.f32.mrb[0].mxu0
    %v5957 = vadd.f32 %v996, %v5956
    %v5958 = vpop.f32.mrb[0].mxu0
    %v5959 = vadd.f32 %v992, %v5958
    %v5960 = vpop.f32.mrb[0].mxu0
    %v5961 = vadd.f32 %v996, %v5960
    %5962 = vmatprep.mubr.bf16.mxu0 %v1172
    %5963 = vmatmul.mubr.bf16.gmra.mrb[0].mxu0 %v1171
    %v5964 = vpop.f32.mrb[0].mxu0
    %v5965 = vadd.f32 %v992, %v5964
    %v5966 = vpop.f32.mrb[0].mxu0
    %v5967 = vadd.f32 %v996, %v5966
    %v5968 = vpop.f32.mrb[0].mxu0
    %v5969 = vadd.f32 %v992, %v5968
    %v5970 = vpop.f32.mrb[0].mxu0
    %v5971 = vadd.f32 %v996, %v5970
    %5972 = vmatprep.mubr.bf16.mxu0 %v1181
    %5973 = vmatmul.mubr.bf16.gmra.mrb[0].mxu0 %v1180
    %v5974 = vpop.f32.mrb[0].mxu0
    %v5975 = vadd.f32 %v992, %v5974
    %v5976 = vpop.f32.mrb[0].mxu0
    %v5977 = vadd.f32 %v996, %v5976
    %v5978 = vpop.f32.mrb[0].mxu0
    %v5979 = vadd.f32 %v992, %v5978
    %v5980 = vpop.f32.mrb[0].mxu0
    %v5981 = vadd.f32 %v996, %v5980
    %5982 = vdwg.mxu0
    %5983 = vmatprep.subr.bf16.mxu0 %v4012
    %5984 = vmatpush1.bf16.msra.mxu0 %v4011
    %5985 = vmatprep.subr.bf16.mxu0 %v4024
    %5986 = vmatpush1.bf16.msra.mxu0 %v4023
    %5987 = vmatprep.subr.bf16.mxu0 %v4036
    %5988 = vmatpush1.bf16.msra.mxu0 %v4035
    %5989 = vmatprep.subr.bf16.mxu0 %v4048
    %5990 = vmatpush1.bf16.msra.mxu0 %v4047
    %5991 = vmatprep.subr.bf16.mxu0 %v4060
    %5992 = vmatpush1.bf16.msra.mxu0 %v4059
    %5993 = vmatprep.subr.bf16.mxu0 %v4072
    %5994 = vmatpush1.bf16.msra.mxu0 %v4071
    %5995 = vmatprep.subr.bf16.mxu0 %v4084
    %5996 = vmatpush1.bf16.msra.mxu0 %v4083
    %5997 = vmatprep.subr.bf16.mxu0 %v4096
    %5998 = vmatpush1.bf16.msra.mxu0 %v4095
    %5999 = vmatprep.subr.bf16.mxu0 %v4108
    %6000 = vmatpush1.bf16.msra.mxu0 %v4107
    %6001 = vmatprep.subr.bf16.mxu0 %v4120
    %6002 = vmatpush1.bf16.msra.mxu0 %v4119
    %6003 = vmatprep.subr.bf16.mxu0 %v4132
    %6004 = vmatpush1.bf16.msra.mxu0 %v4131
    %6005 = vmatprep.subr.bf16.mxu0 %v4144
    %6006 = vmatpush1.bf16.msra.mxu0 %v4143
    %6007 = vmatprep.subr.bf16.mxu0 %v4156
    %6008 = vmatpush1.bf16.msra.mxu0 %v4155
    %6009 = vmatprep.subr.bf16.mxu0 %v4168
    %6010 = vmatpush1.bf16.msra.mxu0 %v4167
    %6011 = vmatprep.subr.bf16.mxu0 %v4180
    %6012 = vmatpush1.bf16.msra.mxu0 %v4179
    %6013 = vmatprep.subr.bf16.mxu0 %v4192
    %6014 = vmatpush1.bf16.msra.mxu0 %v4191
    %6015 = vmatprep.mubr.bf16.mxu0 %v1156
    %6016 = vmatmul.mubr.bf16.gmra.mrb[0].mxu0 %v1155
    %v6017 = vpop.f32.mrb[0].mxu0
    %v6018 = vadd.f32 %v5945, %v6017
    %v6019 = vpop.f32.mrb[0].mxu0
    %v6020 = vadd.f32 %v5947, %v6019
    %v6021 = vpop.f32.mrb[0].mxu0
    %v6022 = vadd.f32 %v5949, %v6021
    %v6023 = vpop.f32.mrb[0].mxu0
    %v6024 = vadd.f32 %v5951, %v6023
    %6025 = vmatprep.mubr.bf16.mxu0 %v1165
    %6026 = vmatmul.mubr.bf16.gmra.mrb[0].mxu0 %v1164
    %v6027 = vpop.f32.mrb[0].mxu0
    %v6028 = vadd.f32 %v5955, %v6027
    %v6029 = vpop.f32.mrb[0].mxu0
    %v6030 = vadd.f32 %v5957, %v6029
    %v6031 = vpop.f32.mrb[0].mxu0
    %v6032 = vadd.f32 %v5959, %v6031
    %v6033 = vpop.f32.mrb[0].mxu0
    %v6034 = vadd.f32 %v5961, %v6033
    %6035 = vmatprep.mubr.bf16.mxu0 %v1174
    %6036 = vmatmul.mubr.bf16.gmra.mrb[0].mxu0 %v1173
    %v6037 = vpop.f32.mrb[0].mxu0
    %v6038 = vadd.f32 %v5965, %v6037
    %v6039 = vpop.f32.mrb[0].mxu0
    %v6040 = vadd.f32 %v5967, %v6039
    %v6041 = vpop.f32.mrb[0].mxu0
    %v6042 = vadd.f32 %v5969, %v6041
    %v6043 = vpop.f32.mrb[0].mxu0
    %v6044 = vadd.f32 %v5971, %v6043
    %6045 = vmatprep.mubr.bf16.mxu0 %v1183
    %6046 = vmatmul.mubr.bf16.gmra.mrb[0].mxu0 %v1182
    %v6047 = vpop.f32.mrb[0].mxu0
    %v6048 = vadd.f32 %v5975, %v6047
    %v6049 = vpop.f32.mrb[0].mxu0
    %v6050 = vadd.f32 %v5977, %v6049
    %v6051 = vpop.f32.mrb[0].mxu0
    %v6052 = vadd.f32 %v5979, %v6051
    %v6053 = vpop.f32.mrb[0].mxu0
    %v6054 = vadd.f32 %v5981, %v6053
    %6055 = vdwg.mxu0
    %6056 = vmatprep.subr.bf16.mxu0 %v4204
    %6057 = vmatpush1.bf16.msra.mxu0 %v4203
    %6058 = vmatprep.subr.bf16.mxu0 %v4216
    %6059 = vmatpush1.bf16.msra.mxu0 %v4215
    %6060 = vmatprep.subr.bf16.mxu0 %v4228
    %6061 = vmatpush1.bf16.msra.mxu0 %v4227
    %6062 = vmatprep.subr.bf16.mxu0 %v4240
    %6063 = vmatpush1.bf16.msra.mxu0 %v4239
    %6064 = vmatprep.subr.bf16.mxu0 %v4252
    %6065 = vmatpush1.bf16.msra.mxu0 %v4251
    %6066 = vmatprep.subr.bf16.mxu0 %v4264
    %6067 = vmatpush1.bf16.msra.mxu0 %v4263
    %6068 = vmatprep.subr.bf16.mxu0 %v4276
    %6069 = vmatpush1.bf16.msra.mxu0 %v4275
    %6070 = vmatprep.subr.bf16.mxu0 %v4288
    %6071 = vmatpush1.bf16.msra.mxu0 %v4287
    %6072 = vmatprep.subr.bf16.mxu0 %v4300
    %6073 = vmatpush1.bf16.msra.mxu0 %v4299
    %6074 = vmatprep.subr.bf16.mxu0 %v4312
    %6075 = vmatpush1.bf16.msra.mxu0 %v4311
    %6076 = vmatprep.subr.bf16.mxu0 %v4324
    %6077 = vmatpush1.bf16.msra.mxu0 %v4323
    %6078 = vmatprep.subr.bf16.mxu0 %v4336
    %6079 = vmatpush1.bf16.msra.mxu0 %v4335
    %6080 = vmatprep.subr.bf16.mxu0 %v4348
    %6081 = vmatpush1.bf16.msra.mxu0 %v4347
    %6082 = vmatprep.subr.bf16.mxu0 %v4360
    %6083 = vmatpush1.bf16.msra.mxu0 %v4359
    %6084 = vmatprep.subr.bf16.mxu0 %v4372
    %6085 = vmatpush1.bf16.msra.mxu0 %v4371
    %6086 = vmatprep.subr.bf16.mxu0 %v4384
    %6087 = vmatpush1.bf16.msra.mxu0 %v4383
    %6088 = vmatprep.mubr.bf16.mxu0 %v1158
    %6089 = vmatmul.mubr.bf16.gmra.mrb[0].mxu0 %v1157
    %v6090 = vpop.f32.mrb[0].mxu0
    %v6091 = vadd.f32 %v6018, %v6090
    %v6092 = vpop.f32.mrb[0].mxu0
    %v6093 = vadd.f32 %v6020, %v6092
    %v6094 = vpop.f32.mrb[0].mxu0
    %v6095 = vadd.f32 %v6022, %v6094
    %v6096 = vpop.f32.mrb[0].mxu0
    %v6097 = vadd.f32 %v6024, %v6096
    %6098 = vmatprep.mubr.bf16.mxu0 %v1167
    %6099 = vmatmul.mubr.bf16.gmra.mrb[0].mxu0 %v1166
    %v6100 = vpop.f32.mrb[0].mxu0
    %v6101 = vadd.f32 %v6028, %v6100
    %v6102 = vpop.f32.mrb[0].mxu0
    %v6103 = vadd.f32 %v6030, %v6102
    %v6104 = vpop.f32.mrb[0].mxu0
    %v6105 = vadd.f32 %v6032, %v6104
    %v6106 = vpop.f32.mrb[0].mxu0
    %v6107 = vadd.f32 %v6034, %v6106
    %6108 = vmatprep.mubr.bf16.mxu0 %v1176
    %6109 = vmatmul.mubr.bf16.gmra.mrb[0].mxu0 %v1175
    %v6110 = vpop.f32.mrb[0].mxu0
    %v6111 = vadd.f32 %v6038, %v6110
    %v6112 = vpop.f32.mrb[0].mxu0
    %v6113 = vadd.f32 %v6040, %v6112
    %v6114 = vpop.f32.mrb[0].mxu0
    %v6115 = vadd.f32 %v6042, %v6114
    %v6116 = vpop.f32.mrb[0].mxu0
    %v6117 = vadd.f32 %v6044, %v6116
    %6118 = vmatprep.mubr.bf16.mxu0 %v1185
    %6119 = vmatmul.mubr.bf16.gmra.mrb[0].mxu0 %v1184
    %v6120 = vpop.f32.mrb[0].mxu0
    %v6121 = vadd.f32 %v6048, %v6120
    %v6122 = vpop.f32.mrb[0].mxu0
    %v6123 = vadd.f32 %v6050, %v6122
    %v6124 = vpop.f32.mrb[0].mxu0
    %v6125 = vadd.f32 %v6052, %v6124
    %v6126 = vpop.f32.mrb[0].mxu0
    %v6127 = vadd.f32 %v6054, %v6126
    %6128 = vdwg.mxu0
    %6129 = vmatprep.subr.bf16.mxu0 %v4396
    %6130 = vmatpush1.bf16.msra.mxu0 %v4395
    %6131 = vmatprep.subr.bf16.mxu0 %v4408
    %6132 = vmatpush1.bf16.msra.mxu0 %v4407
    %6133 = vmatprep.subr.bf16.mxu0 %v4420
    %6134 = vmatpush1.bf16.msra.mxu0 %v4419
    %6135 = vmatprep.subr.bf16.mxu0 %v4432
    %6136 = vmatpush1.bf16.msra.mxu0 %v4431
    %6137 = vmatprep.subr.bf16.mxu0 %v4444
    %6138 = vmatpush1.bf16.msra.mxu0 %v4443
    %6139 = vmatprep.subr.bf16.mxu0 %v4456
    %6140 = vmatpush1.bf16.msra.mxu0 %v4455
    %6141 = vmatprep.subr.bf16.mxu0 %v4468
    %6142 = vmatpush1.bf16.msra.mxu0 %v4467
    %6143 = vmatprep.subr.bf16.mxu0 %v4480
    %6144 = vmatpush1.bf16.msra.mxu0 %v4479
    %6145 = vmatprep.subr.bf16.mxu0 %v4492
    %6146 = vmatpush1.bf16.msra.mxu0 %v4491
    %6147 = vmatprep.subr.bf16.mxu0 %v4504
    %6148 = vmatpush1.bf16.msra.mxu0 %v4503
    %6149 = vmatprep.subr.bf16.mxu0 %v4516
    %6150 = vmatpush1.bf16.msra.mxu0 %v4515
    %6151 = vmatprep.subr.bf16.mxu0 %v4528
    %6152 = vmatpush1.bf16.msra.mxu0 %v4527
    %6153 = vmatprep.subr.bf16.mxu0 %v4540
    %6154 = vmatpush1.bf16.msra.mxu0 %v4539
    %6155 = vmatprep.subr.bf16.mxu0 %v4552
    %6156 = vmatpush1.bf16.msra.mxu0 %v4551
    %6157 = vmatprep.subr.bf16.mxu0 %v4564
    %6158 = vmatpush1.bf16.msra.mxu0 %v4563
    %6159 = vmatprep.subr.bf16.mxu0 %v4576
    %6160 = vmatpush1.bf16.msra.mxu0 %v4575
    %6161 = vmatprep.mubr.bf16.mxu0 %v1160
    %6162 = vmatmul.mubr.bf16.gmra.mrb[0].mxu0 %v1159
    %v6163 = vpop.f32.mrb[0].mxu0
    %v6164 = vadd.f32 %v6091, %v6163
    %v6165 = vpop.f32.mrb[0].mxu0
    %v6166 = vadd.f32 %v6093, %v6165
    %v6167 = vpop.f32.mrb[0].mxu0
    %v6168 = vadd.f32 %v6095, %v6167
    %v6169 = vpop.f32.mrb[0].mxu0
    %v6170 = vadd.f32 %v6097, %v6169
    %6171 = vmatprep.mubr.bf16.mxu0 %v1169
    %6172 = vmatmul.mubr.bf16.gmra.mrb[0].mxu0 %v1168
    %v6173 = vpop.f32.mrb[0].mxu0
    %v6174 = vadd.f32 %v6101, %v6173
    %v6175 = vpop.f32.mrb[0].mxu0
    %v6176 = vadd.f32 %v6103, %v6175
    %v6177 = vpop.f32.mrb[0].mxu0
    %v6178 = vadd.f32 %v6105, %v6177
    %v6179 = vpop.f32.mrb[0].mxu0
    %v6180 = vadd.f32 %v6107, %v6179
    %6181 = vmatprep.mubr.bf16.mxu0 %v1178
    %6182 = vmatmul.mubr.bf16.gmra.mrb[0].mxu0 %v1177
    %v6183 = vpop.f32.mrb[0].mxu0
    %v6184 = vadd.f32 %v6111, %v6183
    %v6185 = vpop.f32.mrb[0].mxu0
    %v6186 = vadd.f32 %v6113, %v6185
    %v6187 = vpop.f32.mrb[0].mxu0
    %v6188 = vadd.f32 %v6115, %v6187
    %v6189 = vpop.f32.mrb[0].mxu0
    %v6190 = vadd.f32 %v6117, %v6189
    %6191 = vmatprep.mubr.bf16.mxu0 %v1187
    %6192 = vmatmul.mubr.bf16.gmra.mrb[0].mxu0 %v1186
    %v6193 = vpop.f32.mrb[0].mxu0
    %v6194 = vadd.f32 %v6121, %v6193
    %v6195 = vpop.f32.mrb[0].mxu0
    %v6196 = vadd.f32 %v6123, %v6195
    %v6197 = vpop.f32.mrb[0].mxu0
    %v6198 = vadd.f32 %v6125, %v6197
    %v6199 = vpop.f32.mrb[0].mxu0
    %v6200 = vadd.f32 %v6127, %v6199
    %6201 = vdwg.mxu0
    %6202 = vmatprep.subr.bf16.mxu0 %v4588
    %6203 = vmatpush1.bf16.msra.mxu0 %v4587
    %6204 = vmatprep.subr.bf16.mxu0 %v4600
    %6205 = vmatpush1.bf16.msra.mxu0 %v4599
    %6206 = vmatprep.subr.bf16.mxu0 %v4612
    %6207 = vmatpush1.bf16.msra.mxu0 %v4611
    %6208 = vmatprep.subr.bf16.mxu0 %v4624
    %6209 = vmatpush1.bf16.msra.mxu0 %v4623
    %6210 = vmatprep.subr.bf16.mxu0 %v4636
    %6211 = vmatpush1.bf16.msra.mxu0 %v4635
    %6212 = vmatprep.subr.bf16.mxu0 %v4648
    %6213 = vmatpush1.bf16.msra.mxu0 %v4647
    %6214 = vmatprep.subr.bf16.mxu0 %v4660
    %6215 = vmatpush1.bf16.msra.mxu0 %v4659
    %6216 = vmatprep.subr.bf16.mxu0 %v4672
    %6217 = vmatpush1.bf16.msra.mxu0 %v4671
    %6218 = vmatprep.subr.bf16.mxu0 0
    %6219 = vmatpush1.bf16.msra.mxu0 0
    %6220 = vmatprep.subr.bf16.mxu0 0
    %6221 = vmatpush1.bf16.msra.mxu0 0
    %6222 = vmatprep.subr.bf16.mxu0 0
    %6223 = vmatpush1.bf16.msra.mxu0 0
    %6224 = vmatprep.subr.bf16.mxu0 0
    %6225 = vmatpush1.bf16.msra.mxu0 0
    %6226 = vmatprep.subr.bf16.mxu0 0
    %6227 = vmatpush1.bf16.msra.mxu0 0
    %6228 = vmatprep.subr.bf16.mxu0 0
    %6229 = vmatpush1.bf16.msra.mxu0 0
    %6230 = vmatprep.subr.bf16.mxu0 0
    %6231 = vmatpush1.bf16.msra.mxu0 0
    %6232 = vmatprep.subr.bf16.mxu0 0
    %6233 = vmatpush1.bf16.msra.mxu0 0
    %6234 = vmatprep.mubr.bf16.mxu0 0
    %6235 = vmatmul.mubr.bf16.gmra.mrb[0].mxu0 %v1161
    %v6236 = vpop.f32.mrb[0].mxu0
    %v6237 = vadd.f32 %v6164, %v6236
    %v6238 = vpop.f32.mrb[0].mxu0
    %v6239 = vadd.f32 %v6166, %v6238
    %v6240 = vpop.f32.mrb[0].mxu0
    %v6241 = vadd.f32 %v6168, %v6240
    %v6242 = vpop.f32.mrb[0].mxu0
    %v6243 = vadd.f32 %v6170, %v6242
    %6244 = vmatprep.mubr.bf16.mxu0 0
    %6245 = vmatmul.mubr.bf16.gmra.mrb[0].mxu0 %v1170
    %v6246 = vpop.f32.mrb[0].mxu0
    %v6247 = vadd.f32 %v6174, %v6246
    %v6248 = vpop.f32.mrb[0].mxu0
    %v6249 = vadd.f32 %v6176, %v6248
    %v6250 = vpop.f32.mrb[0].mxu0
    %v6251 = vadd.f32 %v6178, %v6250
    %v6252 = vpop.f32.mrb[0].mxu0
    %v6253 = vadd.f32 %v6180, %v6252
    %6254 = vmatprep.mubr.bf16.mxu0 0
    %6255 = vmatmul.mubr.bf16.gmra.mrb[0].mxu0 %v1179
    %v6256 = vpop.f32.mrb[0].mxu0
    %v6257 = vadd.f32 %v6184, %v6256
    %v6258 = vpop.f32.mrb[0].mxu0
    %v6259 = vadd.f32 %v6186, %v6258
    %v6260 = vpop.f32.mrb[0].mxu0
    %v6261 = vadd.f32 %v6188, %v6260
    %v6262 = vpop.f32.mrb[0].mxu0
    %v6263 = vadd.f32 %v6190, %v6262
    %6264 = vmatprep.mubr.bf16.mxu0 0
    %6265 = vmatmul.mubr.bf16.gmra.mrb[0].mxu0 %v1188
    %v6266 = vpop.f32.mrb[0].mxu0
    %v6267 = vadd.f32 %v6194, %v6266
    %v6268 = vpop.f32.mrb[0].mxu0
    %v6269 = vadd.f32 %v6196, %v6268
    %v6270 = vpop.f32.mrb[0].mxu0
    %v6271 = vadd.f32 %v6198, %v6270
    %v6272 = vpop.f32.mrb[0].mxu0
    %v6273 = vadd.f32 %v6200, %v6272
    %6274 = vdwg.mxu0
    %6275 = vmatprep.subr.bf16.mxu0 %v3822
    %6276 = vmatpush1.bf16.msra.mxu0 %v3821
    %6277 = vmatprep.subr.bf16.mxu0 %v3834
    %6278 = vmatpush1.bf16.msra.mxu0 %v3833
    %6279 = vmatprep.subr.bf16.mxu0 %v3846
    %6280 = vmatpush1.bf16.msra.mxu0 %v3845
    %6281 = vmatprep.subr.bf16.mxu0 %v3858
    %6282 = vmatpush1.bf16.msra.mxu0 %v3857
    %6283 = vmatprep.subr.bf16.mxu0 %v3870
    %6284 = vmatpush1.bf16.msra.mxu0 %v3869
    %6285 = vmatprep.subr.bf16.mxu0 %v3882
    %6286 = vmatpush1.bf16.msra.mxu0 %v3881
    %6287 = vmatprep.subr.bf16.mxu0 %v3894
    %6288 = vmatpush1.bf16.msra.mxu0 %v3893
    %6289 = vmatprep.subr.bf16.mxu0 %v3906
    %6290 = vmatpush1.bf16.msra.mxu0 %v3905
    %6291 = vmatprep.subr.bf16.mxu0 %v3918
    %6292 = vmatpush1.bf16.msra.mxu0 %v3917
    %6293 = vmatprep.subr.bf16.mxu0 %v3930
    %6294 = vmatpush1.bf16.msra.mxu0 %v3929
    %6295 = vmatprep.subr.bf16.mxu0 %v3942
    %6296 = vmatpush1.bf16.msra.mxu0 %v3941
    %6297 = vmatprep.subr.bf16.mxu0 %v3954
    %6298 = vmatpush1.bf16.msra.mxu0 %v3953
    %6299 = vmatprep.subr.bf16.mxu0 %v3966
    %6300 = vmatpush1.bf16.msra.mxu0 %v3965
    %6301 = vmatprep.subr.bf16.mxu0 %v3978
    %6302 = vmatpush1.bf16.msra.mxu0 %v3977
    %6303 = vmatprep.subr.bf16.mxu0 %v3990
    %6304 = vmatpush1.bf16.msra.mxu0 %v3989
    %6305 = vmatprep.subr.bf16.mxu0 %v4002
    %6306 = vmatpush1.bf16.msra.mxu0 %v4001
    %6307 = vmatprep.mubr.bf16.mxu0 %v1154
    %6308 = vmatmul.mubr.bf16.gmra.mrb[0].mxu0 %v1153
    %v6309 = vpop.f32.mrb[0].mxu0
    %v6310 = vadd.f32 %v1000, %v6309
    %v6311 = vpop.f32.mrb[0].mxu0
    %v6312 = vadd.f32 %v1004, %v6311
    %v6313 = vpop.f32.mrb[0].mxu0
    %v6314 = vadd.f32 %v1000, %v6313
    %v6315 = vpop.f32.mrb[0].mxu0
    %v6316 = vadd.f32 %v1004, %v6315
    %6317 = vmatprep.mubr.bf16.mxu0 %v1163
    %6318 = vmatmul.mubr.bf16.gmra.mrb[0].mxu0 %v1162
    %v6319 = vpop.f32.mrb[0].mxu0
    %v6320 = vadd.f32 %v1000, %v6319
    %v6321 = vpop.f32.mrb[0].mxu0
    %v6322 = vadd.f32 %v1004, %v6321
    %v6323 = vpop.f32.mrb[0].mxu0
    %v6324 = vadd.f32 %v1000, %v6323
    %v6325 = vpop.f32.mrb[0].mxu0
    %v6326 = vadd.f32 %v1004, %v6325
    %6327 = vmatprep.mubr.bf16.mxu0 %v1172
    %6328 = vmatmul.mubr.bf16.gmra.mrb[0].mxu0 %v1171
    %v6329 = vpop.f32.mrb[0].mxu0
    %v6330 = vadd.f32 %v1000, %v6329
    %v6331 = vpop.f32.mrb[0].mxu0
    %v6332 = vadd.f32 %v1004, %v6331
    %v6333 = vpop.f32.mrb[0].mxu0
    %v6334 = vadd.f32 %v1000, %v6333
    %v6335 = vpop.f32.mrb[0].mxu0
    %v6336 = vadd.f32 %v1004, %v6335
    %6337 = vmatprep.mubr.bf16.mxu0 %v1181
    %6338 = vmatmul.mubr.bf16.gmra.mrb[0].mxu0 %v1180
    %v6339 = vpop.f32.mrb[0].mxu0
    %v6340 = vadd.f32 %v1000, %v6339
    %v6341 = vpop.f32.mrb[0].mxu0
    %v6342 = vadd.f32 %v1004, %v6341
    %v6343 = vpop.f32.mrb[0].mxu0
    %v6344 = vadd.f32 %v1000, %v6343
    %v6345 = vpop.f32.mrb[0].mxu0
    %v6346 = vadd.f32 %v1004, %v6345
    %6347 = vdwg.mxu0
    %6348 = vmatprep.subr.bf16.mxu0 %v4014
    %6349 = vmatpush1.bf16.msra.mxu0 %v4013
    %6350 = vmatprep.subr.bf16.mxu0 %v4026
    %6351 = vmatpush1.bf16.msra.mxu0 %v4025
    %6352 = vmatprep.subr.bf16.mxu0 %v4038
    %6353 = vmatpush1.bf16.msra.mxu0 %v4037
    %6354 = vmatprep.subr.bf16.mxu0 %v4050
    %6355 = vmatpush1.bf16.msra.mxu0 %v4049
    %6356 = vmatprep.subr.bf16.mxu0 %v4062
    %6357 = vmatpush1.bf16.msra.mxu0 %v4061
    %6358 = vmatprep.subr.bf16.mxu0 %v4074
    %6359 = vmatpush1.bf16.msra.mxu0 %v4073
    %6360 = vmatprep.subr.bf16.mxu0 %v4086
    %6361 = vmatpush1.bf16.msra.mxu0 %v4085
    %6362 = vmatprep.subr.bf16.mxu0 %v4098
    %6363 = vmatpush1.bf16.msra.mxu0 %v4097
    %6364 = vmatprep.subr.bf16.mxu0 %v4110
    %6365 = vmatpush1.bf16.msra.mxu0 %v4109
    %6366 = vmatprep.subr.bf16.mxu0 %v4122
    %6367 = vmatpush1.bf16.msra.mxu0 %v4121
    %6368 = vmatprep.subr.bf16.mxu0 %v4134
    %6369 = vmatpush1.bf16.msra.mxu0 %v4133
    %6370 = vmatprep.subr.bf16.mxu0 %v4146
    %6371 = vmatpush1.bf16.msra.mxu0 %v4145
    %6372 = vmatprep.subr.bf16.mxu0 %v4158
    %6373 = vmatpush1.bf16.msra.mxu0 %v4157
    %6374 = vmatprep.subr.bf16.mxu0 %v4170
    %6375 = vmatpush1.bf16.msra.mxu0 %v4169
    %6376 = vmatprep.subr.bf16.mxu0 %v4182
    %6377 = vmatpush1.bf16.msra.mxu0 %v4181
    %6378 = vmatprep.subr.bf16.mxu0 %v4194
    %6379 = vmatpush1.bf16.msra.mxu0 %v4193
    %6380 = vmatprep.mubr.bf16.mxu0 %v1156
    %6381 = vmatmul.mubr.bf16.gmra.mrb[0].mxu0 %v1155
    %v6382 = vpop.f32.mrb[0].mxu0
    %v6383 = vadd.f32 %v6310, %v6382
    %v6384 = vpop.f32.mrb[0].mxu0
    %v6385 = vadd.f32 %v6312, %v6384
    %v6386 = vpop.f32.mrb[0].mxu0
    %v6387 = vadd.f32 %v6314, %v6386
    %v6388 = vpop.f32.mrb[0].mxu0
    %v6389 = vadd.f32 %v6316, %v6388
    %6390 = vmatprep.mubr.bf16.mxu0 %v1165
    %6391 = vmatmul.mubr.bf16.gmra.mrb[0].mxu0 %v1164
    %v6392 = vpop.f32.mrb[0].mxu0
    %v6393 = vadd.f32 %v6320, %v6392
    %v6394 = vpop.f32.mrb[0].mxu0
    %v6395 = vadd.f32 %v6322, %v6394
    %v6396 = vpop.f32.mrb[0].mxu0
    %v6397 = vadd.f32 %v6324, %v6396
    %v6398 = vpop.f32.mrb[0].mxu0
    %v6399 = vadd.f32 %v6326, %v6398
    %6400 = vmatprep.mubr.bf16.mxu0 %v1174
    %6401 = vmatmul.mubr.bf16.gmra.mrb[0].mxu0 %v1173
    %v6402 = vpop.f32.mrb[0].mxu0
    %v6403 = vadd.f32 %v6330, %v6402
    %v6404 = vpop.f32.mrb[0].mxu0
    %v6405 = vadd.f32 %v6332, %v6404
    %v6406 = vpop.f32.mrb[0].mxu0
    %v6407 = vadd.f32 %v6334, %v6406
    %v6408 = vpop.f32.mrb[0].mxu0
    %v6409 = vadd.f32 %v6336, %v6408
    %6410 = vmatprep.mubr.bf16.mxu0 %v1183
    %6411 = vmatmul.mubr.bf16.gmra.mrb[0].mxu0 %v1182
    %v6412 = vpop.f32.mrb[0].mxu0
    %v6413 = vadd.f32 %v6340, %v6412
    %v6414 = vpop.f32.mrb[0].mxu0
    %v6415 = vadd.f32 %v6342, %v6414
    %v6416 = vpop.f32.mrb[0].mxu0
    %v6417 = vadd.f32 %v6344, %v6416
    %v6418 = vpop.f32.mrb[0].mxu0
    %v6419 = vadd.f32 %v6346, %v6418
    %6420 = vdwg.mxu0
    %6421 = vmatprep.subr.bf16.mxu0 %v4206
    %6422 = vmatpush1.bf16.msra.mxu0 %v4205
    %6423 = vmatprep.subr.bf16.mxu0 %v4218
    %6424 = vmatpush1.bf16.msra.mxu0 %v4217
    %6425 = vmatprep.subr.bf16.mxu0 %v4230
    %6426 = vmatpush1.bf16.msra.mxu0 %v4229
    %6427 = vmatprep.subr.bf16.mxu0 %v4242
    %6428 = vmatpush1.bf16.msra.mxu0 %v4241
    %6429 = vmatprep.subr.bf16.mxu0 %v4254
    %6430 = vmatpush1.bf16.msra.mxu0 %v4253
    %6431 = vmatprep.subr.bf16.mxu0 %v4266
    %6432 = vmatpush1.bf16.msra.mxu0 %v4265
    %6433 = vmatprep.subr.bf16.mxu0 %v4278
    %6434 = vmatpush1.bf16.msra.mxu0 %v4277
    %6435 = vmatprep.subr.bf16.mxu0 %v4290
    %6436 = vmatpush1.bf16.msra.mxu0 %v4289
    %6437 = vmatprep.subr.bf16.mxu0 %v4302
    %6438 = vmatpush1.bf16.msra.mxu0 %v4301
    %6439 = vmatprep.subr.bf16.mxu0 %v4314
    %6440 = vmatpush1.bf16.msra.mxu0 %v4313
    %6441 = vmatprep.subr.bf16.mxu0 %v4326
    %6442 = vmatpush1.bf16.msra.mxu0 %v4325
    %6443 = vmatprep.subr.bf16.mxu0 %v4338
    %6444 = vmatpush1.bf16.msra.mxu0 %v4337
    %6445 = vmatprep.subr.bf16.mxu0 %v4350
    %6446 = vmatpush1.bf16.msra.mxu0 %v4349
    %6447 = vmatprep.subr.bf16.mxu0 %v4362
    %6448 = vmatpush1.bf16.msra.mxu0 %v4361
    %6449 = vmatprep.subr.bf16.mxu0 %v4374
    %6450 = vmatpush1.bf16.msra.mxu0 %v4373
    %6451 = vmatprep.subr.bf16.mxu0 %v4386
    %6452 = vmatpush1.bf16.msra.mxu0 %v4385
    %6453 = vmatprep.mubr.bf16.mxu0 %v1158
    %6454 = vmatmul.mubr.bf16.gmra.mrb[0].mxu0 %v1157
    %v6455 = vpop.f32.mrb[0].mxu0
    %v6456 = vadd.f32 %v6383, %v6455
    %v6457 = vpop.f32.mrb[0].mxu0
    %v6458 = vadd.f32 %v6385, %v6457
    %v6459 = vpop.f32.mrb[0].mxu0
    %v6460 = vadd.f32 %v6387, %v6459
    %v6461 = vpop.f32.mrb[0].mxu0
    %v6462 = vadd.f32 %v6389, %v6461
    %6463 = vmatprep.mubr.bf16.mxu0 %v1167
    %6464 = vmatmul.mubr.bf16.gmra.mrb[0].mxu0 %v1166
    %v6465 = vpop.f32.mrb[0].mxu0
    %v6466 = vadd.f32 %v6393, %v6465
    %v6467 = vpop.f32.mrb[0].mxu0
    %v6468 = vadd.f32 %v6395, %v6467
    %v6469 = vpop.f32.mrb[0].mxu0
    %v6470 = vadd.f32 %v6397, %v6469
    %v6471 = vpop.f32.mrb[0].mxu0
    %v6472 = vadd.f32 %v6399, %v6471
    %6473 = vmatprep.mubr.bf16.mxu0 %v1176
    %6474 = vmatmul.mubr.bf16.gmra.mrb[0].mxu0 %v1175
    %v6475 = vpop.f32.mrb[0].mxu0
    %v6476 = vadd.f32 %v6403, %v6475
    %v6477 = vpop.f32.mrb[0].mxu0
    %v6478 = vadd.f32 %v6405, %v6477
    %v6479 = vpop.f32.mrb[0].mxu0
    %v6480 = vadd.f32 %v6407, %v6479
    %v6481 = vpop.f32.mrb[0].mxu0
    %v6482 = vadd.f32 %v6409, %v6481
    %6483 = vmatprep.mubr.bf16.mxu0 %v1185
    %6484 = vmatmul.mubr.bf16.gmra.mrb[0].mxu0 %v1184
    %v6485 = vpop.f32.mrb[0].mxu0
    %v6486 = vadd.f32 %v6413, %v6485
    %v6487 = vpop.f32.mrb[0].mxu0
    %v6488 = vadd.f32 %v6415, %v6487
    %v6489 = vpop.f32.mrb[0].mxu0
    %v6490 = vadd.f32 %v6417, %v6489
    %v6491 = vpop.f32.mrb[0].mxu0
    %v6492 = vadd.f32 %v6419, %v6491
    %6493 = vdwg.mxu0
    %6494 = vmatprep.subr.bf16.mxu0 %v4398
    %6495 = vmatpush1.bf16.msra.mxu0 %v4397
    %6496 = vmatprep.subr.bf16.mxu0 %v4410
    %6497 = vmatpush1.bf16.msra.mxu0 %v4409
    %6498 = vmatprep.subr.bf16.mxu0 %v4422
    %6499 = vmatpush1.bf16.msra.mxu0 %v4421
    %6500 = vmatprep.subr.bf16.mxu0 %v4434
    %6501 = vmatpush1.bf16.msra.mxu0 %v4433
    %6502 = vmatprep.subr.bf16.mxu0 %v4446
    %6503 = vmatpush1.bf16.msra.mxu0 %v4445
    %6504 = vmatprep.subr.bf16.mxu0 %v4458
    %6505 = vmatpush1.bf16.msra.mxu0 %v4457
    %6506 = vmatprep.subr.bf16.mxu0 %v4470
    %6507 = vmatpush1.bf16.msra.mxu0 %v4469
    %6508 = vmatprep.subr.bf16.mxu0 %v4482
    %6509 = vmatpush1.bf16.msra.mxu0 %v4481
    %6510 = vmatprep.subr.bf16.mxu0 %v4494
    %6511 = vmatpush1.bf16.msra.mxu0 %v4493
    %6512 = vmatprep.subr.bf16.mxu0 %v4506
    %6513 = vmatpush1.bf16.msra.mxu0 %v4505
    %6514 = vmatprep.subr.bf16.mxu0 %v4518
    %6515 = vmatpush1.bf16.msra.mxu0 %v4517
    %6516 = vmatprep.subr.bf16.mxu0 %v4530
    %6517 = vmatpush1.bf16.msra.mxu0 %v4529
    %6518 = vmatprep.subr.bf16.mxu0 %v4542
    %6519 = vmatpush1.bf16.msra.mxu0 %v4541
    %6520 = vmatprep.subr.bf16.mxu0 %v4554
    %6521 = vmatpush1.bf16.msra.mxu0 %v4553
    %6522 = vmatprep.subr.bf16.mxu0 %v4566
    %6523 = vmatpush1.bf16.msra.mxu0 %v4565
    %6524 = vmatprep.subr.bf16.mxu0 %v4578
    %6525 = vmatpush1.bf16.msra.mxu0 %v4577
    %6526 = vmatprep.mubr.bf16.mxu0 %v1160
    %6527 = vmatmul.mubr.bf16.gmra.mrb[0].mxu0 %v1159
    %v6528 = vpop.f32.mrb[0].mxu0
    %v6529 = vadd.f32 %v6456, %v6528
    %v6530 = vpop.f32.mrb[0].mxu0
    %v6531 = vadd.f32 %v6458, %v6530
    %v6532 = vpop.f32.mrb[0].mxu0
    %v6533 = vadd.f32 %v6460, %v6532
    %v6534 = vpop.f32.mrb[0].mxu0
    %v6535 = vadd.f32 %v6462, %v6534
    %6536 = vmatprep.mubr.bf16.mxu0 %v1169
    %6537 = vmatmul.mubr.bf16.gmra.mrb[0].mxu0 %v1168
    %v6538 = vpop.f32.mrb[0].mxu0
    %v6539 = vadd.f32 %v6466, %v6538
    %v6540 = vpop.f32.mrb[0].mxu0
    %v6541 = vadd.f32 %v6468, %v6540
    %v6542 = vpop.f32.mrb[0].mxu0
    %v6543 = vadd.f32 %v6470, %v6542
    %v6544 = vpop.f32.mrb[0].mxu0
    %v6545 = vadd.f32 %v6472, %v6544
    %6546 = vmatprep.mubr.bf16.mxu0 %v1178
    %6547 = vmatmul.mubr.bf16.gmra.mrb[0].mxu0 %v1177
    %v6548 = vpop.f32.mrb[0].mxu0
    %v6549 = vadd.f32 %v6476, %v6548
    %v6550 = vpop.f32.mrb[0].mxu0
    %v6551 = vadd.f32 %v6478, %v6550
    %v6552 = vpop.f32.mrb[0].mxu0
    %v6553 = vadd.f32 %v6480, %v6552
    %v6554 = vpop.f32.mrb[0].mxu0
    %v6555 = vadd.f32 %v6482, %v6554
    %6556 = vmatprep.mubr.bf16.mxu0 %v1187
    %6557 = vmatmul.mubr.bf16.gmra.mrb[0].mxu0 %v1186
    %v6558 = vpop.f32.mrb[0].mxu0
    %v6559 = vadd.f32 %v6486, %v6558
    %v6560 = vpop.f32.mrb[0].mxu0
    %v6561 = vadd.f32 %v6488, %v6560
    %v6562 = vpop.f32.mrb[0].mxu0
    %v6563 = vadd.f32 %v6490, %v6562
    %v6564 = vpop.f32.mrb[0].mxu0
    %v6565 = vadd.f32 %v6492, %v6564
    %6566 = vdwg.mxu0
    %6567 = vmatprep.subr.bf16.mxu0 %v4590
    %6568 = vmatpush1.bf16.msra.mxu0 %v4589
    %6569 = vmatprep.subr.bf16.mxu0 %v4602
    %6570 = vmatpush1.bf16.msra.mxu0 %v4601
    %6571 = vmatprep.subr.bf16.mxu0 %v4614
    %6572 = vmatpush1.bf16.msra.mxu0 %v4613
    %6573 = vmatprep.subr.bf16.mxu0 %v4626
    %6574 = vmatpush1.bf16.msra.mxu0 %v4625
    %6575 = vmatprep.subr.bf16.mxu0 %v4638
    %6576 = vmatpush1.bf16.msra.mxu0 %v4637
    %6577 = vmatprep.subr.bf16.mxu0 %v4650
    %6578 = vmatpush1.bf16.msra.mxu0 %v4649
    %6579 = vmatprep.subr.bf16.mxu0 %v4662
    %6580 = vmatpush1.bf16.msra.mxu0 %v4661
    %6581 = vmatprep.subr.bf16.mxu0 %v4674
    %6582 = vmatpush1.bf16.msra.mxu0 %v4673
    %6583 = vmatprep.subr.bf16.mxu0 0
    %6584 = vmatpush1.bf16.msra.mxu0 0
    %6585 = vmatprep.subr.bf16.mxu0 0
    %6586 = vmatpush1.bf16.msra.mxu0 0
    %6587 = vmatprep.subr.bf16.mxu0 0
    %6588 = vmatpush1.bf16.msra.mxu0 0
    %6589 = vmatprep.subr.bf16.mxu0 0
    %6590 = vmatpush1.bf16.msra.mxu0 0
    %6591 = vmatprep.subr.bf16.mxu0 0
    %6592 = vmatpush1.bf16.msra.mxu0 0
    %6593 = vmatprep.subr.bf16.mxu0 0
    %6594 = vmatpush1.bf16.msra.mxu0 0
    %6595 = vmatprep.subr.bf16.mxu0 0
    %6596 = vmatpush1.bf16.msra.mxu0 0
    %6597 = vmatprep.subr.bf16.mxu0 0
    %6598 = vmatpush1.bf16.msra.mxu0 0
    %6599 = vmatprep.mubr.bf16.mxu0 0
    %6600 = vmatmul.mubr.bf16.gmra.mrb[0].mxu0 %v1161
    %v6601 = vpop.f32.mrb[0].mxu0
    %v6602 = vadd.f32 %v6529, %v6601
    %v6603 = vpop.f32.mrb[0].mxu0
    %v6604 = vadd.f32 %v6531, %v6603
    %v6605 = vpop.f32.mrb[0].mxu0
    %v6606 = vadd.f32 %v6533, %v6605
    %v6607 = vpop.f32.mrb[0].mxu0
    %v6608 = vadd.f32 %v6535, %v6607
    %6609 = vmatprep.mubr.bf16.mxu0 0
    %6610 = vmatmul.mubr.bf16.gmra.mrb[0].mxu0 %v1170
    %v6611 = vpop.f32.mrb[0].mxu0
    %v6612 = vadd.f32 %v6539, %v6611
    %v6613 = vpop.f32.mrb[0].mxu0
    %v6614 = vadd.f32 %v6541, %v6613
    %v6615 = vpop.f32.mrb[0].mxu0
    %v6616 = vadd.f32 %v6543, %v6615
    %v6617 = vpop.f32.mrb[0].mxu0
    %v6618 = vadd.f32 %v6545, %v6617
    %6619 = vmatprep.mubr.bf16.mxu0 0
    %6620 = vmatmul.mubr.bf16.gmra.mrb[0].mxu0 %v1179
    %v6621 = vpop.f32.mrb[0].mxu0
    %v6622 = vadd.f32 %v6549, %v6621
    %v6623 = vpop.f32.mrb[0].mxu0
    %v6624 = vadd.f32 %v6551, %v6623
    %v6625 = vpop.f32.mrb[0].mxu0
    %v6626 = vadd.f32 %v6553, %v6625
    %v6627 = vpop.f32.mrb[0].mxu0
    %v6628 = vadd.f32 %v6555, %v6627
    %6629 = vmatprep.mubr.bf16.mxu0 0
    %6630 = vmatmul.mubr.bf16.gmra.mrb[0].mxu0 %v1188
    %v6631 = vpop.f32.mrb[0].mxu0
    %v6632 = vadd.f32 %v6559, %v6631
    %v6633 = vpop.f32.mrb[0].mxu0
    %v6634 = vadd.f32 %v6561, %v6633
    %v6635 = vpop.f32.mrb[0].mxu0
    %v6636 = vadd.f32 %v6563, %v6635
    %v6637 = vpop.f32.mrb[0].mxu0
    %v6638 = vadd.f32 %v6565, %v6637
    %6639 = vdwg.mxu0
    %6640 = vmatprep.subr.bf16.mxu0 %v3824
    %6641 = vmatpush1.bf16.msra.mxu0 %v3823
    %6642 = vmatprep.subr.bf16.mxu0 %v3836
    %6643 = vmatpush1.bf16.msra.mxu0 %v3835
    %6644 = vmatprep.subr.bf16.mxu0 %v3848
    %6645 = vmatpush1.bf16.msra.mxu0 %v3847
    %6646 = vmatprep.subr.bf16.mxu0 %v3860
    %6647 = vmatpush1.bf16.msra.mxu0 %v3859
    %6648 = vmatprep.subr.bf16.mxu0 %v3872
    %6649 = vmatpush1.bf16.msra.mxu0 %v3871
    %6650 = vmatprep.subr.bf16.mxu0 %v3884
    %6651 = vmatpush1.bf16.msra.mxu0 %v3883
    %6652 = vmatprep.subr.bf16.mxu0 %v3896
    %6653 = vmatpush1.bf16.msra.mxu0 %v3895
    %6654 = vmatprep.subr.bf16.mxu0 %v3908
    %6655 = vmatpush1.bf16.msra.mxu0 %v3907
    %6656 = vmatprep.subr.bf16.mxu0 %v3920
    %6657 = vmatpush1.bf16.msra.mxu0 %v3919
    %6658 = vmatprep.subr.bf16.mxu0 %v3932
    %6659 = vmatpush1.bf16.msra.mxu0 %v3931
    %6660 = vmatprep.subr.bf16.mxu0 %v3944
    %6661 = vmatpush1.bf16.msra.mxu0 %v3943
    %6662 = vmatprep.subr.bf16.mxu0 %v3956
    %6663 = vmatpush1.bf16.msra.mxu0 %v3955
    %6664 = vmatprep.subr.bf16.mxu0 %v3968
    %6665 = vmatpush1.bf16.msra.mxu0 %v3967
    %6666 = vmatprep.subr.bf16.mxu0 %v3980
    %6667 = vmatpush1.bf16.msra.mxu0 %v3979
    %6668 = vmatprep.subr.bf16.mxu0 %v3992
    %6669 = vmatpush1.bf16.msra.mxu0 %v3991
    %6670 = vmatprep.subr.bf16.mxu0 %v4004
    %6671 = vmatpush1.bf16.msra.mxu0 %v4003
    %6672 = vmatprep.mubr.bf16.mxu0 %v1154
    %6673 = vmatmul.mubr.bf16.gmra.mrb[0].mxu0 %v1153
    %v6674 = vpop.f32.mrb[0].mxu0
    %v6675 = vadd.f32 %v1008, %v6674
    %v6676 = vpop.f32.mrb[0].mxu0
    %v6677 = vadd.f32 %v1012, %v6676
    %v6678 = vpop.f32.mrb[0].mxu0
    %v6679 = vadd.f32 %v1008, %v6678
    %v6680 = vpop.f32.mrb[0].mxu0
    %v6681 = vadd.f32 %v1012, %v6680
    %6682 = vmatprep.mubr.bf16.mxu0 %v1163
    %6683 = vmatmul.mubr.bf16.gmra.mrb[0].mxu0 %v1162
    %v6684 = vpop.f32.mrb[0].mxu0
    %v6685 = vadd.f32 %v1008, %v6684
    %v6686 = vpop.f32.mrb[0].mxu0
    %v6687 = vadd.f32 %v1012, %v6686
    %v6688 = vpop.f32.mrb[0].mxu0
    %v6689 = vadd.f32 %v1008, %v6688
    %v6690 = vpop.f32.mrb[0].mxu0
    %v6691 = vadd.f32 %v1012, %v6690
    %6692 = vmatprep.mubr.bf16.mxu0 %v1172
    %6693 = vmatmul.mubr.bf16.gmra.mrb[0].mxu0 %v1171
    %v6694 = vpop.f32.mrb[0].mxu0
    %v6695 = vadd.f32 %v1008, %v6694
    %v6696 = vpop.f32.mrb[0].mxu0
    %v6697 = vadd.f32 %v1012, %v6696
    %v6698 = vpop.f32.mrb[0].mxu0
    %v6699 = vadd.f32 %v1008, %v6698
    %v6700 = vpop.f32.mrb[0].mxu0
    %v6701 = vadd.f32 %v1012, %v6700
    %6702 = vmatprep.mubr.bf16.mxu0 %v1181
    %6703 = vmatmul.mubr.bf16.gmra.mrb[0].mxu0 %v1180
    %v6704 = vpop.f32.mrb[0].mxu0
    %v6705 = vadd.f32 %v1008, %v6704
    %v6706 = vpop.f32.mrb[0].mxu0
    %v6707 = vadd.f32 %v1012, %v6706
    %v6708 = vpop.f32.mrb[0].mxu0
    %v6709 = vadd.f32 %v1008, %v6708
    %v6710 = vpop.f32.mrb[0].mxu0
    %v6711 = vadd.f32 %v1012, %v6710
    %6712 = vdwg.mxu0
    %6713 = vmatprep.subr.bf16.mxu0 %v4016
    %6714 = vmatpush1.bf16.msra.mxu0 %v4015
    %6715 = vmatprep.subr.bf16.mxu0 %v4028
    %6716 = vmatpush1.bf16.msra.mxu0 %v4027
    %6717 = vmatprep.subr.bf16.mxu0 %v4040
    %6718 = vmatpush1.bf16.msra.mxu0 %v4039
    %6719 = vmatprep.subr.bf16.mxu0 %v4052
    %6720 = vmatpush1.bf16.msra.mxu0 %v4051
    %6721 = vmatprep.subr.bf16.mxu0 %v4064
    %6722 = vmatpush1.bf16.msra.mxu0 %v4063
    %6723 = vmatprep.subr.bf16.mxu0 %v4076
    %6724 = vmatpush1.bf16.msra.mxu0 %v4075
    %6725 = vmatprep.subr.bf16.mxu0 %v4088
    %6726 = vmatpush1.bf16.msra.mxu0 %v4087
    %6727 = vmatprep.subr.bf16.mxu0 %v4100
    %6728 = vmatpush1.bf16.msra.mxu0 %v4099
    %6729 = vmatprep.subr.bf16.mxu0 %v4112
    %6730 = vmatpush1.bf16.msra.mxu0 %v4111
    %6731 = vmatprep.subr.bf16.mxu0 %v4124
    %6732 = vmatpush1.bf16.msra.mxu0 %v4123
    %6733 = vmatprep.subr.bf16.mxu0 %v4136
    %6734 = vmatpush1.bf16.msra.mxu0 %v4135
    %6735 = vmatprep.subr.bf16.mxu0 %v4148
    %6736 = vmatpush1.bf16.msra.mxu0 %v4147
    %6737 = vmatprep.subr.bf16.mxu0 %v4160
    %6738 = vmatpush1.bf16.msra.mxu0 %v4159
    %6739 = vmatprep.subr.bf16.mxu0 %v4172
    %6740 = vmatpush1.bf16.msra.mxu0 %v4171
    %6741 = vmatprep.subr.bf16.mxu0 %v4184
    %6742 = vmatpush1.bf16.msra.mxu0 %v4183
    %6743 = vmatprep.subr.bf16.mxu0 %v4196
    %6744 = vmatpush1.bf16.msra.mxu0 %v4195
    %6745 = vmatprep.mubr.bf16.mxu0 %v1156
    %6746 = vmatmul.mubr.bf16.gmra.mrb[0].mxu0 %v1155
    %v6747 = vpop.f32.mrb[0].mxu0
    %v6748 = vadd.f32 %v6675, %v6747
    %v6749 = vpop.f32.mrb[0].mxu0
    %v6750 = vadd.f32 %v6677, %v6749
    %v6751 = vpop.f32.mrb[0].mxu0
    %v6752 = vadd.f32 %v6679, %v6751
    %v6753 = vpop.f32.mrb[0].mxu0
    %v6754 = vadd.f32 %v6681, %v6753
    %6755 = vmatprep.mubr.bf16.mxu0 %v1165
    %6756 = vmatmul.mubr.bf16.gmra.mrb[0].mxu0 %v1164
    %v6757 = vpop.f32.mrb[0].mxu0
    %v6758 = vadd.f32 %v6685, %v6757
    %v6759 = vpop.f32.mrb[0].mxu0
    %v6760 = vadd.f32 %v6687, %v6759
    %v6761 = vpop.f32.mrb[0].mxu0
    %v6762 = vadd.f32 %v6689, %v6761
    %v6763 = vpop.f32.mrb[0].mxu0
    %v6764 = vadd.f32 %v6691, %v6763
    %6765 = vmatprep.mubr.bf16.mxu0 %v1174
    %6766 = vmatmul.mubr.bf16.gmra.mrb[0].mxu0 %v1173
    %v6767 = vpop.f32.mrb[0].mxu0
    %v6768 = vadd.f32 %v6695, %v6767
    %v6769 = vpop.f32.mrb[0].mxu0
    %v6770 = vadd.f32 %v6697, %v6769
    %v6771 = vpop.f32.mrb[0].mxu0
    %v6772 = vadd.f32 %v6699, %v6771
    %v6773 = vpop.f32.mrb[0].mxu0
    %v6774 = vadd.f32 %v6701, %v6773
    %6775 = vmatprep.mubr.bf16.mxu0 %v1183
    %6776 = vmatmul.mubr.bf16.gmra.mrb[0].mxu0 %v1182
    %v6777 = vpop.f32.mrb[0].mxu0
    %v6778 = vadd.f32 %v6705, %v6777
    %v6779 = vpop.f32.mrb[0].mxu0
    %v6780 = vadd.f32 %v6707, %v6779
    %v6781 = vpop.f32.mrb[0].mxu0
    %v6782 = vadd.f32 %v6709, %v6781
    %v6783 = vpop.f32.mrb[0].mxu0
    %v6784 = vadd.f32 %v6711, %v6783
    %6785 = vdwg.mxu0
    %6786 = vmatprep.subr.bf16.mxu0 %v4208
    %6787 = vmatpush1.bf16.msra.mxu0 %v4207
    %6788 = vmatprep.subr.bf16.mxu0 %v4220
    %6789 = vmatpush1.bf16.msra.mxu0 %v4219
    %6790 = vmatprep.subr.bf16.mxu0 %v4232
    %6791 = vmatpush1.bf16.msra.mxu0 %v4231
    %6792 = vmatprep.subr.bf16.mxu0 %v4244
    %6793 = vmatpush1.bf16.msra.mxu0 %v4243
    %6794 = vmatprep.subr.bf16.mxu0 %v4256
    %6795 = vmatpush1.bf16.msra.mxu0 %v4255
    %6796 = vmatprep.subr.bf16.mxu0 %v4268
    %6797 = vmatpush1.bf16.msra.mxu0 %v4267
    %6798 = vmatprep.subr.bf16.mxu0 %v4280
    %6799 = vmatpush1.bf16.msra.mxu0 %v4279
    %6800 = vmatprep.subr.bf16.mxu0 %v4292
    %6801 = vmatpush1.bf16.msra.mxu0 %v4291
    %6802 = vmatprep.subr.bf16.mxu0 %v4304
    %6803 = vmatpush1.bf16.msra.mxu0 %v4303
    %6804 = vmatprep.subr.bf16.mxu0 %v4316
    %6805 = vmatpush1.bf16.msra.mxu0 %v4315
    %6806 = vmatprep.subr.bf16.mxu0 %v4328
    %6807 = vmatpush1.bf16.msra.mxu0 %v4327
    %6808 = vmatprep.subr.bf16.mxu0 %v4340
    %6809 = vmatpush1.bf16.msra.mxu0 %v4339
    %6810 = vmatprep.subr.bf16.mxu0 %v4352
    %6811 = vmatpush1.bf16.msra.mxu0 %v4351
    %6812 = vmatprep.subr.bf16.mxu0 %v4364
    %6813 = vmatpush1.bf16.msra.mxu0 %v4363
    %6814 = vmatprep.subr.bf16.mxu0 %v4376
    %6815 = vmatpush1.bf16.msra.mxu0 %v4375
    %6816 = vmatprep.subr.bf16.mxu0 %v4388
    %6817 = vmatpush1.bf16.msra.mxu0 %v4387
    %6818 = vmatprep.mubr.bf16.mxu0 %v1158
    %6819 = vmatmul.mubr.bf16.gmra.mrb[0].mxu0 %v1157
    %v6820 = vpop.f32.mrb[0].mxu0
    %v6821 = vadd.f32 %v6748, %v6820
    %v6822 = vpop.f32.mrb[0].mxu0
    %v6823 = vadd.f32 %v6750, %v6822
    %v6824 = vpop.f32.mrb[0].mxu0
    %v6825 = vadd.f32 %v6752, %v6824
    %v6826 = vpop.f32.mrb[0].mxu0
    %v6827 = vadd.f32 %v6754, %v6826
    %6828 = vmatprep.mubr.bf16.mxu0 %v1167
    %6829 = vmatmul.mubr.bf16.gmra.mrb[0].mxu0 %v1166
    %v6830 = vpop.f32.mrb[0].mxu0
    %v6831 = vadd.f32 %v6758, %v6830
    %v6832 = vpop.f32.mrb[0].mxu0
    %v6833 = vadd.f32 %v6760, %v6832
    %v6834 = vpop.f32.mrb[0].mxu0
    %v6835 = vadd.f32 %v6762, %v6834
    %v6836 = vpop.f32.mrb[0].mxu0
    %v6837 = vadd.f32 %v6764, %v6836
    %6838 = vmatprep.mubr.bf16.mxu0 %v1176
    %6839 = vmatmul.mubr.bf16.gmra.mrb[0].mxu0 %v1175
    %v6840 = vpop.f32.mrb[0].mxu0
    %v6841 = vadd.f32 %v6768, %v6840
    %v6842 = vpop.f32.mrb[0].mxu0
    %v6843 = vadd.f32 %v6770, %v6842
    %v6844 = vpop.f32.mrb[0].mxu0
    %v6845 = vadd.f32 %v6772, %v6844
    %v6846 = vpop.f32.mrb[0].mxu0
    %v6847 = vadd.f32 %v6774, %v6846
    %6848 = vmatprep.mubr.bf16.mxu0 %v1185
    %6849 = vmatmul.mubr.bf16.gmra.mrb[0].mxu0 %v1184
    %v6850 = vpop.f32.mrb[0].mxu0
    %v6851 = vadd.f32 %v6778, %v6850
    %v6852 = vpop.f32.mrb[0].mxu0
    %v6853 = vadd.f32 %v6780, %v6852
    %v6854 = vpop.f32.mrb[0].mxu0
    %v6855 = vadd.f32 %v6782, %v6854
    %v6856 = vpop.f32.mrb[0].mxu0
    %v6857 = vadd.f32 %v6784, %v6856
    %6858 = vdwg.mxu0
    %6859 = vmatprep.subr.bf16.mxu0 %v4400
    %6860 = vmatpush1.bf16.msra.mxu0 %v4399
    %6861 = vmatprep.subr.bf16.mxu0 %v4412
    %6862 = vmatpush1.bf16.msra.mxu0 %v4411
    %6863 = vmatprep.subr.bf16.mxu0 %v4424
    %6864 = vmatpush1.bf16.msra.mxu0 %v4423
    %6865 = vmatprep.subr.bf16.mxu0 %v4436
    %6866 = vmatpush1.bf16.msra.mxu0 %v4435
    %6867 = vmatprep.subr.bf16.mxu0 %v4448
    %6868 = vmatpush1.bf16.msra.mxu0 %v4447
    %6869 = vmatprep.subr.bf16.mxu0 %v4460
    %6870 = vmatpush1.bf16.msra.mxu0 %v4459
    %6871 = vmatprep.subr.bf16.mxu0 %v4472
    %6872 = vmatpush1.bf16.msra.mxu0 %v4471
    %6873 = vmatprep.subr.bf16.mxu0 %v4484
    %6874 = vmatpush1.bf16.msra.mxu0 %v4483
    %6875 = vmatprep.subr.bf16.mxu0 %v4496
    %6876 = vmatpush1.bf16.msra.mxu0 %v4495
    %6877 = vmatprep.subr.bf16.mxu0 %v4508
    %6878 = vmatpush1.bf16.msra.mxu0 %v4507
    %6879 = vmatprep.subr.bf16.mxu0 %v4520
    %6880 = vmatpush1.bf16.msra.mxu0 %v4519
    %6881 = vmatprep.subr.bf16.mxu0 %v4532
    %6882 = vmatpush1.bf16.msra.mxu0 %v4531
    %6883 = vmatprep.subr.bf16.mxu0 %v4544
    %6884 = vmatpush1.bf16.msra.mxu0 %v4543
    %6885 = vmatprep.subr.bf16.mxu0 %v4556
    %6886 = vmatpush1.bf16.msra.mxu0 %v4555
    %6887 = vmatprep.subr.bf16.mxu0 %v4568
    %6888 = vmatpush1.bf16.msra.mxu0 %v4567
    %6889 = vmatprep.subr.bf16.mxu0 %v4580
    %6890 = vmatpush1.bf16.msra.mxu0 %v4579
    %6891 = vmatprep.mubr.bf16.mxu0 %v1160
    %6892 = vmatmul.mubr.bf16.gmra.mrb[0].mxu0 %v1159
    %v6893 = vpop.f32.mrb[0].mxu0
    %v6894 = vadd.f32 %v6821, %v6893
    %v6895 = vpop.f32.mrb[0].mxu0
    %v6896 = vadd.f32 %v6823, %v6895
    %v6897 = vpop.f32.mrb[0].mxu0
    %v6898 = vadd.f32 %v6825, %v6897
    %v6899 = vpop.f32.mrb[0].mxu0
    %v6900 = vadd.f32 %v6827, %v6899
    %6901 = vmatprep.mubr.bf16.mxu0 %v1169
    %6902 = vmatmul.mubr.bf16.gmra.mrb[0].mxu0 %v1168
    %v6903 = vpop.f32.mrb[0].mxu0
    %v6904 = vadd.f32 %v6831, %v6903
    %v6905 = vpop.f32.mrb[0].mxu0
    %v6906 = vadd.f32 %v6833, %v6905
    %v6907 = vpop.f32.mrb[0].mxu0
    %v6908 = vadd.f32 %v6835, %v6907
    %v6909 = vpop.f32.mrb[0].mxu0
    %v6910 = vadd.f32 %v6837, %v6909
    %6911 = vmatprep.mubr.bf16.mxu0 %v1178
    %6912 = vmatmul.mubr.bf16.gmra.mrb[0].mxu0 %v1177
    %v6913 = vpop.f32.mrb[0].mxu0
    %v6914 = vadd.f32 %v6841, %v6913
    %v6915 = vpop.f32.mrb[0].mxu0
    %v6916 = vadd.f32 %v6843, %v6915
    %v6917 = vpop.f32.mrb[0].mxu0
    %v6918 = vadd.f32 %v6845, %v6917
    %v6919 = vpop.f32.mrb[0].mxu0
    %v6920 = vadd.f32 %v6847, %v6919
    %6921 = vmatprep.mubr.bf16.mxu0 %v1187
    %6922 = vmatmul.mubr.bf16.gmra.mrb[0].mxu0 %v1186
    %v6923 = vpop.f32.mrb[0].mxu0
    %v6924 = vadd.f32 %v6851, %v6923
    %v6925 = vpop.f32.mrb[0].mxu0
    %v6926 = vadd.f32 %v6853, %v6925
    %v6927 = vpop.f32.mrb[0].mxu0
    %v6928 = vadd.f32 %v6855, %v6927
    %v6929 = vpop.f32.mrb[0].mxu0
    %v6930 = vadd.f32 %v6857, %v6929
    %6931 = vdwg.mxu0
    %6932 = vmatprep.subr.bf16.mxu0 %v4592
    %6933 = vmatpush1.bf16.msra.mxu0 %v4591
    %6934 = vmatprep.subr.bf16.mxu0 %v4604
    %6935 = vmatpush1.bf16.msra.mxu0 %v4603
    %6936 = vmatprep.subr.bf16.mxu0 %v4616
    %6937 = vmatpush1.bf16.msra.mxu0 %v4615
    %6938 = vmatprep.subr.bf16.mxu0 %v4628
    %6939 = vmatpush1.bf16.msra.mxu0 %v4627
    %6940 = vmatprep.subr.bf16.mxu0 %v4640
    %6941 = vmatpush1.bf16.msra.mxu0 %v4639
    %6942 = vmatprep.subr.bf16.mxu0 %v4652
    %6943 = vmatpush1.bf16.msra.mxu0 %v4651
    %6944 = vmatprep.subr.bf16.mxu0 %v4664
    %6945 = vmatpush1.bf16.msra.mxu0 %v4663
    %6946 = vmatprep.subr.bf16.mxu0 %v4676
    %6947 = vmatpush1.bf16.msra.mxu0 %v4675
    %6948 = vmatprep.subr.bf16.mxu0 0
    %6949 = vmatpush1.bf16.msra.mxu0 0
    %6950 = vmatprep.subr.bf16.mxu0 0
    %6951 = vmatpush1.bf16.msra.mxu0 0
    %6952 = vmatprep.subr.bf16.mxu0 0
    %6953 = vmatpush1.bf16.msra.mxu0 0
    %6954 = vmatprep.subr.bf16.mxu0 0
    %6955 = vmatpush1.bf16.msra.mxu0 0
    %6956 = vmatprep.subr.bf16.mxu0 0
    %6957 = vmatpush1.bf16.msra.mxu0 0
    %6958 = vmatprep.subr.bf16.mxu0 0
    %6959 = vmatpush1.bf16.msra.mxu0 0
    %6960 = vmatprep.subr.bf16.mxu0 0
    %6961 = vmatpush1.bf16.msra.mxu0 0
    %6962 = vmatprep.subr.bf16.mxu0 0
    %6963 = vmatpush1.bf16.msra.mxu0 0
    %6964 = vmatprep.mubr.bf16.mxu0 0
    %6965 = vmatmul.mubr.bf16.gmra.mrb[0].mxu0 %v1161
    %v6966 = vpop.f32.mrb[0].mxu0
    %v6967 = vadd.f32 %v6894, %v6966
    %v6968 = vpop.f32.mrb[0].mxu0
    %v6969 = vadd.f32 %v6896, %v6968
    %v6970 = vpop.f32.mrb[0].mxu0
    %v6971 = vadd.f32 %v6898, %v6970
    %v6972 = vpop.f32.mrb[0].mxu0
    %v6973 = vadd.f32 %v6900, %v6972
    %6974 = vmatprep.mubr.bf16.mxu0 0
    %6975 = vmatmul.mubr.bf16.gmra.mrb[0].mxu0 %v1170
    %v6976 = vpop.f32.mrb[0].mxu0
    %v6977 = vadd.f32 %v6904, %v6976
    %v6978 = vpop.f32.mrb[0].mxu0
    %v6979 = vadd.f32 %v6906, %v6978
    %v6980 = vpop.f32.mrb[0].mxu0
    %v6981 = vadd.f32 %v6908, %v6980
    %v6982 = vpop.f32.mrb[0].mxu0
    %v6983 = vadd.f32 %v6910, %v6982
    %6984 = vmatprep.mubr.bf16.mxu0 0
    %6985 = vmatmul.mubr.bf16.gmra.mrb[0].mxu0 %v1179
    %v6986 = vpop.f32.mrb[0].mxu0
    %v6987 = vadd.f32 %v6914, %v6986
    %v6988 = vpop.f32.mrb[0].mxu0
    %v6989 = vadd.f32 %v6916, %v6988
    %v6990 = vpop.f32.mrb[0].mxu0
    %v6991 = vadd.f32 %v6918, %v6990
    %v6992 = vpop.f32.mrb[0].mxu0
    %v6993 = vadd.f32 %v6920, %v6992
    %6994 = vmatprep.mubr.bf16.mxu0 0
    %6995 = vmatmul.mubr.bf16.gmra.mrb[0].mxu0 %v1188
    %v6996 = vpop.f32.mrb[0].mxu0
    %v6997 = vadd.f32 %v6924, %v6996
    %v6998 = vpop.f32.mrb[0].mxu0
    %v6999 = vadd.f32 %v6926, %v6998
    %v7000 = vpop.f32.mrb[0].mxu0
    %v7001 = vadd.f32 %v6928, %v7000
    %v7002 = vpop.f32.mrb[0].mxu0
    %v7003 = vadd.f32 %v6930, %v7002
    %7004 = vdwg.mxu0
    %7005 = vmatprep.subr.bf16.mxu0 %v3826
    %7006 = vmatpush1.bf16.msra.mxu0 %v3825
    %7007 = vmatprep.subr.bf16.mxu0 %v3838
    %7008 = vmatpush1.bf16.msra.mxu0 %v3837
    %7009 = vmatprep.subr.bf16.mxu0 %v3850
    %7010 = vmatpush1.bf16.msra.mxu0 %v3849
    %7011 = vmatprep.subr.bf16.mxu0 %v3862
    %7012 = vmatpush1.bf16.msra.mxu0 %v3861
    %7013 = vmatprep.subr.bf16.mxu0 %v3874
    %7014 = vmatpush1.bf16.msra.mxu0 %v3873
    %7015 = vmatprep.subr.bf16.mxu0 %v3886
    %7016 = vmatpush1.bf16.msra.mxu0 %v3885
    %7017 = vmatprep.subr.bf16.mxu0 %v3898
    %7018 = vmatpush1.bf16.msra.mxu0 %v3897
    %7019 = vmatprep.subr.bf16.mxu0 %v3910
    %7020 = vmatpush1.bf16.msra.mxu0 %v3909
    %7021 = vmatprep.subr.bf16.mxu0 %v3922
    %7022 = vmatpush1.bf16.msra.mxu0 %v3921
    %7023 = vmatprep.subr.bf16.mxu0 %v3934
    %7024 = vmatpush1.bf16.msra.mxu0 %v3933
    %7025 = vmatprep.subr.bf16.mxu0 %v3946
    %7026 = vmatpush1.bf16.msra.mxu0 %v3945
    %7027 = vmatprep.subr.bf16.mxu0 %v3958
    %7028 = vmatpush1.bf16.msra.mxu0 %v3957
    %7029 = vmatprep.subr.bf16.mxu0 %v3970
    %7030 = vmatpush1.bf16.msra.mxu0 %v3969
    %7031 = vmatprep.subr.bf16.mxu0 %v3982
    %7032 = vmatpush1.bf16.msra.mxu0 %v3981
    %7033 = vmatprep.subr.bf16.mxu0 %v3994
    %7034 = vmatpush1.bf16.msra.mxu0 %v3993
    %7035 = vmatprep.subr.bf16.mxu0 %v4006
    %7036 = vmatpush1.bf16.msra.mxu0 %v4005
    %7037 = vmatprep.mubr.bf16.mxu0 %v1154
    %7038 = vmatmul.mubr.bf16.gmra.mrb[0].mxu0 %v1153
    %v7039 = vpop.f32.mrb[0].mxu0
    %v7040 = vadd.f32 %v1016, %v7039
    %v7041 = vpop.f32.mrb[0].mxu0
    %v7042 = vadd.f32 %v1020, %v7041
    %v7043 = vpop.f32.mrb[0].mxu0
    %v7044 = vadd.f32 %v1016, %v7043
    %v7045 = vpop.f32.mrb[0].mxu0
    %v7046 = vadd.f32 %v1020, %v7045
    %7047 = vmatprep.mubr.bf16.mxu0 %v1163
    %7048 = vmatmul.mubr.bf16.gmra.mrb[0].mxu0 %v1162
    %v7049 = vpop.f32.mrb[0].mxu0
    %v7050 = vadd.f32 %v1016, %v7049
    %v7051 = vpop.f32.mrb[0].mxu0
    %v7052 = vadd.f32 %v1020, %v7051
    %v7053 = vpop.f32.mrb[0].mxu0
    %v7054 = vadd.f32 %v1016, %v7053
    %v7055 = vpop.f32.mrb[0].mxu0
    %v7056 = vadd.f32 %v1020, %v7055
    %7057 = vmatprep.mubr.bf16.mxu0 %v1172
    %7058 = vmatmul.mubr.bf16.gmra.mrb[0].mxu0 %v1171
    %v7059 = vpop.f32.mrb[0].mxu0
    %v7060 = vadd.f32 %v1016, %v7059
    %v7061 = vpop.f32.mrb[0].mxu0
    %v7062 = vadd.f32 %v1020, %v7061
    %v7063 = vpop.f32.mrb[0].mxu0
    %v7064 = vadd.f32 %v1016, %v7063
    %v7065 = vpop.f32.mrb[0].mxu0
    %v7066 = vadd.f32 %v1020, %v7065
    %7067 = vmatprep.mubr.bf16.mxu0 %v1181
    %7068 = vmatmul.mubr.bf16.gmra.mrb[0].mxu0 %v1180
    %v7069 = vpop.f32.mrb[0].mxu0
    %v7070 = vadd.f32 %v1016, %v7069
    %v7071 = vpop.f32.mrb[0].mxu0
    %v7072 = vadd.f32 %v1020, %v7071
    %v7073 = vpop.f32.mrb[0].mxu0
    %v7074 = vadd.f32 %v1016, %v7073
    %v7075 = vpop.f32.mrb[0].mxu0
    %v7076 = vadd.f32 %v1020, %v7075
    %7077 = vdwg.mxu0
    %7078 = vmatprep.subr.bf16.mxu0 %v4018
    %7079 = vmatpush1.bf16.msra.mxu0 %v4017
    %7080 = vmatprep.subr.bf16.mxu0 %v4030
    %7081 = vmatpush1.bf16.msra.mxu0 %v4029
    %7082 = vmatprep.subr.bf16.mxu0 %v4042
    %7083 = vmatpush1.bf16.msra.mxu0 %v4041
    %7084 = vmatprep.subr.bf16.mxu0 %v4054
    %7085 = vmatpush1.bf16.msra.mxu0 %v4053
    %7086 = vmatprep.subr.bf16.mxu0 %v4066
    %7087 = vmatpush1.bf16.msra.mxu0 %v4065
    %7088 = vmatprep.subr.bf16.mxu0 %v4078
    %7089 = vmatpush1.bf16.msra.mxu0 %v4077
    %7090 = vmatprep.subr.bf16.mxu0 %v4090
    %7091 = vmatpush1.bf16.msra.mxu0 %v4089
    %7092 = vmatprep.subr.bf16.mxu0 %v4102
    %7093 = vmatpush1.bf16.msra.mxu0 %v4101
    %7094 = vmatprep.subr.bf16.mxu0 %v4114
    %7095 = vmatpush1.bf16.msra.mxu0 %v4113
    %7096 = vmatprep.subr.bf16.mxu0 %v4126
    %7097 = vmatpush1.bf16.msra.mxu0 %v4125
    %7098 = vmatprep.subr.bf16.mxu0 %v4138
    %7099 = vmatpush1.bf16.msra.mxu0 %v4137
    %7100 = vmatprep.subr.bf16.mxu0 %v4150
    %7101 = vmatpush1.bf16.msra.mxu0 %v4149
    %7102 = vmatprep.subr.bf16.mxu0 %v4162
    %7103 = vmatpush1.bf16.msra.mxu0 %v4161
    %7104 = vmatprep.subr.bf16.mxu0 %v4174
    %7105 = vmatpush1.bf16.msra.mxu0 %v4173
    %7106 = vmatprep.subr.bf16.mxu0 %v4186
    %7107 = vmatpush1.bf16.msra.mxu0 %v4185
    %7108 = vmatprep.subr.bf16.mxu0 %v4198
    %7109 = vmatpush1.bf16.msra.mxu0 %v4197
    %7110 = vmatprep.mubr.bf16.mxu0 %v1156
    %7111 = vmatmul.mubr.bf16.gmra.mrb[0].mxu0 %v1155
    %v7112 = vpop.f32.mrb[0].mxu0
    %v7113 = vadd.f32 %v7040, %v7112
    %v7114 = vpop.f32.mrb[0].mxu0
    %v7115 = vadd.f32 %v7042, %v7114
    %v7116 = vpop.f32.mrb[0].mxu0
    %v7117 = vadd.f32 %v7044, %v7116
    %v7118 = vpop.f32.mrb[0].mxu0
    %v7119 = vadd.f32 %v7046, %v7118
    %7120 = vmatprep.mubr.bf16.mxu0 %v1165
    %7121 = vmatmul.mubr.bf16.gmra.mrb[0].mxu0 %v1164
    %v7122 = vpop.f32.mrb[0].mxu0
    %v7123 = vadd.f32 %v7050, %v7122
    %v7124 = vpop.f32.mrb[0].mxu0
    %v7125 = vadd.f32 %v7052, %v7124
    %v7126 = vpop.f32.mrb[0].mxu0
    %v7127 = vadd.f32 %v7054, %v7126
    %v7128 = vpop.f32.mrb[0].mxu0
    %v7129 = vadd.f32 %v7056, %v7128
    %7130 = vmatprep.mubr.bf16.mxu0 %v1174
    %7131 = vmatmul.mubr.bf16.gmra.mrb[0].mxu0 %v1173
    %v7132 = vpop.f32.mrb[0].mxu0
    %v7133 = vadd.f32 %v7060, %v7132
    %v7134 = vpop.f32.mrb[0].mxu0
    %v7135 = vadd.f32 %v7062, %v7134
    %v7136 = vpop.f32.mrb[0].mxu0
    %v7137 = vadd.f32 %v7064, %v7136
    %v7138 = vpop.f32.mrb[0].mxu0
    %v7139 = vadd.f32 %v7066, %v7138
    %7140 = vmatprep.mubr.bf16.mxu0 %v1183
    %7141 = vmatmul.mubr.bf16.gmra.mrb[0].mxu0 %v1182
    %v7142 = vpop.f32.mrb[0].mxu0
    %v7143 = vadd.f32 %v7070, %v7142
    %v7144 = vpop.f32.mrb[0].mxu0
    %v7145 = vadd.f32 %v7072, %v7144
    %v7146 = vpop.f32.mrb[0].mxu0
    %v7147 = vadd.f32 %v7074, %v7146
    %v7148 = vpop.f32.mrb[0].mxu0
    %v7149 = vadd.f32 %v7076, %v7148
    %7150 = vdwg.mxu0
    %7151 = vmatprep.subr.bf16.mxu0 %v4210
    %7152 = vmatpush1.bf16.msra.mxu0 %v4209
    %7153 = vmatprep.subr.bf16.mxu0 %v4222
    %7154 = vmatpush1.bf16.msra.mxu0 %v4221
    %7155 = vmatprep.subr.bf16.mxu0 %v4234
    %7156 = vmatpush1.bf16.msra.mxu0 %v4233
    %7157 = vmatprep.subr.bf16.mxu0 %v4246
    %7158 = vmatpush1.bf16.msra.mxu0 %v4245
    %7159 = vmatprep.subr.bf16.mxu0 %v4258
    %7160 = vmatpush1.bf16.msra.mxu0 %v4257
    %7161 = vmatprep.subr.bf16.mxu0 %v4270
    %7162 = vmatpush1.bf16.msra.mxu0 %v4269
    %7163 = vmatprep.subr.bf16.mxu0 %v4282
    %7164 = vmatpush1.bf16.msra.mxu0 %v4281
    %7165 = vmatprep.subr.bf16.mxu0 %v4294
    %7166 = vmatpush1.bf16.msra.mxu0 %v4293
    %7167 = vmatprep.subr.bf16.mxu0 %v4306
    %7168 = vmatpush1.bf16.msra.mxu0 %v4305
    %7169 = vmatprep.subr.bf16.mxu0 %v4318
    %7170 = vmatpush1.bf16.msra.mxu0 %v4317
    %7171 = vmatprep.subr.bf16.mxu0 %v4330
    %7172 = vmatpush1.bf16.msra.mxu0 %v4329
    %7173 = vmatprep.subr.bf16.mxu0 %v4342
    %7174 = vmatpush1.bf16.msra.mxu0 %v4341
    %7175 = vmatprep.subr.bf16.mxu0 %v4354
    %7176 = vmatpush1.bf16.msra.mxu0 %v4353
    %7177 = vmatprep.subr.bf16.mxu0 %v4366
    %7178 = vmatpush1.bf16.msra.mxu0 %v4365
    %7179 = vmatprep.subr.bf16.mxu0 %v4378
    %7180 = vmatpush1.bf16.msra.mxu0 %v4377
    %7181 = vmatprep.subr.bf16.mxu0 %v4390
    %7182 = vmatpush1.bf16.msra.mxu0 %v4389
    %7183 = vmatprep.mubr.bf16.mxu0 %v1158
    %7184 = vmatmul.mubr.bf16.gmra.mrb[0].mxu0 %v1157
    %v7185 = vpop.f32.mrb[0].mxu0
    %v7186 = vadd.f32 %v7113, %v7185
    %v7187 = vpop.f32.mrb[0].mxu0
    %v7188 = vadd.f32 %v7115, %v7187
    %v7189 = vpop.f32.mrb[0].mxu0
    %v7190 = vadd.f32 %v7117, %v7189
    %v7191 = vpop.f32.mrb[0].mxu0
    %v7192 = vadd.f32 %v7119, %v7191
    %7193 = vmatprep.mubr.bf16.mxu0 %v1167
    %7194 = vmatmul.mubr.bf16.gmra.mrb[0].mxu0 %v1166
    %v7195 = vpop.f32.mrb[0].mxu0
    %v7196 = vadd.f32 %v7123, %v7195
    %v7197 = vpop.f32.mrb[0].mxu0
    %v7198 = vadd.f32 %v7125, %v7197
    %v7199 = vpop.f32.mrb[0].mxu0
    %v7200 = vadd.f32 %v7127, %v7199
    %v7201 = vpop.f32.mrb[0].mxu0
    %v7202 = vadd.f32 %v7129, %v7201
    %7203 = vmatprep.mubr.bf16.mxu0 %v1176
    %7204 = vmatmul.mubr.bf16.gmra.mrb[0].mxu0 %v1175
    %v7205 = vpop.f32.mrb[0].mxu0
    %v7206 = vadd.f32 %v7133, %v7205
    %v7207 = vpop.f32.mrb[0].mxu0
    %v7208 = vadd.f32 %v7135, %v7207
    %v7209 = vpop.f32.mrb[0].mxu0
    %v7210 = vadd.f32 %v7137, %v7209
    %v7211 = vpop.f32.mrb[0].mxu0
    %v7212 = vadd.f32 %v7139, %v7211
    %7213 = vmatprep.mubr.bf16.mxu0 %v1185
    %7214 = vmatmul.mubr.bf16.gmra.mrb[0].mxu0 %v1184
    %v7215 = vpop.f32.mrb[0].mxu0
    %v7216 = vadd.f32 %v7143, %v7215
    %v7217 = vpop.f32.mrb[0].mxu0
    %v7218 = vadd.f32 %v7145, %v7217
    %v7219 = vpop.f32.mrb[0].mxu0
    %v7220 = vadd.f32 %v7147, %v7219
    %v7221 = vpop.f32.mrb[0].mxu0
    %v7222 = vadd.f32 %v7149, %v7221
    %7223 = vdwg.mxu0
    %7224 = vmatprep.subr.bf16.mxu0 %v4402
    %7225 = vmatpush1.bf16.msra.mxu0 %v4401
    %7226 = vmatprep.subr.bf16.mxu0 %v4414
    %7227 = vmatpush1.bf16.msra.mxu0 %v4413
    %7228 = vmatprep.subr.bf16.mxu0 %v4426
    %7229 = vmatpush1.bf16.msra.mxu0 %v4425
    %7230 = vmatprep.subr.bf16.mxu0 %v4438
    %7231 = vmatpush1.bf16.msra.mxu0 %v4437
    %7232 = vmatprep.subr.bf16.mxu0 %v4450
    %7233 = vmatpush1.bf16.msra.mxu0 %v4449
    %7234 = vmatprep.subr.bf16.mxu0 %v4462
    %7235 = vmatpush1.bf16.msra.mxu0 %v4461
    %7236 = vmatprep.subr.bf16.mxu0 %v4474
    %7237 = vmatpush1.bf16.msra.mxu0 %v4473
    %7238 = vmatprep.subr.bf16.mxu0 %v4486
    %7239 = vmatpush1.bf16.msra.mxu0 %v4485
    %7240 = vmatprep.subr.bf16.mxu0 %v4498
    %7241 = vmatpush1.bf16.msra.mxu0 %v4497
    %7242 = vmatprep.subr.bf16.mxu0 %v4510
    %7243 = vmatpush1.bf16.msra.mxu0 %v4509
    %7244 = vmatprep.subr.bf16.mxu0 %v4522
    %7245 = vmatpush1.bf16.msra.mxu0 %v4521
    %7246 = vmatprep.subr.bf16.mxu0 %v4534
    %7247 = vmatpush1.bf16.msra.mxu0 %v4533
    %7248 = vmatprep.subr.bf16.mxu0 %v4546
    %7249 = vmatpush1.bf16.msra.mxu0 %v4545
    %7250 = vmatprep.subr.bf16.mxu0 %v4558
    %7251 = vmatpush1.bf16.msra.mxu0 %v4557
    %7252 = vmatprep.subr.bf16.mxu0 %v4570
    %7253 = vmatpush1.bf16.msra.mxu0 %v4569
    %7254 = vmatprep.subr.bf16.mxu0 %v4582
    %7255 = vmatpush1.bf16.msra.mxu0 %v4581
    %7256 = vmatprep.mubr.bf16.mxu0 %v1160
    %7257 = vmatmul.mubr.bf16.gmra.mrb[0].mxu0 %v1159
    %v7258 = vpop.f32.mrb[0].mxu0
    %v7259 = vadd.f32 %v7186, %v7258
    %v7260 = vpop.f32.mrb[0].mxu0
    %v7261 = vadd.f32 %v7188, %v7260
    %v7262 = vpop.f32.mrb[0].mxu0
    %v7263 = vadd.f32 %v7190, %v7262
    %v7264 = vpop.f32.mrb[0].mxu0
    %v7265 = vadd.f32 %v7192, %v7264
    %7266 = vmatprep.mubr.bf16.mxu0 %v1169
    %7267 = vmatmul.mubr.bf16.gmra.mrb[0].mxu0 %v1168
    %v7268 = vpop.f32.mrb[0].mxu0
    %v7269 = vadd.f32 %v7196, %v7268
    %v7270 = vpop.f32.mrb[0].mxu0
    %v7271 = vadd.f32 %v7198, %v7270
    %v7272 = vpop.f32.mrb[0].mxu0
    %v7273 = vadd.f32 %v7200, %v7272
    %v7274 = vpop.f32.mrb[0].mxu0
    %v7275 = vadd.f32 %v7202, %v7274
    %7276 = vmatprep.mubr.bf16.mxu0 %v1178
    %7277 = vmatmul.mubr.bf16.gmra.mrb[0].mxu0 %v1177
    %v7278 = vpop.f32.mrb[0].mxu0
    %v7279 = vadd.f32 %v7206, %v7278
    %v7280 = vpop.f32.mrb[0].mxu0
    %v7281 = vadd.f32 %v7208, %v7280
    %v7282 = vpop.f32.mrb[0].mxu0
    %v7283 = vadd.f32 %v7210, %v7282
    %v7284 = vpop.f32.mrb[0].mxu0
    %v7285 = vadd.f32 %v7212, %v7284
    %7286 = vmatprep.mubr.bf16.mxu0 %v1187
    %7287 = vmatmul.mubr.bf16.gmra.mrb[0].mxu0 %v1186
    %v7288 = vpop.f32.mrb[0].mxu0
    %v7289 = vadd.f32 %v7216, %v7288
    %v7290 = vpop.f32.mrb[0].mxu0
    %v7291 = vadd.f32 %v7218, %v7290
    %v7292 = vpop.f32.mrb[0].mxu0
    %v7293 = vadd.f32 %v7220, %v7292
    %v7294 = vpop.f32.mrb[0].mxu0
    %v7295 = vadd.f32 %v7222, %v7294
    %7296 = vdwg.mxu0
    %7297 = vmatprep.subr.bf16.mxu0 %v4594
    %7298 = vmatpush1.bf16.msra.mxu0 %v4593
    %7299 = vmatprep.subr.bf16.mxu0 %v4606
    %7300 = vmatpush1.bf16.msra.mxu0 %v4605
    %7301 = vmatprep.subr.bf16.mxu0 %v4618
    %7302 = vmatpush1.bf16.msra.mxu0 %v4617
    %7303 = vmatprep.subr.bf16.mxu0 %v4630
    %7304 = vmatpush1.bf16.msra.mxu0 %v4629
    %7305 = vmatprep.subr.bf16.mxu0 %v4642
    %7306 = vmatpush1.bf16.msra.mxu0 %v4641
    %7307 = vmatprep.subr.bf16.mxu0 %v4654
    %7308 = vmatpush1.bf16.msra.mxu0 %v4653
    %7309 = vmatprep.subr.bf16.mxu0 %v4666
    %7310 = vmatpush1.bf16.msra.mxu0 %v4665
    %7311 = vmatprep.subr.bf16.mxu0 %v4678
    %7312 = vmatpush1.bf16.msra.mxu0 %v4677
    %7313 = vmatprep.subr.bf16.mxu0 0
    %7314 = vmatpush1.bf16.msra.mxu0 0
    %7315 = vmatprep.subr.bf16.mxu0 0
    %7316 = vmatpush1.bf16.msra.mxu0 0
    %7317 = vmatprep.subr.bf16.mxu0 0
    %7318 = vmatpush1.bf16.msra.mxu0 0
    %7319 = vmatprep.subr.bf16.mxu0 0
    %7320 = vmatpush1.bf16.msra.mxu0 0
    %7321 = vmatprep.subr.bf16.mxu0 0
    %7322 = vmatpush1.bf16.msra.mxu0 0
    %7323 = vmatprep.subr.bf16.mxu0 0
    %7324 = vmatpush1.bf16.msra.mxu0 0
    %7325 = vmatprep.subr.bf16.mxu0 0
    %7326 = vmatpush1.bf16.msra.mxu0 0
    %7327 = vmatprep.subr.bf16.mxu0 0
    %7328 = vmatpush1.bf16.msra.mxu0 0
    %7329 = vmatprep.mubr.bf16.mxu0 0
    %7330 = vmatmul.mubr.bf16.gmra.mrb[0].mxu0 %v1161
    %v7331 = vpop.f32.mrb[0].mxu0
    %v7332 = vadd.f32 %v7259, %v7331
    %v7333 = vpop.f32.mrb[0].mxu0
    %v7334 = vadd.f32 %v7261, %v7333
    %v7335 = vpop.f32.mrb[0].mxu0
    %v7336 = vadd.f32 %v7263, %v7335
    %v7337 = vpop.f32.mrb[0].mxu0
    %v7338 = vadd.f32 %v7265, %v7337
    %7339 = vmatprep.mubr.bf16.mxu0 0
    %7340 = vmatmul.mubr.bf16.gmra.mrb[0].mxu0 %v1170
    %v7341 = vpop.f32.mrb[0].mxu0
    %v7342 = vadd.f32 %v7269, %v7341
    %v7343 = vpop.f32.mrb[0].mxu0
    %v7344 = vadd.f32 %v7271, %v7343
    %v7345 = vpop.f32.mrb[0].mxu0
    %v7346 = vadd.f32 %v7273, %v7345
    %v7347 = vpop.f32.mrb[0].mxu0
    %v7348 = vadd.f32 %v7275, %v7347
    %7349 = vmatprep.mubr.bf16.mxu0 0
    %7350 = vmatmul.mubr.bf16.gmra.mrb[0].mxu0 %v1179
    %v7351 = vpop.f32.mrb[0].mxu0
    %v7352 = vadd.f32 %v7279, %v7351
    %v7353 = vpop.f32.mrb[0].mxu0
    %v7354 = vadd.f32 %v7281, %v7353
    %v7355 = vpop.f32.mrb[0].mxu0
    %v7356 = vadd.f32 %v7283, %v7355
    %v7357 = vpop.f32.mrb[0].mxu0
    %v7358 = vadd.f32 %v7285, %v7357
    %7359 = vmatprep.mubr.bf16.mxu0 0
    %7360 = vmatmul.mubr.bf16.gmra.mrb[0].mxu0 %v1188
    %v7361 = vpop.f32.mrb[0].mxu0
    %v7362 = vadd.f32 %v7289, %v7361
    %v7363 = vpop.f32.mrb[0].mxu0
    %v7364 = vadd.f32 %v7291, %v7363
    %v7365 = vpop.f32.mrb[0].mxu0
    %v7366 = vadd.f32 %v7293, %v7365
    %v7367 = vpop.f32.mrb[0].mxu0
    %v7368 = vadd.f32 %v7295, %v7367
    %7369 = vdwg.mxu0
    %7370 = vmatprep.subr.bf16.mxu0 %v3828
    %7371 = vmatpush1.bf16.msra.mxu0 %v3827
    %7372 = vmatprep.subr.bf16.mxu0 %v3840
    %7373 = vmatpush1.bf16.msra.mxu0 %v3839
    %7374 = vmatprep.subr.bf16.mxu0 %v3852
    %7375 = vmatpush1.bf16.msra.mxu0 %v3851
    %7376 = vmatprep.subr.bf16.mxu0 %v3864
    %7377 = vmatpush1.bf16.msra.mxu0 %v3863
    %7378 = vmatprep.subr.bf16.mxu0 %v3876
    %7379 = vmatpush1.bf16.msra.mxu0 %v3875
    %7380 = vmatprep.subr.bf16.mxu0 %v3888
    %7381 = vmatpush1.bf16.msra.mxu0 %v3887
    %7382 = vmatprep.subr.bf16.mxu0 %v3900
    %7383 = vmatpush1.bf16.msra.mxu0 %v3899
    %7384 = vmatprep.subr.bf16.mxu0 %v3912
    %7385 = vmatpush1.bf16.msra.mxu0 %v3911
    %7386 = vmatprep.subr.bf16.mxu0 %v3924
    %7387 = vmatpush1.bf16.msra.mxu0 %v3923
    %7388 = vmatprep.subr.bf16.mxu0 %v3936
    %7389 = vmatpush1.bf16.msra.mxu0 %v3935
    %7390 = vmatprep.subr.bf16.mxu0 %v3948
    %7391 = vmatpush1.bf16.msra.mxu0 %v3947
    %7392 = vmatprep.subr.bf16.mxu0 %v3960
    %7393 = vmatpush1.bf16.msra.mxu0 %v3959
    %7394 = vmatprep.subr.bf16.mxu0 %v3972
    %7395 = vmatpush1.bf16.msra.mxu0 %v3971
    %7396 = vmatprep.subr.bf16.mxu0 %v3984
    %7397 = vmatpush1.bf16.msra.mxu0 %v3983
    %7398 = vmatprep.subr.bf16.mxu0 %v3996
    %7399 = vmatpush1.bf16.msra.mxu0 %v3995
    %7400 = vmatprep.subr.bf16.mxu0 %v4008
    %7401 = vmatpush1.bf16.msra.mxu0 %v4007
    %7402 = vmatprep.mubr.bf16.mxu0 %v1154
    %7403 = vmatmul.mubr.bf16.gmra.mrb[0].mxu0 %v1153
    %v7404 = vpop.f32.mrb[0].mxu0
    %v7405 = vadd.f32 %v1024, %v7404
    %v7406 = vpop.f32.mrb[0].mxu0
    %v7407 = vadd.f32 %v1028, %v7406
    %v7408 = vpop.f32.mrb[0].mxu0
    %v7409 = vadd.f32 %v1024, %v7408
    %v7410 = vpop.f32.mrb[0].mxu0
    %v7411 = vadd.f32 %v1028, %v7410
    %7412 = vmatprep.mubr.bf16.mxu0 %v1163
    %7413 = vmatmul.mubr.bf16.gmra.mrb[0].mxu0 %v1162
    %v7414 = vpop.f32.mrb[0].mxu0
    %v7415 = vadd.f32 %v1024, %v7414
    %v7416 = vpop.f32.mrb[0].mxu0
    %v7417 = vadd.f32 %v1028, %v7416
    %v7418 = vpop.f32.mrb[0].mxu0
    %v7419 = vadd.f32 %v1024, %v7418
    %v7420 = vpop.f32.mrb[0].mxu0
    %v7421 = vadd.f32 %v1028, %v7420
    %7422 = vmatprep.mubr.bf16.mxu0 %v1172
    %7423 = vmatmul.mubr.bf16.gmra.mrb[0].mxu0 %v1171
    %v7424 = vpop.f32.mrb[0].mxu0
    %v7425 = vadd.f32 %v1024, %v7424
    %v7426 = vpop.f32.mrb[0].mxu0
    %v7427 = vadd.f32 %v1028, %v7426
    %v7428 = vpop.f32.mrb[0].mxu0
    %v7429 = vadd.f32 %v1024, %v7428
    %v7430 = vpop.f32.mrb[0].mxu0
    %v7431 = vadd.f32 %v1028, %v7430
    %7432 = vmatprep.mubr.bf16.mxu0 %v1181
    %7433 = vmatmul.mubr.bf16.gmra.mrb[0].mxu0 %v1180
    %v7434 = vpop.f32.mrb[0].mxu0
    %v7435 = vadd.f32 %v1024, %v7434
    %v7436 = vpop.f32.mrb[0].mxu0
    %v7437 = vadd.f32 %v1028, %v7436
    %v7438 = vpop.f32.mrb[0].mxu0
    %v7439 = vadd.f32 %v1024, %v7438
    %v7440 = vpop.f32.mrb[0].mxu0
    %v7441 = vadd.f32 %v1028, %v7440
    %7442 = vdwg.mxu0
    %7443 = vmatprep.subr.bf16.mxu0 %v4020
    %7444 = vmatpush1.bf16.msra.mxu0 %v4019
    %7445 = vmatprep.subr.bf16.mxu0 %v4032
    %7446 = vmatpush1.bf16.msra.mxu0 %v4031
    %7447 = vmatprep.subr.bf16.mxu0 %v4044
    %7448 = vmatpush1.bf16.msra.mxu0 %v4043
    %7449 = vmatprep.subr.bf16.mxu0 %v4056
    %7450 = vmatpush1.bf16.msra.mxu0 %v4055
    %7451 = vmatprep.subr.bf16.mxu0 %v4068
    %7452 = vmatpush1.bf16.msra.mxu0 %v4067
    %7453 = vmatprep.subr.bf16.mxu0 %v4080
    %7454 = vmatpush1.bf16.msra.mxu0 %v4079
    %7455 = vmatprep.subr.bf16.mxu0 %v4092
    %7456 = vmatpush1.bf16.msra.mxu0 %v4091
    %7457 = vmatprep.subr.bf16.mxu0 %v4104
    %7458 = vmatpush1.bf16.msra.mxu0 %v4103
    %7459 = vmatprep.subr.bf16.mxu0 %v4116
    %7460 = vmatpush1.bf16.msra.mxu0 %v4115
    %7461 = vmatprep.subr.bf16.mxu0 %v4128
    %7462 = vmatpush1.bf16.msra.mxu0 %v4127
    %7463 = vmatprep.subr.bf16.mxu0 %v4140
    %7464 = vmatpush1.bf16.msra.mxu0 %v4139
    %7465 = vmatprep.subr.bf16.mxu0 %v4152
    %7466 = vmatpush1.bf16.msra.mxu0 %v4151
    %7467 = vmatprep.subr.bf16.mxu0 %v4164
    %7468 = vmatpush1.bf16.msra.mxu0 %v4163
    %7469 = vmatprep.subr.bf16.mxu0 %v4176
    %7470 = vmatpush1.bf16.msra.mxu0 %v4175
    %7471 = vmatprep.subr.bf16.mxu0 %v4188
    %7472 = vmatpush1.bf16.msra.mxu0 %v4187
    %7473 = vmatprep.subr.bf16.mxu0 %v4200
    %7474 = vmatpush1.bf16.msra.mxu0 %v4199
    %7475 = vmatprep.mubr.bf16.mxu0 %v1156
    %7476 = vmatmul.mubr.bf16.gmra.mrb[0].mxu0 %v1155
    %v7477 = vpop.f32.mrb[0].mxu0
    %v7478 = vadd.f32 %v7405, %v7477
    %v7479 = vpop.f32.mrb[0].mxu0
    %v7480 = vadd.f32 %v7407, %v7479
    %v7481 = vpop.f32.mrb[0].mxu0
    %v7482 = vadd.f32 %v7409, %v7481
    %v7483 = vpop.f32.mrb[0].mxu0
    %v7484 = vadd.f32 %v7411, %v7483
    %7485 = vmatprep.mubr.bf16.mxu0 %v1165
    %7486 = vmatmul.mubr.bf16.gmra.mrb[0].mxu0 %v1164
    %v7487 = vpop.f32.mrb[0].mxu0
    %v7488 = vadd.f32 %v7415, %v7487
    %v7489 = vpop.f32.mrb[0].mxu0
    %v7490 = vadd.f32 %v7417, %v7489
    %v7491 = vpop.f32.mrb[0].mxu0
    %v7492 = vadd.f32 %v7419, %v7491
    %v7493 = vpop.f32.mrb[0].mxu0
    %v7494 = vadd.f32 %v7421, %v7493
    %7495 = vmatprep.mubr.bf16.mxu0 %v1174
    %7496 = vmatmul.mubr.bf16.gmra.mrb[0].mxu0 %v1173
    %v7497 = vpop.f32.mrb[0].mxu0
    %v7498 = vadd.f32 %v7425, %v7497
    %v7499 = vpop.f32.mrb[0].mxu0
    %v7500 = vadd.f32 %v7427, %v7499
    %v7501 = vpop.f32.mrb[0].mxu0
    %v7502 = vadd.f32 %v7429, %v7501
    %v7503 = vpop.f32.mrb[0].mxu0
    %v7504 = vadd.f32 %v7431, %v7503
    %7505 = vmatprep.mubr.bf16.mxu0 %v1183
    %7506 = vmatmul.mubr.bf16.gmra.mrb[0].mxu0 %v1182
    %v7507 = vpop.f32.mrb[0].mxu0
    %v7508 = vadd.f32 %v7435, %v7507
    %v7509 = vpop.f32.mrb[0].mxu0
    %v7510 = vadd.f32 %v7437, %v7509
    %v7511 = vpop.f32.mrb[0].mxu0
    %v7512 = vadd.f32 %v7439, %v7511
    %v7513 = vpop.f32.mrb[0].mxu0
    %v7514 = vadd.f32 %v7441, %v7513
    %7515 = vdwg.mxu0
    %7516 = vmatprep.subr.bf16.mxu0 %v4212
    %7517 = vmatpush1.bf16.msra.mxu0 %v4211
    %7518 = vmatprep.subr.bf16.mxu0 %v4224
    %7519 = vmatpush1.bf16.msra.mxu0 %v4223
    %7520 = vmatprep.subr.bf16.mxu0 %v4236
    %7521 = vmatpush1.bf16.msra.mxu0 %v4235
    %7522 = vmatprep.subr.bf16.mxu0 %v4248
    %7523 = vmatpush1.bf16.msra.mxu0 %v4247
    %7524 = vmatprep.subr.bf16.mxu0 %v4260
    %7525 = vmatpush1.bf16.msra.mxu0 %v4259
    %7526 = vmatprep.subr.bf16.mxu0 %v4272
    %7527 = vmatpush1.bf16.msra.mxu0 %v4271
    %7528 = vmatprep.subr.bf16.mxu0 %v4284
    %7529 = vmatpush1.bf16.msra.mxu0 %v4283
    %7530 = vmatprep.subr.bf16.mxu0 %v4296
    %7531 = vmatpush1.bf16.msra.mxu0 %v4295
    %7532 = vmatprep.subr.bf16.mxu0 %v4308
    %7533 = vmatpush1.bf16.msra.mxu0 %v4307
    %7534 = vmatprep.subr.bf16.mxu0 %v4320
    %7535 = vmatpush1.bf16.msra.mxu0 %v4319
    %7536 = vmatprep.subr.bf16.mxu0 %v4332
    %7537 = vmatpush1.bf16.msra.mxu0 %v4331
    %7538 = vmatprep.subr.bf16.mxu0 %v4344
    %7539 = vmatpush1.bf16.msra.mxu0 %v4343
    %7540 = vmatprep.subr.bf16.mxu0 %v4356
    %7541 = vmatpush1.bf16.msra.mxu0 %v4355
    %7542 = vmatprep.subr.bf16.mxu0 %v4368
    %7543 = vmatpush1.bf16.msra.mxu0 %v4367
    %7544 = vmatprep.subr.bf16.mxu0 %v4380
    %7545 = vmatpush1.bf16.msra.mxu0 %v4379
    %7546 = vmatprep.subr.bf16.mxu0 %v4392
    %7547 = vmatpush1.bf16.msra.mxu0 %v4391
    %7548 = vmatprep.mubr.bf16.mxu0 %v1158
    %7549 = vmatmul.mubr.bf16.gmra.mrb[0].mxu0 %v1157
    %v7550 = vpop.f32.mrb[0].mxu0
    %v7551 = vadd.f32 %v7478, %v7550
    %v7552 = vpop.f32.mrb[0].mxu0
    %v7553 = vadd.f32 %v7480, %v7552
    %v7554 = vpop.f32.mrb[0].mxu0
    %v7555 = vadd.f32 %v7482, %v7554
    %v7556 = vpop.f32.mrb[0].mxu0
    %v7557 = vadd.f32 %v7484, %v7556
    %7558 = vmatprep.mubr.bf16.mxu0 %v1167
    %7559 = vmatmul.mubr.bf16.gmra.mrb[0].mxu0 %v1166
    %v7560 = vpop.f32.mrb[0].mxu0
    %v7561 = vadd.f32 %v7488, %v7560
    %v7562 = vpop.f32.mrb[0].mxu0
    %v7563 = vadd.f32 %v7490, %v7562
    %v7564 = vpop.f32.mrb[0].mxu0
    %v7565 = vadd.f32 %v7492, %v7564
    %v7566 = vpop.f32.mrb[0].mxu0
    %v7567 = vadd.f32 %v7494, %v7566
    %7568 = vmatprep.mubr.bf16.mxu0 %v1176
    %7569 = vmatmul.mubr.bf16.gmra.mrb[0].mxu0 %v1175
    %v7570 = vpop.f32.mrb[0].mxu0
    %v7571 = vadd.f32 %v7498, %v7570
    %v7572 = vpop.f32.mrb[0].mxu0
    %v7573 = vadd.f32 %v7500, %v7572
    %v7574 = vpop.f32.mrb[0].mxu0
    %v7575 = vadd.f32 %v7502, %v7574
    %v7576 = vpop.f32.mrb[0].mxu0
    %v7577 = vadd.f32 %v7504, %v7576
    %7578 = vmatprep.mubr.bf16.mxu0 %v1185
    %7579 = vmatmul.mubr.bf16.gmra.mrb[0].mxu0 %v1184
    %v7580 = vpop.f32.mrb[0].mxu0
    %v7581 = vadd.f32 %v7508, %v7580
    %v7582 = vpop.f32.mrb[0].mxu0
    %v7583 = vadd.f32 %v7510, %v7582
    %v7584 = vpop.f32.mrb[0].mxu0
    %v7585 = vadd.f32 %v7512, %v7584
    %v7586 = vpop.f32.mrb[0].mxu0
    %v7587 = vadd.f32 %v7514, %v7586
    %7588 = vdwg.mxu0
    %7589 = vmatprep.subr.bf16.mxu0 %v4404
    %7590 = vmatpush1.bf16.msra.mxu0 %v4403
    %7591 = vmatprep.subr.bf16.mxu0 %v4416
    %7592 = vmatpush1.bf16.msra.mxu0 %v4415
    %7593 = vmatprep.subr.bf16.mxu0 %v4428
    %7594 = vmatpush1.bf16.msra.mxu0 %v4427
    %7595 = vmatprep.subr.bf16.mxu0 %v4440
    %7596 = vmatpush1.bf16.msra.mxu0 %v4439
    %7597 = vmatprep.subr.bf16.mxu0 %v4452
    %7598 = vmatpush1.bf16.msra.mxu0 %v4451
    %7599 = vmatprep.subr.bf16.mxu0 %v4464
    %7600 = vmatpush1.bf16.msra.mxu0 %v4463
    %7601 = vmatprep.subr.bf16.mxu0 %v4476
    %7602 = vmatpush1.bf16.msra.mxu0 %v4475
    %7603 = vmatprep.subr.bf16.mxu0 %v4488
    %7604 = vmatpush1.bf16.msra.mxu0 %v4487
    %7605 = vmatprep.subr.bf16.mxu0 %v4500
    %7606 = vmatpush1.bf16.msra.mxu0 %v4499
    %7607 = vmatprep.subr.bf16.mxu0 %v4512
    %7608 = vmatpush1.bf16.msra.mxu0 %v4511
    %7609 = vmatprep.subr.bf16.mxu0 %v4524
    %7610 = vmatpush1.bf16.msra.mxu0 %v4523
    %7611 = vmatprep.subr.bf16.mxu0 %v4536
    %7612 = vmatpush1.bf16.msra.mxu0 %v4535
    %7613 = vmatprep.subr.bf16.mxu0 %v4548
    %7614 = vmatpush1.bf16.msra.mxu0 %v4547
    %7615 = vmatprep.subr.bf16.mxu0 %v4560
    %7616 = vmatpush1.bf16.msra.mxu0 %v4559
    %7617 = vmatprep.subr.bf16.mxu0 %v4572
    %7618 = vmatpush1.bf16.msra.mxu0 %v4571
    %7619 = vmatprep.subr.bf16.mxu0 %v4584
    %7620 = vmatpush1.bf16.msra.mxu0 %v4583
    %7621 = vmatprep.mubr.bf16.mxu0 %v1160
    %7622 = vmatmul.mubr.bf16.gmra.mrb[0].mxu0 %v1159
    %v7623 = vpop.f32.mrb[0].mxu0
    %v7624 = vadd.f32 %v7551, %v7623
    %v7625 = vpop.f32.mrb[0].mxu0
    %v7626 = vadd.f32 %v7553, %v7625
    %v7627 = vpop.f32.mrb[0].mxu0
    %v7628 = vadd.f32 %v7555, %v7627
    %v7629 = vpop.f32.mrb[0].mxu0
    %v7630 = vadd.f32 %v7557, %v7629
    %7631 = vmatprep.mubr.bf16.mxu0 %v1169
    %7632 = vmatmul.mubr.bf16.gmra.mrb[0].mxu0 %v1168
    %v7633 = vpop.f32.mrb[0].mxu0
    %v7634 = vadd.f32 %v7561, %v7633
    %v7635 = vpop.f32.mrb[0].mxu0
    %v7636 = vadd.f32 %v7563, %v7635
    %v7637 = vpop.f32.mrb[0].mxu0
    %v7638 = vadd.f32 %v7565, %v7637
    %v7639 = vpop.f32.mrb[0].mxu0
    %v7640 = vadd.f32 %v7567, %v7639
    %7641 = vmatprep.mubr.bf16.mxu0 %v1178
    %7642 = vmatmul.mubr.bf16.gmra.mrb[0].mxu0 %v1177
    %v7643 = vpop.f32.mrb[0].mxu0
    %v7644 = vadd.f32 %v7571, %v7643
    %v7645 = vpop.f32.mrb[0].mxu0
    %v7646 = vadd.f32 %v7573, %v7645
    %v7647 = vpop.f32.mrb[0].mxu0
    %v7648 = vadd.f32 %v7575, %v7647
    %v7649 = vpop.f32.mrb[0].mxu0
    %v7650 = vadd.f32 %v7577, %v7649
    %7651 = vmatprep.mubr.bf16.mxu0 %v1187
    %7652 = vmatmul.mubr.bf16.gmra.mrb[0].mxu0 %v1186
    %v7653 = vpop.f32.mrb[0].mxu0
    %v7654 = vadd.f32 %v7581, %v7653
    %v7655 = vpop.f32.mrb[0].mxu0
    %v7656 = vadd.f32 %v7583, %v7655
    %v7657 = vpop.f32.mrb[0].mxu0
    %v7658 = vadd.f32 %v7585, %v7657
    %v7659 = vpop.f32.mrb[0].mxu0
    %v7660 = vadd.f32 %v7587, %v7659
    %7661 = vdwg.mxu0
    %7662 = vmatprep.subr.bf16.mxu0 %v4596
    %7663 = vmatpush1.bf16.msra.mxu0 %v4595
    %7664 = vmatprep.subr.bf16.mxu0 %v4608
    %7665 = vmatpush1.bf16.msra.mxu0 %v4607
    %7666 = vmatprep.subr.bf16.mxu0 %v4620
    %7667 = vmatpush1.bf16.msra.mxu0 %v4619
    %7668 = vmatprep.subr.bf16.mxu0 %v4632
    %7669 = vmatpush1.bf16.msra.mxu0 %v4631
    %7670 = vmatprep.subr.bf16.mxu0 %v4644
    %7671 = vmatpush1.bf16.msra.mxu0 %v4643
    %7672 = vmatprep.subr.bf16.mxu0 %v4656
    %7673 = vmatpush1.bf16.msra.mxu0 %v4655
    %7674 = vmatprep.subr.bf16.mxu0 %v4668
    %7675 = vmatpush1.bf16.msra.mxu0 %v4667
    %7676 = vmatprep.subr.bf16.mxu0 %v4680
    %7677 = vmatpush1.bf16.msra.mxu0 %v4679
    %7678 = vmatprep.subr.bf16.mxu0 0
    %7679 = vmatpush1.bf16.msra.mxu0 0
    %7680 = vmatprep.subr.bf16.mxu0 0
    %7681 = vmatpush1.bf16.msra.mxu0 0
    %7682 = vmatprep.subr.bf16.mxu0 0
    %7683 = vmatpush1.bf16.msra.mxu0 0
    %7684 = vmatprep.subr.bf16.mxu0 0
    %7685 = vmatpush1.bf16.msra.mxu0 0
    %7686 = vmatprep.subr.bf16.mxu0 0
    %7687 = vmatpush1.bf16.msra.mxu0 0
    %7688 = vmatprep.subr.bf16.mxu0 0
    %7689 = vmatpush1.bf16.msra.mxu0 0
    %7690 = vmatprep.subr.bf16.mxu0 0
    %7691 = vmatpush1.bf16.msra.mxu0 0
    %7692 = vmatprep.subr.bf16.mxu0 0
    %7693 = vmatpush1.bf16.msra.mxu0 0
    %7694 = vmatprep.mubr.bf16.mxu0 0
    %7695 = vmatmul.mubr.bf16.gmra.mrb[0].mxu0 %v1161
    %v7696 = vpop.f32.mrb[0].mxu0
    %v7697 = vadd.f32 %v7624, %v7696
    %v7698 = vpop.f32.mrb[0].mxu0
    %v7699 = vadd.f32 %v7626, %v7698
    %v7700 = vpop.f32.mrb[0].mxu0
    %v7701 = vadd.f32 %v7628, %v7700
    %v7702 = vpop.f32.mrb[0].mxu0
    %v7703 = vadd.f32 %v7630, %v7702
    %7704 = vmatprep.mubr.bf16.mxu0 0
    %7705 = vmatmul.mubr.bf16.gmra.mrb[0].mxu0 %v1170
    %v7706 = vpop.f32.mrb[0].mxu0
    %v7707 = vadd.f32 %v7634, %v7706
    %v7708 = vpop.f32.mrb[0].mxu0
    %v7709 = vadd.f32 %v7636, %v7708
    %v7710 = vpop.f32.mrb[0].mxu0
    %v7711 = vadd.f32 %v7638, %v7710
    %v7712 = vpop.f32.mrb[0].mxu0
    %v7713 = vadd.f32 %v7640, %v7712
    %7714 = vmatprep.mubr.bf16.mxu0 0
    %7715 = vmatmul.mubr.bf16.gmra.mrb[0].mxu0 %v1179
    %v7716 = vpop.f32.mrb[0].mxu0
    %v7717 = vadd.f32 %v7644, %v7716
    %v7718 = vpop.f32.mrb[0].mxu0
    %v7719 = vadd.f32 %v7646, %v7718
    %v7720 = vpop.f32.mrb[0].mxu0
    %v7721 = vadd.f32 %v7648, %v7720
    %v7722 = vpop.f32.mrb[0].mxu0
    %v7723 = vadd.f32 %v7650, %v7722
    %7724 = vmatprep.mubr.bf16.mxu0 0
    %7725 = vmatmul.mubr.bf16.gmra.mrb[0].mxu0 %v1188
    %v7726 = vpop.f32.mrb[0].mxu0
    %v7727 = vadd.f32 %v7654, %v7726
    %v7728 = vpop.f32.mrb[0].mxu0
    %v7729 = vadd.f32 %v7656, %v7728
    %v7730 = vpop.f32.mrb[0].mxu0
    %v7731 = vadd.f32 %v7658, %v7730
    %v7732 = vpop.f32.mrb[0].mxu0
    %v7733 = vadd.f32 %v7660, %v7732
    %7734 = vdwg.mxu0
    %vm7735 = vcmp.gt.f32.partialorder %v5872, 0.0
    %vm7736 = vcmp.gt.f32.partialorder %v5874, 0.0
    %vm7737 = vcmp.gt.f32.partialorder %v6237, 0.0
    %vm7738 = vcmp.gt.f32.partialorder %v6239, 0.0
    %vm7739 = vcmp.gt.f32.partialorder %v6602, 0.0
    %vm7740 = vcmp.gt.f32.partialorder %v6604, 0.0
    %vm7741 = vcmp.gt.f32.partialorder %v6967, 0.0
    %vm7742 = vcmp.gt.f32.partialorder %v6969, 0.0
    %vm7743 = vcmp.gt.f32.partialorder %v7332, 0.0
    %vm7744 = vcmp.gt.f32.partialorder %v7334, 0.0
    %vm7745 = vcmp.gt.f32.partialorder %v7697, 0.0
    %vm7746 = vcmp.gt.f32.partialorder %v7699, 0.0
    %vm7747 = vcmp.gt.f32.partialorder %v5876, 0.0
    %vm7748 = vcmp.gt.f32.partialorder %v5878, 0.0
    %vm7749 = vcmp.gt.f32.partialorder %v6241, 0.0
    %vm7750 = vcmp.gt.f32.partialorder %v6243, 0.0
    %vm7751 = vcmp.gt.f32.partialorder %v6606, 0.0
    %vm7752 = vcmp.gt.f32.partialorder %v6608, 0.0
    %vm7753 = vcmp.gt.f32.partialorder %v6971, 0.0
    %vm7754 = vcmp.gt.f32.partialorder %v6973, 0.0
    %vm7755 = vcmp.gt.f32.partialorder %v7336, 0.0
    %vm7756 = vcmp.gt.f32.partialorder %v7338, 0.0
    %vm7757 = vcmp.gt.f32.partialorder %v7701, 0.0
    %vm7758 = vcmp.gt.f32.partialorder %v7703, 0.0
    %vm7759 = vcmp.gt.f32.partialorder %v5882, 0.0
    %vm7760 = vcmp.gt.f32.partialorder %v5884, 0.0
    %vm7761 = vcmp.gt.f32.partialorder %v6247, 0.0
    %vm7762 = vcmp.gt.f32.partialorder %v6249, 0.0
    %vm7763 = vcmp.gt.f32.partialorder %v6612, 0.0
    %vm7764 = vcmp.gt.f32.partialorder %v6614, 0.0
    %vm7765 = vcmp.gt.f32.partialorder %v6977, 0.0
    %vm7766 = vcmp.gt.f32.partialorder %v6979, 0.0
    %vm7767 = vcmp.gt.f32.partialorder %v7342, 0.0
    %vm7768 = vcmp.gt.f32.partialorder %v7344, 0.0
    %vm7769 = vcmp.gt.f32.partialorder %v7707, 0.0
    %vm7770 = vcmp.gt.f32.partialorder %v7709, 0.0
    %vm7771 = vcmp.gt.f32.partialorder %v5886, 0.0
    %vm7772 = vcmp.gt.f32.partialorder %v5888, 0.0
    %vm7773 = vcmp.gt.f32.partialorder %v6251, 0.0
    %vm7774 = vcmp.gt.f32.partialorder %v6253, 0.0
    %vm7775 = vcmp.gt.f32.partialorder %v6616, 0.0
    %vm7776 = vcmp.gt.f32.partialorder %v6618, 0.0
    %vm7777 = vcmp.gt.f32.partialorder %v6981, 0.0
    %vm7778 = vcmp.gt.f32.partialorder %v6983, 0.0
    %vm7779 = vcmp.gt.f32.partialorder %v7346, 0.0
    %vm7780 = vcmp.gt.f32.partialorder %v7348, 0.0
    %vm7781 = vcmp.gt.f32.partialorder %v7711, 0.0
    %vm7782 = vcmp.gt.f32.partialorder %v7713, 0.0
    %vm7783 = vcmp.gt.f32.partialorder %v5892, 0.0
    %vm7784 = vcmp.gt.f32.partialorder %v5894, 0.0
    %vm7785 = vcmp.gt.f32.partialorder %v6257, 0.0
    %vm7786 = vcmp.gt.f32.partialorder %v6259, 0.0
    %vm7787 = vcmp.gt.f32.partialorder %v6622, 0.0
    %vm7788 = vcmp.gt.f32.partialorder %v6624, 0.0
    %vm7789 = vcmp.gt.f32.partialorder %v6987, 0.0
    %vm7790 = vcmp.gt.f32.partialorder %v6989, 0.0
    %vm7791 = vcmp.gt.f32.partialorder %v7352, 0.0
    %vm7792 = vcmp.gt.f32.partialorder %v7354, 0.0
    %vm7793 = vcmp.gt.f32.partialorder %v7717, 0.0
    %vm7794 = vcmp.gt.f32.partialorder %v7719, 0.0
    %vm7795 = vcmp.gt.f32.partialorder %v5896, 0.0
    %vm7796 = vcmp.gt.f32.partialorder %v5898, 0.0
    %vm7797 = vcmp.gt.f32.partialorder %v6261, 0.0
    %vm7798 = vcmp.gt.f32.partialorder %v6263, 0.0
    %vm7799 = vcmp.gt.f32.partialorder %v6626, 0.0
    %vm7800 = vcmp.gt.f32.partialorder %v6628, 0.0
    %vm7801 = vcmp.gt.f32.partialorder %v6991, 0.0
    %vm7802 = vcmp.gt.f32.partialorder %v6993, 0.0
    %vm7803 = vcmp.gt.f32.partialorder %v7356, 0.0
    %vm7804 = vcmp.gt.f32.partialorder %v7358, 0.0
    %vm7805 = vcmp.gt.f32.partialorder %v7721, 0.0
    %vm7806 = vcmp.gt.f32.partialorder %v7723, 0.0
    %vm7807 = vcmp.gt.f32.partialorder %v5902, 0.0
    %vm7808 = vcmp.gt.f32.partialorder %v5904, 0.0
    %vm7809 = vcmp.gt.f32.partialorder %v6267, 0.0
    %vm7810 = vcmp.gt.f32.partialorder %v6269, 0.0
    %vm7811 = vcmp.gt.f32.partialorder %v6632, 0.0
    %vm7812 = vcmp.gt.f32.partialorder %v6634, 0.0
    %vm7813 = vcmp.gt.f32.partialorder %v6997, 0.0
    %vm7814 = vcmp.gt.f32.partialorder %v6999, 0.0
    %vm7815 = vcmp.gt.f32.partialorder %v7362, 0.0
    %vm7816 = vcmp.gt.f32.partialorder %v7364, 0.0
    %vm7817 = vcmp.gt.f32.partialorder %v7727, 0.0
    %vm7818 = vcmp.gt.f32.partialorder %v7729, 0.0
    %vm7819 = vcmp.gt.f32.partialorder %v5906, 0.0
    %vm7820 = vcmp.gt.f32.partialorder %v5908, 0.0
    %vm7821 = vcmp.gt.f32.partialorder %v6271, 0.0
    %vm7822 = vcmp.gt.f32.partialorder %v6273, 0.0
    %vm7823 = vcmp.gt.f32.partialorder %v6636, 0.0
    %vm7824 = vcmp.gt.f32.partialorder %v6638, 0.0
    %vm7825 = vcmp.gt.f32.partialorder %v7001, 0.0
    %vm7826 = vcmp.gt.f32.partialorder %v7003, 0.0
    %vm7827 = vcmp.gt.f32.partialorder %v7366, 0.0
    %vm7828 = vcmp.gt.f32.partialorder %v7368, 0.0
    %vm7829 = vcmp.gt.f32.partialorder %v7731, 0.0
    %vm7830 = vcmp.gt.f32.partialorder %v7733, 0.0
    %v7831 = vmul.f32 %v5872, 0.01
    %v7832 = vmul.f32 %v5874, 0.01
    %v7833 = vmul.f32 %v6237, 0.01
    %v7834 = vmul.f32 %v6239, 0.01
    %v7835 = vmul.f32 %v6602, 0.01
    %v7836 = vmul.f32 %v6604, 0.01
    %v7837 = vmul.f32 %v6967, 0.01
    %v7838 = vmul.f32 %v6969, 0.01
    %v7839 = vmul.f32 %v7332, 0.01
    %v7840 = vmul.f32 %v7334, 0.01
    %v7841 = vmul.f32 %v7697, 0.01
    %v7842 = vmul.f32 %v7699, 0.01
    %v7843 = vmul.f32 %v5876, 0.01
    %v7844 = vmul.f32 %v5878, 0.01
    %v7845 = vmul.f32 %v6241, 0.01
    %v7846 = vmul.f32 %v6243, 0.01
    %v7847 = vmul.f32 %v6606, 0.01
    %v7848 = vmul.f32 %v6608, 0.01
    %v7849 = vmul.f32 %v6971, 0.01
    %v7850 = vmul.f32 %v6973, 0.01
    %v7851 = vmul.f32 %v7336, 0.01
    %v7852 = vmul.f32 %v7338, 0.01
    %v7853 = vmul.f32 %v7701, 0.01
    %v7854 = vmul.f32 %v7703, 0.01
    %v7855 = vmul.f32 %v5882, 0.01
    %v7856 = vmul.f32 %v5884, 0.01
    %v7857 = vmul.f32 %v6247, 0.01
    %v7858 = vmul.f32 %v6249, 0.01
    %v7859 = vmul.f32 %v6612, 0.01
    %v7860 = vmul.f32 %v6614, 0.01
    %v7861 = vmul.f32 %v6977, 0.01
    %v7862 = vmul.f32 %v6979, 0.01
    %v7863 = vmul.f32 %v7342, 0.01
    %v7864 = vmul.f32 %v7344, 0.01
    %v7865 = vmul.f32 %v7707, 0.01
    %v7866 = vmul.f32 %v7709, 0.01
    %v7867 = vmul.f32 %v5886, 0.01
    %v7868 = vmul.f32 %v5888, 0.01
    %v7869 = vmul.f32 %v6251, 0.01
    %v7870 = vmul.f32 %v6253, 0.01
    %v7871 = vmul.f32 %v6616, 0.01
    %v7872 = vmul.f32 %v6618, 0.01
    %v7873 = vmul.f32 %v6981, 0.01
    %v7874 = vmul.f32 %v6983, 0.01
    %v7875 = vmul.f32 %v7346, 0.01
    %v7876 = vmul.f32 %v7348, 0.01
    %v7877 = vmul.f32 %v7711, 0.01
    %v7878 = vmul.f32 %v7713, 0.01
    %v7879 = vmul.f32 %v5892, 0.01
    %v7880 = vmul.f32 %v5894, 0.01
    %v7881 = vmul.f32 %v6257, 0.01
    %v7882 = vmul.f32 %v6259, 0.01
    %v7883 = vmul.f32 %v6622, 0.01
    %v7884 = vmul.f32 %v6624, 0.01
    %v7885 = vmul.f32 %v6987, 0.01
    %v7886 = vmul.f32 %v6989, 0.01
    %v7887 = vmul.f32 %v7352, 0.01
    %v7888 = vmul.f32 %v7354, 0.01
    %v7889 = vmul.f32 %v7717, 0.01
    %v7890 = vmul.f32 %v7719, 0.01
    %v7891 = vmul.f32 %v5896, 0.01
    %v7892 = vmul.f32 %v5898, 0.01
    %v7893 = vmul.f32 %v6261, 0.01
    %v7894 = vmul.f32 %v6263, 0.01
    %v7895 = vmul.f32 %v6626, 0.01
    %v7896 = vmul.f32 %v6628, 0.01
    %v7897 = vmul.f32 %v6991, 0.01
    %v7898 = vmul.f32 %v6993, 0.01
    %v7899 = vmul.f32 %v7356, 0.01
    %v7900 = vmul.f32 %v7358, 0.01
    %v7901 = vmul.f32 %v7721, 0.01
    %v7902 = vmul.f32 %v7723, 0.01
    %v7903 = vmul.f32 %v5902, 0.01
    %v7904 = vmul.f32 %v5904, 0.01
    %v7905 = vmul.f32 %v6267, 0.01
    %v7906 = vmul.f32 %v6269, 0.01
    %v7907 = vmul.f32 %v6632, 0.01
    %v7908 = vmul.f32 %v6634, 0.01
    %v7909 = vmul.f32 %v6997, 0.01
    %v7910 = vmul.f32 %v6999, 0.01
    %v7911 = vmul.f32 %v7362, 0.01
    %v7912 = vmul.f32 %v7364, 0.01
    %v7913 = vmul.f32 %v7727, 0.01
    %v7914 = vmul.f32 %v7729, 0.01
    %v7915 = vmul.f32 %v5906, 0.01
    %v7916 = vmul.f32 %v5908, 0.01
    %v7917 = vmul.f32 %v6271, 0.01
    %v7918 = vmul.f32 %v6273, 0.01
    %v7919 = vmul.f32 %v6636, 0.01
    %v7920 = vmul.f32 %v6638, 0.01
    %v7921 = vmul.f32 %v7001, 0.01
    %v7922 = vmul.f32 %v7003, 0.01
    %v7923 = vmul.f32 %v7366, 0.01
    %v7924 = vmul.f32 %v7368, 0.01
    %v7925 = vmul.f32 %v7731, 0.01
    %v7926 = vmul.f32 %v7733, 0.01
    %v7927 = vsel %vm7735, %v5872, %v7831
    %v7928 = vsel %vm7736, %v5874, %v7832
    %v7929 = vsel %vm7737, %v6237, %v7833
    %v7930 = vsel %vm7738, %v6239, %v7834
    %v7931 = vsel %vm7739, %v6602, %v7835
    %v7932 = vsel %vm7740, %v6604, %v7836
    %v7933 = vsel %vm7741, %v6967, %v7837
    %v7934 = vsel %vm7742, %v6969, %v7838
    %v7935 = vsel %vm7743, %v7332, %v7839
    %v7936 = vsel %vm7744, %v7334, %v7840
    %v7937 = vsel %vm7745, %v7697, %v7841
    %v7938 = vsel %vm7746, %v7699, %v7842
    %v7939 = vsel %vm7747, %v5876, %v7843
    %v7940 = vsel %vm7748, %v5878, %v7844
    %v7941 = vsel %vm7749, %v6241, %v7845
    %v7942 = vsel %vm7750, %v6243, %v7846
    %v7943 = vsel %vm7751, %v6606, %v7847
    %v7944 = vsel %vm7752, %v6608, %v7848
    %v7945 = vsel %vm7753, %v6971, %v7849
    %v7946 = vsel %vm7754, %v6973, %v7850
    %v7947 = vsel %vm7755, %v7336, %v7851
    %v7948 = vsel %vm7756, %v7338, %v7852
    %v7949 = vsel %vm7757, %v7701, %v7853
    %v7950 = vsel %vm7758, %v7703, %v7854
    %v7951 = vsel %vm7759, %v5882, %v7855
    %v7952 = vsel %vm7760, %v5884, %v7856
    %v7953 = vsel %vm7761, %v6247, %v7857
    %v7954 = vsel %vm7762, %v6249, %v7858
    %v7955 = vsel %vm7763, %v6612, %v7859
    %v7956 = vsel %vm7764, %v6614, %v7860
    %v7957 = vsel %vm7765, %v6977, %v7861
    %v7958 = vsel %vm7766, %v6979, %v7862
    %v7959 = vsel %vm7767, %v7342, %v7863
    %v7960 = vsel %vm7768, %v7344, %v7864
    %v7961 = vsel %vm7769, %v7707, %v7865
    %v7962 = vsel %vm7770, %v7709, %v7866
    %v7963 = vsel %vm7771, %v5886, %v7867
    %v7964 = vsel %vm7772, %v5888, %v7868
    %v7965 = vsel %vm7773, %v6251, %v7869
    %v7966 = vsel %vm7774, %v6253, %v7870
    %v7967 = vsel %vm7775, %v6616, %v7871
    %v7968 = vsel %vm7776, %v6618, %v7872
    %v7969 = vsel %vm7777, %v6981, %v7873
    %v7970 = vsel %vm7778, %v6983, %v7874
    %v7971 = vsel %vm7779, %v7346, %v7875
    %v7972 = vsel %vm7780, %v7348, %v7876
    %v7973 = vsel %vm7781, %v7711, %v7877
    %v7974 = vsel %vm7782, %v7713, %v7878
    %v7975 = vsel %vm7783, %v5892, %v7879
    %v7976 = vsel %vm7784, %v5894, %v7880
    %v7977 = vsel %vm7785, %v6257, %v7881
    %v7978 = vsel %vm7786, %v6259, %v7882
    %v7979 = vsel %vm7787, %v6622, %v7883
    %v7980 = vsel %vm7788, %v6624, %v7884
    %v7981 = vsel %vm7789, %v6987, %v7885
    %v7982 = vsel %vm7790, %v6989, %v7886
    %v7983 = vsel %vm7791, %v7352, %v7887
    %v7984 = vsel %vm7792, %v7354, %v7888
    %v7985 = vsel %vm7793, %v7717, %v7889
    %v7986 = vsel %vm7794, %v7719, %v7890
    %v7987 = vsel %vm7795, %v5896, %v7891
    %v7988 = vsel %vm7796, %v5898, %v7892
    %v7989 = vsel %vm7797, %v6261, %v7893
    %v7990 = vsel %vm7798, %v6263, %v7894
    %v7991 = vsel %vm7799, %v6626, %v7895
    %v7992 = vsel %vm7800, %v6628, %v7896
    %v7993 = vsel %vm7801, %v6991, %v7897
    %v7994 = vsel %vm7802, %v6993, %v7898
    %v7995 = vsel %vm7803, %v7356, %v7899
    %v7996 = vsel %vm7804, %v7358, %v7900
    %v7997 = vsel %vm7805, %v7721, %v7901
    %v7998 = vsel %vm7806, %v7723, %v7902
    %v7999 = vsel %vm7807, %v5902, %v7903
    %v8000 = vsel %vm7808, %v5904, %v7904
    %v8001 = vsel %vm7809, %v6267, %v7905
    %v8002 = vsel %vm7810, %v6269, %v7906
    %v8003 = vsel %vm7811, %v6632, %v7907
    %v8004 = vsel %vm7812, %v6634, %v7908
    %v8005 = vsel %vm7813, %v6997, %v7909
    %v8006 = vsel %vm7814, %v6999, %v7910
    %v8007 = vsel %vm7815, %v7362, %v7911
    %v8008 = vsel %vm7816, %v7364, %v7912
    %v8009 = vsel %vm7817, %v7727, %v7913
    %v8010 = vsel %vm7818, %v7729, %v7914
    %v8011 = vsel %vm7819, %v5906, %v7915
    %v8012 = vsel %vm7820, %v5908, %v7916
    %v8013 = vsel %vm7821, %v6271, %v7917
    %v8014 = vsel %vm7822, %v6273, %v7918
    %v8015 = vsel %vm7823, %v6636, %v7919
    %v8016 = vsel %vm7824, %v6638, %v7920
    %v8017 = vsel %vm7825, %v7001, %v7921
    %v8018 = vsel %vm7826, %v7003, %v7922
    %v8019 = vsel %vm7827, %v7366, %v7923
    %v8020 = vsel %vm7828, %v7368, %v7924
    %v8021 = vsel %vm7829, %v7731, %v7925
    %v8022 = vsel %vm7830, %v7733, %v7926
    %v8023 = vpack.c.bf16 %v7939, %v7927
    %v8024 = vpack.c.bf16 %v7940, %v7928
    %v8025 = vpack.c.bf16 %v7941, %v7929
    %v8026 = vpack.c.bf16 %v7942, %v7930
    %v8027 = vpack.c.bf16 %v7943, %v7931
    %v8028 = vpack.c.bf16 %v7944, %v7932
    %v8029 = vpack.c.bf16 %v7945, %v7933
    %v8030 = vpack.c.bf16 %v7946, %v7934
    %v8031 = vpack.c.bf16 %v7947, %v7935
    %v8032 = vpack.c.bf16 %v7948, %v7936
    %v8033 = vpack.c.bf16 %v7949, %v7937
    %v8034 = vpack.c.bf16 %v7950, %v7938
    %v8035 = vpack.c.bf16 %v7963, %v7951
    %v8036 = vpack.c.bf16 %v7964, %v7952
    %v8037 = vpack.c.bf16 %v7965, %v7953
    %v8038 = vpack.c.bf16 %v7966, %v7954
    %v8039 = vpack.c.bf16 %v7967, %v7955
    %v8040 = vpack.c.bf16 %v7968, %v7956
    %v8041 = vpack.c.bf16 %v7969, %v7957
    %v8042 = vpack.c.bf16 %v7970, %v7958
    %v8043 = vpack.c.bf16 %v7971, %v7959
    %v8044 = vpack.c.bf16 %v7972, %v7960
    %v8045 = vpack.c.bf16 %v7973, %v7961
    %v8046 = vpack.c.bf16 %v7974, %v7962
    %v8047 = vpack.c.bf16 %v7987, %v7975
    %v8048 = vpack.c.bf16 %v7988, %v7976
    %v8049 = vpack.c.bf16 %v7989, %v7977
    %v8050 = vpack.c.bf16 %v7990, %v7978
    %v8051 = vpack.c.bf16 %v7991, %v7979
    %v8052 = vpack.c.bf16 %v7992, %v7980
    %v8053 = vpack.c.bf16 %v7993, %v7981
    %v8054 = vpack.c.bf16 %v7994, %v7982
    %v8055 = vpack.c.bf16 %v7995, %v7983
    %v8056 = vpack.c.bf16 %v7996, %v7984
    %v8057 = vpack.c.bf16 %v7997, %v7985
    %v8058 = vpack.c.bf16 %v7998, %v7986
    %v8059 = vpack.c.bf16 %v8011, %v7999
    %v8060 = vpack.c.bf16 %v8012, %v8000
    %v8061 = vpack.c.bf16 %v8013, %v8001
    %v8062 = vpack.c.bf16 %v8014, %v8002
    %v8063 = vpack.c.bf16 %v8015, %v8003
    %v8064 = vpack.c.bf16 %v8016, %v8004
    %v8065 = vpack.c.bf16 %v8017, %v8005
    %v8066 = vpack.c.bf16 %v8018, %v8006
    %v8067 = vpack.c.bf16 %v8019, %v8007
    %v8068 = vpack.c.bf16 %v8020, %v8008
    %v8069 = vpack.c.bf16 %v8021, %v8009
    %v8070 = vpack.c.bf16 %v8022, %v8010
    %v8071 = vld [vmem:[#allocation7] sm:$0xff]
    %v8072 = vld [vmem:[#allocation7 + $0x8] sm:$0xff]
    %v8073 = vld [vmem:[#allocation7 + $0x10] sm:$0xff]
    %v8074 = vld [vmem:[#allocation7 + $0x18] sm:$0xff]
    %v8075 = vld [vmem:[#allocation7 + $0x20] sm:$0xff]
    %v8076 = vld [vmem:[#allocation7 + $0x28] sm:$0xff]
    %v8077 = vld [vmem:[#allocation7 + $0x30] sm:$0xff]
    %v8078 = vld [vmem:[#allocation7 + $0x38] sm:$0xff]
    %v8079 = vld [vmem:[#allocation7 + $0x40] sm:$0xff]
    %v8080 = vld [vmem:[#allocation7 + $0x48] sm:$0xff]
    %v8081 = vld [vmem:[#allocation7 + $0x50] sm:$0xff]
    %v8082 = vld [vmem:[#allocation7 + $0x58] sm:$0xff]
    %v8083 = vld [vmem:[#allocation7 + $0x60] sm:$0xff]
    %v8084 = vld [vmem:[#allocation7 + $0x68] sm:$0xff]
    %v8085 = vld [vmem:[#allocation7 + $0x70] sm:$0xff]
    %v8086 = vld [vmem:[#allocation7 + $0x78] sm:$0xff]
    %v8087 = vld [vmem:[#allocation7 + $0x80] sm:$0xff]
    %v8088 = vld [vmem:[#allocation7 + $0x88] sm:$0xff]
    %v8089 = vld [vmem:[#allocation7 + $0x90] sm:$0xff]
    %v8090 = vld [vmem:[#allocation7 + $0x98] sm:$0xff]
    %v8091 = vld [vmem:[#allocation7 + $0xa0] sm:$0xff]
    %v8092 = vld [vmem:[#allocation7 + $0xa8] sm:$0xff]
    %v8093 = vld [vmem:[#allocation7 + $0xb0] sm:$0xff]
    %v8094 = vld [vmem:[#allocation7 + $0xb8] sm:$0xff]
    %v8095 = vld [vmem:[#allocation7 + $0xc0] sm:$0xff]
    %v8096 = vld [vmem:[#allocation7 + $0xc8] sm:$0xff]
    %v8097 = vld [vmem:[#allocation7 + $0xd0] sm:$0xff]
    %v8098 = vld [vmem:[#allocation7 + $0xd8] sm:$0xff]
    %v8099 = vld [vmem:[#allocation7 + $0xe0] sm:$0xff]
    %v8100 = vld [vmem:[#allocation7 + $0xe8] sm:$0xff]
    %v8101 = vld [vmem:[#allocation7 + $0xf0] sm:$0xff]
    %v8102 = vld [vmem:[#allocation7 + $0xf8] sm:$0xff]
    %v8103 = vld [vmem:[#allocation7 + $0x100] sm:$0xff]
    %v8104 = vld [vmem:[#allocation7 + $0x108] sm:$0xff]
    %v8105 = vld [vmem:[#allocation7 + $0x110] sm:$0xff]
    %v8106 = vld [vmem:[#allocation7 + $0x118] sm:$0xff]
    %v8107 = vld [vmem:[#allocation7 + $0x120] sm:$0xff]
    %v8108 = vld [vmem:[#allocation7 + $0x128] sm:$0xff]
    %v8109 = vld [vmem:[#allocation7 + $0x130] sm:$0xff]
    %v8110 = vld [vmem:[#allocation7 + $0x138] sm:$0xff]
    %v8111 = vld [vmem:[#allocation7 + $0x140] sm:$0xff]
    %v8112 = vld [vmem:[#allocation7 + $0x148] sm:$0xff]
    %v8113 = vld [vmem:[#allocation7 + $0x150] sm:$0xff]
    %v8114 = vld [vmem:[#allocation7 + $0x158] sm:$0xff]
    %v8115 = vld [vmem:[#allocation7 + $0x160] sm:$0xff]
    %v8116 = vld [vmem:[#allocation7 + $0x168] sm:$0xff]
    %v8117 = vld [vmem:[#allocation7 + $0x170] sm:$0xff]
    %v8118 = vld [vmem:[#allocation7 + $0x178] sm:$0xff]
    %v8119 = vld [vmem:[#allocation7 + $0x180] sm:$0xff]
    %v8120 = vld [vmem:[#allocation7 + $0x188] sm:$0xff]
    %v8121 = vld [vmem:[#allocation7 + $0x190] sm:$0xff]
    %v8122 = vld [vmem:[#allocation7 + $0x198] sm:$0xff]
    %v8123 = vld [vmem:[#allocation7 + $0x1a0] sm:$0xff]
    %v8124 = vld [vmem:[#allocation7 + $0x1a8] sm:$0xff]
    %v8125 = vld [vmem:[#allocation7 + $0x1b0] sm:$0xff]
    %v8126 = vld [vmem:[#allocation7 + $0x1b8] sm:$0xff]
    %v8127 = vld [vmem:[#allocation7 + $0x1c0] sm:$0xff]
    %v8128 = vld [vmem:[#allocation7 + $0x1c8] sm:$0xff]
    %v8129 = vld [vmem:[#allocation7 + $0x1d0] sm:$0xff]
    %v8130 = vld [vmem:[#allocation7 + $0x1d8] sm:$0xff]
    %v8131 = vld [vmem:[#allocation7 + $0x1e0] sm:$0xff]
    %v8132 = vld [vmem:[#allocation7 + $0x1e8] sm:$0xff]
    %v8133 = vld [vmem:[#allocation7 + $0x1f0] sm:$0xff]
    %v8134 = vld [vmem:[#allocation7 + $0x1f8] sm:$0xff]
    %v8135 = vld [vmem:[#allocation7 + $0x200] sm:$0xff]
    %v8136 = vld [vmem:[#allocation7 + $0x208] sm:$0xff]
    %v8137 = vld [vmem:[#allocation7 + $0x210] sm:$0xff]
    %v8138 = vld [vmem:[#allocation7 + $0x218] sm:$0xff]
    %v8139 = vld [vmem:[#allocation7 + $0x220] sm:$0xff]
    %v8140 = vld [vmem:[#allocation7 + $0x228] sm:$0xff]
    %v8141 = vld [vmem:[#allocation7 + $0x230] sm:$0xff]
    %v8142 = vld [vmem:[#allocation7 + $0x238] sm:$0xff]
    %v8143 = vld [vmem:[#allocation7 + $0x240] sm:$0xff]
    %v8144 = vld [vmem:[#allocation7 + $0x248] sm:$0xff]
    %v8145 = vld [vmem:[#allocation7 + $0x250] sm:$0xff]
    %v8146 = vld [vmem:[#allocation7 + $0x258] sm:$0xff]
    %v8147 = vld [vmem:[#allocation7 + $0x260] sm:$0xff]
    %v8148 = vld [vmem:[#allocation7 + $0x268] sm:$0xff]
    %v8149 = vld [vmem:[#allocation7 + $0x270] sm:$0xff]
    %v8150 = vld [vmem:[#allocation7 + $0x278] sm:$0xff]
    %v8151 = vld [vmem:[#allocation7 + $0x280] sm:$0xff]
    %v8152 = vld [vmem:[#allocation7 + $0x288] sm:$0xff]
    %v8153 = vld [vmem:[#allocation7 + $0x290] sm:$0xff]
    %v8154 = vld [vmem:[#allocation7 + $0x298] sm:$0xff]
    %v8155 = vld [vmem:[#allocation7 + $0x2a0] sm:$0xff]
    %v8156 = vld [vmem:[#allocation7 + $0x2a8] sm:$0xff]
    %v8157 = vld [vmem:[#allocation7 + $0x2b0] sm:$0xff]
    %v8158 = vld [vmem:[#allocation7 + $0x2b8] sm:$0xff]
    %v8159 = vld [vmem:[#allocation7 + $0x2c0] sm:$0xff]
    %v8160 = vld [vmem:[#allocation7 + $0x2c8] sm:$0xff]
    %v8161 = vld [vmem:[#allocation7 + $0x2d0] sm:$0xff]
    %v8162 = vld [vmem:[#allocation7 + $0x2d8] sm:$0xff]
    %v8163 = vld [vmem:[#allocation7 + $0x2e0] sm:$0xff]
    %v8164 = vld [vmem:[#allocation7 + $0x2e8] sm:$0xff]
    %v8165 = vld [vmem:[#allocation7 + $0x2f0] sm:$0xff]
    %v8166 = vld [vmem:[#allocation7 + $0x2f8] sm:$0xff]
    %v8167 = vld [vmem:[#allocation7 + $0x300] sm:$0xff]
    %v8168 = vld [vmem:[#allocation7 + $0x308] sm:$0xff]
    %v8169 = vld [vmem:[#allocation7 + $0x310] sm:$0xff]
    %v8170 = vld [vmem:[#allocation7 + $0x318] sm:$0xff]
    %v8171 = vld [vmem:[#allocation7 + $0x320] sm:$0xff]
    %v8172 = vld [vmem:[#allocation7 + $0x328] sm:$0xff]
    %v8173 = vld [vmem:[#allocation7 + $0x330] sm:$0xff]
    %v8174 = vld [vmem:[#allocation7 + $0x338] sm:$0xff]
    %v8175 = vld [vmem:[#allocation7 + $0x340] sm:$0xff]
    %v8176 = vld [vmem:[#allocation7 + $0x348] sm:$0xff]
    %v8177 = vld [vmem:[#allocation7 + $0x350] sm:$0xff]
    %v8178 = vld [vmem:[#allocation7 + $0x358] sm:$0xff]
    %v8179 = vld [vmem:[#allocation7 + $0x360] sm:$0xff]
    %v8180 = vld [vmem:[#allocation7 + $0x368] sm:$0xff]
    %v8181 = vld [vmem:[#allocation7 + $0x370] sm:$0xff]
    %v8182 = vld [vmem:[#allocation7 + $0x378] sm:$0xff]
    %v8183 = vld [vmem:[#allocation7 + $0x380] sm:$0xff]
    %v8184 = vld [vmem:[#allocation7 + $0x388] sm:$0xff]
    %v8185 = vld [vmem:[#allocation7 + $0x390] sm:$0xff]
    %v8186 = vld [vmem:[#allocation7 + $0x398] sm:$0xff]
    %v8187 = vld [vmem:[#allocation7 + $0x3a0] sm:$0xff]
    %v8188 = vld [vmem:[#allocation7 + $0x3a8] sm:$0xff]
    %v8189 = vld [vmem:[#allocation7 + $0x3b0] sm:$0xff]
    %v8190 = vld [vmem:[#allocation7 + $0x3b8] sm:$0xff]
    %v8191 = vld [vmem:[#allocation7 + $0x3c0] sm:$0xff]
    %v8192 = vld [vmem:[#allocation7 + $0x3c8] sm:$0xff]
    %v8193 = vld [vmem:[#allocation7 + $0x3d0] sm:$0xff]
    %v8194 = vld [vmem:[#allocation7 + $0x3d8] sm:$0xff]
    %v8195 = vld [vmem:[#allocation7 + $0x3e0] sm:$0xff]
    %v8196 = vld [vmem:[#allocation7 + $0x3e8] sm:$0xff]
    %v8197 = vld [vmem:[#allocation7 + $0x3f0] sm:$0xff]
    %v8198 = vld [vmem:[#allocation7 + $0x3f8] sm:$0xff]
    %v8199 = vld [vmem:[#allocation7 + $0x400] sm:$0xff]
    %v8200 = vld [vmem:[#allocation7 + $0x408] sm:$0xff]
    %v8201 = vld [vmem:[#allocation7 + $0x410] sm:$0xff]
    %v8202 = vld [vmem:[#allocation7 + $0x418] sm:$0xff]
    %v8203 = vld [vmem:[#allocation7 + $0x420] sm:$0xff]
    %v8204 = vld [vmem:[#allocation7 + $0x428] sm:$0xff]
    %v8205 = vld [vmem:[#allocation7 + $0x430] sm:$0xff]
    %v8206 = vld [vmem:[#allocation7 + $0x438] sm:$0xff]
    %v8207 = vld [vmem:[#allocation7 + $0x440] sm:$0xff]
    %v8208 = vld [vmem:[#allocation7 + $0x448] sm:$0xff]
    %v8209 = vld [vmem:[#allocation7 + $0x450] sm:$0xff]
    %v8210 = vld [vmem:[#allocation7 + $0x458] sm:$0xff]
    %v8211 = vld [vmem:[#allocation7 + $0x460] sm:$0xff]
    %v8212 = vld [vmem:[#allocation7 + $0x468] sm:$0xff]
    %v8213 = vld [vmem:[#allocation7 + $0x470] sm:$0xff]
    %v8214 = vld [vmem:[#allocation7 + $0x478] sm:$0xff]
    %v8215 = vld [vmem:[#allocation7 + $0x480] sm:$0xff]
    %v8216 = vld [vmem:[#allocation7 + $0x488] sm:$0xff]
    %v8217 = vld [vmem:[#allocation7 + $0x490] sm:$0xff]
    %v8218 = vld [vmem:[#allocation7 + $0x498] sm:$0xff]
    %v8219 = vld [vmem:[#allocation7 + $0x4a0] sm:$0xff]
    %v8220 = vld [vmem:[#allocation7 + $0x4a8] sm:$0xff]
    %v8221 = vld [vmem:[#allocation7 + $0x4b0] sm:$0xff]
    %v8222 = vld [vmem:[#allocation7 + $0x4b8] sm:$0xff]
    %v8223 = vld [vmem:[#allocation7 + $0x4c0] sm:$0xff]
    %v8224 = vld [vmem:[#allocation7 + $0x4c8] sm:$0xff]
    %v8225 = vld [vmem:[#allocation7 + $0x4d0] sm:$0xff]
    %v8226 = vld [vmem:[#allocation7 + $0x4d8] sm:$0xff]
    %v8227 = vld [vmem:[#allocation7 + $0x4e0] sm:$0xff]
    %v8228 = vld [vmem:[#allocation7 + $0x4e8] sm:$0xff]
    %v8229 = vld [vmem:[#allocation7 + $0x4f0] sm:$0xff]
    %v8230 = vld [vmem:[#allocation7 + $0x4f8] sm:$0xff]
    %v8231 = vld [vmem:[#allocation7 + $0x500] sm:$0xff]
    %v8232 = vld [vmem:[#allocation7 + $0x508] sm:$0xff]
    %v8233 = vld [vmem:[#allocation7 + $0x510] sm:$0xff]
    %v8234 = vld [vmem:[#allocation7 + $0x518] sm:$0xff]
    %v8235 = vld [vmem:[#allocation7 + $0x520] sm:$0xff]
    %v8236 = vld [vmem:[#allocation7 + $0x528] sm:$0xff]
    %v8237 = vld [vmem:[#allocation7 + $0x530] sm:$0xff]
    %v8238 = vld [vmem:[#allocation7 + $0x538] sm:$0xff]
    %v8239 = vld [vmem:[#allocation7 + $0x540] sm:$0xff]
    %v8240 = vld [vmem:[#allocation7 + $0x548] sm:$0xff]
    %v8241 = vld [vmem:[#allocation7 + $0x550] sm:$0xff]
    %v8242 = vld [vmem:[#allocation7 + $0x558] sm:$0xff]
    %v8243 = vld [vmem:[#allocation7 + $0x560] sm:$0xff]
    %v8244 = vld [vmem:[#allocation7 + $0x568] sm:$0xff]
    %v8245 = vld [vmem:[#allocation7 + $0x570] sm:$0xff]
    %v8246 = vld [vmem:[#allocation7 + $0x578] sm:$0xff]
    %v8247 = vld [vmem:[#allocation7 + $0x580] sm:$0xff]
    %v8248 = vld [vmem:[#allocation7 + $0x588] sm:$0xff]
    %v8249 = vld [vmem:[#allocation7 + $0x590] sm:$0xff]
    %v8250 = vld [vmem:[#allocation7 + $0x598] sm:$0xff]
    %v8251 = vld [vmem:[#allocation7 + $0x5a0] sm:$0xff]
    %v8252 = vld [vmem:[#allocation7 + $0x5a8] sm:$0xff]
    %v8253 = vld [vmem:[#allocation7 + $0x5b0] sm:$0xff]
    %v8254 = vld [vmem:[#allocation7 + $0x5b8] sm:$0xff]
    %v8255 = vld [vmem:[#allocation7 + $0x5c0] sm:$0xff]
    %v8256 = vld [vmem:[#allocation7 + $0x5c8] sm:$0xff]
    %v8257 = vld [vmem:[#allocation7 + $0x5d0] sm:$0xff]
    %v8258 = vld [vmem:[#allocation7 + $0x5d8] sm:$0xff]
    %v8259 = vld [vmem:[#allocation7 + $0x5e0] sm:$0xff]
    %v8260 = vld [vmem:[#allocation7 + $0x5e8] sm:$0xff]
    %v8261 = vld [vmem:[#allocation7 + $0x5f0] sm:$0xff]
    %v8262 = vld [vmem:[#allocation7 + $0x5f8] sm:$0xff]
    %v8263 = vld [vmem:[#allocation7 + $0x600] sm:$0xff]
    %v8264 = vld [vmem:[#allocation7 + $0x608] sm:$0xff]
    %v8265 = vld [vmem:[#allocation7 + $0x610] sm:$0xff]
    %v8266 = vld [vmem:[#allocation7 + $0x618] sm:$0xff]
    %v8267 = vld [vmem:[#allocation7 + $0x620] sm:$0xff]
    %v8268 = vld [vmem:[#allocation7 + $0x628] sm:$0xff]
    %v8269 = vld [vmem:[#allocation7 + $0x630] sm:$0xff]
    %v8270 = vld [vmem:[#allocation7 + $0x638] sm:$0xff]
    %v8271 = vld [vmem:[#allocation7 + $0x640] sm:$0xff]
    %v8272 = vld [vmem:[#allocation7 + $0x648] sm:$0xff]
    %v8273 = vld [vmem:[#allocation7 + $0x650] sm:$0xff]
    %v8274 = vld [vmem:[#allocation7 + $0x658] sm:$0xff]
    %v8275 = vld [vmem:[#allocation7 + $0x660] sm:$0xff]
    %v8276 = vld [vmem:[#allocation7 + $0x668] sm:$0xff]
    %v8277 = vld [vmem:[#allocation7 + $0x670] sm:$0xff]
    %v8278 = vld [vmem:[#allocation7 + $0x678] sm:$0xff]
    %v8279 = vld [vmem:[#allocation7 + $0x680] sm:$0xff]
    %v8280 = vld [vmem:[#allocation7 + $0x688] sm:$0xff]
    %v8281 = vld [vmem:[#allocation7 + $0x690] sm:$0xff]
    %v8282 = vld [vmem:[#allocation7 + $0x698] sm:$0xff]
    %v8283 = vld [vmem:[#allocation7 + $0x6a0] sm:$0xff]
    %v8284 = vld [vmem:[#allocation7 + $0x6a8] sm:$0xff]
    %v8285 = vld [vmem:[#allocation7 + $0x6b0] sm:$0xff]
    %v8286 = vld [vmem:[#allocation7 + $0x6b8] sm:$0xff]
    %v8287 = vld [vmem:[#allocation7 + $0x6c0] sm:$0xff]
    %v8288 = vld [vmem:[#allocation7 + $0x6c8] sm:$0xff]
    %v8289 = vld [vmem:[#allocation7 + $0x6d0] sm:$0xff]
    %v8290 = vld [vmem:[#allocation7 + $0x6d8] sm:$0xff]
    %v8291 = vld [vmem:[#allocation7 + $0x6e0] sm:$0xff]
    %v8292 = vld [vmem:[#allocation7 + $0x6e8] sm:$0xff]
    %v8293 = vld [vmem:[#allocation7 + $0x6f0] sm:$0xff]
    %v8294 = vld [vmem:[#allocation7 + $0x6f8] sm:$0xff]
    %v8295 = vld [vmem:[#allocation7 + $0x700] sm:$0xff]
    %v8296 = vld [vmem:[#allocation7 + $0x708] sm:$0xff]
    %v8297 = vld [vmem:[#allocation7 + $0x710] sm:$0xff]
    %v8298 = vld [vmem:[#allocation7 + $0x718] sm:$0xff]
    %v8299 = vld [vmem:[#allocation7 + $0x720] sm:$0xff]
    %v8300 = vld [vmem:[#allocation7 + $0x728] sm:$0xff]
    %v8301 = vld [vmem:[#allocation7 + $0x730] sm:$0xff]
    %v8302 = vld [vmem:[#allocation7 + $0x738] sm:$0xff]
    %v8303 = vld [vmem:[#allocation7 + $0x740] sm:$0xff]
    %v8304 = vld [vmem:[#allocation7 + $0x748] sm:$0xff]
    %v8305 = vld [vmem:[#allocation7 + $0x750] sm:$0xff]
    %v8306 = vld [vmem:[#allocation7 + $0x758] sm:$0xff]
    %v8307 = vld [vmem:[#allocation7 + $0x760] sm:$0xff]
    %v8308 = vld [vmem:[#allocation7 + $0x768] sm:$0xff]
    %v8309 = vld [vmem:[#allocation7 + $0x770] sm:$0xff]
    %v8310 = vld [vmem:[#allocation7 + $0x778] sm:$0xff]
    %v8311 = vld [vmem:[#allocation7 + $0x780] sm:$0xff]
    %v8312 = vld [vmem:[#allocation7 + $0x788] sm:$0xff]
    %v8313 = vld [vmem:[#allocation7 + $0x790] sm:$0xff]
    %v8314 = vld [vmem:[#allocation7 + $0x798] sm:$0xff]
    %v8315 = vld [vmem:[#allocation7 + $0x7a0] sm:$0xff]
    %v8316 = vld [vmem:[#allocation7 + $0x7a8] sm:$0xff]
    %v8317 = vld [vmem:[#allocation7 + $0x7b0] sm:$0xff]
    %v8318 = vld [vmem:[#allocation7 + $0x7b8] sm:$0xff]
    %v8319 = vld [vmem:[#allocation7 + $0x7c0] sm:$0xff]
    %v8320 = vld [vmem:[#allocation7 + $0x7c8] sm:$0xff]
    %v8321 = vld [vmem:[#allocation7 + $0x7d0] sm:$0xff]
    %v8322 = vld [vmem:[#allocation7 + $0x7d8] sm:$0xff]
    %v8323 = vld [vmem:[#allocation7 + $0x7e0] sm:$0xff]
    %v8324 = vld [vmem:[#allocation7 + $0x7e8] sm:$0xff]
    %v8325 = vld [vmem:[#allocation7 + $0x7f0] sm:$0xff]
    %v8326 = vld [vmem:[#allocation7 + $0x7f8] sm:$0xff]
    %v8327 = vld [vmem:[#allocation7 + $0x800] sm:$0xff]
    %v8328 = vld [vmem:[#allocation7 + $0x808] sm:$0xff]
    %v8329 = vld [vmem:[#allocation7 + $0x810] sm:$0xff]
    %v8330 = vld [vmem:[#allocation7 + $0x818] sm:$0xff]
    %v8331 = vld [vmem:[#allocation7 + $0x820] sm:$0xff]
    %v8332 = vld [vmem:[#allocation7 + $0x828] sm:$0xff]
    %v8333 = vld [vmem:[#allocation7 + $0x830] sm:$0xff]
    %v8334 = vld [vmem:[#allocation7 + $0x838] sm:$0xff]
    %v8335 = vld [vmem:[#allocation7 + $0x840] sm:$0xff]
    %v8336 = vld [vmem:[#allocation7 + $0x848] sm:$0xff]
    %v8337 = vld [vmem:[#allocation7 + $0x850] sm:$0xff]
    %v8338 = vld [vmem:[#allocation7 + $0x858] sm:$0xff]
    %v8339 = vld [vmem:[#allocation7 + $0x860] sm:$0xff]
    %v8340 = vld [vmem:[#allocation7 + $0x868] sm:$0xff]
    %v8341 = vld [vmem:[#allocation7 + $0x870] sm:$0xff]
    %v8342 = vld [vmem:[#allocation7 + $0x878] sm:$0xff]
    %v8343 = vld [vmem:[#allocation7 + $0x880] sm:$0xff]
    %v8344 = vld [vmem:[#allocation7 + $0x888] sm:$0xff]
    %v8345 = vld [vmem:[#allocation7 + $0x890] sm:$0xff]
    %v8346 = vld [vmem:[#allocation7 + $0x898] sm:$0xff]
    %v8347 = vld [vmem:[#allocation7 + $0x8a0] sm:$0xff]
    %v8348 = vld [vmem:[#allocation7 + $0x8a8] sm:$0xff]
    %v8349 = vld [vmem:[#allocation7 + $0x8b0] sm:$0xff]
    %v8350 = vld [vmem:[#allocation7 + $0x8b8] sm:$0xff]
    %v8351 = vld [vmem:[#allocation7 + $0x8c0] sm:$0xff]
    %v8352 = vld [vmem:[#allocation7 + $0x8c8] sm:$0xff]
    %v8353 = vld [vmem:[#allocation7 + $0x8d0] sm:$0xff]
    %v8354 = vld [vmem:[#allocation7 + $0x8d8] sm:$0xff]
    %v8355 = vld [vmem:[#allocation7 + $0x8e0] sm:$0xff]
    %v8356 = vld [vmem:[#allocation7 + $0x8e8] sm:$0xff]
    %v8357 = vld [vmem:[#allocation7 + $0x8f0] sm:$0xff]
    %v8358 = vld [vmem:[#allocation7 + $0x8f8] sm:$0xff]
    %v8359 = vld [vmem:[#allocation7 + $0x900] sm:$0xff]
    %v8360 = vld [vmem:[#allocation7 + $0x908] sm:$0xff]
    %v8361 = vld [vmem:[#allocation7 + $0x910] sm:$0xff]
    %v8362 = vld [vmem:[#allocation7 + $0x918] sm:$0xff]
    %v8363 = vld [vmem:[#allocation7 + $0x920] sm:$0xff]
    %v8364 = vld [vmem:[#allocation7 + $0x928] sm:$0xff]
    %v8365 = vld [vmem:[#allocation7 + $0x930] sm:$0xff]
    %v8366 = vld [vmem:[#allocation7 + $0x938] sm:$0xff]
    %v8367 = vld [vmem:[#allocation7 + $0x940] sm:$0xff]
    %v8368 = vld [vmem:[#allocation7 + $0x948] sm:$0xff]
    %v8369 = vld [vmem:[#allocation7 + $0x950] sm:$0xff]
    %v8370 = vld [vmem:[#allocation7 + $0x958] sm:$0xff]
    %v8371 = vld [vmem:[#allocation7 + $0x960] sm:$0xff]
    %v8372 = vld [vmem:[#allocation7 + $0x968] sm:$0xff]
    %v8373 = vld [vmem:[#allocation7 + $0x970] sm:$0xff]
    %v8374 = vld [vmem:[#allocation7 + $0x978] sm:$0xff]
    %v8375 = vld [vmem:[#allocation7 + $0x980] sm:$0xff]
    %v8376 = vld [vmem:[#allocation7 + $0x988] sm:$0xff]
    %v8377 = vld [vmem:[#allocation7 + $0x990] sm:$0xff]
    %v8378 = vld [vmem:[#allocation7 + $0x998] sm:$0xff]
    %v8379 = vld [vmem:[#allocation7 + $0x9a0] sm:$0xff]
    %v8380 = vld [vmem:[#allocation7 + $0x9a8] sm:$0xff]
    %v8381 = vld [vmem:[#allocation7 + $0x9b0] sm:$0xff]
    %v8382 = vld [vmem:[#allocation7 + $0x9b8] sm:$0xff]
    %v8383 = vld [vmem:[#allocation7 + $0x9c0] sm:$0xff]
    %v8384 = vld [vmem:[#allocation7 + $0x9c8] sm:$0xff]
    %v8385 = vld [vmem:[#allocation7 + $0x9d0] sm:$0xff]
    %v8386 = vld [vmem:[#allocation7 + $0x9d8] sm:$0xff]
    %v8387 = vld [vmem:[#allocation7 + $0x9e0] sm:$0xff]
    %v8388 = vld [vmem:[#allocation7 + $0x9e8] sm:$0xff]
    %v8389 = vld [vmem:[#allocation7 + $0x9f0] sm:$0xff]
    %v8390 = vld [vmem:[#allocation7 + $0x9f8] sm:$0xff]
    %v8391 = vld [vmem:[#allocation7 + $0xa00] sm:$0xff]
    %v8392 = vld [vmem:[#allocation7 + $0xa08] sm:$0xff]
    %v8393 = vld [vmem:[#allocation7 + $0xa10] sm:$0xff]
    %v8394 = vld [vmem:[#allocation7 + $0xa18] sm:$0xff]
    %v8395 = vld [vmem:[#allocation7 + $0xa20] sm:$0xff]
    %v8396 = vld [vmem:[#allocation7 + $0xa28] sm:$0xff]
    %v8397 = vld [vmem:[#allocation7 + $0xa30] sm:$0xff]
    %v8398 = vld [vmem:[#allocation7 + $0xa38] sm:$0xff]
    %v8399 = vld [vmem:[#allocation7 + $0xa40] sm:$0xff]
    %v8400 = vld [vmem:[#allocation7 + $0xa48] sm:$0xff]
    %v8401 = vld [vmem:[#allocation7 + $0xa50] sm:$0xff]
    %v8402 = vld [vmem:[#allocation7 + $0xa58] sm:$0xff]
    %v8403 = vld [vmem:[#allocation7 + $0xa60] sm:$0xff]
    %v8404 = vld [vmem:[#allocation7 + $0xa68] sm:$0xff]
    %v8405 = vld [vmem:[#allocation7 + $0xa70] sm:$0xff]
    %v8406 = vld [vmem:[#allocation7 + $0xa78] sm:$0xff]
    %v8407 = vld [vmem:[#allocation7 + $0xa80] sm:$0xff]
    %v8408 = vld [vmem:[#allocation7 + $0xa88] sm:$0xff]
    %v8409 = vld [vmem:[#allocation7 + $0xa90] sm:$0xff]
    %v8410 = vld [vmem:[#allocation7 + $0xa98] sm:$0xff]
    %v8411 = vld [vmem:[#allocation7 + $0xaa0] sm:$0xff]
    %v8412 = vld [vmem:[#allocation7 + $0xaa8] sm:$0xff]
    %v8413 = vld [vmem:[#allocation7 + $0xab0] sm:$0xff]
    %v8414 = vld [vmem:[#allocation7 + $0xab8] sm:$0xff]
    %v8415 = vld [vmem:[#allocation7 + $0xac0] sm:$0xff]
    %v8416 = vld [vmem:[#allocation7 + $0xac8] sm:$0xff]
    %v8417 = vld [vmem:[#allocation7 + $0xad0] sm:$0xff]
    %v8418 = vld [vmem:[#allocation7 + $0xad8] sm:$0xff]
    %v8419 = vld [vmem:[#allocation7 + $0xae0] sm:$0xff]
    %v8420 = vld [vmem:[#allocation7 + $0xae8] sm:$0xff]
    %v8421 = vld [vmem:[#allocation7 + $0xaf0] sm:$0xff]
    %v8422 = vld [vmem:[#allocation7 + $0xaf8] sm:$0xff]
    %v8423 = vld [vmem:[#allocation7 + $0xb00] sm:$0xff]
    %v8424 = vld [vmem:[#allocation7 + $0xb08] sm:$0xff]
    %v8425 = vld [vmem:[#allocation7 + $0xb10] sm:$0xff]
    %v8426 = vld [vmem:[#allocation7 + $0xb18] sm:$0xff]
    %v8427 = vld [vmem:[#allocation7 + $0xb20] sm:$0xff]
    %v8428 = vld [vmem:[#allocation7 + $0xb28] sm:$0xff]
    %v8429 = vld [vmem:[#allocation7 + $0xb30] sm:$0xff]
    %v8430 = vld [vmem:[#allocation7 + $0xb38] sm:$0xff]
    %v8431 = vld [vmem:[#allocation7 + $0xb40] sm:$0xff]
    %v8432 = vld [vmem:[#allocation7 + $0xb48] sm:$0xff]
    %v8433 = vld [vmem:[#allocation7 + $0xb50] sm:$0xff]
    %v8434 = vld [vmem:[#allocation7 + $0xb58] sm:$0xff]
    %v8435 = vld [vmem:[#allocation7 + $0xb60] sm:$0xff]
    %v8436 = vld [vmem:[#allocation7 + $0xb68] sm:$0xff]
    %v8437 = vld [vmem:[#allocation7 + $0xb70] sm:$0xff]
    %v8438 = vld [vmem:[#allocation7 + $0xb78] sm:$0xff]
    %v8439 = vld [vmem:[#allocation7 + $0xb80] sm:$0xff]
    %v8440 = vld [vmem:[#allocation7 + $0xb88] sm:$0xff]
    %v8441 = vld [vmem:[#allocation7 + $0xb90] sm:$0xff]
    %v8442 = vld [vmem:[#allocation7 + $0xb98] sm:$0xff]
    %v8443 = vld [vmem:[#allocation7 + $0xba0] sm:$0xff]
    %v8444 = vld [vmem:[#allocation7 + $0xba8] sm:$0xff]
    %v8445 = vld [vmem:[#allocation7 + $0xbb0] sm:$0xff]
    %v8446 = vld [vmem:[#allocation7 + $0xbb8] sm:$0xff]
    %v8447 = vld [vmem:[#allocation7 + $0xbc0] sm:$0xff]
    %v8448 = vld [vmem:[#allocation7 + $0xbc8] sm:$0xff]
    %v8449 = vld [vmem:[#allocation7 + $0xbd0] sm:$0xff]
    %v8450 = vld [vmem:[#allocation7 + $0xbd8] sm:$0xff]
    %v8451 = vld [vmem:[#allocation7 + $0xbe0] sm:$0xff]
    %v8452 = vld [vmem:[#allocation7 + $0xbe8] sm:$0xff]
    %v8453 = vld [vmem:[#allocation7 + $0xbf0] sm:$0xff]
    %v8454 = vld [vmem:[#allocation7 + $0xbf8] sm:$0xff]
    %v8455 = vld [vmem:[#allocation7 + $0xc00] sm:$0xff]
    %v8456 = vld [vmem:[#allocation7 + $0xc08] sm:$0xff]
    %v8457 = vld [vmem:[#allocation7 + $0xc10] sm:$0xff]
    %v8458 = vld [vmem:[#allocation7 + $0xc18] sm:$0xff]
    %v8459 = vld [vmem:[#allocation7 + $0xc20] sm:$0xff]
    %v8460 = vld [vmem:[#allocation7 + $0xc28] sm:$0xff]
    %v8461 = vld [vmem:[#allocation7 + $0xc30] sm:$0xff]
    %v8462 = vld [vmem:[#allocation7 + $0xc38] sm:$0xff]
    %v8463 = vld [vmem:[#allocation7 + $0xc40] sm:$0xff]
    %v8464 = vld [vmem:[#allocation7 + $0xc48] sm:$0xff]
    %v8465 = vld [vmem:[#allocation7 + $0xc50] sm:$0xff]
    %v8466 = vld [vmem:[#allocation7 + $0xc58] sm:$0xff]
    %v8467 = vld [vmem:[#allocation7 + $0xc60] sm:$0xff]
    %v8468 = vld [vmem:[#allocation7 + $0xc68] sm:$0xff]
    %v8469 = vld [vmem:[#allocation7 + $0xc70] sm:$0xff]
    %v8470 = vld [vmem:[#allocation7 + $0xc78] sm:$0xff]
    %v8471 = vld [vmem:[#allocation7 + $0xc80] sm:$0xff]
    %v8472 = vld [vmem:[#allocation7 + $0xc88] sm:$0xff]
    %v8473 = vld [vmem:[#allocation7 + $0xc90] sm:$0xff]
    %v8474 = vld [vmem:[#allocation7 + $0xc98] sm:$0xff]
    %v8475 = vld [vmem:[#allocation7 + $0xca0] sm:$0xff]
    %v8476 = vld [vmem:[#allocation7 + $0xca8] sm:$0xff]
    %v8477 = vld [vmem:[#allocation7 + $0xcb0] sm:$0xff]
    %v8478 = vld [vmem:[#allocation7 + $0xcb8] sm:$0xff]
    %v8479 = vld [vmem:[#allocation7 + $0xcc0] sm:$0xff]
    %v8480 = vld [vmem:[#allocation7 + $0xcc8] sm:$0xff]
    %v8481 = vld [vmem:[#allocation7 + $0xcd0] sm:$0xff]
    %v8482 = vld [vmem:[#allocation7 + $0xcd8] sm:$0xff]
    %v8483 = vld [vmem:[#allocation7 + $0xce0] sm:$0xff]
    %v8484 = vld [vmem:[#allocation7 + $0xce8] sm:$0xff]
    %v8485 = vld [vmem:[#allocation7 + $0xcf0] sm:$0xff]
    %v8486 = vld [vmem:[#allocation7 + $0xcf8] sm:$0xff]
    %v8487 = vld [vmem:[#allocation7 + $0xd00] sm:$0xff]
    %v8488 = vld [vmem:[#allocation7 + $0xd08] sm:$0xff]
    %v8489 = vld [vmem:[#allocation7 + $0xd10] sm:$0xff]
    %v8490 = vld [vmem:[#allocation7 + $0xd18] sm:$0xff]
    %v8491 = vld [vmem:[#allocation7 + $0xd20] sm:$0xff]
    %v8492 = vld [vmem:[#allocation7 + $0xd28] sm:$0xff]
    %v8493 = vld [vmem:[#allocation7 + $0xd30] sm:$0xff]
    %v8494 = vld [vmem:[#allocation7 + $0xd38] sm:$0xff]
    %v8495 = vld [vmem:[#allocation7 + $0xd40] sm:$0xff]
    %v8496 = vld [vmem:[#allocation7 + $0xd48] sm:$0xff]
    %v8497 = vld [vmem:[#allocation7 + $0xd50] sm:$0xff]
    %v8498 = vld [vmem:[#allocation7 + $0xd58] sm:$0xff]
    %v8499 = vld [vmem:[#allocation7 + $0xd60] sm:$0xff]
    %v8500 = vld [vmem:[#allocation7 + $0xd68] sm:$0xff]
    %v8501 = vld [vmem:[#allocation7 + $0xd70] sm:$0xff]
    %v8502 = vld [vmem:[#allocation7 + $0xd78] sm:$0xff]
    %v8503 = vld [vmem:[#allocation7 + $0xd80] sm:$0xff]
    %v8504 = vld [vmem:[#allocation7 + $0xd88] sm:$0xff]
    %v8505 = vld [vmem:[#allocation7 + $0xd90] sm:$0xff]
    %v8506 = vld [vmem:[#allocation7 + $0xd98] sm:$0xff]
    %v8507 = vld [vmem:[#allocation7 + $0xda0] sm:$0xff]
    %v8508 = vld [vmem:[#allocation7 + $0xda8] sm:$0xff]
    %v8509 = vld [vmem:[#allocation7 + $0xdb0] sm:$0xff]
    %v8510 = vld [vmem:[#allocation7 + $0xdb8] sm:$0xff]
    %v8511 = vld [vmem:[#allocation7 + $0xdc0] sm:$0xff]
    %v8512 = vld [vmem:[#allocation7 + $0xdc8] sm:$0xff]
    %v8513 = vld [vmem:[#allocation7 + $0xdd0] sm:$0xff]
    %v8514 = vld [vmem:[#allocation7 + $0xdd8] sm:$0xff]
    %v8515 = vld [vmem:[#allocation7 + $0xde0] sm:$0xff]
    %v8516 = vld [vmem:[#allocation7 + $0xde8] sm:$0xff]
    %v8517 = vld [vmem:[#allocation7 + $0xdf0] sm:$0xff]
    %v8518 = vld [vmem:[#allocation7 + $0xdf8] sm:$0xff]
    %v8519 = vld [vmem:[#allocation7 + $0xe00] sm:$0xff]
    %v8520 = vld [vmem:[#allocation7 + $0xe08] sm:$0xff]
    %v8521 = vld [vmem:[#allocation7 + $0xe10] sm:$0xff]
    %v8522 = vld [vmem:[#allocation7 + $0xe18] sm:$0xff]
    %v8523 = vld [vmem:[#allocation7 + $0xe20] sm:$0xff]
    %v8524 = vld [vmem:[#allocation7 + $0xe28] sm:$0xff]
    %v8525 = vld [vmem:[#allocation7 + $0xe30] sm:$0xff]
    %v8526 = vld [vmem:[#allocation7 + $0xe38] sm:$0xff]
    %v8527 = vld [vmem:[#allocation7 + $0xe40] sm:$0xff]
    %v8528 = vld [vmem:[#allocation7 + $0xe48] sm:$0xff]
    %v8529 = vld [vmem:[#allocation7 + $0xe50] sm:$0xff]
    %v8530 = vld [vmem:[#allocation7 + $0xe58] sm:$0xff]
    %v8531 = vld [vmem:[#allocation7 + $0xe60] sm:$0xff]
    %v8532 = vld [vmem:[#allocation7 + $0xe68] sm:$0xff]
    %v8533 = vld [vmem:[#allocation7 + $0xe70] sm:$0xff]
    %v8534 = vld [vmem:[#allocation7 + $0xe78] sm:$0xff]
    %v8535 = vld [vmem:[#allocation7 + $0xe80] sm:$0xff]
    %v8536 = vld [vmem:[#allocation7 + $0xe88] sm:$0xff]
    %v8537 = vld [vmem:[#allocation7 + $0xe90] sm:$0xff]
    %v8538 = vld [vmem:[#allocation7 + $0xe98] sm:$0xff]
    %v8539 = vld [vmem:[#allocation7 + $0xea0] sm:$0xff]
    %v8540 = vld [vmem:[#allocation7 + $0xea8] sm:$0xff]
    %v8541 = vld [vmem:[#allocation7 + $0xeb0] sm:$0xff]
    %v8542 = vld [vmem:[#allocation7 + $0xeb8] sm:$0xff]
    %v8543 = vld [vmem:[#allocation7 + $0xec0] sm:$0xff]
    %v8544 = vld [vmem:[#allocation7 + $0xec8] sm:$0xff]
    %v8545 = vld [vmem:[#allocation7 + $0xed0] sm:$0xff]
    %v8546 = vld [vmem:[#allocation7 + $0xed8] sm:$0xff]
    %v8547 = vld [vmem:[#allocation7 + $0xee0] sm:$0xff]
    %v8548 = vld [vmem:[#allocation7 + $0xee8] sm:$0xff]
    %v8549 = vld [vmem:[#allocation7 + $0xef0] sm:$0xff]
    %v8550 = vld [vmem:[#allocation7 + $0xef8] sm:$0xff]
    %v8551 = vld [vmem:[#allocation7 + $0xf00] sm:$0xff]
    %v8552 = vld [vmem:[#allocation7 + $0xf08] sm:$0xff]
    %v8553 = vld [vmem:[#allocation7 + $0xf10] sm:$0xff]
    %v8554 = vld [vmem:[#allocation7 + $0xf18] sm:$0xff]
    %v8555 = vld [vmem:[#allocation7 + $0xf20] sm:$0xff]
    %v8556 = vld [vmem:[#allocation7 + $0xf28] sm:$0xff]
    %v8557 = vld [vmem:[#allocation7 + $0xf30] sm:$0xff]
    %v8558 = vld [vmem:[#allocation7 + $0xf38] sm:$0xff]
    %v8559 = vld [vmem:[#allocation7 + $0xf40] sm:$0xff]
    %v8560 = vld [vmem:[#allocation7 + $0xf48] sm:$0xff]
    %v8561 = vld [vmem:[#allocation7 + $0xf50] sm:$0xff]
    %v8562 = vld [vmem:[#allocation7 + $0xf58] sm:$0xff]
    %v8563 = vld [vmem:[#allocation7 + $0xf60] sm:$0xff]
    %v8564 = vld [vmem:[#allocation7 + $0xf68] sm:$0xff]
    %v8565 = vld [vmem:[#allocation7 + $0xf70] sm:$0xff]
    %v8566 = vld [vmem:[#allocation7 + $0xf78] sm:$0xff]
    %v8567 = vld [vmem:[#allocation7 + $0xf80] sm:$0xff]
    %v8568 = vld [vmem:[#allocation7 + $0xf88] sm:$0xff]
    %v8569 = vld [vmem:[#allocation7 + $0xf90] sm:$0xff]
    %v8570 = vld [vmem:[#allocation7 + $0xf98] sm:$0xff]
    %v8571 = vld [vmem:[#allocation7 + $0xfa0] sm:$0xff]
    %v8572 = vld [vmem:[#allocation7 + $0xfa8] sm:$0xff]
    %v8573 = vld [vmem:[#allocation7 + $0xfb0] sm:$0xff]
    %v8574 = vld [vmem:[#allocation7 + $0xfb8] sm:$0xff]
    %v8575 = vld [vmem:[#allocation7 + $0xfc0] sm:$0xff]
    %v8576 = vld [vmem:[#allocation7 + $0xfc8] sm:$0xff]
    %v8577 = vld [vmem:[#allocation7 + $0xfd0] sm:$0xff]
    %v8578 = vld [vmem:[#allocation7 + $0xfd8] sm:$0xff]
    %v8579 = vld [vmem:[#allocation7 + $0xfe0] sm:$0xff]
    %v8580 = vld [vmem:[#allocation7 + $0xfe8] sm:$0xff]
    %v8581 = vld [vmem:[#allocation7 + $0xff0] sm:$0xff]
    %v8582 = vld [vmem:[#allocation7 + $0xff8] sm:$0xff]
    %v8583 = vld [vmem:[#allocation7 + $0x1000] sm:$0xff]
    %v8584 = vld [vmem:[#allocation7 + $0x1008] sm:$0xff]
    %v8585 = vld [vmem:[#allocation7 + $0x1010] sm:$0xff]
    %v8586 = vld [vmem:[#allocation7 + $0x1018] sm:$0xff]
    %v8587 = vld [vmem:[#allocation7 + $0x1020] sm:$0xff]
    %v8588 = vld [vmem:[#allocation7 + $0x1028] sm:$0xff]
    %v8589 = vld [vmem:[#allocation7 + $0x1030] sm:$0xff]
    %v8590 = vld [vmem:[#allocation7 + $0x1038] sm:$0xff]
    %v8591 = vld [vmem:[#allocation7 + $0x1040] sm:$0xff]
    %v8592 = vld [vmem:[#allocation7 + $0x1048] sm:$0xff]
    %v8593 = vld [vmem:[#allocation7 + $0x1050] sm:$0xff]
    %v8594 = vld [vmem:[#allocation7 + $0x1058] sm:$0xff]
    %v8595 = vld [vmem:[#allocation7 + $0x1060] sm:$0xff]
    %v8596 = vld [vmem:[#allocation7 + $0x1068] sm:$0xff]
    %v8597 = vld [vmem:[#allocation7 + $0x1070] sm:$0xff]
    %v8598 = vld [vmem:[#allocation7 + $0x1078] sm:$0xff]
    %v8599 = vld [vmem:[#allocation7 + $0x1080] sm:$0xff]
    %v8600 = vld [vmem:[#allocation7 + $0x1088] sm:$0xff]
    %v8601 = vld [vmem:[#allocation7 + $0x1090] sm:$0xff]
    %v8602 = vld [vmem:[#allocation7 + $0x1098] sm:$0xff]
    %v8603 = vld [vmem:[#allocation7 + $0x10a0] sm:$0xff]
    %v8604 = vld [vmem:[#allocation7 + $0x10a8] sm:$0xff]
    %v8605 = vld [vmem:[#allocation7 + $0x10b0] sm:$0xff]
    %v8606 = vld [vmem:[#allocation7 + $0x10b8] sm:$0xff]
    %v8607 = vld [vmem:[#allocation7 + $0x10c0] sm:$0xff]
    %v8608 = vld [vmem:[#allocation7 + $0x10c8] sm:$0xff]
    %v8609 = vld [vmem:[#allocation7 + $0x10d0] sm:$0xff]
    %v8610 = vld [vmem:[#allocation7 + $0x10d8] sm:$0xff]
    %v8611 = vld [vmem:[#allocation7 + $0x10e0] sm:$0xff]
    %v8612 = vld [vmem:[#allocation7 + $0x10e8] sm:$0xff]
    %v8613 = vld [vmem:[#allocation7 + $0x10f0] sm:$0xff]
    %v8614 = vld [vmem:[#allocation7 + $0x10f8] sm:$0xff]
    %v8615 = vld [vmem:[#allocation7 + $0x1100] sm:$0xff]
    %v8616 = vld [vmem:[#allocation7 + $0x1108] sm:$0xff]
    %v8617 = vld [vmem:[#allocation7 + $0x1110] sm:$0xff]
    %v8618 = vld [vmem:[#allocation7 + $0x1118] sm:$0xff]
    %v8619 = vld [vmem:[#allocation7 + $0x1120] sm:$0xff]
    %v8620 = vld [vmem:[#allocation7 + $0x1128] sm:$0xff]
    %v8621 = vld [vmem:[#allocation7 + $0x1130] sm:$0xff]
    %v8622 = vld [vmem:[#allocation7 + $0x1138] sm:$0xff]
    %v8623 = vld [vmem:[#allocation7 + $0x1140] sm:$0xff]
    %v8624 = vld [vmem:[#allocation7 + $0x1148] sm:$0xff]
    %v8625 = vld [vmem:[#allocation7 + $0x1150] sm:$0xff]
    %v8626 = vld [vmem:[#allocation7 + $0x1158] sm:$0xff]
    %v8627 = vld [vmem:[#allocation7 + $0x1160] sm:$0xff]
    %v8628 = vld [vmem:[#allocation7 + $0x1168] sm:$0xff]
    %v8629 = vld [vmem:[#allocation7 + $0x1170] sm:$0xff]
    %v8630 = vld [vmem:[#allocation7 + $0x1178] sm:$0xff]
    %v8631 = vld [vmem:[#allocation7 + $0x1180] sm:$0xff]
    %v8632 = vld [vmem:[#allocation7 + $0x1188] sm:$0xff]
    %v8633 = vld [vmem:[#allocation7 + $0x1190] sm:$0xff]
    %v8634 = vld [vmem:[#allocation7 + $0x1198] sm:$0xff]
    %v8635 = vld [vmem:[#allocation7 + $0x11a0] sm:$0xff]
    %v8636 = vld [vmem:[#allocation7 + $0x11a8] sm:$0xff]
    %v8637 = vld [vmem:[#allocation7 + $0x11b0] sm:$0xff]
    %v8638 = vld [vmem:[#allocation7 + $0x11b8] sm:$0xff]
    %v8639 = vld [vmem:[#allocation7 + $0x11c0] sm:$0xff]
    %v8640 = vld [vmem:[#allocation7 + $0x11c8] sm:$0xff]
    %v8641 = vld [vmem:[#allocation7 + $0x11d0] sm:$0xff]
    %v8642 = vld [vmem:[#allocation7 + $0x11d8] sm:$0xff]
    %v8643 = vld [vmem:[#allocation7 + $0x11e0] sm:$0xff]
    %v8644 = vld [vmem:[#allocation7 + $0x11e8] sm:$0xff]
    %v8645 = vld [vmem:[#allocation7 + $0x11f0] sm:$0xff]
    %v8646 = vld [vmem:[#allocation7 + $0x11f8] sm:$0xff]
    %v8647 = vld [vmem:[#allocation7 + $0x1200] sm:$0xff]
    %v8648 = vld [vmem:[#allocation7 + $0x1208] sm:$0xff]
    %v8649 = vld [vmem:[#allocation7 + $0x1210] sm:$0xff]
    %v8650 = vld [vmem:[#allocation7 + $0x1218] sm:$0xff]
    %v8651 = vld [vmem:[#allocation7 + $0x1220] sm:$0xff]
    %v8652 = vld [vmem:[#allocation7 + $0x1228] sm:$0xff]
    %v8653 = vld [vmem:[#allocation7 + $0x1230] sm:$0xff]
    %v8654 = vld [vmem:[#allocation7 + $0x1238] sm:$0xff]
    %v8655 = vld [vmem:[#allocation7 + $0x1240] sm:$0xff]
    %v8656 = vld [vmem:[#allocation7 + $0x1248] sm:$0xff]
    %v8657 = vld [vmem:[#allocation7 + $0x1250] sm:$0xff]
    %v8658 = vld [vmem:[#allocation7 + $0x1258] sm:$0xff]
    %v8659 = vld [vmem:[#allocation7 + $0x1260] sm:$0xff]
    %v8660 = vld [vmem:[#allocation7 + $0x1268] sm:$0xff]
    %v8661 = vld [vmem:[#allocation7 + $0x1270] sm:$0xff]
    %v8662 = vld [vmem:[#allocation7 + $0x1278] sm:$0xff]
    %v8663 = vld [vmem:[#allocation7 + $0x1280] sm:$0xff]
    %v8664 = vld [vmem:[#allocation7 + $0x1288] sm:$0xff]
    %v8665 = vld [vmem:[#allocation7 + $0x1290] sm:$0xff]
    %v8666 = vld [vmem:[#allocation7 + $0x1298] sm:$0xff]
    %v8667 = vld [vmem:[#allocation7 + $0x12a0] sm:$0xff]
    %v8668 = vld [vmem:[#allocation7 + $0x12a8] sm:$0xff]
    %v8669 = vld [vmem:[#allocation7 + $0x12b0] sm:$0xff]
    %v8670 = vld [vmem:[#allocation7 + $0x12b8] sm:$0xff]
    %v8671 = vld [vmem:[#allocation7 + $0x12c0] sm:$0xff]
    %v8672 = vld [vmem:[#allocation7 + $0x12c8] sm:$0xff]
    %v8673 = vld [vmem:[#allocation7 + $0x12d0] sm:$0xff]
    %v8674 = vld [vmem:[#allocation7 + $0x12d8] sm:$0xff]
    %v8675 = vld [vmem:[#allocation7 + $0x12e0] sm:$0xff]
    %v8676 = vld [vmem:[#allocation7 + $0x12e8] sm:$0xff]
    %v8677 = vld [vmem:[#allocation7 + $0x12f0] sm:$0xff]
    %v8678 = vld [vmem:[#allocation7 + $0x12f8] sm:$0xff]
    %v8679 = vld [vmem:[#allocation7 + $0x1300] sm:$0xff]
    %v8680 = vld [vmem:[#allocation7 + $0x1308] sm:$0xff]
    %v8681 = vld [vmem:[#allocation7 + $0x1310] sm:$0xff]
    %v8682 = vld [vmem:[#allocation7 + $0x1318] sm:$0xff]
    %v8683 = vld [vmem:[#allocation7 + $0x1320] sm:$0xff]
    %v8684 = vld [vmem:[#allocation7 + $0x1328] sm:$0xff]
    %v8685 = vld [vmem:[#allocation7 + $0x1330] sm:$0xff]
    %v8686 = vld [vmem:[#allocation7 + $0x1338] sm:$0xff]
    %v8687 = vld [vmem:[#allocation7 + $0x1340] sm:$0xff]
    %v8688 = vld [vmem:[#allocation7 + $0x1348] sm:$0xff]
    %v8689 = vld [vmem:[#allocation7 + $0x1350] sm:$0xff]
    %v8690 = vld [vmem:[#allocation7 + $0x1358] sm:$0xff]
    %v8691 = vld [vmem:[#allocation7 + $0x1360] sm:$0xff]
    %v8692 = vld [vmem:[#allocation7 + $0x1368] sm:$0xff]
    %v8693 = vld [vmem:[#allocation7 + $0x1370] sm:$0xff]
    %v8694 = vld [vmem:[#allocation7 + $0x1378] sm:$0xff]
    %v8695 = vld [vmem:[#allocation7 + $0x1380] sm:$0xff]
    %v8696 = vld [vmem:[#allocation7 + $0x1388] sm:$0xff]
    %v8697 = vld [vmem:[#allocation7 + $0x1390] sm:$0xff]
    %v8698 = vld [vmem:[#allocation7 + $0x1398] sm:$0xff]
    %v8699 = vld [vmem:[#allocation7 + $0x13a0] sm:$0xff]
    %v8700 = vld [vmem:[#allocation7 + $0x13a8] sm:$0xff]
    %v8701 = vld [vmem:[#allocation7 + $0x13b0] sm:$0xff]
    %v8702 = vld [vmem:[#allocation7 + $0x13b8] sm:$0xff]
    %v8703 = vld [vmem:[#allocation7 + $0x13c0] sm:$0xff]
    %v8704 = vld [vmem:[#allocation7 + $0x13c8] sm:$0xff]
    %v8705 = vld [vmem:[#allocation7 + $0x13d0] sm:$0xff]
    %v8706 = vld [vmem:[#allocation7 + $0x13d8] sm:$0xff]
    %v8707 = vld [vmem:[#allocation7 + $0x13e0] sm:$0xff]
    %v8708 = vld [vmem:[#allocation7 + $0x13e8] sm:$0xff]
    %v8709 = vld [vmem:[#allocation7 + $0x13f0] sm:$0xff]
    %v8710 = vld [vmem:[#allocation7 + $0x13f8] sm:$0xff]
    %v8711 = vld [vmem:[#allocation7 + $0x1400] sm:$0xff]
    %v8712 = vld [vmem:[#allocation7 + $0x1408] sm:$0xff]
    %v8713 = vld [vmem:[#allocation7 + $0x1410] sm:$0xff]
    %v8714 = vld [vmem:[#allocation7 + $0x1418] sm:$0xff]
    %v8715 = vld [vmem:[#allocation7 + $0x1420] sm:$0xff]
    %v8716 = vld [vmem:[#allocation7 + $0x1428] sm:$0xff]
    %v8717 = vld [vmem:[#allocation7 + $0x1430] sm:$0xff]
    %v8718 = vld [vmem:[#allocation7 + $0x1438] sm:$0xff]
    %v8719 = vld [vmem:[#allocation7 + $0x1440] sm:$0xff]
    %v8720 = vld [vmem:[#allocation7 + $0x1448] sm:$0xff]
    %v8721 = vld [vmem:[#allocation7 + $0x1450] sm:$0xff]
    %v8722 = vld [vmem:[#allocation7 + $0x1458] sm:$0xff]
    %v8723 = vld [vmem:[#allocation7 + $0x1460] sm:$0xff]
    %v8724 = vld [vmem:[#allocation7 + $0x1468] sm:$0xff]
    %v8725 = vld [vmem:[#allocation7 + $0x1470] sm:$0xff]
    %v8726 = vld [vmem:[#allocation7 + $0x1478] sm:$0xff]
    %v8727 = vld [vmem:[#allocation7 + $0x1480] sm:$0xff]
    %v8728 = vld [vmem:[#allocation7 + $0x1488] sm:$0xff]
    %v8729 = vld [vmem:[#allocation7 + $0x1490] sm:$0xff]
    %v8730 = vld [vmem:[#allocation7 + $0x1498] sm:$0xff]
    %v8731 = vld [vmem:[#allocation7 + $0x14a0] sm:$0xff]
    %v8732 = vld [vmem:[#allocation7 + $0x14a8] sm:$0xff]
    %v8733 = vld [vmem:[#allocation7 + $0x14b0] sm:$0xff]
    %v8734 = vld [vmem:[#allocation7 + $0x14b8] sm:$0xff]
    %v8735 = vld [vmem:[#allocation7 + $0x14c0] sm:$0xff]
    %v8736 = vld [vmem:[#allocation7 + $0x14c8] sm:$0xff]
    %v8737 = vld [vmem:[#allocation7 + $0x14d0] sm:$0xff]
    %v8738 = vld [vmem:[#allocation7 + $0x14d8] sm:$0xff]
    %v8739 = vld [vmem:[#allocation7 + $0x14e0] sm:$0xff]
    %v8740 = vld [vmem:[#allocation7 + $0x14e8] sm:$0xff]
    %v8741 = vld [vmem:[#allocation7 + $0x14f0] sm:$0xff]
    %v8742 = vld [vmem:[#allocation7 + $0x14f8] sm:$0xff]
    %v8743 = vld [vmem:[#allocation7 + $0x1500] sm:$0xff]
    %v8744 = vld [vmem:[#allocation7 + $0x1508] sm:$0xff]
    %v8745 = vld [vmem:[#allocation7 + $0x1510] sm:$0xff]
    %v8746 = vld [vmem:[#allocation7 + $0x1518] sm:$0xff]
    %v8747 = vld [vmem:[#allocation7 + $0x1520] sm:$0xff]
    %v8748 = vld [vmem:[#allocation7 + $0x1528] sm:$0xff]
    %v8749 = vld [vmem:[#allocation7 + $0x1530] sm:$0xff]
    %v8750 = vld [vmem:[#allocation7 + $0x1538] sm:$0xff]
    %v8751 = vld [vmem:[#allocation7 + $0x1540] sm:$0xff]
    %v8752 = vld [vmem:[#allocation7 + $0x1548] sm:$0xff]
    %v8753 = vld [vmem:[#allocation7 + $0x1550] sm:$0xff]
    %v8754 = vld [vmem:[#allocation7 + $0x1558] sm:$0xff]
    %v8755 = vld [vmem:[#allocation7 + $0x1560] sm:$0xff]
    %v8756 = vld [vmem:[#allocation7 + $0x1568] sm:$0xff]
    %v8757 = vld [vmem:[#allocation7 + $0x1570] sm:$0xff]
    %v8758 = vld [vmem:[#allocation7 + $0x1578] sm:$0xff]
    %v8759 = vld [vmem:[#allocation7 + $0x1580] sm:$0xff]
    %v8760 = vld [vmem:[#allocation7 + $0x1588] sm:$0xff]
    %v8761 = vld [vmem:[#allocation7 + $0x1590] sm:$0xff]
    %v8762 = vld [vmem:[#allocation7 + $0x1598] sm:$0xff]
    %v8763 = vld [vmem:[#allocation7 + $0x15a0] sm:$0xff]
    %v8764 = vld [vmem:[#allocation7 + $0x15a8] sm:$0xff]
    %v8765 = vld [vmem:[#allocation7 + $0x15b0] sm:$0xff]
    %v8766 = vld [vmem:[#allocation7 + $0x15b8] sm:$0xff]
    %v8767 = vld [vmem:[#allocation7 + $0x15c0] sm:$0xff]
    %v8768 = vld [vmem:[#allocation7 + $0x15c8] sm:$0xff]
    %v8769 = vld [vmem:[#allocation7 + $0x15d0] sm:$0xff]
    %v8770 = vld [vmem:[#allocation7 + $0x15d8] sm:$0xff]
    %v8771 = vld [vmem:[#allocation7 + $0x15e0] sm:$0xff]
    %v8772 = vld [vmem:[#allocation7 + $0x15e8] sm:$0xff]
    %v8773 = vld [vmem:[#allocation7 + $0x15f0] sm:$0xff]
    %v8774 = vld [vmem:[#allocation7 + $0x15f8] sm:$0xff]
    %v8775 = vld [vmem:[#allocation7 + $0x1600] sm:$0xff]
    %v8776 = vld [vmem:[#allocation7 + $0x1608] sm:$0xff]
    %v8777 = vld [vmem:[#allocation7 + $0x1610] sm:$0xff]
    %v8778 = vld [vmem:[#allocation7 + $0x1618] sm:$0xff]
    %v8779 = vld [vmem:[#allocation7 + $0x1620] sm:$0xff]
    %v8780 = vld [vmem:[#allocation7 + $0x1628] sm:$0xff]
    %v8781 = vld [vmem:[#allocation7 + $0x1630] sm:$0xff]
    %v8782 = vld [vmem:[#allocation7 + $0x1638] sm:$0xff]
    %v8783 = vld [vmem:[#allocation7 + $0x1640] sm:$0xff]
    %v8784 = vld [vmem:[#allocation7 + $0x1648] sm:$0xff]
    %v8785 = vld [vmem:[#allocation7 + $0x1650] sm:$0xff]
    %v8786 = vld [vmem:[#allocation7 + $0x1658] sm:$0xff]
    %v8787 = vld [vmem:[#allocation7 + $0x1660] sm:$0xff]
    %v8788 = vld [vmem:[#allocation7 + $0x1668] sm:$0xff]
    %v8789 = vld [vmem:[#allocation7 + $0x1670] sm:$0xff]
    %v8790 = vld [vmem:[#allocation7 + $0x1678] sm:$0xff]
    %v8791 = vld [vmem:[#allocation7 + $0x1680] sm:$0xff]
    %v8792 = vld [vmem:[#allocation7 + $0x1688] sm:$0xff]
    %v8793 = vld [vmem:[#allocation7 + $0x1690] sm:$0xff]
    %v8794 = vld [vmem:[#allocation7 + $0x1698] sm:$0xff]
    %v8795 = vld [vmem:[#allocation7 + $0x16a0] sm:$0xff]
    %v8796 = vld [vmem:[#allocation7 + $0x16a8] sm:$0xff]
    %v8797 = vld [vmem:[#allocation7 + $0x16b0] sm:$0xff]
    %v8798 = vld [vmem:[#allocation7 + $0x16b8] sm:$0xff]
    %v8799 = vld [vmem:[#allocation7 + $0x16c0] sm:$0xff]
    %v8800 = vld [vmem:[#allocation7 + $0x16c8] sm:$0xff]
    %v8801 = vld [vmem:[#allocation7 + $0x16d0] sm:$0xff]
    %v8802 = vld [vmem:[#allocation7 + $0x16d8] sm:$0xff]
    %v8803 = vld [vmem:[#allocation7 + $0x16e0] sm:$0xff]
    %v8804 = vld [vmem:[#allocation7 + $0x16e8] sm:$0xff]
    %v8805 = vld [vmem:[#allocation7 + $0x16f0] sm:$0xff]
    %v8806 = vld [vmem:[#allocation7 + $0x16f8] sm:$0xff]
    %v8807 = vld [vmem:[#allocation7 + $0x1700] sm:$0xff]
    %v8808 = vld [vmem:[#allocation7 + $0x1708] sm:$0xff]
    %v8809 = vld [vmem:[#allocation7 + $0x1710] sm:$0xff]
    %v8810 = vld [vmem:[#allocation7 + $0x1718] sm:$0xff]
    %v8811 = vld [vmem:[#allocation7 + $0x1720] sm:$0xff]
    %v8812 = vld [vmem:[#allocation7 + $0x1728] sm:$0xff]
    %v8813 = vld [vmem:[#allocation7 + $0x1730] sm:$0xff]
    %v8814 = vld [vmem:[#allocation7 + $0x1738] sm:$0xff]
    %v8815 = vld [vmem:[#allocation7 + $0x1740] sm:$0xff]
    %v8816 = vld [vmem:[#allocation7 + $0x1748] sm:$0xff]
    %v8817 = vld [vmem:[#allocation7 + $0x1750] sm:$0xff]
    %v8818 = vld [vmem:[#allocation7 + $0x1758] sm:$0xff]
    %v8819 = vld [vmem:[#allocation7 + $0x1760] sm:$0xff]
    %v8820 = vld [vmem:[#allocation7 + $0x1768] sm:$0xff]
    %v8821 = vld [vmem:[#allocation7 + $0x1770] sm:$0xff]
    %v8822 = vld [vmem:[#allocation7 + $0x1778] sm:$0xff]
    %v8823 = vld [vmem:[#allocation7 + $0x1780] sm:$0xff]
    %v8824 = vld [vmem:[#allocation7 + $0x1788] sm:$0xff]
    %v8825 = vld [vmem:[#allocation7 + $0x1790] sm:$0xff]
    %v8826 = vld [vmem:[#allocation7 + $0x1798] sm:$0xff]
    %v8827 = vld [vmem:[#allocation7 + $0x17a0] sm:$0xff]
    %v8828 = vld [vmem:[#allocation7 + $0x17a8] sm:$0xff]
    %v8829 = vld [vmem:[#allocation7 + $0x17b0] sm:$0xff]
    %v8830 = vld [vmem:[#allocation7 + $0x17b8] sm:$0xff]
    %v8831 = vld [vmem:[#allocation7 + $0x17c0] sm:$0xff]
    %v8832 = vld [vmem:[#allocation7 + $0x17c8] sm:$0xff]
    %v8833 = vld [vmem:[#allocation7 + $0x17d0] sm:$0xff]
    %v8834 = vld [vmem:[#allocation7 + $0x17d8] sm:$0xff]
    %v8835 = vld [vmem:[#allocation7 + $0x17e0] sm:$0xff]
    %v8836 = vld [vmem:[#allocation7 + $0x17e8] sm:$0xff]
    %v8837 = vld [vmem:[#allocation7 + $0x17f0] sm:$0xff]
    %v8838 = vld [vmem:[#allocation7 + $0x17f8] sm:$0xff]
    %v8839 = vld [vmem:[#allocation8] sm:$0xff]
    %v8841 = vlaneseq
    %v8842 = vshrl.u32 %v8841, 7
    %v8843 = vsub.s32 0, %v8842
    %v8844 = vrot.slane %v8839, %v8843
    %v8845 = vlaneseq
    %v8846 = vshrl.u32 %v8845, 7
    %v8847 = vsub.s32 1, %v8846
    %v8848 = vrot.slane %v8839, %v8847
    %v8849 = vlaneseq
    %v8850 = vshrl.u32 %v8849, 7
    %v8851 = vsub.s32 2, %v8850
    %v8852 = vrot.slane %v8839, %v8851
    %v8853 = vlaneseq
    %v8854 = vshrl.u32 %v8853, 7
    %v8855 = vsub.s32 3, %v8854
    %v8856 = vrot.slane %v8839, %v8855
    %v8857 = vlaneseq
    %v8858 = vshrl.u32 %v8857, 7
    %v8859 = vsub.s32 4, %v8858
    %v8860 = vrot.slane %v8839, %v8859
    %v8861 = vlaneseq
    %v8862 = vshrl.u32 %v8861, 7
    %v8863 = vsub.s32 5, %v8862
    %v8864 = vrot.slane %v8839, %v8863
    %v8865 = vlaneseq
    %v8866 = vshrl.u32 %v8865, 7
    %v8867 = vsub.s32 6, %v8866
    %v8868 = vrot.slane %v8839, %v8867
    %v8869 = vlaneseq
    %v8870 = vshrl.u32 %v8869, 7
    %v8871 = vsub.s32 7, %v8870
    %v8872 = vrot.slane %v8839, %v8871
    %v9649 = vunpack.c.l.b16 %v8071
    %v9650 = vunpack.c.h.b16 %v8071
    %v9651 = vunpack.c.l.b16 %v8072
    %v9652 = vunpack.c.h.b16 %v8072
    %v9653 = vunpack.c.l.b16 %v8073
    %v9654 = vunpack.c.h.b16 %v8073
    %v9655 = vunpack.c.l.b16 %v8074
    %v9656 = vunpack.c.h.b16 %v8074
    %v9657 = vunpack.c.l.b16 %v8075
    %v9658 = vunpack.c.h.b16 %v8075
    %v9659 = vunpack.c.l.b16 %v8076
    %v9660 = vunpack.c.h.b16 %v8076
    %v9661 = vunpack.c.l.b16 %v8077
    %v9662 = vunpack.c.h.b16 %v8077
    %v9663 = vunpack.c.l.b16 %v8078
    %v9664 = vunpack.c.h.b16 %v8078
    %v9665 = vunpack.c.l.b16 %v8079
    %v9666 = vunpack.c.h.b16 %v8079
    %v9667 = vunpack.c.l.b16 %v8080
    %v9668 = vunpack.c.h.b16 %v8080
    %v9669 = vunpack.c.l.b16 %v8081
    %v9670 = vunpack.c.h.b16 %v8081
    %v9671 = vunpack.c.l.b16 %v8082
    %v9672 = vunpack.c.h.b16 %v8082
    %v9673 = vunpack.c.l.b16 %v8083
    %v9674 = vunpack.c.h.b16 %v8083
    %v9675 = vunpack.c.l.b16 %v8084
    %v9676 = vunpack.c.h.b16 %v8084
    %v9677 = vunpack.c.l.b16 %v8085
    %v9678 = vunpack.c.h.b16 %v8085
    %v9679 = vunpack.c.l.b16 %v8086
    %v9680 = vunpack.c.h.b16 %v8086
    %v9681 = vunpack.c.l.b16 %v8087
    %v9682 = vunpack.c.h.b16 %v8087
    %v9683 = vunpack.c.l.b16 %v8088
    %v9684 = vunpack.c.h.b16 %v8088
    %v9685 = vunpack.c.l.b16 %v8089
    %v9686 = vunpack.c.h.b16 %v8089
    %v9687 = vunpack.c.l.b16 %v8090
    %v9688 = vunpack.c.h.b16 %v8090
    %v9689 = vunpack.c.l.b16 %v8091
    %v9690 = vunpack.c.h.b16 %v8091
    %v9691 = vunpack.c.l.b16 %v8092
    %v9692 = vunpack.c.h.b16 %v8092
    %v9693 = vunpack.c.l.b16 %v8093
    %v9694 = vunpack.c.h.b16 %v8093
    %v9695 = vunpack.c.l.b16 %v8094
    %v9696 = vunpack.c.h.b16 %v8094
    %v9697 = vunpack.c.l.b16 %v8095
    %v9698 = vunpack.c.h.b16 %v8095
    %v9699 = vunpack.c.l.b16 %v8096
    %v9700 = vunpack.c.h.b16 %v8096
    %v9701 = vunpack.c.l.b16 %v8097
    %v9702 = vunpack.c.h.b16 %v8097
    %v9703 = vunpack.c.l.b16 %v8098
    %v9704 = vunpack.c.h.b16 %v8098
    %v9705 = vunpack.c.l.b16 %v8099
    %v9706 = vunpack.c.h.b16 %v8099
    %v9707 = vunpack.c.l.b16 %v8100
    %v9708 = vunpack.c.h.b16 %v8100
    %v9709 = vunpack.c.l.b16 %v8101
    %v9710 = vunpack.c.h.b16 %v8101
    %v9711 = vunpack.c.l.b16 %v8102
    %v9712 = vunpack.c.h.b16 %v8102
    %v9713 = vunpack.c.l.b16 %v8103
    %v9714 = vunpack.c.h.b16 %v8103
    %v9715 = vunpack.c.l.b16 %v8104
    %v9716 = vunpack.c.h.b16 %v8104
    %v9717 = vunpack.c.l.b16 %v8105
    %v9718 = vunpack.c.h.b16 %v8105
    %v9719 = vunpack.c.l.b16 %v8106
    %v9720 = vunpack.c.h.b16 %v8106
    %v9721 = vunpack.c.l.b16 %v8107
    %v9722 = vunpack.c.h.b16 %v8107
    %v9723 = vunpack.c.l.b16 %v8108
    %v9724 = vunpack.c.h.b16 %v8108
    %v9725 = vunpack.c.l.b16 %v8109
    %v9726 = vunpack.c.h.b16 %v8109
    %v9727 = vunpack.c.l.b16 %v8110
    %v9728 = vunpack.c.h.b16 %v8110
    %v9729 = vunpack.c.l.b16 %v8111
    %v9730 = vunpack.c.h.b16 %v8111
    %v9731 = vunpack.c.l.b16 %v8112
    %v9732 = vunpack.c.h.b16 %v8112
    %v9733 = vunpack.c.l.b16 %v8113
    %v9734 = vunpack.c.h.b16 %v8113
    %v9735 = vunpack.c.l.b16 %v8114
    %v9736 = vunpack.c.h.b16 %v8114
    %v9737 = vunpack.c.l.b16 %v8115
    %v9738 = vunpack.c.h.b16 %v8115
    %v9739 = vunpack.c.l.b16 %v8116
    %v9740 = vunpack.c.h.b16 %v8116
    %v9741 = vunpack.c.l.b16 %v8117
    %v9742 = vunpack.c.h.b16 %v8117
    %v9743 = vunpack.c.l.b16 %v8118
    %v9744 = vunpack.c.h.b16 %v8118
    %v9745 = vunpack.c.l.b16 %v8119
    %v9746 = vunpack.c.h.b16 %v8119
    %v9747 = vunpack.c.l.b16 %v8120
    %v9748 = vunpack.c.h.b16 %v8120
    %v9749 = vunpack.c.l.b16 %v8121
    %v9750 = vunpack.c.h.b16 %v8121
    %v9751 = vunpack.c.l.b16 %v8122
    %v9752 = vunpack.c.h.b16 %v8122
    %v9753 = vunpack.c.l.b16 %v8123
    %v9754 = vunpack.c.h.b16 %v8123
    %v9755 = vunpack.c.l.b16 %v8124
    %v9756 = vunpack.c.h.b16 %v8124
    %v9757 = vunpack.c.l.b16 %v8125
    %v9758 = vunpack.c.h.b16 %v8125
    %v9759 = vunpack.c.l.b16 %v8126
    %v9760 = vunpack.c.h.b16 %v8126
    %v9761 = vunpack.c.l.b16 %v8127
    %v9762 = vunpack.c.h.b16 %v8127
    %v9763 = vunpack.c.l.b16 %v8128
    %v9764 = vunpack.c.h.b16 %v8128
    %v9765 = vunpack.c.l.b16 %v8129
    %v9766 = vunpack.c.h.b16 %v8129
    %v9767 = vunpack.c.l.b16 %v8130
    %v9768 = vunpack.c.h.b16 %v8130
    %v9769 = vunpack.c.l.b16 %v8131
    %v9770 = vunpack.c.h.b16 %v8131
    %v9771 = vunpack.c.l.b16 %v8132
    %v9772 = vunpack.c.h.b16 %v8132
    %v9773 = vunpack.c.l.b16 %v8133
    %v9774 = vunpack.c.h.b16 %v8133
    %v9775 = vunpack.c.l.b16 %v8134
    %v9776 = vunpack.c.h.b16 %v8134
    %v9777 = vunpack.c.l.b16 %v8135
    %v9778 = vunpack.c.h.b16 %v8135
    %v9779 = vunpack.c.l.b16 %v8136
    %v9780 = vunpack.c.h.b16 %v8136
    %v9781 = vunpack.c.l.b16 %v8137
    %v9782 = vunpack.c.h.b16 %v8137
    %v9783 = vunpack.c.l.b16 %v8138
    %v9784 = vunpack.c.h.b16 %v8138
    %v9785 = vunpack.c.l.b16 %v8139
    %v9786 = vunpack.c.h.b16 %v8139
    %v9787 = vunpack.c.l.b16 %v8140
    %v9788 = vunpack.c.h.b16 %v8140
    %v9789 = vunpack.c.l.b16 %v8141
    %v9790 = vunpack.c.h.b16 %v8141
    %v9791 = vunpack.c.l.b16 %v8142
    %v9792 = vunpack.c.h.b16 %v8142
    %v9793 = vunpack.c.l.b16 %v8143
    %v9794 = vunpack.c.h.b16 %v8143
    %v9795 = vunpack.c.l.b16 %v8144
    %v9796 = vunpack.c.h.b16 %v8144
    %v9797 = vunpack.c.l.b16 %v8145
    %v9798 = vunpack.c.h.b16 %v8145
    %v9799 = vunpack.c.l.b16 %v8146
    %v9800 = vunpack.c.h.b16 %v8146
    %v9801 = vunpack.c.l.b16 %v8147
    %v9802 = vunpack.c.h.b16 %v8147
    %v9803 = vunpack.c.l.b16 %v8148
    %v9804 = vunpack.c.h.b16 %v8148
    %v9805 = vunpack.c.l.b16 %v8149
    %v9806 = vunpack.c.h.b16 %v8149
    %v9807 = vunpack.c.l.b16 %v8150
    %v9808 = vunpack.c.h.b16 %v8150
    %v9809 = vunpack.c.l.b16 %v8151
    %v9810 = vunpack.c.h.b16 %v8151
    %v9811 = vunpack.c.l.b16 %v8152
    %v9812 = vunpack.c.h.b16 %v8152
    %v9813 = vunpack.c.l.b16 %v8153
    %v9814 = vunpack.c.h.b16 %v8153
    %v9815 = vunpack.c.l.b16 %v8154
    %v9816 = vunpack.c.h.b16 %v8154
    %v9817 = vunpack.c.l.b16 %v8155
    %v9818 = vunpack.c.h.b16 %v8155
    %v9819 = vunpack.c.l.b16 %v8156
    %v9820 = vunpack.c.h.b16 %v8156
    %v9821 = vunpack.c.l.b16 %v8157
    %v9822 = vunpack.c.h.b16 %v8157
    %v9823 = vunpack.c.l.b16 %v8158
    %v9824 = vunpack.c.h.b16 %v8158
    %v9825 = vunpack.c.l.b16 %v8159
    %v9826 = vunpack.c.h.b16 %v8159
    %v9827 = vunpack.c.l.b16 %v8160
    %v9828 = vunpack.c.h.b16 %v8160
    %v9829 = vunpack.c.l.b16 %v8161
    %v9830 = vunpack.c.h.b16 %v8161
    %v9831 = vunpack.c.l.b16 %v8162
    %v9832 = vunpack.c.h.b16 %v8162
    %v9833 = vunpack.c.l.b16 %v8163
    %v9834 = vunpack.c.h.b16 %v8163
    %v9835 = vunpack.c.l.b16 %v8164
    %v9836 = vunpack.c.h.b16 %v8164
    %v9837 = vunpack.c.l.b16 %v8165
    %v9838 = vunpack.c.h.b16 %v8165
    %v9839 = vunpack.c.l.b16 %v8166
    %v9840 = vunpack.c.h.b16 %v8166
    %v9841 = vunpack.c.l.b16 %v8167
    %v9842 = vunpack.c.h.b16 %v8167
    %v9843 = vunpack.c.l.b16 %v8168
    %v9844 = vunpack.c.h.b16 %v8168
    %v9845 = vunpack.c.l.b16 %v8169
    %v9846 = vunpack.c.h.b16 %v8169
    %v9847 = vunpack.c.l.b16 %v8170
    %v9848 = vunpack.c.h.b16 %v8170
    %v9849 = vunpack.c.l.b16 %v8171
    %v9850 = vunpack.c.h.b16 %v8171
    %v9851 = vunpack.c.l.b16 %v8172
    %v9852 = vunpack.c.h.b16 %v8172
    %v9853 = vunpack.c.l.b16 %v8173
    %v9854 = vunpack.c.h.b16 %v8173
    %v9855 = vunpack.c.l.b16 %v8174
    %v9856 = vunpack.c.h.b16 %v8174
    %v9857 = vunpack.c.l.b16 %v8175
    %v9858 = vunpack.c.h.b16 %v8175
    %v9859 = vunpack.c.l.b16 %v8176
    %v9860 = vunpack.c.h.b16 %v8176
    %v9861 = vunpack.c.l.b16 %v8177
    %v9862 = vunpack.c.h.b16 %v8177
    %v9863 = vunpack.c.l.b16 %v8178
    %v9864 = vunpack.c.h.b16 %v8178
    %v9865 = vunpack.c.l.b16 %v8179
    %v9866 = vunpack.c.h.b16 %v8179
    %v9867 = vunpack.c.l.b16 %v8180
    %v9868 = vunpack.c.h.b16 %v8180
    %v9869 = vunpack.c.l.b16 %v8181
    %v9870 = vunpack.c.h.b16 %v8181
    %v9871 = vunpack.c.l.b16 %v8182
    %v9872 = vunpack.c.h.b16 %v8182
    %v9873 = vunpack.c.l.b16 %v8183
    %v9874 = vunpack.c.h.b16 %v8183
    %v9875 = vunpack.c.l.b16 %v8184
    %v9876 = vunpack.c.h.b16 %v8184
    %v9877 = vunpack.c.l.b16 %v8185
    %v9878 = vunpack.c.h.b16 %v8185
    %v9879 = vunpack.c.l.b16 %v8186
    %v9880 = vunpack.c.h.b16 %v8186
    %v9881 = vunpack.c.l.b16 %v8187
    %v9882 = vunpack.c.h.b16 %v8187
    %v9883 = vunpack.c.l.b16 %v8188
    %v9884 = vunpack.c.h.b16 %v8188
    %v9885 = vunpack.c.l.b16 %v8189
    %v9886 = vunpack.c.h.b16 %v8189
    %v9887 = vunpack.c.l.b16 %v8190
    %v9888 = vunpack.c.h.b16 %v8190
    %v9889 = vunpack.c.l.b16 %v8191
    %v9890 = vunpack.c.h.b16 %v8191
    %v9891 = vunpack.c.l.b16 %v8192
    %v9892 = vunpack.c.h.b16 %v8192
    %v9893 = vunpack.c.l.b16 %v8193
    %v9894 = vunpack.c.h.b16 %v8193
    %v9895 = vunpack.c.l.b16 %v8194
    %v9896 = vunpack.c.h.b16 %v8194
    %v9897 = vunpack.c.l.b16 %v8195
    %v9898 = vunpack.c.h.b16 %v8195
    %v9899 = vunpack.c.l.b16 %v8196
    %v9900 = vunpack.c.h.b16 %v8196
    %v9901 = vunpack.c.l.b16 %v8197
    %v9902 = vunpack.c.h.b16 %v8197
    %v9903 = vunpack.c.l.b16 %v8198
    %v9904 = vunpack.c.h.b16 %v8198
    %v9905 = vunpack.c.l.b16 %v8199
    %v9906 = vunpack.c.h.b16 %v8199
    %v9907 = vunpack.c.l.b16 %v8200
    %v9908 = vunpack.c.h.b16 %v8200
    %v9909 = vunpack.c.l.b16 %v8201
    %v9910 = vunpack.c.h.b16 %v8201
    %v9911 = vunpack.c.l.b16 %v8202
    %v9912 = vunpack.c.h.b16 %v8202
    %v9913 = vunpack.c.l.b16 %v8203
    %v9914 = vunpack.c.h.b16 %v8203
    %v9915 = vunpack.c.l.b16 %v8204
    %v9916 = vunpack.c.h.b16 %v8204
    %v9917 = vunpack.c.l.b16 %v8205
    %v9918 = vunpack.c.h.b16 %v8205
    %v9919 = vunpack.c.l.b16 %v8206
    %v9920 = vunpack.c.h.b16 %v8206
    %v9921 = vunpack.c.l.b16 %v8207
    %v9922 = vunpack.c.h.b16 %v8207
    %v9923 = vunpack.c.l.b16 %v8208
    %v9924 = vunpack.c.h.b16 %v8208
    %v9925 = vunpack.c.l.b16 %v8209
    %v9926 = vunpack.c.h.b16 %v8209
    %v9927 = vunpack.c.l.b16 %v8210
    %v9928 = vunpack.c.h.b16 %v8210
    %v9929 = vunpack.c.l.b16 %v8211
    %v9930 = vunpack.c.h.b16 %v8211
    %v9931 = vunpack.c.l.b16 %v8212
    %v9932 = vunpack.c.h.b16 %v8212
    %v9933 = vunpack.c.l.b16 %v8213
    %v9934 = vunpack.c.h.b16 %v8213
    %v9935 = vunpack.c.l.b16 %v8214
    %v9936 = vunpack.c.h.b16 %v8214
    %v9937 = vunpack.c.l.b16 %v8215
    %v9938 = vunpack.c.h.b16 %v8215
    %v9939 = vunpack.c.l.b16 %v8216
    %v9940 = vunpack.c.h.b16 %v8216
    %v9941 = vunpack.c.l.b16 %v8217
    %v9942 = vunpack.c.h.b16 %v8217
    %v9943 = vunpack.c.l.b16 %v8218
    %v9944 = vunpack.c.h.b16 %v8218
    %v9945 = vunpack.c.l.b16 %v8219
    %v9946 = vunpack.c.h.b16 %v8219
    %v9947 = vunpack.c.l.b16 %v8220
    %v9948 = vunpack.c.h.b16 %v8220
    %v9949 = vunpack.c.l.b16 %v8221
    %v9950 = vunpack.c.h.b16 %v8221
    %v9951 = vunpack.c.l.b16 %v8222
    %v9952 = vunpack.c.h.b16 %v8222
    %v9953 = vunpack.c.l.b16 %v8223
    %v9954 = vunpack.c.h.b16 %v8223
    %v9955 = vunpack.c.l.b16 %v8224
    %v9956 = vunpack.c.h.b16 %v8224
    %v9957 = vunpack.c.l.b16 %v8225
    %v9958 = vunpack.c.h.b16 %v8225
    %v9959 = vunpack.c.l.b16 %v8226
    %v9960 = vunpack.c.h.b16 %v8226
    %v9961 = vunpack.c.l.b16 %v8227
    %v9962 = vunpack.c.h.b16 %v8227
    %v9963 = vunpack.c.l.b16 %v8228
    %v9964 = vunpack.c.h.b16 %v8228
    %v9965 = vunpack.c.l.b16 %v8229
    %v9966 = vunpack.c.h.b16 %v8229
    %v9967 = vunpack.c.l.b16 %v8230
    %v9968 = vunpack.c.h.b16 %v8230
    %v9969 = vunpack.c.l.b16 %v8231
    %v9970 = vunpack.c.h.b16 %v8231
    %v9971 = vunpack.c.l.b16 %v8232
    %v9972 = vunpack.c.h.b16 %v8232
    %v9973 = vunpack.c.l.b16 %v8233
    %v9974 = vunpack.c.h.b16 %v8233
    %v9975 = vunpack.c.l.b16 %v8234
    %v9976 = vunpack.c.h.b16 %v8234
    %v9977 = vunpack.c.l.b16 %v8235
    %v9978 = vunpack.c.h.b16 %v8235
    %v9979 = vunpack.c.l.b16 %v8236
    %v9980 = vunpack.c.h.b16 %v8236
    %v9981 = vunpack.c.l.b16 %v8237
    %v9982 = vunpack.c.h.b16 %v8237
    %v9983 = vunpack.c.l.b16 %v8238
    %v9984 = vunpack.c.h.b16 %v8238
    %v9985 = vunpack.c.l.b16 %v8239
    %v9986 = vunpack.c.h.b16 %v8239
    %v9987 = vunpack.c.l.b16 %v8240
    %v9988 = vunpack.c.h.b16 %v8240
    %v9989 = vunpack.c.l.b16 %v8241
    %v9990 = vunpack.c.h.b16 %v8241
    %v9991 = vunpack.c.l.b16 %v8242
    %v9992 = vunpack.c.h.b16 %v8242
    %v9993 = vunpack.c.l.b16 %v8243
    %v9994 = vunpack.c.h.b16 %v8243
    %v9995 = vunpack.c.l.b16 %v8244
    %v9996 = vunpack.c.h.b16 %v8244
    %v9997 = vunpack.c.l.b16 %v8245
    %v9998 = vunpack.c.h.b16 %v8245
    %v9999 = vunpack.c.l.b16 %v8246
    %v10000 = vunpack.c.h.b16 %v8246
    %v10001 = vunpack.c.l.b16 %v8247
    %v10002 = vunpack.c.h.b16 %v8247
    %v10003 = vunpack.c.l.b16 %v8248
    %v10004 = vunpack.c.h.b16 %v8248
    %v10005 = vunpack.c.l.b16 %v8249
    %v10006 = vunpack.c.h.b16 %v8249
    %v10007 = vunpack.c.l.b16 %v8250
    %v10008 = vunpack.c.h.b16 %v8250
    %v10009 = vunpack.c.l.b16 %v8251
    %v10010 = vunpack.c.h.b16 %v8251
    %v10011 = vunpack.c.l.b16 %v8252
    %v10012 = vunpack.c.h.b16 %v8252
    %v10013 = vunpack.c.l.b16 %v8253
    %v10014 = vunpack.c.h.b16 %v8253
    %v10015 = vunpack.c.l.b16 %v8254
    %v10016 = vunpack.c.h.b16 %v8254
    %v10017 = vunpack.c.l.b16 %v8255
    %v10018 = vunpack.c.h.b16 %v8255
    %v10019 = vunpack.c.l.b16 %v8256
    %v10020 = vunpack.c.h.b16 %v8256
    %v10021 = vunpack.c.l.b16 %v8257
    %v10022 = vunpack.c.h.b16 %v8257
    %v10023 = vunpack.c.l.b16 %v8258
    %v10024 = vunpack.c.h.b16 %v8258
    %v10025 = vunpack.c.l.b16 %v8259
    %v10026 = vunpack.c.h.b16 %v8259
    %v10027 = vunpack.c.l.b16 %v8260
    %v10028 = vunpack.c.h.b16 %v8260
    %v10029 = vunpack.c.l.b16 %v8261
    %v10030 = vunpack.c.h.b16 %v8261
    %v10031 = vunpack.c.l.b16 %v8262
    %v10032 = vunpack.c.h.b16 %v8262
    %v10033 = vunpack.c.l.b16 %v8263
    %v10034 = vunpack.c.h.b16 %v8263
    %v10035 = vunpack.c.l.b16 %v8264
    %v10036 = vunpack.c.h.b16 %v8264
    %v10037 = vunpack.c.l.b16 %v8265
    %v10038 = vunpack.c.h.b16 %v8265
    %v10039 = vunpack.c.l.b16 %v8266
    %v10040 = vunpack.c.h.b16 %v8266
    %v10041 = vunpack.c.l.b16 %v8267
    %v10042 = vunpack.c.h.b16 %v8267
    %v10043 = vunpack.c.l.b16 %v8268
    %v10044 = vunpack.c.h.b16 %v8268
    %v10045 = vunpack.c.l.b16 %v8269
    %v10046 = vunpack.c.h.b16 %v8269
    %v10047 = vunpack.c.l.b16 %v8270
    %v10048 = vunpack.c.h.b16 %v8270
    %v10049 = vunpack.c.l.b16 %v8271
    %v10050 = vunpack.c.h.b16 %v8271
    %v10051 = vunpack.c.l.b16 %v8272
    %v10052 = vunpack.c.h.b16 %v8272
    %v10053 = vunpack.c.l.b16 %v8273
    %v10054 = vunpack.c.h.b16 %v8273
    %v10055 = vunpack.c.l.b16 %v8274
    %v10056 = vunpack.c.h.b16 %v8274
    %v10057 = vunpack.c.l.b16 %v8275
    %v10058 = vunpack.c.h.b16 %v8275
    %v10059 = vunpack.c.l.b16 %v8276
    %v10060 = vunpack.c.h.b16 %v8276
    %v10061 = vunpack.c.l.b16 %v8277
    %v10062 = vunpack.c.h.b16 %v8277
    %v10063 = vunpack.c.l.b16 %v8278
    %v10064 = vunpack.c.h.b16 %v8278
    %v10065 = vunpack.c.l.b16 %v8279
    %v10066 = vunpack.c.h.b16 %v8279
    %v10067 = vunpack.c.l.b16 %v8280
    %v10068 = vunpack.c.h.b16 %v8280
    %v10069 = vunpack.c.l.b16 %v8281
    %v10070 = vunpack.c.h.b16 %v8281
    %v10071 = vunpack.c.l.b16 %v8282
    %v10072 = vunpack.c.h.b16 %v8282
    %v10073 = vunpack.c.l.b16 %v8283
    %v10074 = vunpack.c.h.b16 %v8283
    %v10075 = vunpack.c.l.b16 %v8284
    %v10076 = vunpack.c.h.b16 %v8284
    %v10077 = vunpack.c.l.b16 %v8285
    %v10078 = vunpack.c.h.b16 %v8285
    %v10079 = vunpack.c.l.b16 %v8286
    %v10080 = vunpack.c.h.b16 %v8286
    %v10081 = vunpack.c.l.b16 %v8287
    %v10082 = vunpack.c.h.b16 %v8287
    %v10083 = vunpack.c.l.b16 %v8288
    %v10084 = vunpack.c.h.b16 %v8288
    %v10085 = vunpack.c.l.b16 %v8289
    %v10086 = vunpack.c.h.b16 %v8289
    %v10087 = vunpack.c.l.b16 %v8290
    %v10088 = vunpack.c.h.b16 %v8290
    %v10089 = vunpack.c.l.b16 %v8291
    %v10090 = vunpack.c.h.b16 %v8291
    %v10091 = vunpack.c.l.b16 %v8292
    %v10092 = vunpack.c.h.b16 %v8292
    %v10093 = vunpack.c.l.b16 %v8293
    %v10094 = vunpack.c.h.b16 %v8293
    %v10095 = vunpack.c.l.b16 %v8294
    %v10096 = vunpack.c.h.b16 %v8294
    %v10097 = vunpack.c.l.b16 %v8295
    %v10098 = vunpack.c.h.b16 %v8295
    %v10099 = vunpack.c.l.b16 %v8296
    %v10100 = vunpack.c.h.b16 %v8296
    %v10101 = vunpack.c.l.b16 %v8297
    %v10102 = vunpack.c.h.b16 %v8297
    %v10103 = vunpack.c.l.b16 %v8298
    %v10104 = vunpack.c.h.b16 %v8298
    %v10105 = vunpack.c.l.b16 %v8299
    %v10106 = vunpack.c.h.b16 %v8299
    %v10107 = vunpack.c.l.b16 %v8300
    %v10108 = vunpack.c.h.b16 %v8300
    %v10109 = vunpack.c.l.b16 %v8301
    %v10110 = vunpack.c.h.b16 %v8301
    %v10111 = vunpack.c.l.b16 %v8302
    %v10112 = vunpack.c.h.b16 %v8302
    %v10113 = vunpack.c.l.b16 %v8303
    %v10114 = vunpack.c.h.b16 %v8303
    %v10115 = vunpack.c.l.b16 %v8304
    %v10116 = vunpack.c.h.b16 %v8304
    %v10117 = vunpack.c.l.b16 %v8305
    %v10118 = vunpack.c.h.b16 %v8305
    %v10119 = vunpack.c.l.b16 %v8306
    %v10120 = vunpack.c.h.b16 %v8306
    %v10121 = vunpack.c.l.b16 %v8307
    %v10122 = vunpack.c.h.b16 %v8307
    %v10123 = vunpack.c.l.b16 %v8308
    %v10124 = vunpack.c.h.b16 %v8308
    %v10125 = vunpack.c.l.b16 %v8309
    %v10126 = vunpack.c.h.b16 %v8309
    %v10127 = vunpack.c.l.b16 %v8310
    %v10128 = vunpack.c.h.b16 %v8310
    %v10129 = vunpack.c.l.b16 %v8311
    %v10130 = vunpack.c.h.b16 %v8311
    %v10131 = vunpack.c.l.b16 %v8312
    %v10132 = vunpack.c.h.b16 %v8312
    %v10133 = vunpack.c.l.b16 %v8313
    %v10134 = vunpack.c.h.b16 %v8313
    %v10135 = vunpack.c.l.b16 %v8314
    %v10136 = vunpack.c.h.b16 %v8314
    %v10137 = vunpack.c.l.b16 %v8315
    %v10138 = vunpack.c.h.b16 %v8315
    %v10139 = vunpack.c.l.b16 %v8316
    %v10140 = vunpack.c.h.b16 %v8316
    %v10141 = vunpack.c.l.b16 %v8317
    %v10142 = vunpack.c.h.b16 %v8317
    %v10143 = vunpack.c.l.b16 %v8318
    %v10144 = vunpack.c.h.b16 %v8318
    %v10145 = vunpack.c.l.b16 %v8319
    %v10146 = vunpack.c.h.b16 %v8319
    %v10147 = vunpack.c.l.b16 %v8320
    %v10148 = vunpack.c.h.b16 %v8320
    %v10149 = vunpack.c.l.b16 %v8321
    %v10150 = vunpack.c.h.b16 %v8321
    %v10151 = vunpack.c.l.b16 %v8322
    %v10152 = vunpack.c.h.b16 %v8322
    %v10153 = vunpack.c.l.b16 %v8323
    %v10154 = vunpack.c.h.b16 %v8323
    %v10155 = vunpack.c.l.b16 %v8324
    %v10156 = vunpack.c.h.b16 %v8324
    %v10157 = vunpack.c.l.b16 %v8325
    %v10158 = vunpack.c.h.b16 %v8325
    %v10159 = vunpack.c.l.b16 %v8326
    %v10160 = vunpack.c.h.b16 %v8326
    %v10161 = vunpack.c.l.b16 %v8327
    %v10162 = vunpack.c.h.b16 %v8327
    %v10163 = vunpack.c.l.b16 %v8328
    %v10164 = vunpack.c.h.b16 %v8328
    %v10165 = vunpack.c.l.b16 %v8329
    %v10166 = vunpack.c.h.b16 %v8329
    %v10167 = vunpack.c.l.b16 %v8330
    %v10168 = vunpack.c.h.b16 %v8330
    %v10169 = vunpack.c.l.b16 %v8331
    %v10170 = vunpack.c.h.b16 %v8331
    %v10171 = vunpack.c.l.b16 %v8332
    %v10172 = vunpack.c.h.b16 %v8332
    %v10173 = vunpack.c.l.b16 %v8333
    %v10174 = vunpack.c.h.b16 %v8333
    %v10175 = vunpack.c.l.b16 %v8334
    %v10176 = vunpack.c.h.b16 %v8334
    %v10177 = vunpack.c.l.b16 %v8335
    %v10178 = vunpack.c.h.b16 %v8335
    %v10179 = vunpack.c.l.b16 %v8336
    %v10180 = vunpack.c.h.b16 %v8336
    %v10181 = vunpack.c.l.b16 %v8337
    %v10182 = vunpack.c.h.b16 %v8337
    %v10183 = vunpack.c.l.b16 %v8338
    %v10184 = vunpack.c.h.b16 %v8338
    %v10185 = vunpack.c.l.b16 %v8339
    %v10186 = vunpack.c.h.b16 %v8339
    %v10187 = vunpack.c.l.b16 %v8340
    %v10188 = vunpack.c.h.b16 %v8340
    %v10189 = vunpack.c.l.b16 %v8341
    %v10190 = vunpack.c.h.b16 %v8341
    %v10191 = vunpack.c.l.b16 %v8342
    %v10192 = vunpack.c.h.b16 %v8342
    %v10193 = vunpack.c.l.b16 %v8343
    %v10194 = vunpack.c.h.b16 %v8343
    %v10195 = vunpack.c.l.b16 %v8344
    %v10196 = vunpack.c.h.b16 %v8344
    %v10197 = vunpack.c.l.b16 %v8345
    %v10198 = vunpack.c.h.b16 %v8345
    %v10199 = vunpack.c.l.b16 %v8346
    %v10200 = vunpack.c.h.b16 %v8346
    %v10201 = vunpack.c.l.b16 %v8347
    %v10202 = vunpack.c.h.b16 %v8347
    %v10203 = vunpack.c.l.b16 %v8348
    %v10204 = vunpack.c.h.b16 %v8348
    %v10205 = vunpack.c.l.b16 %v8349
    %v10206 = vunpack.c.h.b16 %v8349
    %v10207 = vunpack.c.l.b16 %v8350
    %v10208 = vunpack.c.h.b16 %v8350
    %v10209 = vunpack.c.l.b16 %v8351
    %v10210 = vunpack.c.h.b16 %v8351
    %v10211 = vunpack.c.l.b16 %v8352
    %v10212 = vunpack.c.h.b16 %v8352
    %v10213 = vunpack.c.l.b16 %v8353
    %v10214 = vunpack.c.h.b16 %v8353
    %v10215 = vunpack.c.l.b16 %v8354
    %v10216 = vunpack.c.h.b16 %v8354
    %v10217 = vunpack.c.l.b16 %v8355
    %v10218 = vunpack.c.h.b16 %v8355
    %v10219 = vunpack.c.l.b16 %v8356
    %v10220 = vunpack.c.h.b16 %v8356
    %v10221 = vunpack.c.l.b16 %v8357
    %v10222 = vunpack.c.h.b16 %v8357
    %v10223 = vunpack.c.l.b16 %v8358
    %v10224 = vunpack.c.h.b16 %v8358
    %v10225 = vunpack.c.l.b16 %v8359
    %v10226 = vunpack.c.h.b16 %v8359
    %v10227 = vunpack.c.l.b16 %v8360
    %v10228 = vunpack.c.h.b16 %v8360
    %v10229 = vunpack.c.l.b16 %v8361
    %v10230 = vunpack.c.h.b16 %v8361
    %v10231 = vunpack.c.l.b16 %v8362
    %v10232 = vunpack.c.h.b16 %v8362
    %v10233 = vunpack.c.l.b16 %v8363
    %v10234 = vunpack.c.h.b16 %v8363
    %v10235 = vunpack.c.l.b16 %v8364
    %v10236 = vunpack.c.h.b16 %v8364
    %v10237 = vunpack.c.l.b16 %v8365
    %v10238 = vunpack.c.h.b16 %v8365
    %v10239 = vunpack.c.l.b16 %v8366
    %v10240 = vunpack.c.h.b16 %v8366
    %v10241 = vunpack.c.l.b16 %v8367
    %v10242 = vunpack.c.h.b16 %v8367
    %v10243 = vunpack.c.l.b16 %v8368
    %v10244 = vunpack.c.h.b16 %v8368
    %v10245 = vunpack.c.l.b16 %v8369
    %v10246 = vunpack.c.h.b16 %v8369
    %v10247 = vunpack.c.l.b16 %v8370
    %v10248 = vunpack.c.h.b16 %v8370
    %v10249 = vunpack.c.l.b16 %v8371
    %v10250 = vunpack.c.h.b16 %v8371
    %v10251 = vunpack.c.l.b16 %v8372
    %v10252 = vunpack.c.h.b16 %v8372
    %v10253 = vunpack.c.l.b16 %v8373
    %v10254 = vunpack.c.h.b16 %v8373
    %v10255 = vunpack.c.l.b16 %v8374
    %v10256 = vunpack.c.h.b16 %v8374
    %v10257 = vunpack.c.l.b16 %v8375
    %v10258 = vunpack.c.h.b16 %v8375
    %v10259 = vunpack.c.l.b16 %v8376
    %v10260 = vunpack.c.h.b16 %v8376
    %v10261 = vunpack.c.l.b16 %v8377
    %v10262 = vunpack.c.h.b16 %v8377
    %v10263 = vunpack.c.l.b16 %v8378
    %v10264 = vunpack.c.h.b16 %v8378
    %v10265 = vunpack.c.l.b16 %v8379
    %v10266 = vunpack.c.h.b16 %v8379
    %v10267 = vunpack.c.l.b16 %v8380
    %v10268 = vunpack.c.h.b16 %v8380
    %v10269 = vunpack.c.l.b16 %v8381
    %v10270 = vunpack.c.h.b16 %v8381
    %v10271 = vunpack.c.l.b16 %v8382
    %v10272 = vunpack.c.h.b16 %v8382
    %v10273 = vunpack.c.l.b16 %v8383
    %v10274 = vunpack.c.h.b16 %v8383
    %v10275 = vunpack.c.l.b16 %v8384
    %v10276 = vunpack.c.h.b16 %v8384
    %v10277 = vunpack.c.l.b16 %v8385
    %v10278 = vunpack.c.h.b16 %v8385
    %v10279 = vunpack.c.l.b16 %v8386
    %v10280 = vunpack.c.h.b16 %v8386
    %v10281 = vunpack.c.l.b16 %v8387
    %v10282 = vunpack.c.h.b16 %v8387
    %v10283 = vunpack.c.l.b16 %v8388
    %v10284 = vunpack.c.h.b16 %v8388
    %v10285 = vunpack.c.l.b16 %v8389
    %v10286 = vunpack.c.h.b16 %v8389
    %v10287 = vunpack.c.l.b16 %v8390
    %v10288 = vunpack.c.h.b16 %v8390
    %v10289 = vunpack.c.l.b16 %v8391
    %v10290 = vunpack.c.h.b16 %v8391
    %v10291 = vunpack.c.l.b16 %v8392
    %v10292 = vunpack.c.h.b16 %v8392
    %v10293 = vunpack.c.l.b16 %v8393
    %v10294 = vunpack.c.h.b16 %v8393
    %v10295 = vunpack.c.l.b16 %v8394
    %v10296 = vunpack.c.h.b16 %v8394
    %v10297 = vunpack.c.l.b16 %v8395
    %v10298 = vunpack.c.h.b16 %v8395
    %v10299 = vunpack.c.l.b16 %v8396
    %v10300 = vunpack.c.h.b16 %v8396
    %v10301 = vunpack.c.l.b16 %v8397
    %v10302 = vunpack.c.h.b16 %v8397
    %v10303 = vunpack.c.l.b16 %v8398
    %v10304 = vunpack.c.h.b16 %v8398
    %v10305 = vunpack.c.l.b16 %v8399
    %v10306 = vunpack.c.h.b16 %v8399
    %v10307 = vunpack.c.l.b16 %v8400
    %v10308 = vunpack.c.h.b16 %v8400
    %v10309 = vunpack.c.l.b16 %v8401
    %v10310 = vunpack.c.h.b16 %v8401
    %v10311 = vunpack.c.l.b16 %v8402
    %v10312 = vunpack.c.h.b16 %v8402
    %v10313 = vunpack.c.l.b16 %v8403
    %v10314 = vunpack.c.h.b16 %v8403
    %v10315 = vunpack.c.l.b16 %v8404
    %v10316 = vunpack.c.h.b16 %v8404
    %v10317 = vunpack.c.l.b16 %v8405
    %v10318 = vunpack.c.h.b16 %v8405
    %v10319 = vunpack.c.l.b16 %v8406
    %v10320 = vunpack.c.h.b16 %v8406
    %v10321 = vunpack.c.l.b16 %v8407
    %v10322 = vunpack.c.h.b16 %v8407
    %v10323 = vunpack.c.l.b16 %v8408
    %v10324 = vunpack.c.h.b16 %v8408
    %v10325 = vunpack.c.l.b16 %v8409
    %v10326 = vunpack.c.h.b16 %v8409
    %v10327 = vunpack.c.l.b16 %v8410
    %v10328 = vunpack.c.h.b16 %v8410
    %v10329 = vunpack.c.l.b16 %v8411
    %v10330 = vunpack.c.h.b16 %v8411
    %v10331 = vunpack.c.l.b16 %v8412
    %v10332 = vunpack.c.h.b16 %v8412
    %v10333 = vunpack.c.l.b16 %v8413
    %v10334 = vunpack.c.h.b16 %v8413
    %v10335 = vunpack.c.l.b16 %v8414
    %v10336 = vunpack.c.h.b16 %v8414
    %v10337 = vunpack.c.l.b16 %v8415
    %v10338 = vunpack.c.h.b16 %v8415
    %v10339 = vunpack.c.l.b16 %v8416
    %v10340 = vunpack.c.h.b16 %v8416
    %v10341 = vunpack.c.l.b16 %v8417
    %v10342 = vunpack.c.h.b16 %v8417
    %v10343 = vunpack.c.l.b16 %v8418
    %v10344 = vunpack.c.h.b16 %v8418
    %v10345 = vunpack.c.l.b16 %v8419
    %v10346 = vunpack.c.h.b16 %v8419
    %v10347 = vunpack.c.l.b16 %v8420
    %v10348 = vunpack.c.h.b16 %v8420
    %v10349 = vunpack.c.l.b16 %v8421
    %v10350 = vunpack.c.h.b16 %v8421
    %v10351 = vunpack.c.l.b16 %v8422
    %v10352 = vunpack.c.h.b16 %v8422
    %v10353 = vunpack.c.l.b16 %v8423
    %v10354 = vunpack.c.h.b16 %v8423
    %v10355 = vunpack.c.l.b16 %v8424
    %v10356 = vunpack.c.h.b16 %v8424
    %v10357 = vunpack.c.l.b16 %v8425
    %v10358 = vunpack.c.h.b16 %v8425
    %v10359 = vunpack.c.l.b16 %v8426
    %v10360 = vunpack.c.h.b16 %v8426
    %v10361 = vunpack.c.l.b16 %v8427
    %v10362 = vunpack.c.h.b16 %v8427
    %v10363 = vunpack.c.l.b16 %v8428
    %v10364 = vunpack.c.h.b16 %v8428
    %v10365 = vunpack.c.l.b16 %v8429
    %v10366 = vunpack.c.h.b16 %v8429
    %v10367 = vunpack.c.l.b16 %v8430
    %v10368 = vunpack.c.h.b16 %v8430
    %v10369 = vunpack.c.l.b16 %v8431
    %v10370 = vunpack.c.h.b16 %v8431
    %v10371 = vunpack.c.l.b16 %v8432
    %v10372 = vunpack.c.h.b16 %v8432
    %v10373 = vunpack.c.l.b16 %v8433
    %v10374 = vunpack.c.h.b16 %v8433
    %v10375 = vunpack.c.l.b16 %v8434
    %v10376 = vunpack.c.h.b16 %v8434
    %v10377 = vunpack.c.l.b16 %v8435
    %v10378 = vunpack.c.h.b16 %v8435
    %v10379 = vunpack.c.l.b16 %v8436
    %v10380 = vunpack.c.h.b16 %v8436
    %v10381 = vunpack.c.l.b16 %v8437
    %v10382 = vunpack.c.h.b16 %v8437
    %v10383 = vunpack.c.l.b16 %v8438
    %v10384 = vunpack.c.h.b16 %v8438
    %v10385 = vunpack.c.l.b16 %v8439
    %v10386 = vunpack.c.h.b16 %v8439
    %v10387 = vunpack.c.l.b16 %v8440
    %v10388 = vunpack.c.h.b16 %v8440
    %v10389 = vunpack.c.l.b16 %v8441
    %v10390 = vunpack.c.h.b16 %v8441
    %v10391 = vunpack.c.l.b16 %v8442
    %v10392 = vunpack.c.h.b16 %v8442
    %v10393 = vunpack.c.l.b16 %v8443
    %v10394 = vunpack.c.h.b16 %v8443
    %v10395 = vunpack.c.l.b16 %v8444
    %v10396 = vunpack.c.h.b16 %v8444
    %v10397 = vunpack.c.l.b16 %v8445
    %v10398 = vunpack.c.h.b16 %v8445
    %v10399 = vunpack.c.l.b16 %v8446
    %v10400 = vunpack.c.h.b16 %v8446
    %v10401 = vunpack.c.l.b16 %v8447
    %v10402 = vunpack.c.h.b16 %v8447
    %v10403 = vunpack.c.l.b16 %v8448
    %v10404 = vunpack.c.h.b16 %v8448
    %v10405 = vunpack.c.l.b16 %v8449
    %v10406 = vunpack.c.h.b16 %v8449
    %v10407 = vunpack.c.l.b16 %v8450
    %v10408 = vunpack.c.h.b16 %v8450
    %v10409 = vunpack.c.l.b16 %v8451
    %v10410 = vunpack.c.h.b16 %v8451
    %v10411 = vunpack.c.l.b16 %v8452
    %v10412 = vunpack.c.h.b16 %v8452
    %v10413 = vunpack.c.l.b16 %v8453
    %v10414 = vunpack.c.h.b16 %v8453
    %v10415 = vunpack.c.l.b16 %v8454
    %v10416 = vunpack.c.h.b16 %v8454
    %v10417 = vunpack.c.l.b16 %v8455
    %v10418 = vunpack.c.h.b16 %v8455
    %v10419 = vunpack.c.l.b16 %v8456
    %v10420 = vunpack.c.h.b16 %v8456
    %v10421 = vunpack.c.l.b16 %v8457
    %v10422 = vunpack.c.h.b16 %v8457
    %v10423 = vunpack.c.l.b16 %v8458
    %v10424 = vunpack.c.h.b16 %v8458
    %v10425 = vunpack.c.l.b16 %v8459
    %v10426 = vunpack.c.h.b16 %v8459
    %v10427 = vunpack.c.l.b16 %v8460
    %v10428 = vunpack.c.h.b16 %v8460
    %v10429 = vunpack.c.l.b16 %v8461
    %v10430 = vunpack.c.h.b16 %v8461
    %v10431 = vunpack.c.l.b16 %v8462
    %v10432 = vunpack.c.h.b16 %v8462
    %v10433 = vunpack.c.l.b16 %v8463
    %v10434 = vunpack.c.h.b16 %v8463
    %v10435 = vunpack.c.l.b16 %v8464
    %v10436 = vunpack.c.h.b16 %v8464
    %v10437 = vunpack.c.l.b16 %v8465
    %v10438 = vunpack.c.h.b16 %v8465
    %v10439 = vunpack.c.l.b16 %v8466
    %v10440 = vunpack.c.h.b16 %v8466
    %v10441 = vunpack.c.l.b16 %v8467
    %v10442 = vunpack.c.h.b16 %v8467
    %v10443 = vunpack.c.l.b16 %v8468
    %v10444 = vunpack.c.h.b16 %v8468
    %v10445 = vunpack.c.l.b16 %v8469
    %v10446 = vunpack.c.h.b16 %v8469
    %v10447 = vunpack.c.l.b16 %v8470
    %v10448 = vunpack.c.h.b16 %v8470
    %v10449 = vunpack.c.l.b16 %v8471
    %v10450 = vunpack.c.h.b16 %v8471
    %v10451 = vunpack.c.l.b16 %v8472
    %v10452 = vunpack.c.h.b16 %v8472
    %v10453 = vunpack.c.l.b16 %v8473
    %v10454 = vunpack.c.h.b16 %v8473
    %v10455 = vunpack.c.l.b16 %v8474
    %v10456 = vunpack.c.h.b16 %v8474
    %v10457 = vunpack.c.l.b16 %v8475
    %v10458 = vunpack.c.h.b16 %v8475
    %v10459 = vunpack.c.l.b16 %v8476
    %v10460 = vunpack.c.h.b16 %v8476
    %v10461 = vunpack.c.l.b16 %v8477
    %v10462 = vunpack.c.h.b16 %v8477
    %v10463 = vunpack.c.l.b16 %v8478
    %v10464 = vunpack.c.h.b16 %v8478
    %v10465 = vunpack.c.l.b16 %v8479
    %v10466 = vunpack.c.h.b16 %v8479
    %v10467 = vunpack.c.l.b16 %v8480
    %v10468 = vunpack.c.h.b16 %v8480
    %v10469 = vunpack.c.l.b16 %v8481
    %v10470 = vunpack.c.h.b16 %v8481
    %v10471 = vunpack.c.l.b16 %v8482
    %v10472 = vunpack.c.h.b16 %v8482
    %v10473 = vunpack.c.l.b16 %v8483
    %v10474 = vunpack.c.h.b16 %v8483
    %v10475 = vunpack.c.l.b16 %v8484
    %v10476 = vunpack.c.h.b16 %v8484
    %v10477 = vunpack.c.l.b16 %v8485
    %v10478 = vunpack.c.h.b16 %v8485
    %v10479 = vunpack.c.l.b16 %v8486
    %v10480 = vunpack.c.h.b16 %v8486
    %v10481 = vunpack.c.l.b16 %v8487
    %v10482 = vunpack.c.h.b16 %v8487
    %v10483 = vunpack.c.l.b16 %v8488
    %v10484 = vunpack.c.h.b16 %v8488
    %v10485 = vunpack.c.l.b16 %v8489
    %v10486 = vunpack.c.h.b16 %v8489
    %v10487 = vunpack.c.l.b16 %v8490
    %v10488 = vunpack.c.h.b16 %v8490
    %v10489 = vunpack.c.l.b16 %v8491
    %v10490 = vunpack.c.h.b16 %v8491
    %v10491 = vunpack.c.l.b16 %v8492
    %v10492 = vunpack.c.h.b16 %v8492
    %v10493 = vunpack.c.l.b16 %v8493
    %v10494 = vunpack.c.h.b16 %v8493
    %v10495 = vunpack.c.l.b16 %v8494
    %v10496 = vunpack.c.h.b16 %v8494
    %v10497 = vunpack.c.l.b16 %v8495
    %v10498 = vunpack.c.h.b16 %v8495
    %v10499 = vunpack.c.l.b16 %v8496
    %v10500 = vunpack.c.h.b16 %v8496
    %v10501 = vunpack.c.l.b16 %v8497
    %v10502 = vunpack.c.h.b16 %v8497
    %v10503 = vunpack.c.l.b16 %v8498
    %v10504 = vunpack.c.h.b16 %v8498
    %v10505 = vunpack.c.l.b16 %v8499
    %v10506 = vunpack.c.h.b16 %v8499
    %v10507 = vunpack.c.l.b16 %v8500
    %v10508 = vunpack.c.h.b16 %v8500
    %v10509 = vunpack.c.l.b16 %v8501
    %v10510 = vunpack.c.h.b16 %v8501
    %v10511 = vunpack.c.l.b16 %v8502
    %v10512 = vunpack.c.h.b16 %v8502
    %v10513 = vunpack.c.l.b16 %v8503
    %v10514 = vunpack.c.h.b16 %v8503
    %v10515 = vunpack.c.l.b16 %v8504
    %v10516 = vunpack.c.h.b16 %v8504
    %v10517 = vunpack.c.l.b16 %v8505
    %v10518 = vunpack.c.h.b16 %v8505
    %v10519 = vunpack.c.l.b16 %v8506
    %v10520 = vunpack.c.h.b16 %v8506
    %v10521 = vunpack.c.l.b16 %v8507
    %v10522 = vunpack.c.h.b16 %v8507
    %v10523 = vunpack.c.l.b16 %v8508
    %v10524 = vunpack.c.h.b16 %v8508
    %v10525 = vunpack.c.l.b16 %v8509
    %v10526 = vunpack.c.h.b16 %v8509
    %v10527 = vunpack.c.l.b16 %v8510
    %v10528 = vunpack.c.h.b16 %v8510
    %v10529 = vunpack.c.l.b16 %v8511
    %v10530 = vunpack.c.h.b16 %v8511
    %v10531 = vunpack.c.l.b16 %v8512
    %v10532 = vunpack.c.h.b16 %v8512
    %v10533 = vunpack.c.l.b16 %v8513
    %v10534 = vunpack.c.h.b16 %v8513
    %v10535 = vunpack.c.l.b16 %v8514
    %v10536 = vunpack.c.h.b16 %v8514
    %v10537 = vunpack.c.l.b16 %v8515
    %v10538 = vunpack.c.h.b16 %v8515
    %v10539 = vunpack.c.l.b16 %v8516
    %v10540 = vunpack.c.h.b16 %v8516
    %v10541 = vunpack.c.l.b16 %v8517
    %v10542 = vunpack.c.h.b16 %v8517
    %v10543 = vunpack.c.l.b16 %v8518
    %v10544 = vunpack.c.h.b16 %v8518
    %v10545 = vunpack.c.l.b16 %v8519
    %v10546 = vunpack.c.h.b16 %v8519
    %v10547 = vunpack.c.l.b16 %v8520
    %v10548 = vunpack.c.h.b16 %v8520
    %v10549 = vunpack.c.l.b16 %v8521
    %v10550 = vunpack.c.h.b16 %v8521
    %v10551 = vunpack.c.l.b16 %v8522
    %v10552 = vunpack.c.h.b16 %v8522
    %v10553 = vunpack.c.l.b16 %v8523
    %v10554 = vunpack.c.h.b16 %v8523
    %v10555 = vunpack.c.l.b16 %v8524
    %v10556 = vunpack.c.h.b16 %v8524
    %v10557 = vunpack.c.l.b16 %v8525
    %v10558 = vunpack.c.h.b16 %v8525
    %v10559 = vunpack.c.l.b16 %v8526
    %v10560 = vunpack.c.h.b16 %v8526
    %v10561 = vunpack.c.l.b16 %v8527
    %v10562 = vunpack.c.h.b16 %v8527
    %v10563 = vunpack.c.l.b16 %v8528
    %v10564 = vunpack.c.h.b16 %v8528
    %v10565 = vunpack.c.l.b16 %v8529
    %v10566 = vunpack.c.h.b16 %v8529
    %v10567 = vunpack.c.l.b16 %v8530
    %v10568 = vunpack.c.h.b16 %v8530
    %v10569 = vunpack.c.l.b16 %v8531
    %v10570 = vunpack.c.h.b16 %v8531
    %v10571 = vunpack.c.l.b16 %v8532
    %v10572 = vunpack.c.h.b16 %v8532
    %v10573 = vunpack.c.l.b16 %v8533
    %v10574 = vunpack.c.h.b16 %v8533
    %v10575 = vunpack.c.l.b16 %v8534
    %v10576 = vunpack.c.h.b16 %v8534
    %v10577 = vunpack.c.l.b16 %v8535
    %v10578 = vunpack.c.h.b16 %v8535
    %v10579 = vunpack.c.l.b16 %v8536
    %v10580 = vunpack.c.h.b16 %v8536
    %v10581 = vunpack.c.l.b16 %v8537
    %v10582 = vunpack.c.h.b16 %v8537
    %v10583 = vunpack.c.l.b16 %v8538
    %v10584 = vunpack.c.h.b16 %v8538
    %v10585 = vunpack.c.l.b16 %v8539
    %v10586 = vunpack.c.h.b16 %v8539
    %v10587 = vunpack.c.l.b16 %v8540
    %v10588 = vunpack.c.h.b16 %v8540
    %v10589 = vunpack.c.l.b16 %v8541
    %v10590 = vunpack.c.h.b16 %v8541
    %v10591 = vunpack.c.l.b16 %v8542
    %v10592 = vunpack.c.h.b16 %v8542
    %v10593 = vunpack.c.l.b16 %v8543
    %v10594 = vunpack.c.h.b16 %v8543
    %v10595 = vunpack.c.l.b16 %v8544
    %v10596 = vunpack.c.h.b16 %v8544
    %v10597 = vunpack.c.l.b16 %v8545
    %v10598 = vunpack.c.h.b16 %v8545
    %v10599 = vunpack.c.l.b16 %v8546
    %v10600 = vunpack.c.h.b16 %v8546
    %v10601 = vunpack.c.l.b16 %v8547
    %v10602 = vunpack.c.h.b16 %v8547
    %v10603 = vunpack.c.l.b16 %v8548
    %v10604 = vunpack.c.h.b16 %v8548
    %v10605 = vunpack.c.l.b16 %v8549
    %v10606 = vunpack.c.h.b16 %v8549
    %v10607 = vunpack.c.l.b16 %v8550
    %v10608 = vunpack.c.h.b16 %v8550
    %v10609 = vunpack.c.l.b16 %v8551
    %v10610 = vunpack.c.h.b16 %v8551
    %v10611 = vunpack.c.l.b16 %v8552
    %v10612 = vunpack.c.h.b16 %v8552
    %v10613 = vunpack.c.l.b16 %v8553
    %v10614 = vunpack.c.h.b16 %v8553
    %v10615 = vunpack.c.l.b16 %v8554
    %v10616 = vunpack.c.h.b16 %v8554
    %v10617 = vunpack.c.l.b16 %v8555
    %v10618 = vunpack.c.h.b16 %v8555
    %v10619 = vunpack.c.l.b16 %v8556
    %v10620 = vunpack.c.h.b16 %v8556
    %v10621 = vunpack.c.l.b16 %v8557
    %v10622 = vunpack.c.h.b16 %v8557
    %v10623 = vunpack.c.l.b16 %v8558
    %v10624 = vunpack.c.h.b16 %v8558
    %v10625 = vunpack.c.l.b16 %v8559
    %v10626 = vunpack.c.h.b16 %v8559
    %v10627 = vunpack.c.l.b16 %v8560
    %v10628 = vunpack.c.h.b16 %v8560
    %v10629 = vunpack.c.l.b16 %v8561
    %v10630 = vunpack.c.h.b16 %v8561
    %v10631 = vunpack.c.l.b16 %v8562
    %v10632 = vunpack.c.h.b16 %v8562
    %v10633 = vunpack.c.l.b16 %v8563
    %v10634 = vunpack.c.h.b16 %v8563
    %v10635 = vunpack.c.l.b16 %v8564
    %v10636 = vunpack.c.h.b16 %v8564
    %v10637 = vunpack.c.l.b16 %v8565
    %v10638 = vunpack.c.h.b16 %v8565
    %v10639 = vunpack.c.l.b16 %v8566
    %v10640 = vunpack.c.h.b16 %v8566
    %v10641 = vunpack.c.l.b16 %v8567
    %v10642 = vunpack.c.h.b16 %v8567
    %v10643 = vunpack.c.l.b16 %v8568
    %v10644 = vunpack.c.h.b16 %v8568
    %v10645 = vunpack.c.l.b16 %v8569
    %v10646 = vunpack.c.h.b16 %v8569
    %v10647 = vunpack.c.l.b16 %v8570
    %v10648 = vunpack.c.h.b16 %v8570
    %v10649 = vunpack.c.l.b16 %v8571
    %v10650 = vunpack.c.h.b16 %v8571
    %v10651 = vunpack.c.l.b16 %v8572
    %v10652 = vunpack.c.h.b16 %v8572
    %v10653 = vunpack.c.l.b16 %v8573
    %v10654 = vunpack.c.h.b16 %v8573
    %v10655 = vunpack.c.l.b16 %v8574
    %v10656 = vunpack.c.h.b16 %v8574
    %v10657 = vunpack.c.l.b16 %v8575
    %v10658 = vunpack.c.h.b16 %v8575
    %v10659 = vunpack.c.l.b16 %v8576
    %v10660 = vunpack.c.h.b16 %v8576
    %v10661 = vunpack.c.l.b16 %v8577
    %v10662 = vunpack.c.h.b16 %v8577
    %v10663 = vunpack.c.l.b16 %v8578
    %v10664 = vunpack.c.h.b16 %v8578
    %v10665 = vunpack.c.l.b16 %v8579
    %v10666 = vunpack.c.h.b16 %v8579
    %v10667 = vunpack.c.l.b16 %v8580
    %v10668 = vunpack.c.h.b16 %v8580
    %v10669 = vunpack.c.l.b16 %v8581
    %v10670 = vunpack.c.h.b16 %v8581
    %v10671 = vunpack.c.l.b16 %v8582
    %v10672 = vunpack.c.h.b16 %v8582
    %v10673 = vunpack.c.l.b16 %v8583
    %v10674 = vunpack.c.h.b16 %v8583
    %v10675 = vunpack.c.l.b16 %v8584
    %v10676 = vunpack.c.h.b16 %v8584
    %v10677 = vunpack.c.l.b16 %v8585
    %v10678 = vunpack.c.h.b16 %v8585
    %v10679 = vunpack.c.l.b16 %v8586
    %v10680 = vunpack.c.h.b16 %v8586
    %v10681 = vunpack.c.l.b16 %v8587
    %v10682 = vunpack.c.h.b16 %v8587
    %v10683 = vunpack.c.l.b16 %v8588
    %v10684 = vunpack.c.h.b16 %v8588
    %v10685 = vunpack.c.l.b16 %v8589
    %v10686 = vunpack.c.h.b16 %v8589
    %v10687 = vunpack.c.l.b16 %v8590
    %v10688 = vunpack.c.h.b16 %v8590
    %v10689 = vunpack.c.l.b16 %v8591
    %v10690 = vunpack.c.h.b16 %v8591
    %v10691 = vunpack.c.l.b16 %v8592
    %v10692 = vunpack.c.h.b16 %v8592
    %v10693 = vunpack.c.l.b16 %v8593
    %v10694 = vunpack.c.h.b16 %v8593
    %v10695 = vunpack.c.l.b16 %v8594
    %v10696 = vunpack.c.h.b16 %v8594
    %v10697 = vunpack.c.l.b16 %v8595
    %v10698 = vunpack.c.h.b16 %v8595
    %v10699 = vunpack.c.l.b16 %v8596
    %v10700 = vunpack.c.h.b16 %v8596
    %v10701 = vunpack.c.l.b16 %v8597
    %v10702 = vunpack.c.h.b16 %v8597
    %v10703 = vunpack.c.l.b16 %v8598
    %v10704 = vunpack.c.h.b16 %v8598
    %v10705 = vunpack.c.l.b16 %v8599
    %v10706 = vunpack.c.h.b16 %v8599
    %v10707 = vunpack.c.l.b16 %v8600
    %v10708 = vunpack.c.h.b16 %v8600
    %v10709 = vunpack.c.l.b16 %v8601
    %v10710 = vunpack.c.h.b16 %v8601
    %v10711 = vunpack.c.l.b16 %v8602
    %v10712 = vunpack.c.h.b16 %v8602
    %v10713 = vunpack.c.l.b16 %v8603
    %v10714 = vunpack.c.h.b16 %v8603
    %v10715 = vunpack.c.l.b16 %v8604
    %v10716 = vunpack.c.h.b16 %v8604
    %v10717 = vunpack.c.l.b16 %v8605
    %v10718 = vunpack.c.h.b16 %v8605
    %v10719 = vunpack.c.l.b16 %v8606
    %v10720 = vunpack.c.h.b16 %v8606
    %v10721 = vunpack.c.l.b16 %v8607
    %v10722 = vunpack.c.h.b16 %v8607
    %v10723 = vunpack.c.l.b16 %v8608
    %v10724 = vunpack.c.h.b16 %v8608
    %v10725 = vunpack.c.l.b16 %v8609
    %v10726 = vunpack.c.h.b16 %v8609
    %v10727 = vunpack.c.l.b16 %v8610
    %v10728 = vunpack.c.h.b16 %v8610
    %v10729 = vunpack.c.l.b16 %v8611
    %v10730 = vunpack.c.h.b16 %v8611
    %v10731 = vunpack.c.l.b16 %v8612
    %v10732 = vunpack.c.h.b16 %v8612
    %v10733 = vunpack.c.l.b16 %v8613
    %v10734 = vunpack.c.h.b16 %v8613
    %v10735 = vunpack.c.l.b16 %v8614
    %v10736 = vunpack.c.h.b16 %v8614
    %v10737 = vunpack.c.l.b16 %v8615
    %v10738 = vunpack.c.h.b16 %v8615
    %v10739 = vunpack.c.l.b16 %v8616
    %v10740 = vunpack.c.h.b16 %v8616
    %v10741 = vunpack.c.l.b16 %v8617
    %v10742 = vunpack.c.h.b16 %v8617
    %v10743 = vunpack.c.l.b16 %v8618
    %v10744 = vunpack.c.h.b16 %v8618
    %v10745 = vunpack.c.l.b16 %v8619
    %v10746 = vunpack.c.h.b16 %v8619
    %v10747 = vunpack.c.l.b16 %v8620
    %v10748 = vunpack.c.h.b16 %v8620
    %v10749 = vunpack.c.l.b16 %v8621
    %v10750 = vunpack.c.h.b16 %v8621
    %v10751 = vunpack.c.l.b16 %v8622
    %v10752 = vunpack.c.h.b16 %v8622
    %v10753 = vunpack.c.l.b16 %v8623
    %v10754 = vunpack.c.h.b16 %v8623
    %v10755 = vunpack.c.l.b16 %v8624
    %v10756 = vunpack.c.h.b16 %v8624
    %v10757 = vunpack.c.l.b16 %v8625
    %v10758 = vunpack.c.h.b16 %v8625
    %v10759 = vunpack.c.l.b16 %v8626
    %v10760 = vunpack.c.h.b16 %v8626
    %v10761 = vunpack.c.l.b16 %v8627
    %v10762 = vunpack.c.h.b16 %v8627
    %v10763 = vunpack.c.l.b16 %v8628
    %v10764 = vunpack.c.h.b16 %v8628
    %v10765 = vunpack.c.l.b16 %v8629
    %v10766 = vunpack.c.h.b16 %v8629
    %v10767 = vunpack.c.l.b16 %v8630
    %v10768 = vunpack.c.h.b16 %v8630
    %v10769 = vunpack.c.l.b16 %v8631
    %v10770 = vunpack.c.h.b16 %v8631
    %v10771 = vunpack.c.l.b16 %v8632
    %v10772 = vunpack.c.h.b16 %v8632
    %v10773 = vunpack.c.l.b16 %v8633
    %v10774 = vunpack.c.h.b16 %v8633
    %v10775 = vunpack.c.l.b16 %v8634
    %v10776 = vunpack.c.h.b16 %v8634
    %v10777 = vunpack.c.l.b16 %v8635
    %v10778 = vunpack.c.h.b16 %v8635
    %v10779 = vunpack.c.l.b16 %v8636
    %v10780 = vunpack.c.h.b16 %v8636
    %v10781 = vunpack.c.l.b16 %v8637
    %v10782 = vunpack.c.h.b16 %v8637
    %v10783 = vunpack.c.l.b16 %v8638
    %v10784 = vunpack.c.h.b16 %v8638
    %v10785 = vunpack.c.l.b16 %v8639
    %v10786 = vunpack.c.h.b16 %v8639
    %v10787 = vunpack.c.l.b16 %v8640
    %v10788 = vunpack.c.h.b16 %v8640
    %v10789 = vunpack.c.l.b16 %v8641
    %v10790 = vunpack.c.h.b16 %v8641
    %v10791 = vunpack.c.l.b16 %v8642
    %v10792 = vunpack.c.h.b16 %v8642
    %v10793 = vunpack.c.l.b16 %v8643
    %v10794 = vunpack.c.h.b16 %v8643
    %v10795 = vunpack.c.l.b16 %v8644
    %v10796 = vunpack.c.h.b16 %v8644
    %v10797 = vunpack.c.l.b16 %v8645
    %v10798 = vunpack.c.h.b16 %v8645
    %v10799 = vunpack.c.l.b16 %v8646
    %v10800 = vunpack.c.h.b16 %v8646
    %v10801 = vunpack.c.l.b16 %v8647
    %v10802 = vunpack.c.h.b16 %v8647
    %v10803 = vunpack.c.l.b16 %v8648
    %v10804 = vunpack.c.h.b16 %v8648
    %v10805 = vunpack.c.l.b16 %v8649
    %v10806 = vunpack.c.h.b16 %v8649
    %v10807 = vunpack.c.l.b16 %v8650
    %v10808 = vunpack.c.h.b16 %v8650
    %v10809 = vunpack.c.l.b16 %v8651
    %v10810 = vunpack.c.h.b16 %v8651
    %v10811 = vunpack.c.l.b16 %v8652
    %v10812 = vunpack.c.h.b16 %v8652
    %v10813 = vunpack.c.l.b16 %v8653
    %v10814 = vunpack.c.h.b16 %v8653
    %v10815 = vunpack.c.l.b16 %v8654
    %v10816 = vunpack.c.h.b16 %v8654
    %v10817 = vunpack.c.l.b16 %v8655
    %v10818 = vunpack.c.h.b16 %v8655
    %v10819 = vunpack.c.l.b16 %v8656
    %v10820 = vunpack.c.h.b16 %v8656
    %v10821 = vunpack.c.l.b16 %v8657
    %v10822 = vunpack.c.h.b16 %v8657
    %v10823 = vunpack.c.l.b16 %v8658
    %v10824 = vunpack.c.h.b16 %v8658
    %v10825 = vunpack.c.l.b16 %v8659
    %v10826 = vunpack.c.h.b16 %v8659
    %v10827 = vunpack.c.l.b16 %v8660
    %v10828 = vunpack.c.h.b16 %v8660
    %v10829 = vunpack.c.l.b16 %v8661
    %v10830 = vunpack.c.h.b16 %v8661
    %v10831 = vunpack.c.l.b16 %v8662
    %v10832 = vunpack.c.h.b16 %v8662
    %v10833 = vunpack.c.l.b16 %v8663
    %v10834 = vunpack.c.h.b16 %v8663
    %v10835 = vunpack.c.l.b16 %v8664
    %v10836 = vunpack.c.h.b16 %v8664
    %v10837 = vunpack.c.l.b16 %v8665
    %v10838 = vunpack.c.h.b16 %v8665
    %v10839 = vunpack.c.l.b16 %v8666
    %v10840 = vunpack.c.h.b16 %v8666
    %v10841 = vunpack.c.l.b16 %v8667
    %v10842 = vunpack.c.h.b16 %v8667
    %v10843 = vunpack.c.l.b16 %v8668
    %v10844 = vunpack.c.h.b16 %v8668
    %v10845 = vunpack.c.l.b16 %v8669
    %v10846 = vunpack.c.h.b16 %v8669
    %v10847 = vunpack.c.l.b16 %v8670
    %v10848 = vunpack.c.h.b16 %v8670
    %v10849 = vunpack.c.l.b16 %v8671
    %v10850 = vunpack.c.h.b16 %v8671
    %v10851 = vunpack.c.l.b16 %v8672
    %v10852 = vunpack.c.h.b16 %v8672
    %v10853 = vunpack.c.l.b16 %v8673
    %v10854 = vunpack.c.h.b16 %v8673
    %v10855 = vunpack.c.l.b16 %v8674
    %v10856 = vunpack.c.h.b16 %v8674
    %v10857 = vunpack.c.l.b16 %v8675
    %v10858 = vunpack.c.h.b16 %v8675
    %v10859 = vunpack.c.l.b16 %v8676
    %v10860 = vunpack.c.h.b16 %v8676
    %v10861 = vunpack.c.l.b16 %v8677
    %v10862 = vunpack.c.h.b16 %v8677
    %v10863 = vunpack.c.l.b16 %v8678
    %v10864 = vunpack.c.h.b16 %v8678
    %v10865 = vunpack.c.l.b16 %v8679
    %v10866 = vunpack.c.h.b16 %v8679
    %v10867 = vunpack.c.l.b16 %v8680
    %v10868 = vunpack.c.h.b16 %v8680
    %v10869 = vunpack.c.l.b16 %v8681
    %v10870 = vunpack.c.h.b16 %v8681
    %v10871 = vunpack.c.l.b16 %v8682
    %v10872 = vunpack.c.h.b16 %v8682
    %v10873 = vunpack.c.l.b16 %v8683
    %v10874 = vunpack.c.h.b16 %v8683
    %v10875 = vunpack.c.l.b16 %v8684
    %v10876 = vunpack.c.h.b16 %v8684
    %v10877 = vunpack.c.l.b16 %v8685
    %v10878 = vunpack.c.h.b16 %v8685
    %v10879 = vunpack.c.l.b16 %v8686
    %v10880 = vunpack.c.h.b16 %v8686
    %v10881 = vunpack.c.l.b16 %v8687
    %v10882 = vunpack.c.h.b16 %v8687
    %v10883 = vunpack.c.l.b16 %v8688
    %v10884 = vunpack.c.h.b16 %v8688
    %v10885 = vunpack.c.l.b16 %v8689
    %v10886 = vunpack.c.h.b16 %v8689
    %v10887 = vunpack.c.l.b16 %v8690
    %v10888 = vunpack.c.h.b16 %v8690
    %v10889 = vunpack.c.l.b16 %v8691
    %v10890 = vunpack.c.h.b16 %v8691
    %v10891 = vunpack.c.l.b16 %v8692
    %v10892 = vunpack.c.h.b16 %v8692
    %v10893 = vunpack.c.l.b16 %v8693
    %v10894 = vunpack.c.h.b16 %v8693
    %v10895 = vunpack.c.l.b16 %v8694
    %v10896 = vunpack.c.h.b16 %v8694
    %v10897 = vunpack.c.l.b16 %v8695
    %v10898 = vunpack.c.h.b16 %v8695
    %v10899 = vunpack.c.l.b16 %v8696
    %v10900 = vunpack.c.h.b16 %v8696
    %v10901 = vunpack.c.l.b16 %v8697
    %v10902 = vunpack.c.h.b16 %v8697
    %v10903 = vunpack.c.l.b16 %v8698
    %v10904 = vunpack.c.h.b16 %v8698
    %v10905 = vunpack.c.l.b16 %v8699
    %v10906 = vunpack.c.h.b16 %v8699
    %v10907 = vunpack.c.l.b16 %v8700
    %v10908 = vunpack.c.h.b16 %v8700
    %v10909 = vunpack.c.l.b16 %v8701
    %v10910 = vunpack.c.h.b16 %v8701
    %v10911 = vunpack.c.l.b16 %v8702
    %v10912 = vunpack.c.h.b16 %v8702
    %v10913 = vunpack.c.l.b16 %v8703
    %v10914 = vunpack.c.h.b16 %v8703
    %v10915 = vunpack.c.l.b16 %v8704
    %v10916 = vunpack.c.h.b16 %v8704
    %v10917 = vunpack.c.l.b16 %v8705
    %v10918 = vunpack.c.h.b16 %v8705
    %v10919 = vunpack.c.l.b16 %v8706
    %v10920 = vunpack.c.h.b16 %v8706
    %v10921 = vunpack.c.l.b16 %v8707
    %v10922 = vunpack.c.h.b16 %v8707
    %v10923 = vunpack.c.l.b16 %v8708
    %v10924 = vunpack.c.h.b16 %v8708
    %v10925 = vunpack.c.l.b16 %v8709
    %v10926 = vunpack.c.h.b16 %v8709
    %v10927 = vunpack.c.l.b16 %v8710
    %v10928 = vunpack.c.h.b16 %v8710
    %v10929 = vunpack.c.l.b16 %v8711
    %v10930 = vunpack.c.h.b16 %v8711
    %v10931 = vunpack.c.l.b16 %v8712
    %v10932 = vunpack.c.h.b16 %v8712
    %v10933 = vunpack.c.l.b16 %v8713
    %v10934 = vunpack.c.h.b16 %v8713
    %v10935 = vunpack.c.l.b16 %v8714
    %v10936 = vunpack.c.h.b16 %v8714
    %v10937 = vunpack.c.l.b16 %v8715
    %v10938 = vunpack.c.h.b16 %v8715
    %v10939 = vunpack.c.l.b16 %v8716
    %v10940 = vunpack.c.h.b16 %v8716
    %v10941 = vunpack.c.l.b16 %v8717
    %v10942 = vunpack.c.h.b16 %v8717
    %v10943 = vunpack.c.l.b16 %v8718
    %v10944 = vunpack.c.h.b16 %v8718
    %v10945 = vunpack.c.l.b16 %v8719
    %v10946 = vunpack.c.h.b16 %v8719
    %v10947 = vunpack.c.l.b16 %v8720
    %v10948 = vunpack.c.h.b16 %v8720
    %v10949 = vunpack.c.l.b16 %v8721
    %v10950 = vunpack.c.h.b16 %v8721
    %v10951 = vunpack.c.l.b16 %v8722
    %v10952 = vunpack.c.h.b16 %v8722
    %v10953 = vunpack.c.l.b16 %v8723
    %v10954 = vunpack.c.h.b16 %v8723
    %v10955 = vunpack.c.l.b16 %v8724
    %v10956 = vunpack.c.h.b16 %v8724
    %v10957 = vunpack.c.l.b16 %v8725
    %v10958 = vunpack.c.h.b16 %v8725
    %v10959 = vunpack.c.l.b16 %v8726
    %v10960 = vunpack.c.h.b16 %v8726
    %v10961 = vunpack.c.l.b16 %v8727
    %v10962 = vunpack.c.h.b16 %v8727
    %v10963 = vunpack.c.l.b16 %v8728
    %v10964 = vunpack.c.h.b16 %v8728
    %v10965 = vunpack.c.l.b16 %v8729
    %v10966 = vunpack.c.h.b16 %v8729
    %v10967 = vunpack.c.l.b16 %v8730
    %v10968 = vunpack.c.h.b16 %v8730
    %v10969 = vunpack.c.l.b16 %v8731
    %v10970 = vunpack.c.h.b16 %v8731
    %v10971 = vunpack.c.l.b16 %v8732
    %v10972 = vunpack.c.h.b16 %v8732
    %v10973 = vunpack.c.l.b16 %v8733
    %v10974 = vunpack.c.h.b16 %v8733
    %v10975 = vunpack.c.l.b16 %v8734
    %v10976 = vunpack.c.h.b16 %v8734
    %v10977 = vunpack.c.l.b16 %v8735
    %v10978 = vunpack.c.h.b16 %v8735
    %v10979 = vunpack.c.l.b16 %v8736
    %v10980 = vunpack.c.h.b16 %v8736
    %v10981 = vunpack.c.l.b16 %v8737
    %v10982 = vunpack.c.h.b16 %v8737
    %v10983 = vunpack.c.l.b16 %v8738
    %v10984 = vunpack.c.h.b16 %v8738
    %v10985 = vunpack.c.l.b16 %v8739
    %v10986 = vunpack.c.h.b16 %v8739
    %v10987 = vunpack.c.l.b16 %v8740
    %v10988 = vunpack.c.h.b16 %v8740
    %v10989 = vunpack.c.l.b16 %v8741
    %v10990 = vunpack.c.h.b16 %v8741
    %v10991 = vunpack.c.l.b16 %v8742
    %v10992 = vunpack.c.h.b16 %v8742
    %v10993 = vunpack.c.l.b16 %v8743
    %v10994 = vunpack.c.h.b16 %v8743
    %v10995 = vunpack.c.l.b16 %v8744
    %v10996 = vunpack.c.h.b16 %v8744
    %v10997 = vunpack.c.l.b16 %v8745
    %v10998 = vunpack.c.h.b16 %v8745
    %v10999 = vunpack.c.l.b16 %v8746
    %v11000 = vunpack.c.h.b16 %v8746
    %v11001 = vunpack.c.l.b16 %v8747
    %v11002 = vunpack.c.h.b16 %v8747
    %v11003 = vunpack.c.l.b16 %v8748
    %v11004 = vunpack.c.h.b16 %v8748
    %v11005 = vunpack.c.l.b16 %v8749
    %v11006 = vunpack.c.h.b16 %v8749
    %v11007 = vunpack.c.l.b16 %v8750
    %v11008 = vunpack.c.h.b16 %v8750
    %v11009 = vunpack.c.l.b16 %v8751
    %v11010 = vunpack.c.h.b16 %v8751
    %v11011 = vunpack.c.l.b16 %v8752
    %v11012 = vunpack.c.h.b16 %v8752
    %v11013 = vunpack.c.l.b16 %v8753
    %v11014 = vunpack.c.h.b16 %v8753
    %v11015 = vunpack.c.l.b16 %v8754
    %v11016 = vunpack.c.h.b16 %v8754
    %v11017 = vunpack.c.l.b16 %v8755
    %v11018 = vunpack.c.h.b16 %v8755
    %v11019 = vunpack.c.l.b16 %v8756
    %v11020 = vunpack.c.h.b16 %v8756
    %v11021 = vunpack.c.l.b16 %v8757
    %v11022 = vunpack.c.h.b16 %v8757
    %v11023 = vunpack.c.l.b16 %v8758
    %v11024 = vunpack.c.h.b16 %v8758
    %v11025 = vunpack.c.l.b16 %v8759
    %v11026 = vunpack.c.h.b16 %v8759
    %v11027 = vunpack.c.l.b16 %v8760
    %v11028 = vunpack.c.h.b16 %v8760
    %v11029 = vunpack.c.l.b16 %v8761
    %v11030 = vunpack.c.h.b16 %v8761
    %v11031 = vunpack.c.l.b16 %v8762
    %v11032 = vunpack.c.h.b16 %v8762
    %v11033 = vunpack.c.l.b16 %v8763
    %v11034 = vunpack.c.h.b16 %v8763
    %v11035 = vunpack.c.l.b16 %v8764
    %v11036 = vunpack.c.h.b16 %v8764
    %v11037 = vunpack.c.l.b16 %v8765
    %v11038 = vunpack.c.h.b16 %v8765
    %v11039 = vunpack.c.l.b16 %v8766
    %v11040 = vunpack.c.h.b16 %v8766
    %v11041 = vunpack.c.l.b16 %v8767
    %v11042 = vunpack.c.h.b16 %v8767
    %v11043 = vunpack.c.l.b16 %v8768
    %v11044 = vunpack.c.h.b16 %v8768
    %v11045 = vunpack.c.l.b16 %v8769
    %v11046 = vunpack.c.h.b16 %v8769
    %v11047 = vunpack.c.l.b16 %v8770
    %v11048 = vunpack.c.h.b16 %v8770
    %v11049 = vunpack.c.l.b16 %v8771
    %v11050 = vunpack.c.h.b16 %v8771
    %v11051 = vunpack.c.l.b16 %v8772
    %v11052 = vunpack.c.h.b16 %v8772
    %v11053 = vunpack.c.l.b16 %v8773
    %v11054 = vunpack.c.h.b16 %v8773
    %v11055 = vunpack.c.l.b16 %v8774
    %v11056 = vunpack.c.h.b16 %v8774
    %v11057 = vunpack.c.l.b16 %v8775
    %v11058 = vunpack.c.h.b16 %v8775
    %v11059 = vunpack.c.l.b16 %v8776
    %v11060 = vunpack.c.h.b16 %v8776
    %v11061 = vunpack.c.l.b16 %v8777
    %v11062 = vunpack.c.h.b16 %v8777
    %v11063 = vunpack.c.l.b16 %v8778
    %v11064 = vunpack.c.h.b16 %v8778
    %v11065 = vunpack.c.l.b16 %v8779
    %v11066 = vunpack.c.h.b16 %v8779
    %v11067 = vunpack.c.l.b16 %v8780
    %v11068 = vunpack.c.h.b16 %v8780
    %v11069 = vunpack.c.l.b16 %v8781
    %v11070 = vunpack.c.h.b16 %v8781
    %v11071 = vunpack.c.l.b16 %v8782
    %v11072 = vunpack.c.h.b16 %v8782
    %v11073 = vunpack.c.l.b16 %v8783
    %v11074 = vunpack.c.h.b16 %v8783
    %v11075 = vunpack.c.l.b16 %v8784
    %v11076 = vunpack.c.h.b16 %v8784
    %v11077 = vunpack.c.l.b16 %v8785
    %v11078 = vunpack.c.h.b16 %v8785
    %v11079 = vunpack.c.l.b16 %v8786
    %v11080 = vunpack.c.h.b16 %v8786
    %v11081 = vunpack.c.l.b16 %v8787
    %v11082 = vunpack.c.h.b16 %v8787
    %v11083 = vunpack.c.l.b16 %v8788
    %v11084 = vunpack.c.h.b16 %v8788
    %v11085 = vunpack.c.l.b16 %v8789
    %v11086 = vunpack.c.h.b16 %v8789
    %v11087 = vunpack.c.l.b16 %v8790
    %v11088 = vunpack.c.h.b16 %v8790
    %v11089 = vunpack.c.l.b16 %v8791
    %v11090 = vunpack.c.h.b16 %v8791
    %v11091 = vunpack.c.l.b16 %v8792
    %v11092 = vunpack.c.h.b16 %v8792
    %v11093 = vunpack.c.l.b16 %v8793
    %v11094 = vunpack.c.h.b16 %v8793
    %v11095 = vunpack.c.l.b16 %v8794
    %v11096 = vunpack.c.h.b16 %v8794
    %v11097 = vunpack.c.l.b16 %v8795
    %v11098 = vunpack.c.h.b16 %v8795
    %v11099 = vunpack.c.l.b16 %v8796
    %v11100 = vunpack.c.h.b16 %v8796
    %v11101 = vunpack.c.l.b16 %v8797
    %v11102 = vunpack.c.h.b16 %v8797
    %v11103 = vunpack.c.l.b16 %v8798
    %v11104 = vunpack.c.h.b16 %v8798
    %v11105 = vunpack.c.l.b16 %v8799
    %v11106 = vunpack.c.h.b16 %v8799
    %v11107 = vunpack.c.l.b16 %v8800
    %v11108 = vunpack.c.h.b16 %v8800
    %v11109 = vunpack.c.l.b16 %v8801
    %v11110 = vunpack.c.h.b16 %v8801
    %v11111 = vunpack.c.l.b16 %v8802
    %v11112 = vunpack.c.h.b16 %v8802
    %v11113 = vunpack.c.l.b16 %v8803
    %v11114 = vunpack.c.h.b16 %v8803
    %v11115 = vunpack.c.l.b16 %v8804
    %v11116 = vunpack.c.h.b16 %v8804
    %v11117 = vunpack.c.l.b16 %v8805
    %v11118 = vunpack.c.h.b16 %v8805
    %v11119 = vunpack.c.l.b16 %v8806
    %v11120 = vunpack.c.h.b16 %v8806
    %v11121 = vunpack.c.l.b16 %v8807
    %v11122 = vunpack.c.h.b16 %v8807
    %v11123 = vunpack.c.l.b16 %v8808
    %v11124 = vunpack.c.h.b16 %v8808
    %v11125 = vunpack.c.l.b16 %v8809
    %v11126 = vunpack.c.h.b16 %v8809
    %v11127 = vunpack.c.l.b16 %v8810
    %v11128 = vunpack.c.h.b16 %v8810
    %v11129 = vunpack.c.l.b16 %v8811
    %v11130 = vunpack.c.h.b16 %v8811
    %v11131 = vunpack.c.l.b16 %v8812
    %v11132 = vunpack.c.h.b16 %v8812
    %v11133 = vunpack.c.l.b16 %v8813
    %v11134 = vunpack.c.h.b16 %v8813
    %v11135 = vunpack.c.l.b16 %v8814
    %v11136 = vunpack.c.h.b16 %v8814
    %v11137 = vunpack.c.l.b16 %v8815
    %v11138 = vunpack.c.h.b16 %v8815
    %v11139 = vunpack.c.l.b16 %v8816
    %v11140 = vunpack.c.h.b16 %v8816
    %v11141 = vunpack.c.l.b16 %v8817
    %v11142 = vunpack.c.h.b16 %v8817
    %v11143 = vunpack.c.l.b16 %v8818
    %v11144 = vunpack.c.h.b16 %v8818
    %v11145 = vunpack.c.l.b16 %v8819
    %v11146 = vunpack.c.h.b16 %v8819
    %v11147 = vunpack.c.l.b16 %v8820
    %v11148 = vunpack.c.h.b16 %v8820
    %v11149 = vunpack.c.l.b16 %v8821
    %v11150 = vunpack.c.h.b16 %v8821
    %v11151 = vunpack.c.l.b16 %v8822
    %v11152 = vunpack.c.h.b16 %v8822
    %v11153 = vunpack.c.l.b16 %v8823
    %v11154 = vunpack.c.h.b16 %v8823
    %v11155 = vunpack.c.l.b16 %v8824
    %v11156 = vunpack.c.h.b16 %v8824
    %v11157 = vunpack.c.l.b16 %v8825
    %v11158 = vunpack.c.h.b16 %v8825
    %v11159 = vunpack.c.l.b16 %v8826
    %v11160 = vunpack.c.h.b16 %v8826
    %v11161 = vunpack.c.l.b16 %v8827
    %v11162 = vunpack.c.h.b16 %v8827
    %v11163 = vunpack.c.l.b16 %v8828
    %v11164 = vunpack.c.h.b16 %v8828
    %v11165 = vunpack.c.l.b16 %v8829
    %v11166 = vunpack.c.h.b16 %v8829
    %v11167 = vunpack.c.l.b16 %v8830
    %v11168 = vunpack.c.h.b16 %v8830
    %v11169 = vunpack.c.l.b16 %v8831
    %v11170 = vunpack.c.h.b16 %v8831
    %v11171 = vunpack.c.l.b16 %v8832
    %v11172 = vunpack.c.h.b16 %v8832
    %v11173 = vunpack.c.l.b16 %v8833
    %v11174 = vunpack.c.h.b16 %v8833
    %v11175 = vunpack.c.l.b16 %v8834
    %v11176 = vunpack.c.h.b16 %v8834
    %v11177 = vunpack.c.l.b16 %v8835
    %v11178 = vunpack.c.h.b16 %v8835
    %v11179 = vunpack.c.l.b16 %v8836
    %v11180 = vunpack.c.h.b16 %v8836
    %v11181 = vunpack.c.l.b16 %v8837
    %v11182 = vunpack.c.h.b16 %v8837
    %v11183 = vunpack.c.l.b16 %v8838
    %v11184 = vunpack.c.h.b16 %v8838
    %v11185 = vpack.c.b16 %v9657, %v9649
    %v11186 = vpack.c.b16 %v9658, %v9650
    %v11187 = vpack.c.b16 %v9659, %v9651
    %v11188 = vpack.c.b16 %v9660, %v9652
    %v11189 = vpack.c.b16 %v9661, %v9653
    %v11190 = vpack.c.b16 %v9662, %v9654
    %v11191 = vpack.c.b16 %v9663, %v9655
    %v11192 = vpack.c.b16 %v9664, %v9656
    %v11193 = vpack.c.b16 %v9673, %v9665
    %v11194 = vpack.c.b16 %v9674, %v9666
    %v11195 = vpack.c.b16 %v9675, %v9667
    %v11196 = vpack.c.b16 %v9676, %v9668
    %v11197 = vpack.c.b16 %v9677, %v9669
    %v11198 = vpack.c.b16 %v9678, %v9670
    %v11199 = vpack.c.b16 %v9679, %v9671
    %v11200 = vpack.c.b16 %v9680, %v9672
    %v11201 = vpack.c.b16 %v9689, %v9681
    %v11202 = vpack.c.b16 %v9690, %v9682
    %v11203 = vpack.c.b16 %v9691, %v9683
    %v11204 = vpack.c.b16 %v9692, %v9684
    %v11205 = vpack.c.b16 %v9693, %v9685
    %v11206 = vpack.c.b16 %v9694, %v9686
    %v11207 = vpack.c.b16 %v9695, %v9687
    %v11208 = vpack.c.b16 %v9696, %v9688
    %v11209 = vpack.c.b16 %v9705, %v9697
    %v11210 = vpack.c.b16 %v9706, %v9698
    %v11211 = vpack.c.b16 %v9707, %v9699
    %v11212 = vpack.c.b16 %v9708, %v9700
    %v11213 = vpack.c.b16 %v9709, %v9701
    %v11214 = vpack.c.b16 %v9710, %v9702
    %v11215 = vpack.c.b16 %v9711, %v9703
    %v11216 = vpack.c.b16 %v9712, %v9704
    %v11217 = vpack.c.b16 %v9721, %v9713
    %v11218 = vpack.c.b16 %v9722, %v9714
    %v11219 = vpack.c.b16 %v9723, %v9715
    %v11220 = vpack.c.b16 %v9724, %v9716
    %v11221 = vpack.c.b16 %v9725, %v9717
    %v11222 = vpack.c.b16 %v9726, %v9718
    %v11223 = vpack.c.b16 %v9727, %v9719
    %v11224 = vpack.c.b16 %v9728, %v9720
    %v11225 = vpack.c.b16 %v9737, %v9729
    %v11226 = vpack.c.b16 %v9738, %v9730
    %v11227 = vpack.c.b16 %v9739, %v9731
    %v11228 = vpack.c.b16 %v9740, %v9732
    %v11229 = vpack.c.b16 %v9741, %v9733
    %v11230 = vpack.c.b16 %v9742, %v9734
    %v11231 = vpack.c.b16 %v9743, %v9735
    %v11232 = vpack.c.b16 %v9744, %v9736
    %v11233 = vpack.c.b16 %v9753, %v9745
    %v11234 = vpack.c.b16 %v9754, %v9746
    %v11235 = vpack.c.b16 %v9755, %v9747
    %v11236 = vpack.c.b16 %v9756, %v9748
    %v11237 = vpack.c.b16 %v9757, %v9749
    %v11238 = vpack.c.b16 %v9758, %v9750
    %v11239 = vpack.c.b16 %v9759, %v9751
    %v11240 = vpack.c.b16 %v9760, %v9752
    %v11241 = vpack.c.b16 %v9769, %v9761
    %v11242 = vpack.c.b16 %v9770, %v9762
    %v11243 = vpack.c.b16 %v9771, %v9763
    %v11244 = vpack.c.b16 %v9772, %v9764
    %v11245 = vpack.c.b16 %v9773, %v9765
    %v11246 = vpack.c.b16 %v9774, %v9766
    %v11247 = vpack.c.b16 %v9775, %v9767
    %v11248 = vpack.c.b16 %v9776, %v9768
    %v11249 = vpack.c.b16 %v9785, %v9777
    %v11250 = vpack.c.b16 %v9786, %v9778
    %v11251 = vpack.c.b16 %v9787, %v9779
    %v11252 = vpack.c.b16 %v9788, %v9780
    %v11253 = vpack.c.b16 %v9789, %v9781
    %v11254 = vpack.c.b16 %v9790, %v9782
    %v11255 = vpack.c.b16 %v9791, %v9783
    %v11256 = vpack.c.b16 %v9792, %v9784
    %v11257 = vpack.c.b16 %v9801, %v9793
    %v11258 = vpack.c.b16 %v9802, %v9794
    %v11259 = vpack.c.b16 %v9803, %v9795
    %v11260 = vpack.c.b16 %v9804, %v9796
    %v11261 = vpack.c.b16 %v9805, %v9797
    %v11262 = vpack.c.b16 %v9806, %v9798
    %v11263 = vpack.c.b16 %v9807, %v9799
    %v11264 = vpack.c.b16 %v9808, %v9800
    %v11265 = vpack.c.b16 %v9817, %v9809
    %v11266 = vpack.c.b16 %v9818, %v9810
    %v11267 = vpack.c.b16 %v9819, %v9811
    %v11268 = vpack.c.b16 %v9820, %v9812
    %v11269 = vpack.c.b16 %v9821, %v9813
    %v11270 = vpack.c.b16 %v9822, %v9814
    %v11271 = vpack.c.b16 %v9823, %v9815
    %v11272 = vpack.c.b16 %v9824, %v9816
    %v11273 = vpack.c.b16 %v9833, %v9825
    %v11274 = vpack.c.b16 %v9834, %v9826
    %v11275 = vpack.c.b16 %v9835, %v9827
    %v11276 = vpack.c.b16 %v9836, %v9828
    %v11277 = vpack.c.b16 %v9837, %v9829
    %v11278 = vpack.c.b16 %v9838, %v9830
    %v11279 = vpack.c.b16 %v9839, %v9831
    %v11280 = vpack.c.b16 %v9840, %v9832
    %v11281 = vpack.c.b16 %v9849, %v9841
    %v11282 = vpack.c.b16 %v9850, %v9842
    %v11283 = vpack.c.b16 %v9851, %v9843
    %v11284 = vpack.c.b16 %v9852, %v9844
    %v11285 = vpack.c.b16 %v9853, %v9845
    %v11286 = vpack.c.b16 %v9854, %v9846
    %v11287 = vpack.c.b16 %v9855, %v9847
    %v11288 = vpack.c.b16 %v9856, %v9848
    %v11289 = vpack.c.b16 %v9865, %v9857
    %v11290 = vpack.c.b16 %v9866, %v9858
    %v11291 = vpack.c.b16 %v9867, %v9859
    %v11292 = vpack.c.b16 %v9868, %v9860
    %v11293 = vpack.c.b16 %v9869, %v9861
    %v11294 = vpack.c.b16 %v9870, %v9862
    %v11295 = vpack.c.b16 %v9871, %v9863
    %v11296 = vpack.c.b16 %v9872, %v9864
    %v11297 = vpack.c.b16 %v9881, %v9873
    %v11298 = vpack.c.b16 %v9882, %v9874
    %v11299 = vpack.c.b16 %v9883, %v9875
    %v11300 = vpack.c.b16 %v9884, %v9876
    %v11301 = vpack.c.b16 %v9885, %v9877
    %v11302 = vpack.c.b16 %v9886, %v9878
    %v11303 = vpack.c.b16 %v9887, %v9879
    %v11304 = vpack.c.b16 %v9888, %v9880
    %v11305 = vpack.c.b16 %v9897, %v9889
    %v11306 = vpack.c.b16 %v9898, %v9890
    %v11307 = vpack.c.b16 %v9899, %v9891
    %v11308 = vpack.c.b16 %v9900, %v9892
    %v11309 = vpack.c.b16 %v9901, %v9893
    %v11310 = vpack.c.b16 %v9902, %v9894
    %v11311 = vpack.c.b16 %v9903, %v9895
    %v11312 = vpack.c.b16 %v9904, %v9896
    %v11313 = vpack.c.b16 %v9913, %v9905
    %v11314 = vpack.c.b16 %v9914, %v9906
    %v11315 = vpack.c.b16 %v9915, %v9907
    %v11316 = vpack.c.b16 %v9916, %v9908
    %v11317 = vpack.c.b16 %v9917, %v9909
    %v11318 = vpack.c.b16 %v9918, %v9910
    %v11319 = vpack.c.b16 %v9919, %v9911
    %v11320 = vpack.c.b16 %v9920, %v9912
    %v11321 = vpack.c.b16 %v9929, %v9921
    %v11322 = vpack.c.b16 %v9930, %v9922
    %v11323 = vpack.c.b16 %v9931, %v9923
    %v11324 = vpack.c.b16 %v9932, %v9924
    %v11325 = vpack.c.b16 %v9933, %v9925
    %v11326 = vpack.c.b16 %v9934, %v9926
    %v11327 = vpack.c.b16 %v9935, %v9927
    %v11328 = vpack.c.b16 %v9936, %v9928
    %v11329 = vpack.c.b16 %v9945, %v9937
    %v11330 = vpack.c.b16 %v9946, %v9938
    %v11331 = vpack.c.b16 %v9947, %v9939
    %v11332 = vpack.c.b16 %v9948, %v9940
    %v11333 = vpack.c.b16 %v9949, %v9941
    %v11334 = vpack.c.b16 %v9950, %v9942
    %v11335 = vpack.c.b16 %v9951, %v9943
    %v11336 = vpack.c.b16 %v9952, %v9944
    %v11337 = vpack.c.b16 %v9961, %v9953
    %v11338 = vpack.c.b16 %v9962, %v9954
    %v11339 = vpack.c.b16 %v9963, %v9955
    %v11340 = vpack.c.b16 %v9964, %v9956
    %v11341 = vpack.c.b16 %v9965, %v9957
    %v11342 = vpack.c.b16 %v9966, %v9958
    %v11343 = vpack.c.b16 %v9967, %v9959
    %v11344 = vpack.c.b16 %v9968, %v9960
    %v11345 = vpack.c.b16 %v9977, %v9969
    %v11346 = vpack.c.b16 %v9978, %v9970
    %v11347 = vpack.c.b16 %v9979, %v9971
    %v11348 = vpack.c.b16 %v9980, %v9972
    %v11349 = vpack.c.b16 %v9981, %v9973
    %v11350 = vpack.c.b16 %v9982, %v9974
    %v11351 = vpack.c.b16 %v9983, %v9975
    %v11352 = vpack.c.b16 %v9984, %v9976
    %v11353 = vpack.c.b16 %v9993, %v9985
    %v11354 = vpack.c.b16 %v9994, %v9986
    %v11355 = vpack.c.b16 %v9995, %v9987
    %v11356 = vpack.c.b16 %v9996, %v9988
    %v11357 = vpack.c.b16 %v9997, %v9989
    %v11358 = vpack.c.b16 %v9998, %v9990
    %v11359 = vpack.c.b16 %v9999, %v9991
    %v11360 = vpack.c.b16 %v10000, %v9992
    %v11361 = vpack.c.b16 %v10009, %v10001
    %v11362 = vpack.c.b16 %v10010, %v10002
    %v11363 = vpack.c.b16 %v10011, %v10003
    %v11364 = vpack.c.b16 %v10012, %v10004
    %v11365 = vpack.c.b16 %v10013, %v10005
    %v11366 = vpack.c.b16 %v10014, %v10006
    %v11367 = vpack.c.b16 %v10015, %v10007
    %v11368 = vpack.c.b16 %v10016, %v10008
    %v11369 = vpack.c.b16 %v10025, %v10017
    %v11370 = vpack.c.b16 %v10026, %v10018
    %v11371 = vpack.c.b16 %v10027, %v10019
    %v11372 = vpack.c.b16 %v10028, %v10020
    %v11373 = vpack.c.b16 %v10029, %v10021
    %v11374 = vpack.c.b16 %v10030, %v10022
    %v11375 = vpack.c.b16 %v10031, %v10023
    %v11376 = vpack.c.b16 %v10032, %v10024
    %v11377 = vpack.c.b16 %v10041, %v10033
    %v11378 = vpack.c.b16 %v10042, %v10034
    %v11379 = vpack.c.b16 %v10043, %v10035
    %v11380 = vpack.c.b16 %v10044, %v10036
    %v11381 = vpack.c.b16 %v10045, %v10037
    %v11382 = vpack.c.b16 %v10046, %v10038
    %v11383 = vpack.c.b16 %v10047, %v10039
    %v11384 = vpack.c.b16 %v10048, %v10040
    %v11385 = vpack.c.b16 %v10057, %v10049
    %v11386 = vpack.c.b16 %v10058, %v10050
    %v11387 = vpack.c.b16 %v10059, %v10051
    %v11388 = vpack.c.b16 %v10060, %v10052
    %v11389 = vpack.c.b16 %v10061, %v10053
    %v11390 = vpack.c.b16 %v10062, %v10054
    %v11391 = vpack.c.b16 %v10063, %v10055
    %v11392 = vpack.c.b16 %v10064, %v10056
    %v11393 = vpack.c.b16 %v10073, %v10065
    %v11394 = vpack.c.b16 %v10074, %v10066
    %v11395 = vpack.c.b16 %v10075, %v10067
    %v11396 = vpack.c.b16 %v10076, %v10068
    %v11397 = vpack.c.b16 %v10077, %v10069
    %v11398 = vpack.c.b16 %v10078, %v10070
    %v11399 = vpack.c.b16 %v10079, %v10071
    %v11400 = vpack.c.b16 %v10080, %v10072
    %v11401 = vpack.c.b16 %v10089, %v10081
    %v11402 = vpack.c.b16 %v10090, %v10082
    %v11403 = vpack.c.b16 %v10091, %v10083
    %v11404 = vpack.c.b16 %v10092, %v10084
    %v11405 = vpack.c.b16 %v10093, %v10085
    %v11406 = vpack.c.b16 %v10094, %v10086
    %v11407 = vpack.c.b16 %v10095, %v10087
    %v11408 = vpack.c.b16 %v10096, %v10088
    %v11409 = vpack.c.b16 %v10105, %v10097
    %v11410 = vpack.c.b16 %v10106, %v10098
    %v11411 = vpack.c.b16 %v10107, %v10099
    %v11412 = vpack.c.b16 %v10108, %v10100
    %v11413 = vpack.c.b16 %v10109, %v10101
    %v11414 = vpack.c.b16 %v10110, %v10102
    %v11415 = vpack.c.b16 %v10111, %v10103
    %v11416 = vpack.c.b16 %v10112, %v10104
    %v11417 = vpack.c.b16 %v10121, %v10113
    %v11418 = vpack.c.b16 %v10122, %v10114
    %v11419 = vpack.c.b16 %v10123, %v10115
    %v11420 = vpack.c.b16 %v10124, %v10116
    %v11421 = vpack.c.b16 %v10125, %v10117
    %v11422 = vpack.c.b16 %v10126, %v10118
    %v11423 = vpack.c.b16 %v10127, %v10119
    %v11424 = vpack.c.b16 %v10128, %v10120
    %v11425 = vpack.c.b16 %v10137, %v10129
    %v11426 = vpack.c.b16 %v10138, %v10130
    %v11427 = vpack.c.b16 %v10139, %v10131
    %v11428 = vpack.c.b16 %v10140, %v10132
    %v11429 = vpack.c.b16 %v10141, %v10133
    %v11430 = vpack.c.b16 %v10142, %v10134
    %v11431 = vpack.c.b16 %v10143, %v10135
    %v11432 = vpack.c.b16 %v10144, %v10136
    %v11433 = vpack.c.b16 %v10153, %v10145
    %v11434 = vpack.c.b16 %v10154, %v10146
    %v11435 = vpack.c.b16 %v10155, %v10147
    %v11436 = vpack.c.b16 %v10156, %v10148
    %v11437 = vpack.c.b16 %v10157, %v10149
    %v11438 = vpack.c.b16 %v10158, %v10150
    %v11439 = vpack.c.b16 %v10159, %v10151
    %v11440 = vpack.c.b16 %v10160, %v10152
    %v11441 = vpack.c.b16 %v10169, %v10161
    %v11442 = vpack.c.b16 %v10170, %v10162
    %v11443 = vpack.c.b16 %v10171, %v10163
    %v11444 = vpack.c.b16 %v10172, %v10164
    %v11445 = vpack.c.b16 %v10173, %v10165
    %v11446 = vpack.c.b16 %v10174, %v10166
    %v11447 = vpack.c.b16 %v10175, %v10167
    %v11448 = vpack.c.b16 %v10176, %v10168
    %v11449 = vpack.c.b16 %v10185, %v10177
    %v11450 = vpack.c.b16 %v10186, %v10178
    %v11451 = vpack.c.b16 %v10187, %v10179
    %v11452 = vpack.c.b16 %v10188, %v10180
    %v11453 = vpack.c.b16 %v10189, %v10181
    %v11454 = vpack.c.b16 %v10190, %v10182
    %v11455 = vpack.c.b16 %v10191, %v10183
    %v11456 = vpack.c.b16 %v10192, %v10184
    %v11457 = vpack.c.b16 %v10201, %v10193
    %v11458 = vpack.c.b16 %v10202, %v10194
    %v11459 = vpack.c.b16 %v10203, %v10195
    %v11460 = vpack.c.b16 %v10204, %v10196
    %v11461 = vpack.c.b16 %v10205, %v10197
    %v11462 = vpack.c.b16 %v10206, %v10198
    %v11463 = vpack.c.b16 %v10207, %v10199
    %v11464 = vpack.c.b16 %v10208, %v10200
    %v11465 = vpack.c.b16 %v10217, %v10209
    %v11466 = vpack.c.b16 %v10218, %v10210
    %v11467 = vpack.c.b16 %v10219, %v10211
    %v11468 = vpack.c.b16 %v10220, %v10212
    %v11469 = vpack.c.b16 %v10221, %v10213
    %v11470 = vpack.c.b16 %v10222, %v10214
    %v11471 = vpack.c.b16 %v10223, %v10215
    %v11472 = vpack.c.b16 %v10224, %v10216
    %v11473 = vpack.c.b16 %v10233, %v10225
    %v11474 = vpack.c.b16 %v10234, %v10226
    %v11475 = vpack.c.b16 %v10235, %v10227
    %v11476 = vpack.c.b16 %v10236, %v10228
    %v11477 = vpack.c.b16 %v10237, %v10229
    %v11478 = vpack.c.b16 %v10238, %v10230
    %v11479 = vpack.c.b16 %v10239, %v10231
    %v11480 = vpack.c.b16 %v10240, %v10232
    %v11481 = vpack.c.b16 %v10249, %v10241
    %v11482 = vpack.c.b16 %v10250, %v10242
    %v11483 = vpack.c.b16 %v10251, %v10243
    %v11484 = vpack.c.b16 %v10252, %v10244
    %v11485 = vpack.c.b16 %v10253, %v10245
    %v11486 = vpack.c.b16 %v10254, %v10246
    %v11487 = vpack.c.b16 %v10255, %v10247
    %v11488 = vpack.c.b16 %v10256, %v10248
    %v11489 = vpack.c.b16 %v10265, %v10257
    %v11490 = vpack.c.b16 %v10266, %v10258
    %v11491 = vpack.c.b16 %v10267, %v10259
    %v11492 = vpack.c.b16 %v10268, %v10260
    %v11493 = vpack.c.b16 %v10269, %v10261
    %v11494 = vpack.c.b16 %v10270, %v10262
    %v11495 = vpack.c.b16 %v10271, %v10263
    %v11496 = vpack.c.b16 %v10272, %v10264
    %v11497 = vpack.c.b16 %v10281, %v10273
    %v11498 = vpack.c.b16 %v10282, %v10274
    %v11499 = vpack.c.b16 %v10283, %v10275
    %v11500 = vpack.c.b16 %v10284, %v10276
    %v11501 = vpack.c.b16 %v10285, %v10277
    %v11502 = vpack.c.b16 %v10286, %v10278
    %v11503 = vpack.c.b16 %v10287, %v10279
    %v11504 = vpack.c.b16 %v10288, %v10280
    %v11505 = vpack.c.b16 %v10297, %v10289
    %v11506 = vpack.c.b16 %v10298, %v10290
    %v11507 = vpack.c.b16 %v10299, %v10291
    %v11508 = vpack.c.b16 %v10300, %v10292
    %v11509 = vpack.c.b16 %v10301, %v10293
    %v11510 = vpack.c.b16 %v10302, %v10294
    %v11511 = vpack.c.b16 %v10303, %v10295
    %v11512 = vpack.c.b16 %v10304, %v10296
    %v11513 = vpack.c.b16 %v10313, %v10305
    %v11514 = vpack.c.b16 %v10314, %v10306
    %v11515 = vpack.c.b16 %v10315, %v10307
    %v11516 = vpack.c.b16 %v10316, %v10308
    %v11517 = vpack.c.b16 %v10317, %v10309
    %v11518 = vpack.c.b16 %v10318, %v10310
    %v11519 = vpack.c.b16 %v10319, %v10311
    %v11520 = vpack.c.b16 %v10320, %v10312
    %v11521 = vpack.c.b16 %v10329, %v10321
    %v11522 = vpack.c.b16 %v10330, %v10322
    %v11523 = vpack.c.b16 %v10331, %v10323
    %v11524 = vpack.c.b16 %v10332, %v10324
    %v11525 = vpack.c.b16 %v10333, %v10325
    %v11526 = vpack.c.b16 %v10334, %v10326
    %v11527 = vpack.c.b16 %v10335, %v10327
    %v11528 = vpack.c.b16 %v10336, %v10328
    %v11529 = vpack.c.b16 %v10345, %v10337
    %v11530 = vpack.c.b16 %v10346, %v10338
    %v11531 = vpack.c.b16 %v10347, %v10339
    %v11532 = vpack.c.b16 %v10348, %v10340
    %v11533 = vpack.c.b16 %v10349, %v10341
    %v11534 = vpack.c.b16 %v10350, %v10342
    %v11535 = vpack.c.b16 %v10351, %v10343
    %v11536 = vpack.c.b16 %v10352, %v10344
    %v11537 = vpack.c.b16 %v10361, %v10353
    %v11538 = vpack.c.b16 %v10362, %v10354
    %v11539 = vpack.c.b16 %v10363, %v10355
    %v11540 = vpack.c.b16 %v10364, %v10356
    %v11541 = vpack.c.b16 %v10365, %v10357
    %v11542 = vpack.c.b16 %v10366, %v10358
    %v11543 = vpack.c.b16 %v10367, %v10359
    %v11544 = vpack.c.b16 %v10368, %v10360
    %v11545 = vpack.c.b16 %v10377, %v10369
    %v11546 = vpack.c.b16 %v10378, %v10370
    %v11547 = vpack.c.b16 %v10379, %v10371
    %v11548 = vpack.c.b16 %v10380, %v10372
    %v11549 = vpack.c.b16 %v10381, %v10373
    %v11550 = vpack.c.b16 %v10382, %v10374
    %v11551 = vpack.c.b16 %v10383, %v10375
    %v11552 = vpack.c.b16 %v10384, %v10376
    %v11553 = vpack.c.b16 %v10393, %v10385
    %v11554 = vpack.c.b16 %v10394, %v10386
    %v11555 = vpack.c.b16 %v10395, %v10387
    %v11556 = vpack.c.b16 %v10396, %v10388
    %v11557 = vpack.c.b16 %v10397, %v10389
    %v11558 = vpack.c.b16 %v10398, %v10390
    %v11559 = vpack.c.b16 %v10399, %v10391
    %v11560 = vpack.c.b16 %v10400, %v10392
    %v11561 = vpack.c.b16 %v10409, %v10401
    %v11562 = vpack.c.b16 %v10410, %v10402
    %v11563 = vpack.c.b16 %v10411, %v10403
    %v11564 = vpack.c.b16 %v10412, %v10404
    %v11565 = vpack.c.b16 %v10413, %v10405
    %v11566 = vpack.c.b16 %v10414, %v10406
    %v11567 = vpack.c.b16 %v10415, %v10407
    %v11568 = vpack.c.b16 %v10416, %v10408
    %v11569 = vpack.c.b16 %v10425, %v10417
    %v11570 = vpack.c.b16 %v10426, %v10418
    %v11571 = vpack.c.b16 %v10427, %v10419
    %v11572 = vpack.c.b16 %v10428, %v10420
    %v11573 = vpack.c.b16 %v10429, %v10421
    %v11574 = vpack.c.b16 %v10430, %v10422
    %v11575 = vpack.c.b16 %v10431, %v10423
    %v11576 = vpack.c.b16 %v10432, %v10424
    %v11577 = vpack.c.b16 %v10441, %v10433
    %v11578 = vpack.c.b16 %v10442, %v10434
    %v11579 = vpack.c.b16 %v10443, %v10435
    %v11580 = vpack.c.b16 %v10444, %v10436
    %v11581 = vpack.c.b16 %v10445, %v10437
    %v11582 = vpack.c.b16 %v10446, %v10438
    %v11583 = vpack.c.b16 %v10447, %v10439
    %v11584 = vpack.c.b16 %v10448, %v10440
    %v11585 = vpack.c.b16 %v10457, %v10449
    %v11586 = vpack.c.b16 %v10458, %v10450
    %v11587 = vpack.c.b16 %v10459, %v10451
    %v11588 = vpack.c.b16 %v10460, %v10452
    %v11589 = vpack.c.b16 %v10461, %v10453
    %v11590 = vpack.c.b16 %v10462, %v10454
    %v11591 = vpack.c.b16 %v10463, %v10455
    %v11592 = vpack.c.b16 %v10464, %v10456
    %v11593 = vpack.c.b16 %v10473, %v10465
    %v11594 = vpack.c.b16 %v10474, %v10466
    %v11595 = vpack.c.b16 %v10475, %v10467
    %v11596 = vpack.c.b16 %v10476, %v10468
    %v11597 = vpack.c.b16 %v10477, %v10469
    %v11598 = vpack.c.b16 %v10478, %v10470
    %v11599 = vpack.c.b16 %v10479, %v10471
    %v11600 = vpack.c.b16 %v10480, %v10472
    %v11601 = vpack.c.b16 %v10489, %v10481
    %v11602 = vpack.c.b16 %v10490, %v10482
    %v11603 = vpack.c.b16 %v10491, %v10483
    %v11604 = vpack.c.b16 %v10492, %v10484
    %v11605 = vpack.c.b16 %v10493, %v10485
    %v11606 = vpack.c.b16 %v10494, %v10486
    %v11607 = vpack.c.b16 %v10495, %v10487
    %v11608 = vpack.c.b16 %v10496, %v10488
    %v11609 = vpack.c.b16 %v10505, %v10497
    %v11610 = vpack.c.b16 %v10506, %v10498
    %v11611 = vpack.c.b16 %v10507, %v10499
    %v11612 = vpack.c.b16 %v10508, %v10500
    %v11613 = vpack.c.b16 %v10509, %v10501
    %v11614 = vpack.c.b16 %v10510, %v10502
    %v11615 = vpack.c.b16 %v10511, %v10503
    %v11616 = vpack.c.b16 %v10512, %v10504
    %v11617 = vpack.c.b16 %v10521, %v10513
    %v11618 = vpack.c.b16 %v10522, %v10514
    %v11619 = vpack.c.b16 %v10523, %v10515
    %v11620 = vpack.c.b16 %v10524, %v10516
    %v11621 = vpack.c.b16 %v10525, %v10517
    %v11622 = vpack.c.b16 %v10526, %v10518
    %v11623 = vpack.c.b16 %v10527, %v10519
    %v11624 = vpack.c.b16 %v10528, %v10520
    %v11625 = vpack.c.b16 %v10537, %v10529
    %v11626 = vpack.c.b16 %v10538, %v10530
    %v11627 = vpack.c.b16 %v10539, %v10531
    %v11628 = vpack.c.b16 %v10540, %v10532
    %v11629 = vpack.c.b16 %v10541, %v10533
    %v11630 = vpack.c.b16 %v10542, %v10534
    %v11631 = vpack.c.b16 %v10543, %v10535
    %v11632 = vpack.c.b16 %v10544, %v10536
    %v11633 = vpack.c.b16 %v10553, %v10545
    %v11634 = vpack.c.b16 %v10554, %v10546
    %v11635 = vpack.c.b16 %v10555, %v10547
    %v11636 = vpack.c.b16 %v10556, %v10548
    %v11637 = vpack.c.b16 %v10557, %v10549
    %v11638 = vpack.c.b16 %v10558, %v10550
    %v11639 = vpack.c.b16 %v10559, %v10551
    %v11640 = vpack.c.b16 %v10560, %v10552
    %v11641 = vpack.c.b16 %v10569, %v10561
    %v11642 = vpack.c.b16 %v10570, %v10562
    %v11643 = vpack.c.b16 %v10571, %v10563
    %v11644 = vpack.c.b16 %v10572, %v10564
    %v11645 = vpack.c.b16 %v10573, %v10565
    %v11646 = vpack.c.b16 %v10574, %v10566
    %v11647 = vpack.c.b16 %v10575, %v10567
    %v11648 = vpack.c.b16 %v10576, %v10568
    %v11649 = vpack.c.b16 %v10585, %v10577
    %v11650 = vpack.c.b16 %v10586, %v10578
    %v11651 = vpack.c.b16 %v10587, %v10579
    %v11652 = vpack.c.b16 %v10588, %v10580
    %v11653 = vpack.c.b16 %v10589, %v10581
    %v11654 = vpack.c.b16 %v10590, %v10582
    %v11655 = vpack.c.b16 %v10591, %v10583
    %v11656 = vpack.c.b16 %v10592, %v10584
    %v11657 = vpack.c.b16 %v10601, %v10593
    %v11658 = vpack.c.b16 %v10602, %v10594
    %v11659 = vpack.c.b16 %v10603, %v10595
    %v11660 = vpack.c.b16 %v10604, %v10596
    %v11661 = vpack.c.b16 %v10605, %v10597
    %v11662 = vpack.c.b16 %v10606, %v10598
    %v11663 = vpack.c.b16 %v10607, %v10599
    %v11664 = vpack.c.b16 %v10608, %v10600
    %v11665 = vpack.c.b16 %v10617, %v10609
    %v11666 = vpack.c.b16 %v10618, %v10610
    %v11667 = vpack.c.b16 %v10619, %v10611
    %v11668 = vpack.c.b16 %v10620, %v10612
    %v11669 = vpack.c.b16 %v10621, %v10613
    %v11670 = vpack.c.b16 %v10622, %v10614
    %v11671 = vpack.c.b16 %v10623, %v10615
    %v11672 = vpack.c.b16 %v10624, %v10616
    %v11673 = vpack.c.b16 %v10633, %v10625
    %v11674 = vpack.c.b16 %v10634, %v10626
    %v11675 = vpack.c.b16 %v10635, %v10627
    %v11676 = vpack.c.b16 %v10636, %v10628
    %v11677 = vpack.c.b16 %v10637, %v10629
    %v11678 = vpack.c.b16 %v10638, %v10630
    %v11679 = vpack.c.b16 %v10639, %v10631
    %v11680 = vpack.c.b16 %v10640, %v10632
    %v11681 = vpack.c.b16 %v10649, %v10641
    %v11682 = vpack.c.b16 %v10650, %v10642
    %v11683 = vpack.c.b16 %v10651, %v10643
    %v11684 = vpack.c.b16 %v10652, %v10644
    %v11685 = vpack.c.b16 %v10653, %v10645
    %v11686 = vpack.c.b16 %v10654, %v10646
    %v11687 = vpack.c.b16 %v10655, %v10647
    %v11688 = vpack.c.b16 %v10656, %v10648
    %v11689 = vpack.c.b16 %v10665, %v10657
    %v11690 = vpack.c.b16 %v10666, %v10658
    %v11691 = vpack.c.b16 %v10667, %v10659
    %v11692 = vpack.c.b16 %v10668, %v10660
    %v11693 = vpack.c.b16 %v10669, %v10661
    %v11694 = vpack.c.b16 %v10670, %v10662
    %v11695 = vpack.c.b16 %v10671, %v10663
    %v11696 = vpack.c.b16 %v10672, %v10664
    %v11697 = vpack.c.b16 %v10681, %v10673
    %v11698 = vpack.c.b16 %v10682, %v10674
    %v11699 = vpack.c.b16 %v10683, %v10675
    %v11700 = vpack.c.b16 %v10684, %v10676
    %v11701 = vpack.c.b16 %v10685, %v10677
    %v11702 = vpack.c.b16 %v10686, %v10678
    %v11703 = vpack.c.b16 %v10687, %v10679
    %v11704 = vpack.c.b16 %v10688, %v10680
    %v11705 = vpack.c.b16 %v10697, %v10689
    %v11706 = vpack.c.b16 %v10698, %v10690
    %v11707 = vpack.c.b16 %v10699, %v10691
    %v11708 = vpack.c.b16 %v10700, %v10692
    %v11709 = vpack.c.b16 %v10701, %v10693
    %v11710 = vpack.c.b16 %v10702, %v10694
    %v11711 = vpack.c.b16 %v10703, %v10695
    %v11712 = vpack.c.b16 %v10704, %v10696
    %v11713 = vpack.c.b16 %v10713, %v10705
    %v11714 = vpack.c.b16 %v10714, %v10706
    %v11715 = vpack.c.b16 %v10715, %v10707
    %v11716 = vpack.c.b16 %v10716, %v10708
    %v11717 = vpack.c.b16 %v10717, %v10709
    %v11718 = vpack.c.b16 %v10718, %v10710
    %v11719 = vpack.c.b16 %v10719, %v10711
    %v11720 = vpack.c.b16 %v10720, %v10712
    %v11721 = vpack.c.b16 %v10729, %v10721
    %v11722 = vpack.c.b16 %v10730, %v10722
    %v11723 = vpack.c.b16 %v10731, %v10723
    %v11724 = vpack.c.b16 %v10732, %v10724
    %v11725 = vpack.c.b16 %v10733, %v10725
    %v11726 = vpack.c.b16 %v10734, %v10726
    %v11727 = vpack.c.b16 %v10735, %v10727
    %v11728 = vpack.c.b16 %v10736, %v10728
    %v11729 = vpack.c.b16 %v10745, %v10737
    %v11730 = vpack.c.b16 %v10746, %v10738
    %v11731 = vpack.c.b16 %v10747, %v10739
    %v11732 = vpack.c.b16 %v10748, %v10740
    %v11733 = vpack.c.b16 %v10749, %v10741
    %v11734 = vpack.c.b16 %v10750, %v10742
    %v11735 = vpack.c.b16 %v10751, %v10743
    %v11736 = vpack.c.b16 %v10752, %v10744
    %v11737 = vpack.c.b16 %v10761, %v10753
    %v11738 = vpack.c.b16 %v10762, %v10754
    %v11739 = vpack.c.b16 %v10763, %v10755
    %v11740 = vpack.c.b16 %v10764, %v10756
    %v11741 = vpack.c.b16 %v10765, %v10757
    %v11742 = vpack.c.b16 %v10766, %v10758
    %v11743 = vpack.c.b16 %v10767, %v10759
    %v11744 = vpack.c.b16 %v10768, %v10760
    %v11745 = vpack.c.b16 %v10777, %v10769
    %v11746 = vpack.c.b16 %v10778, %v10770
    %v11747 = vpack.c.b16 %v10779, %v10771
    %v11748 = vpack.c.b16 %v10780, %v10772
    %v11749 = vpack.c.b16 %v10781, %v10773
    %v11750 = vpack.c.b16 %v10782, %v10774
    %v11751 = vpack.c.b16 %v10783, %v10775
    %v11752 = vpack.c.b16 %v10784, %v10776
    %v11753 = vpack.c.b16 %v10793, %v10785
    %v11754 = vpack.c.b16 %v10794, %v10786
    %v11755 = vpack.c.b16 %v10795, %v10787
    %v11756 = vpack.c.b16 %v10796, %v10788
    %v11757 = vpack.c.b16 %v10797, %v10789
    %v11758 = vpack.c.b16 %v10798, %v10790
    %v11759 = vpack.c.b16 %v10799, %v10791
    %v11760 = vpack.c.b16 %v10800, %v10792
    %v11761 = vpack.c.b16 %v10809, %v10801
    %v11762 = vpack.c.b16 %v10810, %v10802
    %v11763 = vpack.c.b16 %v10811, %v10803
    %v11764 = vpack.c.b16 %v10812, %v10804
    %v11765 = vpack.c.b16 %v10813, %v10805
    %v11766 = vpack.c.b16 %v10814, %v10806
    %v11767 = vpack.c.b16 %v10815, %v10807
    %v11768 = vpack.c.b16 %v10816, %v10808
    %v11769 = vpack.c.b16 %v10825, %v10817
    %v11770 = vpack.c.b16 %v10826, %v10818
    %v11771 = vpack.c.b16 %v10827, %v10819
    %v11772 = vpack.c.b16 %v10828, %v10820
    %v11773 = vpack.c.b16 %v10829, %v10821
    %v11774 = vpack.c.b16 %v10830, %v10822
    %v11775 = vpack.c.b16 %v10831, %v10823
    %v11776 = vpack.c.b16 %v10832, %v10824
    %v11777 = vpack.c.b16 %v10841, %v10833
    %v11778 = vpack.c.b16 %v10842, %v10834
    %v11779 = vpack.c.b16 %v10843, %v10835
    %v11780 = vpack.c.b16 %v10844, %v10836
    %v11781 = vpack.c.b16 %v10845, %v10837
    %v11782 = vpack.c.b16 %v10846, %v10838
    %v11783 = vpack.c.b16 %v10847, %v10839
    %v11784 = vpack.c.b16 %v10848, %v10840
    %v11785 = vpack.c.b16 %v10857, %v10849
    %v11786 = vpack.c.b16 %v10858, %v10850
    %v11787 = vpack.c.b16 %v10859, %v10851
    %v11788 = vpack.c.b16 %v10860, %v10852
    %v11789 = vpack.c.b16 %v10861, %v10853
    %v11790 = vpack.c.b16 %v10862, %v10854
    %v11791 = vpack.c.b16 %v10863, %v10855
    %v11792 = vpack.c.b16 %v10864, %v10856
    %v11793 = vpack.c.b16 %v10873, %v10865
    %v11794 = vpack.c.b16 %v10874, %v10866
    %v11795 = vpack.c.b16 %v10875, %v10867
    %v11796 = vpack.c.b16 %v10876, %v10868
    %v11797 = vpack.c.b16 %v10877, %v10869
    %v11798 = vpack.c.b16 %v10878, %v10870
    %v11799 = vpack.c.b16 %v10879, %v10871
    %v11800 = vpack.c.b16 %v10880, %v10872
    %v11801 = vpack.c.b16 %v10889, %v10881
    %v11802 = vpack.c.b16 %v10890, %v10882
    %v11803 = vpack.c.b16 %v10891, %v10883
    %v11804 = vpack.c.b16 %v10892, %v10884
    %v11805 = vpack.c.b16 %v10893, %v10885
    %v11806 = vpack.c.b16 %v10894, %v10886
    %v11807 = vpack.c.b16 %v10895, %v10887
    %v11808 = vpack.c.b16 %v10896, %v10888
    %v11809 = vpack.c.b16 %v10905, %v10897
    %v11810 = vpack.c.b16 %v10906, %v10898
    %v11811 = vpack.c.b16 %v10907, %v10899
    %v11812 = vpack.c.b16 %v10908, %v10900
    %v11813 = vpack.c.b16 %v10909, %v10901
    %v11814 = vpack.c.b16 %v10910, %v10902
    %v11815 = vpack.c.b16 %v10911, %v10903
    %v11816 = vpack.c.b16 %v10912, %v10904
    %v11817 = vpack.c.b16 %v10921, %v10913
    %v11818 = vpack.c.b16 %v10922, %v10914
    %v11819 = vpack.c.b16 %v10923, %v10915
    %v11820 = vpack.c.b16 %v10924, %v10916
    %v11821 = vpack.c.b16 %v10925, %v10917
    %v11822 = vpack.c.b16 %v10926, %v10918
    %v11823 = vpack.c.b16 %v10927, %v10919
    %v11824 = vpack.c.b16 %v10928, %v10920
    %v11825 = vpack.c.b16 %v10937, %v10929
    %v11826 = vpack.c.b16 %v10938, %v10930
    %v11827 = vpack.c.b16 %v10939, %v10931
    %v11828 = vpack.c.b16 %v10940, %v10932
    %v11829 = vpack.c.b16 %v10941, %v10933
    %v11830 = vpack.c.b16 %v10942, %v10934
    %v11831 = vpack.c.b16 %v10943, %v10935
    %v11832 = vpack.c.b16 %v10944, %v10936
    %v11833 = vpack.c.b16 %v10953, %v10945
    %v11834 = vpack.c.b16 %v10954, %v10946
    %v11835 = vpack.c.b16 %v10955, %v10947
    %v11836 = vpack.c.b16 %v10956, %v10948
    %v11837 = vpack.c.b16 %v10957, %v10949
    %v11838 = vpack.c.b16 %v10958, %v10950
    %v11839 = vpack.c.b16 %v10959, %v10951
    %v11840 = vpack.c.b16 %v10960, %v10952
    %v11841 = vpack.c.b16 %v10969, %v10961
    %v11842 = vpack.c.b16 %v10970, %v10962
    %v11843 = vpack.c.b16 %v10971, %v10963
    %v11844 = vpack.c.b16 %v10972, %v10964
    %v11845 = vpack.c.b16 %v10973, %v10965
    %v11846 = vpack.c.b16 %v10974, %v10966
    %v11847 = vpack.c.b16 %v10975, %v10967
    %v11848 = vpack.c.b16 %v10976, %v10968
    %v11849 = vpack.c.b16 %v10985, %v10977
    %v11850 = vpack.c.b16 %v10986, %v10978
    %v11851 = vpack.c.b16 %v10987, %v10979
    %v11852 = vpack.c.b16 %v10988, %v10980
    %v11853 = vpack.c.b16 %v10989, %v10981
    %v11854 = vpack.c.b16 %v10990, %v10982
    %v11855 = vpack.c.b16 %v10991, %v10983
    %v11856 = vpack.c.b16 %v10992, %v10984
    %v11857 = vpack.c.b16 %v11001, %v10993
    %v11858 = vpack.c.b16 %v11002, %v10994
    %v11859 = vpack.c.b16 %v11003, %v10995
    %v11860 = vpack.c.b16 %v11004, %v10996
    %v11861 = vpack.c.b16 %v11005, %v10997
    %v11862 = vpack.c.b16 %v11006, %v10998
    %v11863 = vpack.c.b16 %v11007, %v10999
    %v11864 = vpack.c.b16 %v11008, %v11000
    %v11865 = vpack.c.b16 %v11017, %v11009
    %v11866 = vpack.c.b16 %v11018, %v11010
    %v11867 = vpack.c.b16 %v11019, %v11011
    %v11868 = vpack.c.b16 %v11020, %v11012
    %v11869 = vpack.c.b16 %v11021, %v11013
    %v11870 = vpack.c.b16 %v11022, %v11014
    %v11871 = vpack.c.b16 %v11023, %v11015
    %v11872 = vpack.c.b16 %v11024, %v11016
    %v11873 = vpack.c.b16 %v11033, %v11025
    %v11874 = vpack.c.b16 %v11034, %v11026
    %v11875 = vpack.c.b16 %v11035, %v11027
    %v11876 = vpack.c.b16 %v11036, %v11028
    %v11877 = vpack.c.b16 %v11037, %v11029
    %v11878 = vpack.c.b16 %v11038, %v11030
    %v11879 = vpack.c.b16 %v11039, %v11031
    %v11880 = vpack.c.b16 %v11040, %v11032
    %v11881 = vpack.c.b16 %v11049, %v11041
    %v11882 = vpack.c.b16 %v11050, %v11042
    %v11883 = vpack.c.b16 %v11051, %v11043
    %v11884 = vpack.c.b16 %v11052, %v11044
    %v11885 = vpack.c.b16 %v11053, %v11045
    %v11886 = vpack.c.b16 %v11054, %v11046
    %v11887 = vpack.c.b16 %v11055, %v11047
    %v11888 = vpack.c.b16 %v11056, %v11048
    %v11889 = vpack.c.b16 %v11065, %v11057
    %v11890 = vpack.c.b16 %v11066, %v11058
    %v11891 = vpack.c.b16 %v11067, %v11059
    %v11892 = vpack.c.b16 %v11068, %v11060
    %v11893 = vpack.c.b16 %v11069, %v11061
    %v11894 = vpack.c.b16 %v11070, %v11062
    %v11895 = vpack.c.b16 %v11071, %v11063
    %v11896 = vpack.c.b16 %v11072, %v11064
    %v11897 = vpack.c.b16 %v11081, %v11073
    %v11898 = vpack.c.b16 %v11082, %v11074
    %v11899 = vpack.c.b16 %v11083, %v11075
    %v11900 = vpack.c.b16 %v11084, %v11076
    %v11901 = vpack.c.b16 %v11085, %v11077
    %v11902 = vpack.c.b16 %v11086, %v11078
    %v11903 = vpack.c.b16 %v11087, %v11079
    %v11904 = vpack.c.b16 %v11088, %v11080
    %v11905 = vpack.c.b16 %v11097, %v11089
    %v11906 = vpack.c.b16 %v11098, %v11090
    %v11907 = vpack.c.b16 %v11099, %v11091
    %v11908 = vpack.c.b16 %v11100, %v11092
    %v11909 = vpack.c.b16 %v11101, %v11093
    %v11910 = vpack.c.b16 %v11102, %v11094
    %v11911 = vpack.c.b16 %v11103, %v11095
    %v11912 = vpack.c.b16 %v11104, %v11096
    %v11913 = vpack.c.b16 %v11113, %v11105
    %v11914 = vpack.c.b16 %v11114, %v11106
    %v11915 = vpack.c.b16 %v11115, %v11107
    %v11916 = vpack.c.b16 %v11116, %v11108
    %v11917 = vpack.c.b16 %v11117, %v11109
    %v11918 = vpack.c.b16 %v11118, %v11110
    %v11919 = vpack.c.b16 %v11119, %v11111
    %v11920 = vpack.c.b16 %v11120, %v11112
    %v11921 = vpack.c.b16 %v11129, %v11121
    %v11922 = vpack.c.b16 %v11130, %v11122
    %v11923 = vpack.c.b16 %v11131, %v11123
    %v11924 = vpack.c.b16 %v11132, %v11124
    %v11925 = vpack.c.b16 %v11133, %v11125
    %v11926 = vpack.c.b16 %v11134, %v11126
    %v11927 = vpack.c.b16 %v11135, %v11127
    %v11928 = vpack.c.b16 %v11136, %v11128
    %v11929 = vpack.c.b16 %v11145, %v11137
    %v11930 = vpack.c.b16 %v11146, %v11138
    %v11931 = vpack.c.b16 %v11147, %v11139
    %v11932 = vpack.c.b16 %v11148, %v11140
    %v11933 = vpack.c.b16 %v11149, %v11141
    %v11934 = vpack.c.b16 %v11150, %v11142
    %v11935 = vpack.c.b16 %v11151, %v11143
    %v11936 = vpack.c.b16 %v11152, %v11144
    %v11937 = vpack.c.b16 %v11161, %v11153
    %v11938 = vpack.c.b16 %v11162, %v11154
    %v11939 = vpack.c.b16 %v11163, %v11155
    %v11940 = vpack.c.b16 %v11164, %v11156
    %v11941 = vpack.c.b16 %v11165, %v11157
    %v11942 = vpack.c.b16 %v11166, %v11158
    %v11943 = vpack.c.b16 %v11167, %v11159
    %v11944 = vpack.c.b16 %v11168, %v11160
    %v11945 = vpack.c.b16 %v11177, %v11169
    %v11946 = vpack.c.b16 %v11178, %v11170
    %v11947 = vpack.c.b16 %v11179, %v11171
    %v11948 = vpack.c.b16 %v11180, %v11172
    %v11949 = vpack.c.b16 %v11181, %v11173
    %v11950 = vpack.c.b16 %v11182, %v11174
    %v11951 = vpack.c.b16 %v11183, %v11175
    %v11952 = vpack.c.b16 %v11184, %v11176
    %12721 = vmatprep.subr.bf16.mxu0 %v11186
    %12722 = vmatpush1.bf16.msra.mxu0 %v11185
    %12723 = vmatprep.subr.bf16.mxu0 %v11194
    %12724 = vmatpush1.bf16.msra.mxu0 %v11193
    %12725 = vmatprep.subr.bf16.mxu0 %v11202
    %12726 = vmatpush1.bf16.msra.mxu0 %v11201
    %12727 = vmatprep.subr.bf16.mxu0 %v11210
    %12728 = vmatpush1.bf16.msra.mxu0 %v11209
    %12729 = vmatprep.subr.bf16.mxu0 %v11218
    %12730 = vmatpush1.bf16.msra.mxu0 %v11217
    %12731 = vmatprep.subr.bf16.mxu0 %v11226
    %12732 = vmatpush1.bf16.msra.mxu0 %v11225
    %12733 = vmatprep.subr.bf16.mxu0 %v11234
    %12734 = vmatpush1.bf16.msra.mxu0 %v11233
    %12735 = vmatprep.subr.bf16.mxu0 %v11242
    %12736 = vmatpush1.bf16.msra.mxu0 %v11241
    %12737 = vmatprep.subr.bf16.mxu0 %v11250
    %12738 = vmatpush1.bf16.msra.mxu0 %v11249
    %12739 = vmatprep.subr.bf16.mxu0 %v11258
    %12740 = vmatpush1.bf16.msra.mxu0 %v11257
    %12741 = vmatprep.subr.bf16.mxu0 %v11266
    %12742 = vmatpush1.bf16.msra.mxu0 %v11265
    %12743 = vmatprep.subr.bf16.mxu0 %v11274
    %12744 = vmatpush1.bf16.msra.mxu0 %v11273
    %12745 = vmatprep.subr.bf16.mxu0 %v11282
    %12746 = vmatpush1.bf16.msra.mxu0 %v11281
    %12747 = vmatprep.subr.bf16.mxu0 %v11290
    %12748 = vmatpush1.bf16.msra.mxu0 %v11289
    %12749 = vmatprep.subr.bf16.mxu0 %v11298
    %12750 = vmatpush1.bf16.msra.mxu0 %v11297
    %12751 = vmatprep.subr.bf16.mxu0 %v11306
    %12752 = vmatpush1.bf16.msra.mxu0 %v11305
    %12753 = vmatprep.mubr.bf16.mxu0 %v8024
    %12754 = vmatmul.mubr.bf16.gmra.mrb[0].mxu0 %v8023
    %v12755 = vpop.f32.mrb[0].mxu0
    %v12756 = vadd.f32 %v8844, %v12755
    %v12757 = vpop.f32.mrb[0].mxu0
    %v12758 = vadd.f32 %v8848, %v12757
    %v12759 = vpop.f32.mrb[0].mxu0
    %v12760 = vadd.f32 %v8844, %v12759
    %v12761 = vpop.f32.mrb[0].mxu0
    %v12762 = vadd.f32 %v8848, %v12761
    %12763 = vmatprep.mubr.bf16.mxu0 %v8036
    %12764 = vmatmul.mubr.bf16.gmra.mrb[0].mxu0 %v8035
    %v12765 = vpop.f32.mrb[0].mxu0
    %v12766 = vadd.f32 %v8844, %v12765
    %v12767 = vpop.f32.mrb[0].mxu0
    %v12768 = vadd.f32 %v8848, %v12767
    %v12769 = vpop.f32.mrb[0].mxu0
    %v12770 = vadd.f32 %v8844, %v12769
    %v12771 = vpop.f32.mrb[0].mxu0
    %v12772 = vadd.f32 %v8848, %v12771
    %12773 = vmatprep.mubr.bf16.mxu0 %v8048
    %12774 = vmatmul.mubr.bf16.gmra.mrb[0].mxu0 %v8047
    %v12775 = vpop.f32.mrb[0].mxu0
    %v12776 = vadd.f32 %v8844, %v12775
    %v12777 = vpop.f32.mrb[0].mxu0
    %v12778 = vadd.f32 %v8848, %v12777
    %v12779 = vpop.f32.mrb[0].mxu0
    %v12780 = vadd.f32 %v8844, %v12779
    %v12781 = vpop.f32.mrb[0].mxu0
    %v12782 = vadd.f32 %v8848, %v12781
    %12783 = vmatprep.mubr.bf16.mxu0 %v8060
    %12784 = vmatmul.mubr.bf16.gmra.mrb[0].mxu0 %v8059
    %v12785 = vpop.f32.mrb[0].mxu0
    %v12786 = vadd.f32 %v8844, %v12785
    %v12787 = vpop.f32.mrb[0].mxu0
    %v12788 = vadd.f32 %v8848, %v12787
    %v12789 = vpop.f32.mrb[0].mxu0
    %v12790 = vadd.f32 %v8844, %v12789
    %v12791 = vpop.f32.mrb[0].mxu0
    %v12792 = vadd.f32 %v8848, %v12791
    %12793 = vdwg.mxu0
    %12794 = vmatprep.subr.bf16.mxu0 %v11314
    %12795 = vmatpush1.bf16.msra.mxu0 %v11313
    %12796 = vmatprep.subr.bf16.mxu0 %v11322
    %12797 = vmatpush1.bf16.msra.mxu0 %v11321
    %12798 = vmatprep.subr.bf16.mxu0 %v11330
    %12799 = vmatpush1.bf16.msra.mxu0 %v11329
    %12800 = vmatprep.subr.bf16.mxu0 %v11338
    %12801 = vmatpush1.bf16.msra.mxu0 %v11337
    %12802 = vmatprep.subr.bf16.mxu0 %v11346
    %12803 = vmatpush1.bf16.msra.mxu0 %v11345
    %12804 = vmatprep.subr.bf16.mxu0 %v11354
    %12805 = vmatpush1.bf16.msra.mxu0 %v11353
    %12806 = vmatprep.subr.bf16.mxu0 %v11362
    %12807 = vmatpush1.bf16.msra.mxu0 %v11361
    %12808 = vmatprep.subr.bf16.mxu0 %v11370
    %12809 = vmatpush1.bf16.msra.mxu0 %v11369
    %12810 = vmatprep.subr.bf16.mxu0 %v11378
    %12811 = vmatpush1.bf16.msra.mxu0 %v11377
    %12812 = vmatprep.subr.bf16.mxu0 %v11386
    %12813 = vmatpush1.bf16.msra.mxu0 %v11385
    %12814 = vmatprep.subr.bf16.mxu0 %v11394
    %12815 = vmatpush1.bf16.msra.mxu0 %v11393
    %12816 = vmatprep.subr.bf16.mxu0 %v11402
    %12817 = vmatpush1.bf16.msra.mxu0 %v11401
    %12818 = vmatprep.subr.bf16.mxu0 %v11410
    %12819 = vmatpush1.bf16.msra.mxu0 %v11409
    %12820 = vmatprep.subr.bf16.mxu0 %v11418
    %12821 = vmatpush1.bf16.msra.mxu0 %v11417
    %12822 = vmatprep.subr.bf16.mxu0 %v11426
    %12823 = vmatpush1.bf16.msra.mxu0 %v11425
    %12824 = vmatprep.subr.bf16.mxu0 %v11434
    %12825 = vmatpush1.bf16.msra.mxu0 %v11433
    %12826 = vmatprep.mubr.bf16.mxu0 %v8026
    %12827 = vmatmul.mubr.bf16.gmra.mrb[0].mxu0 %v8025
    %v12828 = vpop.f32.mrb[0].mxu0
    %v12829 = vadd.f32 %v12756, %v12828
    %v12830 = vpop.f32.mrb[0].mxu0
    %v12831 = vadd.f32 %v12758, %v12830
    %v12832 = vpop.f32.mrb[0].mxu0
    %v12833 = vadd.f32 %v12760, %v12832
    %v12834 = vpop.f32.mrb[0].mxu0
    %v12835 = vadd.f32 %v12762, %v12834
    %12836 = vmatprep.mubr.bf16.mxu0 %v8038
    %12837 = vmatmul.mubr.bf16.gmra.mrb[0].mxu0 %v8037
    %v12838 = vpop.f32.mrb[0].mxu0
    %v12839 = vadd.f32 %v12766, %v12838
    %v12840 = vpop.f32.mrb[0].mxu0
    %v12841 = vadd.f32 %v12768, %v12840
    %v12842 = vpop.f32.mrb[0].mxu0
    %v12843 = vadd.f32 %v12770, %v12842
    %v12844 = vpop.f32.mrb[0].mxu0
    %v12845 = vadd.f32 %v12772, %v12844
    %12846 = vmatprep.mubr.bf16.mxu0 %v8050
    %12847 = vmatmul.mubr.bf16.gmra.mrb[0].mxu0 %v8049
    %v12848 = vpop.f32.mrb[0].mxu0
    %v12849 = vadd.f32 %v12776, %v12848
    %v12850 = vpop.f32.mrb[0].mxu0
    %v12851 = vadd.f32 %v12778, %v12850
    %v12852 = vpop.f32.mrb[0].mxu0
    %v12853 = vadd.f32 %v12780, %v12852
    %v12854 = vpop.f32.mrb[0].mxu0
    %v12855 = vadd.f32 %v12782, %v12854
    %12856 = vmatprep.mubr.bf16.mxu0 %v8062
    %12857 = vmatmul.mubr.bf16.gmra.mrb[0].mxu0 %v8061
    %v12858 = vpop.f32.mrb[0].mxu0
    %v12859 = vadd.f32 %v12786, %v12858
    %v12860 = vpop.f32.mrb[0].mxu0
    %v12861 = vadd.f32 %v12788, %v12860
    %v12862 = vpop.f32.mrb[0].mxu0
    %v12863 = vadd.f32 %v12790, %v12862
    %v12864 = vpop.f32.mrb[0].mxu0
    %v12865 = vadd.f32 %v12792, %v12864
    %12866 = vdwg.mxu0
    %12867 = vmatprep.subr.bf16.mxu0 %v11442
    %12868 = vmatpush1.bf16.msra.mxu0 %v11441
    %12869 = vmatprep.subr.bf16.mxu0 %v11450
    %12870 = vmatpush1.bf16.msra.mxu0 %v11449
    %12871 = vmatprep.subr.bf16.mxu0 %v11458
    %12872 = vmatpush1.bf16.msra.mxu0 %v11457
    %12873 = vmatprep.subr.bf16.mxu0 %v11466
    %12874 = vmatpush1.bf16.msra.mxu0 %v11465
    %12875 = vmatprep.subr.bf16.mxu0 %v11474
    %12876 = vmatpush1.bf16.msra.mxu0 %v11473
    %12877 = vmatprep.subr.bf16.mxu0 %v11482
    %12878 = vmatpush1.bf16.msra.mxu0 %v11481
    %12879 = vmatprep.subr.bf16.mxu0 %v11490
    %12880 = vmatpush1.bf16.msra.mxu0 %v11489
    %12881 = vmatprep.subr.bf16.mxu0 %v11498
    %12882 = vmatpush1.bf16.msra.mxu0 %v11497
    %12883 = vmatprep.subr.bf16.mxu0 %v11506
    %12884 = vmatpush1.bf16.msra.mxu0 %v11505
    %12885 = vmatprep.subr.bf16.mxu0 %v11514
    %12886 = vmatpush1.bf16.msra.mxu0 %v11513
    %12887 = vmatprep.subr.bf16.mxu0 %v11522
    %12888 = vmatpush1.bf16.msra.mxu0 %v11521
    %12889 = vmatprep.subr.bf16.mxu0 %v11530
    %12890 = vmatpush1.bf16.msra.mxu0 %v11529
    %12891 = vmatprep.subr.bf16.mxu0 %v11538
    %12892 = vmatpush1.bf16.msra.mxu0 %v11537
    %12893 = vmatprep.subr.bf16.mxu0 %v11546
    %12894 = vmatpush1.bf16.msra.mxu0 %v11545
    %12895 = vmatprep.subr.bf16.mxu0 %v11554
    %12896 = vmatpush1.bf16.msra.mxu0 %v11553
    %12897 = vmatprep.subr.bf16.mxu0 %v11562
    %12898 = vmatpush1.bf16.msra.mxu0 %v11561
    %12899 = vmatprep.mubr.bf16.mxu0 %v8028
    %12900 = vmatmul.mubr.bf16.gmra.mrb[0].mxu0 %v8027
    %v12901 = vpop.f32.mrb[0].mxu0
    %v12902 = vadd.f32 %v12829, %v12901
    %v12903 = vpop.f32.mrb[0].mxu0
    %v12904 = vadd.f32 %v12831, %v12903
    %v12905 = vpop.f32.mrb[0].mxu0
    %v12906 = vadd.f32 %v12833, %v12905
    %v12907 = vpop.f32.mrb[0].mxu0
    %v12908 = vadd.f32 %v12835, %v12907
    %12909 = vmatprep.mubr.bf16.mxu0 %v8040
    %12910 = vmatmul.mubr.bf16.gmra.mrb[0].mxu0 %v8039
    %v12911 = vpop.f32.mrb[0].mxu0
    %v12912 = vadd.f32 %v12839, %v12911
    %v12913 = vpop.f32.mrb[0].mxu0
    %v12914 = vadd.f32 %v12841, %v12913
    %v12915 = vpop.f32.mrb[0].mxu0
    %v12916 = vadd.f32 %v12843, %v12915
    %v12917 = vpop.f32.mrb[0].mxu0
    %v12918 = vadd.f32 %v12845, %v12917
    %12919 = vmatprep.mubr.bf16.mxu0 %v8052
    %12920 = vmatmul.mubr.bf16.gmra.mrb[0].mxu0 %v8051
    %v12921 = vpop.f32.mrb[0].mxu0
    %v12922 = vadd.f32 %v12849, %v12921
    %v12923 = vpop.f32.mrb[0].mxu0
    %v12924 = vadd.f32 %v12851, %v12923
    %v12925 = vpop.f32.mrb[0].mxu0
    %v12926 = vadd.f32 %v12853, %v12925
    %v12927 = vpop.f32.mrb[0].mxu0
    %v12928 = vadd.f32 %v12855, %v12927
    %12929 = vmatprep.mubr.bf16.mxu0 %v8064
    %12930 = vmatmul.mubr.bf16.gmra.mrb[0].mxu0 %v8063
    %v12931 = vpop.f32.mrb[0].mxu0
    %v12932 = vadd.f32 %v12859, %v12931
    %v12933 = vpop.f32.mrb[0].mxu0
    %v12934 = vadd.f32 %v12861, %v12933
    %v12935 = vpop.f32.mrb[0].mxu0
    %v12936 = vadd.f32 %v12863, %v12935
    %v12937 = vpop.f32.mrb[0].mxu0
    %v12938 = vadd.f32 %v12865, %v12937
    %12939 = vdwg.mxu0
    %12940 = vmatprep.subr.bf16.mxu0 %v11570
    %12941 = vmatpush1.bf16.msra.mxu0 %v11569
    %12942 = vmatprep.subr.bf16.mxu0 %v11578
    %12943 = vmatpush1.bf16.msra.mxu0 %v11577
    %12944 = vmatprep.subr.bf16.mxu0 %v11586
    %12945 = vmatpush1.bf16.msra.mxu0 %v11585
    %12946 = vmatprep.subr.bf16.mxu0 %v11594
    %12947 = vmatpush1.bf16.msra.mxu0 %v11593
    %12948 = vmatprep.subr.bf16.mxu0 %v11602
    %12949 = vmatpush1.bf16.msra.mxu0 %v11601
    %12950 = vmatprep.subr.bf16.mxu0 %v11610
    %12951 = vmatpush1.bf16.msra.mxu0 %v11609
    %12952 = vmatprep.subr.bf16.mxu0 %v11618
    %12953 = vmatpush1.bf16.msra.mxu0 %v11617
    %12954 = vmatprep.subr.bf16.mxu0 %v11626
    %12955 = vmatpush1.bf16.msra.mxu0 %v11625
    %12956 = vmatprep.subr.bf16.mxu0 %v11634
    %12957 = vmatpush1.bf16.msra.mxu0 %v11633
    %12958 = vmatprep.subr.bf16.mxu0 %v11642
    %12959 = vmatpush1.bf16.msra.mxu0 %v11641
    %12960 = vmatprep.subr.bf16.mxu0 %v11650
    %12961 = vmatpush1.bf16.msra.mxu0 %v11649
    %12962 = vmatprep.subr.bf16.mxu0 %v11658
    %12963 = vmatpush1.bf16.msra.mxu0 %v11657
    %12964 = vmatprep.subr.bf16.mxu0 %v11666
    %12965 = vmatpush1.bf16.msra.mxu0 %v11665
    %12966 = vmatprep.subr.bf16.mxu0 %v11674
    %12967 = vmatpush1.bf16.msra.mxu0 %v11673
    %12968 = vmatprep.subr.bf16.mxu0 %v11682
    %12969 = vmatpush1.bf16.msra.mxu0 %v11681
    %12970 = vmatprep.subr.bf16.mxu0 %v11690
    %12971 = vmatpush1.bf16.msra.mxu0 %v11689
    %12972 = vmatprep.mubr.bf16.mxu0 %v8030
    %12973 = vmatmul.mubr.bf16.gmra.mrb[0].mxu0 %v8029
    %v12974 = vpop.f32.mrb[0].mxu0
    %v12975 = vadd.f32 %v12902, %v12974
    %v12976 = vpop.f32.mrb[0].mxu0
    %v12977 = vadd.f32 %v12904, %v12976
    %v12978 = vpop.f32.mrb[0].mxu0
    %v12979 = vadd.f32 %v12906, %v12978
    %v12980 = vpop.f32.mrb[0].mxu0
    %v12981 = vadd.f32 %v12908, %v12980
    %12982 = vmatprep.mubr.bf16.mxu0 %v8042
    %12983 = vmatmul.mubr.bf16.gmra.mrb[0].mxu0 %v8041
    %v12984 = vpop.f32.mrb[0].mxu0
    %v12985 = vadd.f32 %v12912, %v12984
    %v12986 = vpop.f32.mrb[0].mxu0
    %v12987 = vadd.f32 %v12914, %v12986
    %v12988 = vpop.f32.mrb[0].mxu0
    %v12989 = vadd.f32 %v12916, %v12988
    %v12990 = vpop.f32.mrb[0].mxu0
    %v12991 = vadd.f32 %v12918, %v12990
    %12992 = vmatprep.mubr.bf16.mxu0 %v8054
    %12993 = vmatmul.mubr.bf16.gmra.mrb[0].mxu0 %v8053
    %v12994 = vpop.f32.mrb[0].mxu0
    %v12995 = vadd.f32 %v12922, %v12994
    %v12996 = vpop.f32.mrb[0].mxu0
    %v12997 = vadd.f32 %v12924, %v12996
    %v12998 = vpop.f32.mrb[0].mxu0
    %v12999 = vadd.f32 %v12926, %v12998
    %v13000 = vpop.f32.mrb[0].mxu0
    %v13001 = vadd.f32 %v12928, %v13000
    %13002 = vmatprep.mubr.bf16.mxu0 %v8066
    %13003 = vmatmul.mubr.bf16.gmra.mrb[0].mxu0 %v8065
    %v13004 = vpop.f32.mrb[0].mxu0
    %v13005 = vadd.f32 %v12932, %v13004
    %v13006 = vpop.f32.mrb[0].mxu0
    %v13007 = vadd.f32 %v12934, %v13006
    %v13008 = vpop.f32.mrb[0].mxu0
    %v13009 = vadd.f32 %v12936, %v13008
    %v13010 = vpop.f32.mrb[0].mxu0
    %v13011 = vadd.f32 %v12938, %v13010
    %13012 = vdwg.mxu0
    %13013 = vmatprep.subr.bf16.mxu0 %v11698
    %13014 = vmatpush1.bf16.msra.mxu0 %v11697
    %13015 = vmatprep.subr.bf16.mxu0 %v11706
    %13016 = vmatpush1.bf16.msra.mxu0 %v11705
    %13017 = vmatprep.subr.bf16.mxu0 %v11714
    %13018 = vmatpush1.bf16.msra.mxu0 %v11713
    %13019 = vmatprep.subr.bf16.mxu0 %v11722
    %13020 = vmatpush1.bf16.msra.mxu0 %v11721
    %13021 = vmatprep.subr.bf16.mxu0 %v11730
    %13022 = vmatpush1.bf16.msra.mxu0 %v11729
    %13023 = vmatprep.subr.bf16.mxu0 %v11738
    %13024 = vmatpush1.bf16.msra.mxu0 %v11737
    %13025 = vmatprep.subr.bf16.mxu0 %v11746
    %13026 = vmatpush1.bf16.msra.mxu0 %v11745
    %13027 = vmatprep.subr.bf16.mxu0 %v11754
    %13028 = vmatpush1.bf16.msra.mxu0 %v11753
    %13029 = vmatprep.subr.bf16.mxu0 %v11762
    %13030 = vmatpush1.bf16.msra.mxu0 %v11761
    %13031 = vmatprep.subr.bf16.mxu0 %v11770
    %13032 = vmatpush1.bf16.msra.mxu0 %v11769
    %13033 = vmatprep.subr.bf16.mxu0 %v11778
    %13034 = vmatpush1.bf16.msra.mxu0 %v11777
    %13035 = vmatprep.subr.bf16.mxu0 %v11786
    %13036 = vmatpush1.bf16.msra.mxu0 %v11785
    %13037 = vmatprep.subr.bf16.mxu0 %v11794
    %13038 = vmatpush1.bf16.msra.mxu0 %v11793
    %13039 = vmatprep.subr.bf16.mxu0 %v11802
    %13040 = vmatpush1.bf16.msra.mxu0 %v11801
    %13041 = vmatprep.subr.bf16.mxu0 %v11810
    %13042 = vmatpush1.bf16.msra.mxu0 %v11809
    %13043 = vmatprep.subr.bf16.mxu0 %v11818
    %13044 = vmatpush1.bf16.msra.mxu0 %v11817
    %13045 = vmatprep.mubr.bf16.mxu0 %v8032
    %13046 = vmatmul.mubr.bf16.gmra.mrb[0].mxu0 %v8031
    %v13047 = vpop.f32.mrb[0].mxu0
    %v13048 = vadd.f32 %v12975, %v13047
    %v13049 = vpop.f32.mrb[0].mxu0
    %v13050 = vadd.f32 %v12977, %v13049
    %v13051 = vpop.f32.mrb[0].mxu0
    %v13052 = vadd.f32 %v12979, %v13051
    %v13053 = vpop.f32.mrb[0].mxu0
    %v13054 = vadd.f32 %v12981, %v13053
    %13055 = vmatprep.mubr.bf16.mxu0 %v8044
    %13056 = vmatmul.mubr.bf16.gmra.mrb[0].mxu0 %v8043
    %v13057 = vpop.f32.mrb[0].mxu0
    %v13058 = vadd.f32 %v12985, %v13057
    %v13059 = vpop.f32.mrb[0].mxu0
    %v13060 = vadd.f32 %v12987, %v13059
    %v13061 = vpop.f32.mrb[0].mxu0
    %v13062 = vadd.f32 %v12989, %v13061
    %v13063 = vpop.f32.mrb[0].mxu0
    %v13064 = vadd.f32 %v12991, %v13063
    %13065 = vmatprep.mubr.bf16.mxu0 %v8056
    %13066 = vmatmul.mubr.bf16.gmra.mrb[0].mxu0 %v8055
    %v13067 = vpop.f32.mrb[0].mxu0
    %v13068 = vadd.f32 %v12995, %v13067
    %v13069 = vpop.f32.mrb[0].mxu0
    %v13070 = vadd.f32 %v12997, %v13069
    %v13071 = vpop.f32.mrb[0].mxu0
    %v13072 = vadd.f32 %v12999, %v13071
    %v13073 = vpop.f32.mrb[0].mxu0
    %v13074 = vadd.f32 %v13001, %v13073
    %13075 = vmatprep.mubr.bf16.mxu0 %v8068
    %13076 = vmatmul.mubr.bf16.gmra.mrb[0].mxu0 %v8067
    %v13077 = vpop.f32.mrb[0].mxu0
    %v13078 = vadd.f32 %v13005, %v13077
    %v13079 = vpop.f32.mrb[0].mxu0
    %v13080 = vadd.f32 %v13007, %v13079
    %v13081 = vpop.f32.mrb[0].mxu0
    %v13082 = vadd.f32 %v13009, %v13081
    %v13083 = vpop.f32.mrb[0].mxu0
    %v13084 = vadd.f32 %v13011, %v13083
    %13085 = vdwg.mxu0
    %13086 = vmatprep.subr.bf16.mxu0 %v11826
    %13087 = vmatpush1.bf16.msra.mxu0 %v11825
    %13088 = vmatprep.subr.bf16.mxu0 %v11834
    %13089 = vmatpush1.bf16.msra.mxu0 %v11833
    %13090 = vmatprep.subr.bf16.mxu0 %v11842
    %13091 = vmatpush1.bf16.msra.mxu0 %v11841
    %13092 = vmatprep.subr.bf16.mxu0 %v11850
    %13093 = vmatpush1.bf16.msra.mxu0 %v11849
    %13094 = vmatprep.subr.bf16.mxu0 %v11858
    %13095 = vmatpush1.bf16.msra.mxu0 %v11857
    %13096 = vmatprep.subr.bf16.mxu0 %v11866
    %13097 = vmatpush1.bf16.msra.mxu0 %v11865
    %13098 = vmatprep.subr.bf16.mxu0 %v11874
    %13099 = vmatpush1.bf16.msra.mxu0 %v11873
    %13100 = vmatprep.subr.bf16.mxu0 %v11882
    %13101 = vmatpush1.bf16.msra.mxu0 %v11881
    %13102 = vmatprep.subr.bf16.mxu0 %v11890
    %13103 = vmatpush1.bf16.msra.mxu0 %v11889
    %13104 = vmatprep.subr.bf16.mxu0 %v11898
    %13105 = vmatpush1.bf16.msra.mxu0 %v11897
    %13106 = vmatprep.subr.bf16.mxu0 %v11906
    %13107 = vmatpush1.bf16.msra.mxu0 %v11905
    %13108 = vmatprep.subr.bf16.mxu0 %v11914
    %13109 = vmatpush1.bf16.msra.mxu0 %v11913
    %13110 = vmatprep.subr.bf16.mxu0 %v11922
    %13111 = vmatpush1.bf16.msra.mxu0 %v11921
    %13112 = vmatprep.subr.bf16.mxu0 %v11930
    %13113 = vmatpush1.bf16.msra.mxu0 %v11929
    %13114 = vmatprep.subr.bf16.mxu0 %v11938
    %13115 = vmatpush1.bf16.msra.mxu0 %v11937
    %13116 = vmatprep.subr.bf16.mxu0 %v11946
    %13117 = vmatpush1.bf16.msra.mxu0 %v11945
    %13118 = vmatprep.mubr.bf16.mxu0 %v8034
    %13119 = vmatmul.mubr.bf16.gmra.mrb[0].mxu0 %v8033
    %v13120 = vpop.f32.mrb[0].mxu0
    %v13121 = vadd.f32 %v13048, %v13120
    %v13122 = vpop.f32.mrb[0].mxu0
    %v13123 = vadd.f32 %v13050, %v13122
    %v13124 = vpop.f32.mrb[0].mxu0
    %v13125 = vadd.f32 %v13052, %v13124
    %v13126 = vpop.f32.mrb[0].mxu0
    %v13127 = vadd.f32 %v13054, %v13126
    %13128 = vmatprep.mubr.bf16.mxu0 %v8046
    %13129 = vmatmul.mubr.bf16.gmra.mrb[0].mxu0 %v8045
    %v13130 = vpop.f32.mrb[0].mxu0
    %v13131 = vadd.f32 %v13058, %v13130
    %v13132 = vpop.f32.mrb[0].mxu0
    %v13133 = vadd.f32 %v13060, %v13132
    %v13134 = vpop.f32.mrb[0].mxu0
    %v13135 = vadd.f32 %v13062, %v13134
    %v13136 = vpop.f32.mrb[0].mxu0
    %v13137 = vadd.f32 %v13064, %v13136
    %13138 = vmatprep.mubr.bf16.mxu0 %v8058
    %13139 = vmatmul.mubr.bf16.gmra.mrb[0].mxu0 %v8057
    %v13140 = vpop.f32.mrb[0].mxu0
    %v13141 = vadd.f32 %v13068, %v13140
    %v13142 = vpop.f32.mrb[0].mxu0
    %v13143 = vadd.f32 %v13070, %v13142
    %v13144 = vpop.f32.mrb[0].mxu0
    %v13145 = vadd.f32 %v13072, %v13144
    %v13146 = vpop.f32.mrb[0].mxu0
    %v13147 = vadd.f32 %v13074, %v13146
    %13148 = vmatprep.mubr.bf16.mxu0 %v8070
    %13149 = vmatmul.mubr.bf16.gmra.mrb[0].mxu0 %v8069
    %v13150 = vpop.f32.mrb[0].mxu0
    %v13151 = vadd.f32 %v13078, %v13150
    %v13152 = vpop.f32.mrb[0].mxu0
    %v13153 = vadd.f32 %v13080, %v13152
    %v13154 = vpop.f32.mrb[0].mxu0
    %v13155 = vadd.f32 %v13082, %v13154
    %v13156 = vpop.f32.mrb[0].mxu0
    %v13157 = vadd.f32 %v13084, %v13156
    %13158 = vdwg.mxu0
    %13159 = vmatprep.subr.bf16.mxu0 %v11188
    %13160 = vmatpush1.bf16.msra.mxu0 %v11187
    %13161 = vmatprep.subr.bf16.mxu0 %v11196
    %13162 = vmatpush1.bf16.msra.mxu0 %v11195
    %13163 = vmatprep.subr.bf16.mxu0 %v11204
    %13164 = vmatpush1.bf16.msra.mxu0 %v11203
    %13165 = vmatprep.subr.bf16.mxu0 %v11212
    %13166 = vmatpush1.bf16.msra.mxu0 %v11211
    %13167 = vmatprep.subr.bf16.mxu0 %v11220
    %13168 = vmatpush1.bf16.msra.mxu0 %v11219
    %13169 = vmatprep.subr.bf16.mxu0 %v11228
    %13170 = vmatpush1.bf16.msra.mxu0 %v11227
    %13171 = vmatprep.subr.bf16.mxu0 %v11236
    %13172 = vmatpush1.bf16.msra.mxu0 %v11235
    %13173 = vmatprep.subr.bf16.mxu0 %v11244
    %13174 = vmatpush1.bf16.msra.mxu0 %v11243
    %13175 = vmatprep.subr.bf16.mxu0 %v11252
    %13176 = vmatpush1.bf16.msra.mxu0 %v11251
    %13177 = vmatprep.subr.bf16.mxu0 %v11260
    %13178 = vmatpush1.bf16.msra.mxu0 %v11259
    %13179 = vmatprep.subr.bf16.mxu0 %v11268
    %13180 = vmatpush1.bf16.msra.mxu0 %v11267
    %13181 = vmatprep.subr.bf16.mxu0 %v11276
    %13182 = vmatpush1.bf16.msra.mxu0 %v11275
    %13183 = vmatprep.subr.bf16.mxu0 %v11284
    %13184 = vmatpush1.bf16.msra.mxu0 %v11283
    %13185 = vmatprep.subr.bf16.mxu0 %v11292
    %13186 = vmatpush1.bf16.msra.mxu0 %v11291
    %13187 = vmatprep.subr.bf16.mxu0 %v11300
    %13188 = vmatpush1.bf16.msra.mxu0 %v11299
    %13189 = vmatprep.subr.bf16.mxu0 %v11308
    %13190 = vmatpush1.bf16.msra.mxu0 %v11307
    %13191 = vmatprep.mubr.bf16.mxu0 %v8024
    %13192 = vmatmul.mubr.bf16.gmra.mrb[0].mxu0 %v8023
    %v13193 = vpop.f32.mrb[0].mxu0
    %v13194 = vadd.f32 %v8852, %v13193
    %v13195 = vpop.f32.mrb[0].mxu0
    %v13196 = vadd.f32 %v8856, %v13195
    %v13197 = vpop.f32.mrb[0].mxu0
    %v13198 = vadd.f32 %v8852, %v13197
    %v13199 = vpop.f32.mrb[0].mxu0
    %v13200 = vadd.f32 %v8856, %v13199
    %13201 = vmatprep.mubr.bf16.mxu0 %v8036
    %13202 = vmatmul.mubr.bf16.gmra.mrb[0].mxu0 %v8035
    %v13203 = vpop.f32.mrb[0].mxu0
    %v13204 = vadd.f32 %v8852, %v13203
    %v13205 = vpop.f32.mrb[0].mxu0
    %v13206 = vadd.f32 %v8856, %v13205
    %v13207 = vpop.f32.mrb[0].mxu0
    %v13208 = vadd.f32 %v8852, %v13207
    %v13209 = vpop.f32.mrb[0].mxu0
    %v13210 = vadd.f32 %v8856, %v13209
    %13211 = vmatprep.mubr.bf16.mxu0 %v8048
    %13212 = vmatmul.mubr.bf16.gmra.mrb[0].mxu0 %v8047
    %v13213 = vpop.f32.mrb[0].mxu0
    %v13214 = vadd.f32 %v8852, %v13213
    %v13215 = vpop.f32.mrb[0].mxu0
    %v13216 = vadd.f32 %v8856, %v13215
    %v13217 = vpop.f32.mrb[0].mxu0
    %v13218 = vadd.f32 %v8852, %v13217
    %v13219 = vpop.f32.mrb[0].mxu0
    %v13220 = vadd.f32 %v8856, %v13219
    %13221 = vmatprep.mubr.bf16.mxu0 %v8060
    %13222 = vmatmul.mubr.bf16.gmra.mrb[0].mxu0 %v8059
    %v13223 = vpop.f32.mrb[0].mxu0
    %v13224 = vadd.f32 %v8852, %v13223
    %v13225 = vpop.f32.mrb[0].mxu0
    %v13226 = vadd.f32 %v8856, %v13225
    %v13227 = vpop.f32.mrb[0].mxu0
    %v13228 = vadd.f32 %v8852, %v13227
    %v13229 = vpop.f32.mrb[0].mxu0
    %v13230 = vadd.f32 %v8856, %v13229
    %13231 = vdwg.mxu0
    %13232 = vmatprep.subr.bf16.mxu0 %v11316
    %13233 = vmatpush1.bf16.msra.mxu0 %v11315
    %13234 = vmatprep.subr.bf16.mxu0 %v11324
    %13235 = vmatpush1.bf16.msra.mxu0 %v11323
    %13236 = vmatprep.subr.bf16.mxu0 %v11332
    %13237 = vmatpush1.bf16.msra.mxu0 %v11331
    %13238 = vmatprep.subr.bf16.mxu0 %v11340
    %13239 = vmatpush1.bf16.msra.mxu0 %v11339
    %13240 = vmatprep.subr.bf16.mxu0 %v11348
    %13241 = vmatpush1.bf16.msra.mxu0 %v11347
    %13242 = vmatprep.subr.bf16.mxu0 %v11356
    %13243 = vmatpush1.bf16.msra.mxu0 %v11355
    %13244 = vmatprep.subr.bf16.mxu0 %v11364
    %13245 = vmatpush1.bf16.msra.mxu0 %v11363
    %13246 = vmatprep.subr.bf16.mxu0 %v11372
    %13247 = vmatpush1.bf16.msra.mxu0 %v11371
    %13248 = vmatprep.subr.bf16.mxu0 %v11380
    %13249 = vmatpush1.bf16.msra.mxu0 %v11379
    %13250 = vmatprep.subr.bf16.mxu0 %v11388
    %13251 = vmatpush1.bf16.msra.mxu0 %v11387
    %13252 = vmatprep.subr.bf16.mxu0 %v11396
    %13253 = vmatpush1.bf16.msra.mxu0 %v11395
    %13254 = vmatprep.subr.bf16.mxu0 %v11404
    %13255 = vmatpush1.bf16.msra.mxu0 %v11403
    %13256 = vmatprep.subr.bf16.mxu0 %v11412
    %13257 = vmatpush1.bf16.msra.mxu0 %v11411
    %13258 = vmatprep.subr.bf16.mxu0 %v11420
    %13259 = vmatpush1.bf16.msra.mxu0 %v11419
    %13260 = vmatprep.subr.bf16.mxu0 %v11428
    %13261 = vmatpush1.bf16.msra.mxu0 %v11427
    %13262 = vmatprep.subr.bf16.mxu0 %v11436
    %13263 = vmatpush1.bf16.msra.mxu0 %v11435
    %13264 = vmatprep.mubr.bf16.mxu0 %v8026
    %13265 = vmatmul.mubr.bf16.gmra.mrb[0].mxu0 %v8025
    %v13266 = vpop.f32.mrb[0].mxu0
    %v13267 = vadd.f32 %v13194, %v13266
    %v13268 = vpop.f32.mrb[0].mxu0
    %v13269 = vadd.f32 %v13196, %v13268
    %v13270 = vpop.f32.mrb[0].mxu0
    %v13271 = vadd.f32 %v13198, %v13270
    %v13272 = vpop.f32.mrb[0].mxu0
    %v13273 = vadd.f32 %v13200, %v13272
    %13274 = vmatprep.mubr.bf16.mxu0 %v8038
    %13275 = vmatmul.mubr.bf16.gmra.mrb[0].mxu0 %v8037
    %v13276 = vpop.f32.mrb[0].mxu0
    %v13277 = vadd.f32 %v13204, %v13276
    %v13278 = vpop.f32.mrb[0].mxu0
    %v13279 = vadd.f32 %v13206, %v13278
    %v13280 = vpop.f32.mrb[0].mxu0
    %v13281 = vadd.f32 %v13208, %v13280
    %v13282 = vpop.f32.mrb[0].mxu0
    %v13283 = vadd.f32 %v13210, %v13282
    %13284 = vmatprep.mubr.bf16.mxu0 %v8050
    %13285 = vmatmul.mubr.bf16.gmra.mrb[0].mxu0 %v8049
    %v13286 = vpop.f32.mrb[0].mxu0
    %v13287 = vadd.f32 %v13214, %v13286
    %v13288 = vpop.f32.mrb[0].mxu0
    %v13289 = vadd.f32 %v13216, %v13288
    %v13290 = vpop.f32.mrb[0].mxu0
    %v13291 = vadd.f32 %v13218, %v13290
    %v13292 = vpop.f32.mrb[0].mxu0
    %v13293 = vadd.f32 %v13220, %v13292
    %13294 = vmatprep.mubr.bf16.mxu0 %v8062
    %13295 = vmatmul.mubr.bf16.gmra.mrb[0].mxu0 %v8061
    %v13296 = vpop.f32.mrb[0].mxu0
    %v13297 = vadd.f32 %v13224, %v13296
    %v13298 = vpop.f32.mrb[0].mxu0
    %v13299 = vadd.f32 %v13226, %v13298
    %v13300 = vpop.f32.mrb[0].mxu0
    %v13301 = vadd.f32 %v13228, %v13300
    %v13302 = vpop.f32.mrb[0].mxu0
    %v13303 = vadd.f32 %v13230, %v13302
    %13304 = vdwg.mxu0
    %13305 = vmatprep.subr.bf16.mxu0 %v11444
    %13306 = vmatpush1.bf16.msra.mxu0 %v11443
    %13307 = vmatprep.subr.bf16.mxu0 %v11452
    %13308 = vmatpush1.bf16.msra.mxu0 %v11451
    %13309 = vmatprep.subr.bf16.mxu0 %v11460
    %13310 = vmatpush1.bf16.msra.mxu0 %v11459
    %13311 = vmatprep.subr.bf16.mxu0 %v11468
    %13312 = vmatpush1.bf16.msra.mxu0 %v11467
    %13313 = vmatprep.subr.bf16.mxu0 %v11476
    %13314 = vmatpush1.bf16.msra.mxu0 %v11475
    %13315 = vmatprep.subr.bf16.mxu0 %v11484
    %13316 = vmatpush1.bf16.msra.mxu0 %v11483
    %13317 = vmatprep.subr.bf16.mxu0 %v11492
    %13318 = vmatpush1.bf16.msra.mxu0 %v11491
    %13319 = vmatprep.subr.bf16.mxu0 %v11500
    %13320 = vmatpush1.bf16.msra.mxu0 %v11499
    %13321 = vmatprep.subr.bf16.mxu0 %v11508
    %13322 = vmatpush1.bf16.msra.mxu0 %v11507
    %13323 = vmatprep.subr.bf16.mxu0 %v11516
    %13324 = vmatpush1.bf16.msra.mxu0 %v11515
    %13325 = vmatprep.subr.bf16.mxu0 %v11524
    %13326 = vmatpush1.bf16.msra.mxu0 %v11523
    %13327 = vmatprep.subr.bf16.mxu0 %v11532
    %13328 = vmatpush1.bf16.msra.mxu0 %v11531
    %13329 = vmatprep.subr.bf16.mxu0 %v11540
    %13330 = vmatpush1.bf16.msra.mxu0 %v11539
    %13331 = vmatprep.subr.bf16.mxu0 %v11548
    %13332 = vmatpush1.bf16.msra.mxu0 %v11547
    %13333 = vmatprep.subr.bf16.mxu0 %v11556
    %13334 = vmatpush1.bf16.msra.mxu0 %v11555
    %13335 = vmatprep.subr.bf16.mxu0 %v11564
    %13336 = vmatpush1.bf16.msra.mxu0 %v11563
    %13337 = vmatprep.mubr.bf16.mxu0 %v8028
    %13338 = vmatmul.mubr.bf16.gmra.mrb[0].mxu0 %v8027
    %v13339 = vpop.f32.mrb[0].mxu0
    %v13340 = vadd.f32 %v13267, %v13339
    %v13341 = vpop.f32.mrb[0].mxu0
    %v13342 = vadd.f32 %v13269, %v13341
    %v13343 = vpop.f32.mrb[0].mxu0
    %v13344 = vadd.f32 %v13271, %v13343
    %v13345 = vpop.f32.mrb[0].mxu0
    %v13346 = vadd.f32 %v13273, %v13345
    %13347 = vmatprep.mubr.bf16.mxu0 %v8040
    %13348 = vmatmul.mubr.bf16.gmra.mrb[0].mxu0 %v8039
    %v13349 = vpop.f32.mrb[0].mxu0
    %v13350 = vadd.f32 %v13277, %v13349
    %v13351 = vpop.f32.mrb[0].mxu0
    %v13352 = vadd.f32 %v13279, %v13351
    %v13353 = vpop.f32.mrb[0].mxu0
    %v13354 = vadd.f32 %v13281, %v13353
    %v13355 = vpop.f32.mrb[0].mxu0
    %v13356 = vadd.f32 %v13283, %v13355
    %13357 = vmatprep.mubr.bf16.mxu0 %v8052
    %13358 = vmatmul.mubr.bf16.gmra.mrb[0].mxu0 %v8051
    %v13359 = vpop.f32.mrb[0].mxu0
    %v13360 = vadd.f32 %v13287, %v13359
    %v13361 = vpop.f32.mrb[0].mxu0
    %v13362 = vadd.f32 %v13289, %v13361
    %v13363 = vpop.f32.mrb[0].mxu0
    %v13364 = vadd.f32 %v13291, %v13363
    %v13365 = vpop.f32.mrb[0].mxu0
    %v13366 = vadd.f32 %v13293, %v13365
    %13367 = vmatprep.mubr.bf16.mxu0 %v8064
    %13368 = vmatmul.mubr.bf16.gmra.mrb[0].mxu0 %v8063
    %v13369 = vpop.f32.mrb[0].mxu0
    %v13370 = vadd.f32 %v13297, %v13369
    %v13371 = vpop.f32.mrb[0].mxu0
    %v13372 = vadd.f32 %v13299, %v13371
    %v13373 = vpop.f32.mrb[0].mxu0
    %v13374 = vadd.f32 %v13301, %v13373
    %v13375 = vpop.f32.mrb[0].mxu0
    %v13376 = vadd.f32 %v13303, %v13375
    %13377 = vdwg.mxu0
    %13378 = vmatprep.subr.bf16.mxu0 %v11572
    %13379 = vmatpush1.bf16.msra.mxu0 %v11571
    %13380 = vmatprep.subr.bf16.mxu0 %v11580
    %13381 = vmatpush1.bf16.msra.mxu0 %v11579
    %13382 = vmatprep.subr.bf16.mxu0 %v11588
    %13383 = vmatpush1.bf16.msra.mxu0 %v11587
    %13384 = vmatprep.subr.bf16.mxu0 %v11596
    %13385 = vmatpush1.bf16.msra.mxu0 %v11595
    %13386 = vmatprep.subr.bf16.mxu0 %v11604
    %13387 = vmatpush1.bf16.msra.mxu0 %v11603
    %13388 = vmatprep.subr.bf16.mxu0 %v11612
    %13389 = vmatpush1.bf16.msra.mxu0 %v11611
    %13390 = vmatprep.subr.bf16.mxu0 %v11620
    %13391 = vmatpush1.bf16.msra.mxu0 %v11619
    %13392 = vmatprep.subr.bf16.mxu0 %v11628
    %13393 = vmatpush1.bf16.msra.mxu0 %v11627
    %13394 = vmatprep.subr.bf16.mxu0 %v11636
    %13395 = vmatpush1.bf16.msra.mxu0 %v11635
    %13396 = vmatprep.subr.bf16.mxu0 %v11644
    %13397 = vmatpush1.bf16.msra.mxu0 %v11643
    %13398 = vmatprep.subr.bf16.mxu0 %v11652
    %13399 = vmatpush1.bf16.msra.mxu0 %v11651
    %13400 = vmatprep.subr.bf16.mxu0 %v11660
    %13401 = vmatpush1.bf16.msra.mxu0 %v11659
    %13402 = vmatprep.subr.bf16.mxu0 %v11668
    %13403 = vmatpush1.bf16.msra.mxu0 %v11667
    %13404 = vmatprep.subr.bf16.mxu0 %v11676
    %13405 = vmatpush1.bf16.msra.mxu0 %v11675
    %13406 = vmatprep.subr.bf16.mxu0 %v11684
    %13407 = vmatpush1.bf16.msra.mxu0 %v11683
    %13408 = vmatprep.subr.bf16.mxu0 %v11692
    %13409 = vmatpush1.bf16.msra.mxu0 %v11691
    %13410 = vmatprep.mubr.bf16.mxu0 %v8030
    %13411 = vmatmul.mubr.bf16.gmra.mrb[0].mxu0 %v8029
    %v13412 = vpop.f32.mrb[0].mxu0
    %v13413 = vadd.f32 %v13340, %v13412
    %v13414 = vpop.f32.mrb[0].mxu0
    %v13415 = vadd.f32 %v13342, %v13414
    %v13416 = vpop.f32.mrb[0].mxu0
    %v13417 = vadd.f32 %v13344, %v13416
    %v13418 = vpop.f32.mrb[0].mxu0
    %v13419 = vadd.f32 %v13346, %v13418
    %13420 = vmatprep.mubr.bf16.mxu0 %v8042
    %13421 = vmatmul.mubr.bf16.gmra.mrb[0].mxu0 %v8041
    %v13422 = vpop.f32.mrb[0].mxu0
    %v13423 = vadd.f32 %v13350, %v13422
    %v13424 = vpop.f32.mrb[0].mxu0
    %v13425 = vadd.f32 %v13352, %v13424
    %v13426 = vpop.f32.mrb[0].mxu0
    %v13427 = vadd.f32 %v13354, %v13426
    %v13428 = vpop.f32.mrb[0].mxu0
    %v13429 = vadd.f32 %v13356, %v13428
    %13430 = vmatprep.mubr.bf16.mxu0 %v8054
    %13431 = vmatmul.mubr.bf16.gmra.mrb[0].mxu0 %v8053
    %v13432 = vpop.f32.mrb[0].mxu0
    %v13433 = vadd.f32 %v13360, %v13432
    %v13434 = vpop.f32.mrb[0].mxu0
    %v13435 = vadd.f32 %v13362, %v13434
    %v13436 = vpop.f32.mrb[0].mxu0
    %v13437 = vadd.f32 %v13364, %v13436
    %v13438 = vpop.f32.mrb[0].mxu0
    %v13439 = vadd.f32 %v13366, %v13438
    %13440 = vmatprep.mubr.bf16.mxu0 %v8066
    %13441 = vmatmul.mubr.bf16.gmra.mrb[0].mxu0 %v8065
    %v13442 = vpop.f32.mrb[0].mxu0
    %v13443 = vadd.f32 %v13370, %v13442
    %v13444 = vpop.f32.mrb[0].mxu0
    %v13445 = vadd.f32 %v13372, %v13444
    %v13446 = vpop.f32.mrb[0].mxu0
    %v13447 = vadd.f32 %v13374, %v13446
    %v13448 = vpop.f32.mrb[0].mxu0
    %v13449 = vadd.f32 %v13376, %v13448
    %13450 = vdwg.mxu0
    %13451 = vmatprep.subr.bf16.mxu0 %v11700
    %13452 = vmatpush1.bf16.msra.mxu0 %v11699
    %13453 = vmatprep.subr.bf16.mxu0 %v11708
    %13454 = vmatpush1.bf16.msra.mxu0 %v11707
    %13455 = vmatprep.subr.bf16.mxu0 %v11716
    %13456 = vmatpush1.bf16.msra.mxu0 %v11715
    %13457 = vmatprep.subr.bf16.mxu0 %v11724
    %13458 = vmatpush1.bf16.msra.mxu0 %v11723
    %13459 = vmatprep.subr.bf16.mxu0 %v11732
    %13460 = vmatpush1.bf16.msra.mxu0 %v11731
    %13461 = vmatprep.subr.bf16.mxu0 %v11740
    %13462 = vmatpush1.bf16.msra.mxu0 %v11739
    %13463 = vmatprep.subr.bf16.mxu0 %v11748
    %13464 = vmatpush1.bf16.msra.mxu0 %v11747
    %13465 = vmatprep.subr.bf16.mxu0 %v11756
    %13466 = vmatpush1.bf16.msra.mxu0 %v11755
    %13467 = vmatprep.subr.bf16.mxu0 %v11764
    %13468 = vmatpush1.bf16.msra.mxu0 %v11763
    %13469 = vmatprep.subr.bf16.mxu0 %v11772
    %13470 = vmatpush1.bf16.msra.mxu0 %v11771
    %13471 = vmatprep.subr.bf16.mxu0 %v11780
    %13472 = vmatpush1.bf16.msra.mxu0 %v11779
    %13473 = vmatprep.subr.bf16.mxu0 %v11788
    %13474 = vmatpush1.bf16.msra.mxu0 %v11787
    %13475 = vmatprep.subr.bf16.mxu0 %v11796
    %13476 = vmatpush1.bf16.msra.mxu0 %v11795
    %13477 = vmatprep.subr.bf16.mxu0 %v11804
    %13478 = vmatpush1.bf16.msra.mxu0 %v11803
    %13479 = vmatprep.subr.bf16.mxu0 %v11812
    %13480 = vmatpush1.bf16.msra.mxu0 %v11811
    %13481 = vmatprep.subr.bf16.mxu0 %v11820
    %13482 = vmatpush1.bf16.msra.mxu0 %v11819
    %13483 = vmatprep.mubr.bf16.mxu0 %v8032
    %13484 = vmatmul.mubr.bf16.gmra.mrb[0].mxu0 %v8031
    %v13485 = vpop.f32.mrb[0].mxu0
    %v13486 = vadd.f32 %v13413, %v13485
    %v13487 = vpop.f32.mrb[0].mxu0
    %v13488 = vadd.f32 %v13415, %v13487
    %v13489 = vpop.f32.mrb[0].mxu0
    %v13490 = vadd.f32 %v13417, %v13489
    %v13491 = vpop.f32.mrb[0].mxu0
    %v13492 = vadd.f32 %v13419, %v13491
    %13493 = vmatprep.mubr.bf16.mxu0 %v8044
    %13494 = vmatmul.mubr.bf16.gmra.mrb[0].mxu0 %v8043
    %v13495 = vpop.f32.mrb[0].mxu0
    %v13496 = vadd.f32 %v13423, %v13495
    %v13497 = vpop.f32.mrb[0].mxu0
    %v13498 = vadd.f32 %v13425, %v13497
    %v13499 = vpop.f32.mrb[0].mxu0
    %v13500 = vadd.f32 %v13427, %v13499
    %v13501 = vpop.f32.mrb[0].mxu0
    %v13502 = vadd.f32 %v13429, %v13501
    %13503 = vmatprep.mubr.bf16.mxu0 %v8056
    %13504 = vmatmul.mubr.bf16.gmra.mrb[0].mxu0 %v8055
    %v13505 = vpop.f32.mrb[0].mxu0
    %v13506 = vadd.f32 %v13433, %v13505
    %v13507 = vpop.f32.mrb[0].mxu0
    %v13508 = vadd.f32 %v13435, %v13507
    %v13509 = vpop.f32.mrb[0].mxu0
    %v13510 = vadd.f32 %v13437, %v13509
    %v13511 = vpop.f32.mrb[0].mxu0
    %v13512 = vadd.f32 %v13439, %v13511
    %13513 = vmatprep.mubr.bf16.mxu0 %v8068
    %13514 = vmatmul.mubr.bf16.gmra.mrb[0].mxu0 %v8067
    %v13515 = vpop.f32.mrb[0].mxu0
    %v13516 = vadd.f32 %v13443, %v13515
    %v13517 = vpop.f32.mrb[0].mxu0
    %v13518 = vadd.f32 %v13445, %v13517
    %v13519 = vpop.f32.mrb[0].mxu0
    %v13520 = vadd.f32 %v13447, %v13519
    %v13521 = vpop.f32.mrb[0].mxu0
    %v13522 = vadd.f32 %v13449, %v13521
    %13523 = vdwg.mxu0
    %13524 = vmatprep.subr.bf16.mxu0 %v11828
    %13525 = vmatpush1.bf16.msra.mxu0 %v11827
    %13526 = vmatprep.subr.bf16.mxu0 %v11836
    %13527 = vmatpush1.bf16.msra.mxu0 %v11835
    %13528 = vmatprep.subr.bf16.mxu0 %v11844
    %13529 = vmatpush1.bf16.msra.mxu0 %v11843
    %13530 = vmatprep.subr.bf16.mxu0 %v11852
    %13531 = vmatpush1.bf16.msra.mxu0 %v11851
    %13532 = vmatprep.subr.bf16.mxu0 %v11860
    %13533 = vmatpush1.bf16.msra.mxu0 %v11859
    %13534 = vmatprep.subr.bf16.mxu0 %v11868
    %13535 = vmatpush1.bf16.msra.mxu0 %v11867
    %13536 = vmatprep.subr.bf16.mxu0 %v11876
    %13537 = vmatpush1.bf16.msra.mxu0 %v11875
    %13538 = vmatprep.subr.bf16.mxu0 %v11884
    %13539 = vmatpush1.bf16.msra.mxu0 %v11883
    %13540 = vmatprep.subr.bf16.mxu0 %v11892
    %13541 = vmatpush1.bf16.msra.mxu0 %v11891
    %13542 = vmatprep.subr.bf16.mxu0 %v11900
    %13543 = vmatpush1.bf16.msra.mxu0 %v11899
    %13544 = vmatprep.subr.bf16.mxu0 %v11908
    %13545 = vmatpush1.bf16.msra.mxu0 %v11907
    %13546 = vmatprep.subr.bf16.mxu0 %v11916
    %13547 = vmatpush1.bf16.msra.mxu0 %v11915
    %13548 = vmatprep.subr.bf16.mxu0 %v11924
    %13549 = vmatpush1.bf16.msra.mxu0 %v11923
    %13550 = vmatprep.subr.bf16.mxu0 %v11932
    %13551 = vmatpush1.bf16.msra.mxu0 %v11931
    %13552 = vmatprep.subr.bf16.mxu0 %v11940
    %13553 = vmatpush1.bf16.msra.mxu0 %v11939
    %13554 = vmatprep.subr.bf16.mxu0 %v11948
    %13555 = vmatpush1.bf16.msra.mxu0 %v11947
    %13556 = vmatprep.mubr.bf16.mxu0 %v8034
    %13557 = vmatmul.mubr.bf16.gmra.mrb[0].mxu0 %v8033
    %v13558 = vpop.f32.mrb[0].mxu0
    %v13559 = vadd.f32 %v13486, %v13558
    %v13560 = vpop.f32.mrb[0].mxu0
    %v13561 = vadd.f32 %v13488, %v13560
    %v13562 = vpop.f32.mrb[0].mxu0
    %v13563 = vadd.f32 %v13490, %v13562
    %v13564 = vpop.f32.mrb[0].mxu0
    %v13565 = vadd.f32 %v13492, %v13564
    %13566 = vmatprep.mubr.bf16.mxu0 %v8046
    %13567 = vmatmul.mubr.bf16.gmra.mrb[0].mxu0 %v8045
    %v13568 = vpop.f32.mrb[0].mxu0
    %v13569 = vadd.f32 %v13496, %v13568
    %v13570 = vpop.f32.mrb[0].mxu0
    %v13571 = vadd.f32 %v13498, %v13570
    %v13572 = vpop.f32.mrb[0].mxu0
    %v13573 = vadd.f32 %v13500, %v13572
    %v13574 = vpop.f32.mrb[0].mxu0
    %v13575 = vadd.f32 %v13502, %v13574
    %13576 = vmatprep.mubr.bf16.mxu0 %v8058
    %13577 = vmatmul.mubr.bf16.gmra.mrb[0].mxu0 %v8057
    %v13578 = vpop.f32.mrb[0].mxu0
    %v13579 = vadd.f32 %v13506, %v13578
    %v13580 = vpop.f32.mrb[0].mxu0
    %v13581 = vadd.f32 %v13508, %v13580
    %v13582 = vpop.f32.mrb[0].mxu0
    %v13583 = vadd.f32 %v13510, %v13582
    %v13584 = vpop.f32.mrb[0].mxu0
    %v13585 = vadd.f32 %v13512, %v13584
    %13586 = vmatprep.mubr.bf16.mxu0 %v8070
    %13587 = vmatmul.mubr.bf16.gmra.mrb[0].mxu0 %v8069
    %v13588 = vpop.f32.mrb[0].mxu0
    %v13589 = vadd.f32 %v13516, %v13588
    %v13590 = vpop.f32.mrb[0].mxu0
    %v13591 = vadd.f32 %v13518, %v13590
    %v13592 = vpop.f32.mrb[0].mxu0
    %v13593 = vadd.f32 %v13520, %v13592
    %v13594 = vpop.f32.mrb[0].mxu0
    %v13595 = vadd.f32 %v13522, %v13594
    %13596 = vdwg.mxu0
    %13597 = vmatprep.subr.bf16.mxu0 %v11190
    %13598 = vmatpush1.bf16.msra.mxu0 %v11189
    %13599 = vmatprep.subr.bf16.mxu0 %v11198
    %13600 = vmatpush1.bf16.msra.mxu0 %v11197
    %13601 = vmatprep.subr.bf16.mxu0 %v11206
    %13602 = vmatpush1.bf16.msra.mxu0 %v11205
    %13603 = vmatprep.subr.bf16.mxu0 %v11214
    %13604 = vmatpush1.bf16.msra.mxu0 %v11213
    %13605 = vmatprep.subr.bf16.mxu0 %v11222
    %13606 = vmatpush1.bf16.msra.mxu0 %v11221
    %13607 = vmatprep.subr.bf16.mxu0 %v11230
    %13608 = vmatpush1.bf16.msra.mxu0 %v11229
    %13609 = vmatprep.subr.bf16.mxu0 %v11238
    %13610 = vmatpush1.bf16.msra.mxu0 %v11237
    %13611 = vmatprep.subr.bf16.mxu0 %v11246
    %13612 = vmatpush1.bf16.msra.mxu0 %v11245
    %13613 = vmatprep.subr.bf16.mxu0 %v11254
    %13614 = vmatpush1.bf16.msra.mxu0 %v11253
    %13615 = vmatprep.subr.bf16.mxu0 %v11262
    %13616 = vmatpush1.bf16.msra.mxu0 %v11261
    %13617 = vmatprep.subr.bf16.mxu0 %v11270
    %13618 = vmatpush1.bf16.msra.mxu0 %v11269
    %13619 = vmatprep.subr.bf16.mxu0 %v11278
    %13620 = vmatpush1.bf16.msra.mxu0 %v11277
    %13621 = vmatprep.subr.bf16.mxu0 %v11286
    %13622 = vmatpush1.bf16.msra.mxu0 %v11285
    %13623 = vmatprep.subr.bf16.mxu0 %v11294
    %13624 = vmatpush1.bf16.msra.mxu0 %v11293
    %13625 = vmatprep.subr.bf16.mxu0 %v11302
    %13626 = vmatpush1.bf16.msra.mxu0 %v11301
    %13627 = vmatprep.subr.bf16.mxu0 %v11310
    %13628 = vmatpush1.bf16.msra.mxu0 %v11309
    %13629 = vmatprep.mubr.bf16.mxu0 %v8024
    %13630 = vmatmul.mubr.bf16.gmra.mrb[0].mxu0 %v8023
    %v13631 = vpop.f32.mrb[0].mxu0
    %v13632 = vadd.f32 %v8860, %v13631
    %v13633 = vpop.f32.mrb[0].mxu0
    %v13634 = vadd.f32 %v8864, %v13633
    %v13635 = vpop.f32.mrb[0].mxu0
    %v13636 = vadd.f32 %v8860, %v13635
    %v13637 = vpop.f32.mrb[0].mxu0
    %v13638 = vadd.f32 %v8864, %v13637
    %13639 = vmatprep.mubr.bf16.mxu0 %v8036
    %13640 = vmatmul.mubr.bf16.gmra.mrb[0].mxu0 %v8035
    %v13641 = vpop.f32.mrb[0].mxu0
    %v13642 = vadd.f32 %v8860, %v13641
    %v13643 = vpop.f32.mrb[0].mxu0
    %v13644 = vadd.f32 %v8864, %v13643
    %v13645 = vpop.f32.mrb[0].mxu0
    %v13646 = vadd.f32 %v8860, %v13645
    %v13647 = vpop.f32.mrb[0].mxu0
    %v13648 = vadd.f32 %v8864, %v13647
    %13649 = vmatprep.mubr.bf16.mxu0 %v8048
    %13650 = vmatmul.mubr.bf16.gmra.mrb[0].mxu0 %v8047
    %v13651 = vpop.f32.mrb[0].mxu0
    %v13652 = vadd.f32 %v8860, %v13651
    %v13653 = vpop.f32.mrb[0].mxu0
    %v13654 = vadd.f32 %v8864, %v13653
    %v13655 = vpop.f32.mrb[0].mxu0
    %v13656 = vadd.f32 %v8860, %v13655
    %v13657 = vpop.f32.mrb[0].mxu0
    %v13658 = vadd.f32 %v8864, %v13657
    %13659 = vmatprep.mubr.bf16.mxu0 %v8060
    %13660 = vmatmul.mubr.bf16.gmra.mrb[0].mxu0 %v8059
    %v13661 = vpop.f32.mrb[0].mxu0
    %v13662 = vadd.f32 %v8860, %v13661
    %v13663 = vpop.f32.mrb[0].mxu0
    %v13664 = vadd.f32 %v8864, %v13663
    %v13665 = vpop.f32.mrb[0].mxu0
    %v13666 = vadd.f32 %v8860, %v13665
    %v13667 = vpop.f32.mrb[0].mxu0
    %v13668 = vadd.f32 %v8864, %v13667
    %13669 = vdwg.mxu0
    %13670 = vmatprep.subr.bf16.mxu0 %v11318
    %13671 = vmatpush1.bf16.msra.mxu0 %v11317
    %13672 = vmatprep.subr.bf16.mxu0 %v11326
    %13673 = vmatpush1.bf16.msra.mxu0 %v11325
    %13674 = vmatprep.subr.bf16.mxu0 %v11334
    %13675 = vmatpush1.bf16.msra.mxu0 %v11333
    %13676 = vmatprep.subr.bf16.mxu0 %v11342
    %13677 = vmatpush1.bf16.msra.mxu0 %v11341
    %13678 = vmatprep.subr.bf16.mxu0 %v11350
    %13679 = vmatpush1.bf16.msra.mxu0 %v11349
    %13680 = vmatprep.subr.bf16.mxu0 %v11358
    %13681 = vmatpush1.bf16.msra.mxu0 %v11357
    %13682 = vmatprep.subr.bf16.mxu0 %v11366
    %13683 = vmatpush1.bf16.msra.mxu0 %v11365
    %13684 = vmatprep.subr.bf16.mxu0 %v11374
    %13685 = vmatpush1.bf16.msra.mxu0 %v11373
    %13686 = vmatprep.subr.bf16.mxu0 %v11382
    %13687 = vmatpush1.bf16.msra.mxu0 %v11381
    %13688 = vmatprep.subr.bf16.mxu0 %v11390
    %13689 = vmatpush1.bf16.msra.mxu0 %v11389
    %13690 = vmatprep.subr.bf16.mxu0 %v11398
    %13691 = vmatpush1.bf16.msra.mxu0 %v11397
    %13692 = vmatprep.subr.bf16.mxu0 %v11406
    %13693 = vmatpush1.bf16.msra.mxu0 %v11405
    %13694 = vmatprep.subr.bf16.mxu0 %v11414
    %13695 = vmatpush1.bf16.msra.mxu0 %v11413
    %13696 = vmatprep.subr.bf16.mxu0 %v11422
    %13697 = vmatpush1.bf16.msra.mxu0 %v11421
    %13698 = vmatprep.subr.bf16.mxu0 %v11430
    %13699 = vmatpush1.bf16.msra.mxu0 %v11429
    %13700 = vmatprep.subr.bf16.mxu0 %v11438
    %13701 = vmatpush1.bf16.msra.mxu0 %v11437
    %13702 = vmatprep.mubr.bf16.mxu0 %v8026
    %13703 = vmatmul.mubr.bf16.gmra.mrb[0].mxu0 %v8025
    %v13704 = vpop.f32.mrb[0].mxu0
    %v13705 = vadd.f32 %v13632, %v13704
    %v13706 = vpop.f32.mrb[0].mxu0
    %v13707 = vadd.f32 %v13634, %v13706
    %v13708 = vpop.f32.mrb[0].mxu0
    %v13709 = vadd.f32 %v13636, %v13708
    %v13710 = vpop.f32.mrb[0].mxu0
    %v13711 = vadd.f32 %v13638, %v13710
    %13712 = vmatprep.mubr.bf16.mxu0 %v8038
    %13713 = vmatmul.mubr.bf16.gmra.mrb[0].mxu0 %v8037
    %v13714 = vpop.f32.mrb[0].mxu0
    %v13715 = vadd.f32 %v13642, %v13714
    %v13716 = vpop.f32.mrb[0].mxu0
    %v13717 = vadd.f32 %v13644, %v13716
    %v13718 = vpop.f32.mrb[0].mxu0
    %v13719 = vadd.f32 %v13646, %v13718
    %v13720 = vpop.f32.mrb[0].mxu0
    %v13721 = vadd.f32 %v13648, %v13720
    %13722 = vmatprep.mubr.bf16.mxu0 %v8050
    %13723 = vmatmul.mubr.bf16.gmra.mrb[0].mxu0 %v8049
    %v13724 = vpop.f32.mrb[0].mxu0
    %v13725 = vadd.f32 %v13652, %v13724
    %v13726 = vpop.f32.mrb[0].mxu0
    %v13727 = vadd.f32 %v13654, %v13726
    %v13728 = vpop.f32.mrb[0].mxu0
    %v13729 = vadd.f32 %v13656, %v13728
    %v13730 = vpop.f32.mrb[0].mxu0
    %v13731 = vadd.f32 %v13658, %v13730
    %13732 = vmatprep.mubr.bf16.mxu0 %v8062
    %13733 = vmatmul.mubr.bf16.gmra.mrb[0].mxu0 %v8061
    %v13734 = vpop.f32.mrb[0].mxu0
    %v13735 = vadd.f32 %v13662, %v13734
    %v13736 = vpop.f32.mrb[0].mxu0
    %v13737 = vadd.f32 %v13664, %v13736
    %v13738 = vpop.f32.mrb[0].mxu0
    %v13739 = vadd.f32 %v13666, %v13738
    %v13740 = vpop.f32.mrb[0].mxu0
    %v13741 = vadd.f32 %v13668, %v13740
    %13742 = vdwg.mxu0
    %13743 = vmatprep.subr.bf16.mxu0 %v11446
    %13744 = vmatpush1.bf16.msra.mxu0 %v11445
    %13745 = vmatprep.subr.bf16.mxu0 %v11454
    %13746 = vmatpush1.bf16.msra.mxu0 %v11453
    %13747 = vmatprep.subr.bf16.mxu0 %v11462
    %13748 = vmatpush1.bf16.msra.mxu0 %v11461
    %13749 = vmatprep.subr.bf16.mxu0 %v11470
    %13750 = vmatpush1.bf16.msra.mxu0 %v11469
    %13751 = vmatprep.subr.bf16.mxu0 %v11478
    %13752 = vmatpush1.bf16.msra.mxu0 %v11477
    %13753 = vmatprep.subr.bf16.mxu0 %v11486
    %13754 = vmatpush1.bf16.msra.mxu0 %v11485
    %13755 = vmatprep.subr.bf16.mxu0 %v11494
    %13756 = vmatpush1.bf16.msra.mxu0 %v11493
    %13757 = vmatprep.subr.bf16.mxu0 %v11502
    %13758 = vmatpush1.bf16.msra.mxu0 %v11501
    %13759 = vmatprep.subr.bf16.mxu0 %v11510
    %13760 = vmatpush1.bf16.msra.mxu0 %v11509
    %13761 = vmatprep.subr.bf16.mxu0 %v11518
    %13762 = vmatpush1.bf16.msra.mxu0 %v11517
    %13763 = vmatprep.subr.bf16.mxu0 %v11526
    %13764 = vmatpush1.bf16.msra.mxu0 %v11525
    %13765 = vmatprep.subr.bf16.mxu0 %v11534
    %13766 = vmatpush1.bf16.msra.mxu0 %v11533
    %13767 = vmatprep.subr.bf16.mxu0 %v11542
    %13768 = vmatpush1.bf16.msra.mxu0 %v11541
    %13769 = vmatprep.subr.bf16.mxu0 %v11550
    %13770 = vmatpush1.bf16.msra.mxu0 %v11549
    %13771 = vmatprep.subr.bf16.mxu0 %v11558
    %13772 = vmatpush1.bf16.msra.mxu0 %v11557
    %13773 = vmatprep.subr.bf16.mxu0 %v11566
    %13774 = vmatpush1.bf16.msra.mxu0 %v11565
    %13775 = vmatprep.mubr.bf16.mxu0 %v8028
    %13776 = vmatmul.mubr.bf16.gmra.mrb[0].mxu0 %v8027
    %v13777 = vpop.f32.mrb[0].mxu0
    %v13778 = vadd.f32 %v13705, %v13777
    %v13779 = vpop.f32.mrb[0].mxu0
    %v13780 = vadd.f32 %v13707, %v13779
    %v13781 = vpop.f32.mrb[0].mxu0
    %v13782 = vadd.f32 %v13709, %v13781
    %v13783 = vpop.f32.mrb[0].mxu0
    %v13784 = vadd.f32 %v13711, %v13783
    %13785 = vmatprep.mubr.bf16.mxu0 %v8040
    %13786 = vmatmul.mubr.bf16.gmra.mrb[0].mxu0 %v8039
    %v13787 = vpop.f32.mrb[0].mxu0
    %v13788 = vadd.f32 %v13715, %v13787
    %v13789 = vpop.f32.mrb[0].mxu0
    %v13790 = vadd.f32 %v13717, %v13789
    %v13791 = vpop.f32.mrb[0].mxu0
    %v13792 = vadd.f32 %v13719, %v13791
    %v13793 = vpop.f32.mrb[0].mxu0
    %v13794 = vadd.f32 %v13721, %v13793
    %13795 = vmatprep.mubr.bf16.mxu0 %v8052
    %13796 = vmatmul.mubr.bf16.gmra.mrb[0].mxu0 %v8051
    %v13797 = vpop.f32.mrb[0].mxu0
    %v13798 = vadd.f32 %v13725, %v13797
    %v13799 = vpop.f32.mrb[0].mxu0
    %v13800 = vadd.f32 %v13727, %v13799
    %v13801 = vpop.f32.mrb[0].mxu0
    %v13802 = vadd.f32 %v13729, %v13801
    %v13803 = vpop.f32.mrb[0].mxu0
    %v13804 = vadd.f32 %v13731, %v13803
    %13805 = vmatprep.mubr.bf16.mxu0 %v8064
    %13806 = vmatmul.mubr.bf16.gmra.mrb[0].mxu0 %v8063
    %v13807 = vpop.f32.mrb[0].mxu0
    %v13808 = vadd.f32 %v13735, %v13807
    %v13809 = vpop.f32.mrb[0].mxu0
    %v13810 = vadd.f32 %v13737, %v13809
    %v13811 = vpop.f32.mrb[0].mxu0
    %v13812 = vadd.f32 %v13739, %v13811
    %v13813 = vpop.f32.mrb[0].mxu0
    %v13814 = vadd.f32 %v13741, %v13813
    %13815 = vdwg.mxu0
    %13816 = vmatprep.subr.bf16.mxu0 %v11574
    %13817 = vmatpush1.bf16.msra.mxu0 %v11573
    %13818 = vmatprep.subr.bf16.mxu0 %v11582
    %13819 = vmatpush1.bf16.msra.mxu0 %v11581
    %13820 = vmatprep.subr.bf16.mxu0 %v11590
    %13821 = vmatpush1.bf16.msra.mxu0 %v11589
    %13822 = vmatprep.subr.bf16.mxu0 %v11598
    %13823 = vmatpush1.bf16.msra.mxu0 %v11597
    %13824 = vmatprep.subr.bf16.mxu0 %v11606
    %13825 = vmatpush1.bf16.msra.mxu0 %v11605
    %13826 = vmatprep.subr.bf16.mxu0 %v11614
    %13827 = vmatpush1.bf16.msra.mxu0 %v11613
    %13828 = vmatprep.subr.bf16.mxu0 %v11622
    %13829 = vmatpush1.bf16.msra.mxu0 %v11621
    %13830 = vmatprep.subr.bf16.mxu0 %v11630
    %13831 = vmatpush1.bf16.msra.mxu0 %v11629
    %13832 = vmatprep.subr.bf16.mxu0 %v11638
    %13833 = vmatpush1.bf16.msra.mxu0 %v11637
    %13834 = vmatprep.subr.bf16.mxu0 %v11646
    %13835 = vmatpush1.bf16.msra.mxu0 %v11645
    %13836 = vmatprep.subr.bf16.mxu0 %v11654
    %13837 = vmatpush1.bf16.msra.mxu0 %v11653
    %13838 = vmatprep.subr.bf16.mxu0 %v11662
    %13839 = vmatpush1.bf16.msra.mxu0 %v11661
    %13840 = vmatprep.subr.bf16.mxu0 %v11670
    %13841 = vmatpush1.bf16.msra.mxu0 %v11669
    %13842 = vmatprep.subr.bf16.mxu0 %v11678
    %13843 = vmatpush1.bf16.msra.mxu0 %v11677
    %13844 = vmatprep.subr.bf16.mxu0 %v11686
    %13845 = vmatpush1.bf16.msra.mxu0 %v11685
    %13846 = vmatprep.subr.bf16.mxu0 %v11694
    %13847 = vmatpush1.bf16.msra.mxu0 %v11693
    %13848 = vmatprep.mubr.bf16.mxu0 %v8030
    %13849 = vmatmul.mubr.bf16.gmra.mrb[0].mxu0 %v8029
    %v13850 = vpop.f32.mrb[0].mxu0
    %v13851 = vadd.f32 %v13778, %v13850
    %v13852 = vpop.f32.mrb[0].mxu0
    %v13853 = vadd.f32 %v13780, %v13852
    %v13854 = vpop.f32.mrb[0].mxu0
    %v13855 = vadd.f32 %v13782, %v13854
    %v13856 = vpop.f32.mrb[0].mxu0
    %v13857 = vadd.f32 %v13784, %v13856
    %13858 = vmatprep.mubr.bf16.mxu0 %v8042
    %13859 = vmatmul.mubr.bf16.gmra.mrb[0].mxu0 %v8041
    %v13860 = vpop.f32.mrb[0].mxu0
    %v13861 = vadd.f32 %v13788, %v13860
    %v13862 = vpop.f32.mrb[0].mxu0
    %v13863 = vadd.f32 %v13790, %v13862
    %v13864 = vpop.f32.mrb[0].mxu0
    %v13865 = vadd.f32 %v13792, %v13864
    %v13866 = vpop.f32.mrb[0].mxu0
    %v13867 = vadd.f32 %v13794, %v13866
    %13868 = vmatprep.mubr.bf16.mxu0 %v8054
    %13869 = vmatmul.mubr.bf16.gmra.mrb[0].mxu0 %v8053
    %v13870 = vpop.f32.mrb[0].mxu0
    %v13871 = vadd.f32 %v13798, %v13870
    %v13872 = vpop.f32.mrb[0].mxu0
    %v13873 = vadd.f32 %v13800, %v13872
    %v13874 = vpop.f32.mrb[0].mxu0
    %v13875 = vadd.f32 %v13802, %v13874
    %v13876 = vpop.f32.mrb[0].mxu0
    %v13877 = vadd.f32 %v13804, %v13876
    %13878 = vmatprep.mubr.bf16.mxu0 %v8066
    %13879 = vmatmul.mubr.bf16.gmra.mrb[0].mxu0 %v8065
    %v13880 = vpop.f32.mrb[0].mxu0
    %v13881 = vadd.f32 %v13808, %v13880
    %v13882 = vpop.f32.mrb[0].mxu0
    %v13883 = vadd.f32 %v13810, %v13882
    %v13884 = vpop.f32.mrb[0].mxu0
    %v13885 = vadd.f32 %v13812, %v13884
    %v13886 = vpop.f32.mrb[0].mxu0
    %v13887 = vadd.f32 %v13814, %v13886
    %13888 = vdwg.mxu0
    %13889 = vmatprep.subr.bf16.mxu0 %v11702
    %13890 = vmatpush1.bf16.msra.mxu0 %v11701
    %13891 = vmatprep.subr.bf16.mxu0 %v11710
    %13892 = vmatpush1.bf16.msra.mxu0 %v11709
    %13893 = vmatprep.subr.bf16.mxu0 %v11718
    %13894 = vmatpush1.bf16.msra.mxu0 %v11717
    %13895 = vmatprep.subr.bf16.mxu0 %v11726
    %13896 = vmatpush1.bf16.msra.mxu0 %v11725
    %13897 = vmatprep.subr.bf16.mxu0 %v11734
    %13898 = vmatpush1.bf16.msra.mxu0 %v11733
    %13899 = vmatprep.subr.bf16.mxu0 %v11742
    %13900 = vmatpush1.bf16.msra.mxu0 %v11741
    %13901 = vmatprep.subr.bf16.mxu0 %v11750
    %13902 = vmatpush1.bf16.msra.mxu0 %v11749
    %13903 = vmatprep.subr.bf16.mxu0 %v11758
    %13904 = vmatpush1.bf16.msra.mxu0 %v11757
    %13905 = vmatprep.subr.bf16.mxu0 %v11766
    %13906 = vmatpush1.bf16.msra.mxu0 %v11765
    %13907 = vmatprep.subr.bf16.mxu0 %v11774
    %13908 = vmatpush1.bf16.msra.mxu0 %v11773
    %13909 = vmatprep.subr.bf16.mxu0 %v11782
    %13910 = vmatpush1.bf16.msra.mxu0 %v11781
    %13911 = vmatprep.subr.bf16.mxu0 %v11790
    %13912 = vmatpush1.bf16.msra.mxu0 %v11789
    %13913 = vmatprep.subr.bf16.mxu0 %v11798
    %13914 = vmatpush1.bf16.msra.mxu0 %v11797
    %13915 = vmatprep.subr.bf16.mxu0 %v11806
    %13916 = vmatpush1.bf16.msra.mxu0 %v11805
    %13917 = vmatprep.subr.bf16.mxu0 %v11814
    %13918 = vmatpush1.bf16.msra.mxu0 %v11813
    %13919 = vmatprep.subr.bf16.mxu0 %v11822
    %13920 = vmatpush1.bf16.msra.mxu0 %v11821
    %13921 = vmatprep.mubr.bf16.mxu0 %v8032
    %13922 = vmatmul.mubr.bf16.gmra.mrb[0].mxu0 %v8031
    %v13923 = vpop.f32.mrb[0].mxu0
    %v13924 = vadd.f32 %v13851, %v13923
    %v13925 = vpop.f32.mrb[0].mxu0
    %v13926 = vadd.f32 %v13853, %v13925
    %v13927 = vpop.f32.mrb[0].mxu0
    %v13928 = vadd.f32 %v13855, %v13927
    %v13929 = vpop.f32.mrb[0].mxu0
    %v13930 = vadd.f32 %v13857, %v13929
    %13931 = vmatprep.mubr.bf16.mxu0 %v8044
    %13932 = vmatmul.mubr.bf16.gmra.mrb[0].mxu0 %v8043
    %v13933 = vpop.f32.mrb[0].mxu0
    %v13934 = vadd.f32 %v13861, %v13933
    %v13935 = vpop.f32.mrb[0].mxu0
    %v13936 = vadd.f32 %v13863, %v13935
    %v13937 = vpop.f32.mrb[0].mxu0
    %v13938 = vadd.f32 %v13865, %v13937
    %v13939 = vpop.f32.mrb[0].mxu0
    %v13940 = vadd.f32 %v13867, %v13939
    %13941 = vmatprep.mubr.bf16.mxu0 %v8056
    %13942 = vmatmul.mubr.bf16.gmra.mrb[0].mxu0 %v8055
    %v13943 = vpop.f32.mrb[0].mxu0
    %v13944 = vadd.f32 %v13871, %v13943
    %v13945 = vpop.f32.mrb[0].mxu0
    %v13946 = vadd.f32 %v13873, %v13945
    %v13947 = vpop.f32.mrb[0].mxu0
    %v13948 = vadd.f32 %v13875, %v13947
    %v13949 = vpop.f32.mrb[0].mxu0
    %v13950 = vadd.f32 %v13877, %v13949
    %13951 = vmatprep.mubr.bf16.mxu0 %v8068
    %13952 = vmatmul.mubr.bf16.gmra.mrb[0].mxu0 %v8067
    %v13953 = vpop.f32.mrb[0].mxu0
    %v13954 = vadd.f32 %v13881, %v13953
    %v13955 = vpop.f32.mrb[0].mxu0
    %v13956 = vadd.f32 %v13883, %v13955
    %v13957 = vpop.f32.mrb[0].mxu0
    %v13958 = vadd.f32 %v13885, %v13957
    %v13959 = vpop.f32.mrb[0].mxu0
    %v13960 = vadd.f32 %v13887, %v13959
    %13961 = vdwg.mxu0
    %13962 = vmatprep.subr.bf16.mxu0 %v11830
    %13963 = vmatpush1.bf16.msra.mxu0 %v11829
    %13964 = vmatprep.subr.bf16.mxu0 %v11838
    %13965 = vmatpush1.bf16.msra.mxu0 %v11837
    %13966 = vmatprep.subr.bf16.mxu0 %v11846
    %13967 = vmatpush1.bf16.msra.mxu0 %v11845
    %13968 = vmatprep.subr.bf16.mxu0 %v11854
    %13969 = vmatpush1.bf16.msra.mxu0 %v11853
    %13970 = vmatprep.subr.bf16.mxu0 %v11862
    %13971 = vmatpush1.bf16.msra.mxu0 %v11861
    %13972 = vmatprep.subr.bf16.mxu0 %v11870
    %13973 = vmatpush1.bf16.msra.mxu0 %v11869
    %13974 = vmatprep.subr.bf16.mxu0 %v11878
    %13975 = vmatpush1.bf16.msra.mxu0 %v11877
    %13976 = vmatprep.subr.bf16.mxu0 %v11886
    %13977 = vmatpush1.bf16.msra.mxu0 %v11885
    %13978 = vmatprep.subr.bf16.mxu0 %v11894
    %13979 = vmatpush1.bf16.msra.mxu0 %v11893
    %13980 = vmatprep.subr.bf16.mxu0 %v11902
    %13981 = vmatpush1.bf16.msra.mxu0 %v11901
    %13982 = vmatprep.subr.bf16.mxu0 %v11910
    %13983 = vmatpush1.bf16.msra.mxu0 %v11909
    %13984 = vmatprep.subr.bf16.mxu0 %v11918
    %13985 = vmatpush1.bf16.msra.mxu0 %v11917
    %13986 = vmatprep.subr.bf16.mxu0 %v11926
    %13987 = vmatpush1.bf16.msra.mxu0 %v11925
    %13988 = vmatprep.subr.bf16.mxu0 %v11934
    %13989 = vmatpush1.bf16.msra.mxu0 %v11933
    %13990 = vmatprep.subr.bf16.mxu0 %v11942
    %13991 = vmatpush1.bf16.msra.mxu0 %v11941
    %13992 = vmatprep.subr.bf16.mxu0 %v11950
    %13993 = vmatpush1.bf16.msra.mxu0 %v11949
    %13994 = vmatprep.mubr.bf16.mxu0 %v8034
    %13995 = vmatmul.mubr.bf16.gmra.mrb[0].mxu0 %v8033
    %v13996 = vpop.f32.mrb[0].mxu0
    %v13997 = vadd.f32 %v13924, %v13996
    %v13998 = vpop.f32.mrb[0].mxu0
    %v13999 = vadd.f32 %v13926, %v13998
    %v14000 = vpop.f32.mrb[0].mxu0
    %v14001 = vadd.f32 %v13928, %v14000
    %v14002 = vpop.f32.mrb[0].mxu0
    %v14003 = vadd.f32 %v13930, %v14002
    %14004 = vmatprep.mubr.bf16.mxu0 %v8046
    %14005 = vmatmul.mubr.bf16.gmra.mrb[0].mxu0 %v8045
    %v14006 = vpop.f32.mrb[0].mxu0
    %v14007 = vadd.f32 %v13934, %v14006
    %v14008 = vpop.f32.mrb[0].mxu0
    %v14009 = vadd.f32 %v13936, %v14008
    %v14010 = vpop.f32.mrb[0].mxu0
    %v14011 = vadd.f32 %v13938, %v14010
    %v14012 = vpop.f32.mrb[0].mxu0
    %v14013 = vadd.f32 %v13940, %v14012
    %14014 = vmatprep.mubr.bf16.mxu0 %v8058
    %14015 = vmatmul.mubr.bf16.gmra.mrb[0].mxu0 %v8057
    %v14016 = vpop.f32.mrb[0].mxu0
    %v14017 = vadd.f32 %v13944, %v14016
    %v14018 = vpop.f32.mrb[0].mxu0
    %v14019 = vadd.f32 %v13946, %v14018
    %v14020 = vpop.f32.mrb[0].mxu0
    %v14021 = vadd.f32 %v13948, %v14020
    %v14022 = vpop.f32.mrb[0].mxu0
    %v14023 = vadd.f32 %v13950, %v14022
    %14024 = vmatprep.mubr.bf16.mxu0 %v8070
    %14025 = vmatmul.mubr.bf16.gmra.mrb[0].mxu0 %v8069
    %v14026 = vpop.f32.mrb[0].mxu0
    %v14027 = vadd.f32 %v13954, %v14026
    %v14028 = vpop.f32.mrb[0].mxu0
    %v14029 = vadd.f32 %v13956, %v14028
    %v14030 = vpop.f32.mrb[0].mxu0
    %v14031 = vadd.f32 %v13958, %v14030
    %v14032 = vpop.f32.mrb[0].mxu0
    %v14033 = vadd.f32 %v13960, %v14032
    %14034 = vdwg.mxu0
    %14035 = vmatprep.subr.bf16.mxu0 %v11192
    %14036 = vmatpush1.bf16.msra.mxu0 %v11191
    %14037 = vmatprep.subr.bf16.mxu0 %v11200
    %14038 = vmatpush1.bf16.msra.mxu0 %v11199
    %14039 = vmatprep.subr.bf16.mxu0 %v11208
    %14040 = vmatpush1.bf16.msra.mxu0 %v11207
    %14041 = vmatprep.subr.bf16.mxu0 %v11216
    %14042 = vmatpush1.bf16.msra.mxu0 %v11215
    %14043 = vmatprep.subr.bf16.mxu0 %v11224
    %14044 = vmatpush1.bf16.msra.mxu0 %v11223
    %14045 = vmatprep.subr.bf16.mxu0 %v11232
    %14046 = vmatpush1.bf16.msra.mxu0 %v11231
    %14047 = vmatprep.subr.bf16.mxu0 %v11240
    %14048 = vmatpush1.bf16.msra.mxu0 %v11239
    %14049 = vmatprep.subr.bf16.mxu0 %v11248
    %14050 = vmatpush1.bf16.msra.mxu0 %v11247
    %14051 = vmatprep.subr.bf16.mxu0 %v11256
    %14052 = vmatpush1.bf16.msra.mxu0 %v11255
    %14053 = vmatprep.subr.bf16.mxu0 %v11264
    %14054 = vmatpush1.bf16.msra.mxu0 %v11263
    %14055 = vmatprep.subr.bf16.mxu0 %v11272
    %14056 = vmatpush1.bf16.msra.mxu0 %v11271
    %14057 = vmatprep.subr.bf16.mxu0 %v11280
    %14058 = vmatpush1.bf16.msra.mxu0 %v11279
    %14059 = vmatprep.subr.bf16.mxu0 %v11288
    %14060 = vmatpush1.bf16.msra.mxu0 %v11287
    %14061 = vmatprep.subr.bf16.mxu0 %v11296
    %14062 = vmatpush1.bf16.msra.mxu0 %v11295
    %14063 = vmatprep.subr.bf16.mxu0 %v11304
    %14064 = vmatpush1.bf16.msra.mxu0 %v11303
    %14065 = vmatprep.subr.bf16.mxu0 %v11312
    %14066 = vmatpush1.bf16.msra.mxu0 %v11311
    %14067 = vmatprep.mubr.bf16.mxu0 %v8024
    %14068 = vmatmul.mubr.bf16.gmra.mrb[0].mxu0 %v8023
    %v14069 = vpop.f32.mrb[0].mxu0
    %v14070 = vadd.f32 %v8868, %v14069
    %v14071 = vpop.f32.mrb[0].mxu0
    %v14072 = vadd.f32 %v8872, %v14071
    %v14073 = vpop.f32.mrb[0].mxu0
    %v14074 = vadd.f32 %v8868, %v14073
    %v14075 = vpop.f32.mrb[0].mxu0
    %v14076 = vadd.f32 %v8872, %v14075
    %14077 = vmatprep.mubr.bf16.mxu0 %v8036
    %14078 = vmatmul.mubr.bf16.gmra.mrb[0].mxu0 %v8035
    %v14079 = vpop.f32.mrb[0].mxu0
    %v14080 = vadd.f32 %v8868, %v14079
    %v14081 = vpop.f32.mrb[0].mxu0
    %v14082 = vadd.f32 %v8872, %v14081
    %v14083 = vpop.f32.mrb[0].mxu0
    %v14084 = vadd.f32 %v8868, %v14083
    %v14085 = vpop.f32.mrb[0].mxu0
    %v14086 = vadd.f32 %v8872, %v14085
    %14087 = vmatprep.mubr.bf16.mxu0 %v8048
    %14088 = vmatmul.mubr.bf16.gmra.mrb[0].mxu0 %v8047
    %v14089 = vpop.f32.mrb[0].mxu0
    %v14090 = vadd.f32 %v8868, %v14089
    %v14091 = vpop.f32.mrb[0].mxu0
    %v14092 = vadd.f32 %v8872, %v14091
    %v14093 = vpop.f32.mrb[0].mxu0
    %v14094 = vadd.f32 %v8868, %v14093
    %v14095 = vpop.f32.mrb[0].mxu0
    %v14096 = vadd.f32 %v8872, %v14095
    %14097 = vmatprep.mubr.bf16.mxu0 %v8060
    %14098 = vmatmul.mubr.bf16.gmra.mrb[0].mxu0 %v8059
    %v14099 = vpop.f32.mrb[0].mxu0
    %v14100 = vadd.f32 %v8868, %v14099
    %v14101 = vpop.f32.mrb[0].mxu0
    %v14102 = vadd.f32 %v8872, %v14101
    %v14103 = vpop.f32.mrb[0].mxu0
    %v14104 = vadd.f32 %v8868, %v14103
    %v14105 = vpop.f32.mrb[0].mxu0
    %v14106 = vadd.f32 %v8872, %v14105
    %14107 = vdwg.mxu0
    %14108 = vmatprep.subr.bf16.mxu0 %v11320
    %14109 = vmatpush1.bf16.msra.mxu0 %v11319
    %14110 = vmatprep.subr.bf16.mxu0 %v11328
    %14111 = vmatpush1.bf16.msra.mxu0 %v11327
    %14112 = vmatprep.subr.bf16.mxu0 %v11336
    %14113 = vmatpush1.bf16.msra.mxu0 %v11335
    %14114 = vmatprep.subr.bf16.mxu0 %v11344
    %14115 = vmatpush1.bf16.msra.mxu0 %v11343
    %14116 = vmatprep.subr.bf16.mxu0 %v11352
    %14117 = vmatpush1.bf16.msra.mxu0 %v11351
    %14118 = vmatprep.subr.bf16.mxu0 %v11360
    %14119 = vmatpush1.bf16.msra.mxu0 %v11359
    %14120 = vmatprep.subr.bf16.mxu0 %v11368
    %14121 = vmatpush1.bf16.msra.mxu0 %v11367
    %14122 = vmatprep.subr.bf16.mxu0 %v11376
    %14123 = vmatpush1.bf16.msra.mxu0 %v11375
    %14124 = vmatprep.subr.bf16.mxu0 %v11384
    %14125 = vmatpush1.bf16.msra.mxu0 %v11383
    %14126 = vmatprep.subr.bf16.mxu0 %v11392
    %14127 = vmatpush1.bf16.msra.mxu0 %v11391
    %14128 = vmatprep.subr.bf16.mxu0 %v11400
    %14129 = vmatpush1.bf16.msra.mxu0 %v11399
    %14130 = vmatprep.subr.bf16.mxu0 %v11408
    %14131 = vmatpush1.bf16.msra.mxu0 %v11407
    %14132 = vmatprep.subr.bf16.mxu0 %v11416
    %14133 = vmatpush1.bf16.msra.mxu0 %v11415
    %14134 = vmatprep.subr.bf16.mxu0 %v11424
    %14135 = vmatpush1.bf16.msra.mxu0 %v11423
    %14136 = vmatprep.subr.bf16.mxu0 %v11432
    %14137 = vmatpush1.bf16.msra.mxu0 %v11431
    %14138 = vmatprep.subr.bf16.mxu0 %v11440
    %14139 = vmatpush1.bf16.msra.mxu0 %v11439
    %14140 = vmatprep.mubr.bf16.mxu0 %v8026
    %14141 = vmatmul.mubr.bf16.gmra.mrb[0].mxu0 %v8025
    %v14142 = vpop.f32.mrb[0].mxu0
    %v14143 = vadd.f32 %v14070, %v14142
    %v14144 = vpop.f32.mrb[0].mxu0
    %v14145 = vadd.f32 %v14072, %v14144
    %v14146 = vpop.f32.mrb[0].mxu0
    %v14147 = vadd.f32 %v14074, %v14146
    %v14148 = vpop.f32.mrb[0].mxu0
    %v14149 = vadd.f32 %v14076, %v14148
    %14150 = vmatprep.mubr.bf16.mxu0 %v8038
    %14151 = vmatmul.mubr.bf16.gmra.mrb[0].mxu0 %v8037
    %v14152 = vpop.f32.mrb[0].mxu0
    %v14153 = vadd.f32 %v14080, %v14152
    %v14154 = vpop.f32.mrb[0].mxu0
    %v14155 = vadd.f32 %v14082, %v14154
    %v14156 = vpop.f32.mrb[0].mxu0
    %v14157 = vadd.f32 %v14084, %v14156
    %v14158 = vpop.f32.mrb[0].mxu0
    %v14159 = vadd.f32 %v14086, %v14158
    %14160 = vmatprep.mubr.bf16.mxu0 %v8050
    %14161 = vmatmul.mubr.bf16.gmra.mrb[0].mxu0 %v8049
    %v14162 = vpop.f32.mrb[0].mxu0
    %v14163 = vadd.f32 %v14090, %v14162
    %v14164 = vpop.f32.mrb[0].mxu0
    %v14165 = vadd.f32 %v14092, %v14164
    %v14166 = vpop.f32.mrb[0].mxu0
    %v14167 = vadd.f32 %v14094, %v14166
    %v14168 = vpop.f32.mrb[0].mxu0
    %v14169 = vadd.f32 %v14096, %v14168
    %14170 = vmatprep.mubr.bf16.mxu0 %v8062
    %14171 = vmatmul.mubr.bf16.gmra.mrb[0].mxu0 %v8061
    %v14172 = vpop.f32.mrb[0].mxu0
    %v14173 = vadd.f32 %v14100, %v14172
    %v14174 = vpop.f32.mrb[0].mxu0
    %v14175 = vadd.f32 %v14102, %v14174
    %v14176 = vpop.f32.mrb[0].mxu0
    %v14177 = vadd.f32 %v14104, %v14176
    %v14178 = vpop.f32.mrb[0].mxu0
    %v14179 = vadd.f32 %v14106, %v14178
    %14180 = vdwg.mxu0
    %14181 = vmatprep.subr.bf16.mxu0 %v11448
    %14182 = vmatpush1.bf16.msra.mxu0 %v11447
    %14183 = vmatprep.subr.bf16.mxu0 %v11456
    %14184 = vmatpush1.bf16.msra.mxu0 %v11455
    %14185 = vmatprep.subr.bf16.mxu0 %v11464
    %14186 = vmatpush1.bf16.msra.mxu0 %v11463
    %14187 = vmatprep.subr.bf16.mxu0 %v11472
    %14188 = vmatpush1.bf16.msra.mxu0 %v11471
    %14189 = vmatprep.subr.bf16.mxu0 %v11480
    %14190 = vmatpush1.bf16.msra.mxu0 %v11479
    %14191 = vmatprep.subr.bf16.mxu0 %v11488
    %14192 = vmatpush1.bf16.msra.mxu0 %v11487
    %14193 = vmatprep.subr.bf16.mxu0 %v11496
    %14194 = vmatpush1.bf16.msra.mxu0 %v11495
    %14195 = vmatprep.subr.bf16.mxu0 %v11504
    %14196 = vmatpush1.bf16.msra.mxu0 %v11503
    %14197 = vmatprep.subr.bf16.mxu0 %v11512
    %14198 = vmatpush1.bf16.msra.mxu0 %v11511
    %14199 = vmatprep.subr.bf16.mxu0 %v11520
    %14200 = vmatpush1.bf16.msra.mxu0 %v11519
    %14201 = vmatprep.subr.bf16.mxu0 %v11528
    %14202 = vmatpush1.bf16.msra.mxu0 %v11527
    %14203 = vmatprep.subr.bf16.mxu0 %v11536
    %14204 = vmatpush1.bf16.msra.mxu0 %v11535
    %14205 = vmatprep.subr.bf16.mxu0 %v11544
    %14206 = vmatpush1.bf16.msra.mxu0 %v11543
    %14207 = vmatprep.subr.bf16.mxu0 %v11552
    %14208 = vmatpush1.bf16.msra.mxu0 %v11551
    %14209 = vmatprep.subr.bf16.mxu0 %v11560
    %14210 = vmatpush1.bf16.msra.mxu0 %v11559
    %14211 = vmatprep.subr.bf16.mxu0 %v11568
    %14212 = vmatpush1.bf16.msra.mxu0 %v11567
    %14213 = vmatprep.mubr.bf16.mxu0 %v8028
    %14214 = vmatmul.mubr.bf16.gmra.mrb[0].mxu0 %v8027
    %v14215 = vpop.f32.mrb[0].mxu0
    %v14216 = vadd.f32 %v14143, %v14215
    %v14217 = vpop.f32.mrb[0].mxu0
    %v14218 = vadd.f32 %v14145, %v14217
    %v14219 = vpop.f32.mrb[0].mxu0
    %v14220 = vadd.f32 %v14147, %v14219
    %v14221 = vpop.f32.mrb[0].mxu0
    %v14222 = vadd.f32 %v14149, %v14221
    %14223 = vmatprep.mubr.bf16.mxu0 %v8040
    %14224 = vmatmul.mubr.bf16.gmra.mrb[0].mxu0 %v8039
    %v14225 = vpop.f32.mrb[0].mxu0
    %v14226 = vadd.f32 %v14153, %v14225
    %v14227 = vpop.f32.mrb[0].mxu0
    %v14228 = vadd.f32 %v14155, %v14227
    %v14229 = vpop.f32.mrb[0].mxu0
    %v14230 = vadd.f32 %v14157, %v14229
    %v14231 = vpop.f32.mrb[0].mxu0
    %v14232 = vadd.f32 %v14159, %v14231
    %14233 = vmatprep.mubr.bf16.mxu0 %v8052
    %14234 = vmatmul.mubr.bf16.gmra.mrb[0].mxu0 %v8051
    %v14235 = vpop.f32.mrb[0].mxu0
    %v14236 = vadd.f32 %v14163, %v14235
    %v14237 = vpop.f32.mrb[0].mxu0
    %v14238 = vadd.f32 %v14165, %v14237
    %v14239 = vpop.f32.mrb[0].mxu0
    %v14240 = vadd.f32 %v14167, %v14239
    %v14241 = vpop.f32.mrb[0].mxu0
    %v14242 = vadd.f32 %v14169, %v14241
    %14243 = vmatprep.mubr.bf16.mxu0 %v8064
    %14244 = vmatmul.mubr.bf16.gmra.mrb[0].mxu0 %v8063
    %v14245 = vpop.f32.mrb[0].mxu0
    %v14246 = vadd.f32 %v14173, %v14245
    %v14247 = vpop.f32.mrb[0].mxu0
    %v14248 = vadd.f32 %v14175, %v14247
    %v14249 = vpop.f32.mrb[0].mxu0
    %v14250 = vadd.f32 %v14177, %v14249
    %v14251 = vpop.f32.mrb[0].mxu0
    %v14252 = vadd.f32 %v14179, %v14251
    %14253 = vdwg.mxu0
    %14254 = vmatprep.subr.bf16.mxu0 %v11576
    %14255 = vmatpush1.bf16.msra.mxu0 %v11575
    %14256 = vmatprep.subr.bf16.mxu0 %v11584
    %14257 = vmatpush1.bf16.msra.mxu0 %v11583
    %14258 = vmatprep.subr.bf16.mxu0 %v11592
    %14259 = vmatpush1.bf16.msra.mxu0 %v11591
    %14260 = vmatprep.subr.bf16.mxu0 %v11600
    %14261 = vmatpush1.bf16.msra.mxu0 %v11599
    %14262 = vmatprep.subr.bf16.mxu0 %v11608
    %14263 = vmatpush1.bf16.msra.mxu0 %v11607
    %14264 = vmatprep.subr.bf16.mxu0 %v11616
    %14265 = vmatpush1.bf16.msra.mxu0 %v11615
    %14266 = vmatprep.subr.bf16.mxu0 %v11624
    %14267 = vmatpush1.bf16.msra.mxu0 %v11623
    %14268 = vmatprep.subr.bf16.mxu0 %v11632
    %14269 = vmatpush1.bf16.msra.mxu0 %v11631
    %14270 = vmatprep.subr.bf16.mxu0 %v11640
    %14271 = vmatpush1.bf16.msra.mxu0 %v11639
    %14272 = vmatprep.subr.bf16.mxu0 %v11648
    %14273 = vmatpush1.bf16.msra.mxu0 %v11647
    %14274 = vmatprep.subr.bf16.mxu0 %v11656
    %14275 = vmatpush1.bf16.msra.mxu0 %v11655
    %14276 = vmatprep.subr.bf16.mxu0 %v11664
    %14277 = vmatpush1.bf16.msra.mxu0 %v11663
    %14278 = vmatprep.subr.bf16.mxu0 %v11672
    %14279 = vmatpush1.bf16.msra.mxu0 %v11671
    %14280 = vmatprep.subr.bf16.mxu0 %v11680
    %14281 = vmatpush1.bf16.msra.mxu0 %v11679
    %14282 = vmatprep.subr.bf16.mxu0 %v11688
    %14283 = vmatpush1.bf16.msra.mxu0 %v11687
    %14284 = vmatprep.subr.bf16.mxu0 %v11696
    %14285 = vmatpush1.bf16.msra.mxu0 %v11695
    %14286 = vmatprep.mubr.bf16.mxu0 %v8030
    %14287 = vmatmul.mubr.bf16.gmra.mrb[0].mxu0 %v8029
    %v14288 = vpop.f32.mrb[0].mxu0
    %v14289 = vadd.f32 %v14216, %v14288
    %v14290 = vpop.f32.mrb[0].mxu0
    %v14291 = vadd.f32 %v14218, %v14290
    %v14292 = vpop.f32.mrb[0].mxu0
    %v14293 = vadd.f32 %v14220, %v14292
    %v14294 = vpop.f32.mrb[0].mxu0
    %v14295 = vadd.f32 %v14222, %v14294
    %14296 = vmatprep.mubr.bf16.mxu0 %v8042
    %14297 = vmatmul.mubr.bf16.gmra.mrb[0].mxu0 %v8041
    %v14298 = vpop.f32.mrb[0].mxu0
    %v14299 = vadd.f32 %v14226, %v14298
    %v14300 = vpop.f32.mrb[0].mxu0
    %v14301 = vadd.f32 %v14228, %v14300
    %v14302 = vpop.f32.mrb[0].mxu0
    %v14303 = vadd.f32 %v14230, %v14302
    %v14304 = vpop.f32.mrb[0].mxu0
    %v14305 = vadd.f32 %v14232, %v14304
    %14306 = vmatprep.mubr.bf16.mxu0 %v8054
    %14307 = vmatmul.mubr.bf16.gmra.mrb[0].mxu0 %v8053
    %v14308 = vpop.f32.mrb[0].mxu0
    %v14309 = vadd.f32 %v14236, %v14308
    %v14310 = vpop.f32.mrb[0].mxu0
    %v14311 = vadd.f32 %v14238, %v14310
    %v14312 = vpop.f32.mrb[0].mxu0
    %v14313 = vadd.f32 %v14240, %v14312
    %v14314 = vpop.f32.mrb[0].mxu0
    %v14315 = vadd.f32 %v14242, %v14314
    %14316 = vmatprep.mubr.bf16.mxu0 %v8066
    %14317 = vmatmul.mubr.bf16.gmra.mrb[0].mxu0 %v8065
    %v14318 = vpop.f32.mrb[0].mxu0
    %v14319 = vadd.f32 %v14246, %v14318
    %v14320 = vpop.f32.mrb[0].mxu0
    %v14321 = vadd.f32 %v14248, %v14320
    %v14322 = vpop.f32.mrb[0].mxu0
    %v14323 = vadd.f32 %v14250, %v14322
    %v14324 = vpop.f32.mrb[0].mxu0
    %v14325 = vadd.f32 %v14252, %v14324
    %14326 = vdwg.mxu0
    %14327 = vmatprep.subr.bf16.mxu0 %v11704
    %14328 = vmatpush1.bf16.msra.mxu0 %v11703
    %14329 = vmatprep.subr.bf16.mxu0 %v11712
    %14330 = vmatpush1.bf16.msra.mxu0 %v11711
    %14331 = vmatprep.subr.bf16.mxu0 %v11720
    %14332 = vmatpush1.bf16.msra.mxu0 %v11719
    %14333 = vmatprep.subr.bf16.mxu0 %v11728
    %14334 = vmatpush1.bf16.msra.mxu0 %v11727
    %14335 = vmatprep.subr.bf16.mxu0 %v11736
    %14336 = vmatpush1.bf16.msra.mxu0 %v11735
    %14337 = vmatprep.subr.bf16.mxu0 %v11744
    %14338 = vmatpush1.bf16.msra.mxu0 %v11743
    %14339 = vmatprep.subr.bf16.mxu0 %v11752
    %14340 = vmatpush1.bf16.msra.mxu0 %v11751
    %14341 = vmatprep.subr.bf16.mxu0 %v11760
    %14342 = vmatpush1.bf16.msra.mxu0 %v11759
    %14343 = vmatprep.subr.bf16.mxu0 %v11768
    %14344 = vmatpush1.bf16.msra.mxu0 %v11767
    %14345 = vmatprep.subr.bf16.mxu0 %v11776
    %14346 = vmatpush1.bf16.msra.mxu0 %v11775
    %14347 = vmatprep.subr.bf16.mxu0 %v11784
    %14348 = vmatpush1.bf16.msra.mxu0 %v11783
    %14349 = vmatprep.subr.bf16.mxu0 %v11792
    %14350 = vmatpush1.bf16.msra.mxu0 %v11791
    %14351 = vmatprep.subr.bf16.mxu0 %v11800
    %14352 = vmatpush1.bf16.msra.mxu0 %v11799
    %14353 = vmatprep.subr.bf16.mxu0 %v11808
    %14354 = vmatpush1.bf16.msra.mxu0 %v11807
    %14355 = vmatprep.subr.bf16.mxu0 %v11816
    %14356 = vmatpush1.bf16.msra.mxu0 %v11815
    %14357 = vmatprep.subr.bf16.mxu0 %v11824
    %14358 = vmatpush1.bf16.msra.mxu0 %v11823
    %14359 = vmatprep.mubr.bf16.mxu0 %v8032
    %14360 = vmatmul.mubr.bf16.gmra.mrb[0].mxu0 %v8031
    %v14361 = vpop.f32.mrb[0].mxu0
    %v14362 = vadd.f32 %v14289, %v14361
    %v14363 = vpop.f32.mrb[0].mxu0
    %v14364 = vadd.f32 %v14291, %v14363
    %v14365 = vpop.f32.mrb[0].mxu0
    %v14366 = vadd.f32 %v14293, %v14365
    %v14367 = vpop.f32.mrb[0].mxu0
    %v14368 = vadd.f32 %v14295, %v14367
    %14369 = vmatprep.mubr.bf16.mxu0 %v8044
    %14370 = vmatmul.mubr.bf16.gmra.mrb[0].mxu0 %v8043
    %v14371 = vpop.f32.mrb[0].mxu0
    %v14372 = vadd.f32 %v14299, %v14371
    %v14373 = vpop.f32.mrb[0].mxu0
    %v14374 = vadd.f32 %v14301, %v14373
    %v14375 = vpop.f32.mrb[0].mxu0
    %v14376 = vadd.f32 %v14303, %v14375
    %v14377 = vpop.f32.mrb[0].mxu0
    %v14378 = vadd.f32 %v14305, %v14377
    %14379 = vmatprep.mubr.bf16.mxu0 %v8056
    %14380 = vmatmul.mubr.bf16.gmra.mrb[0].mxu0 %v8055
    %v14381 = vpop.f32.mrb[0].mxu0
    %v14382 = vadd.f32 %v14309, %v14381
    %v14383 = vpop.f32.mrb[0].mxu0
    %v14384 = vadd.f32 %v14311, %v14383
    %v14385 = vpop.f32.mrb[0].mxu0
    %v14386 = vadd.f32 %v14313, %v14385
    %v14387 = vpop.f32.mrb[0].mxu0
    %v14388 = vadd.f32 %v14315, %v14387
    %14389 = vmatprep.mubr.bf16.mxu0 %v8068
    %14390 = vmatmul.mubr.bf16.gmra.mrb[0].mxu0 %v8067
    %v14391 = vpop.f32.mrb[0].mxu0
    %v14392 = vadd.f32 %v14319, %v14391
    %v14393 = vpop.f32.mrb[0].mxu0
    %v14394 = vadd.f32 %v14321, %v14393
    %v14395 = vpop.f32.mrb[0].mxu0
    %v14396 = vadd.f32 %v14323, %v14395
    %v14397 = vpop.f32.mrb[0].mxu0
    %v14398 = vadd.f32 %v14325, %v14397
    %14399 = vdwg.mxu0
    %14400 = vmatprep.subr.bf16.mxu0 %v11832
    %14401 = vmatpush1.bf16.msra.mxu0 %v11831
    %14402 = vmatprep.subr.bf16.mxu0 %v11840
    %14403 = vmatpush1.bf16.msra.mxu0 %v11839
    %14404 = vmatprep.subr.bf16.mxu0 %v11848
    %14405 = vmatpush1.bf16.msra.mxu0 %v11847
    %14406 = vmatprep.subr.bf16.mxu0 %v11856
    %14407 = vmatpush1.bf16.msra.mxu0 %v11855
    %14408 = vmatprep.subr.bf16.mxu0 %v11864
    %14409 = vmatpush1.bf16.msra.mxu0 %v11863
    %14410 = vmatprep.subr.bf16.mxu0 %v11872
    %14411 = vmatpush1.bf16.msra.mxu0 %v11871
    %14412 = vmatprep.subr.bf16.mxu0 %v11880
    %14413 = vmatpush1.bf16.msra.mxu0 %v11879
    %14414 = vmatprep.subr.bf16.mxu0 %v11888
    %14415 = vmatpush1.bf16.msra.mxu0 %v11887
    %14416 = vmatprep.subr.bf16.mxu0 %v11896
    %14417 = vmatpush1.bf16.msra.mxu0 %v11895
    %14418 = vmatprep.subr.bf16.mxu0 %v11904
    %14419 = vmatpush1.bf16.msra.mxu0 %v11903
    %14420 = vmatprep.subr.bf16.mxu0 %v11912
    %14421 = vmatpush1.bf16.msra.mxu0 %v11911
    %14422 = vmatprep.subr.bf16.mxu0 %v11920
    %14423 = vmatpush1.bf16.msra.mxu0 %v11919
    %14424 = vmatprep.subr.bf16.mxu0 %v11928
    %14425 = vmatpush1.bf16.msra.mxu0 %v11927
    %14426 = vmatprep.subr.bf16.mxu0 %v11936
    %14427 = vmatpush1.bf16.msra.mxu0 %v11935
    %14428 = vmatprep.subr.bf16.mxu0 %v11944
    %14429 = vmatpush1.bf16.msra.mxu0 %v11943
    %14430 = vmatprep.subr.bf16.mxu0 %v11952
    %14431 = vmatpush1.bf16.msra.mxu0 %v11951
    %14432 = vmatprep.mubr.bf16.mxu0 %v8034
    %14433 = vmatmul.mubr.bf16.gmra.mrb[0].mxu0 %v8033
    %v14434 = vpop.f32.mrb[0].mxu0
    %v14435 = vadd.f32 %v14362, %v14434
    %v14436 = vpop.f32.mrb[0].mxu0
    %v14437 = vadd.f32 %v14364, %v14436
    %v14438 = vpop.f32.mrb[0].mxu0
    %v14439 = vadd.f32 %v14366, %v14438
    %v14440 = vpop.f32.mrb[0].mxu0
    %v14441 = vadd.f32 %v14368, %v14440
    %14442 = vmatprep.mubr.bf16.mxu0 %v8046
    %14443 = vmatmul.mubr.bf16.gmra.mrb[0].mxu0 %v8045
    %v14444 = vpop.f32.mrb[0].mxu0
    %v14445 = vadd.f32 %v14372, %v14444
    %v14446 = vpop.f32.mrb[0].mxu0
    %v14447 = vadd.f32 %v14374, %v14446
    %v14448 = vpop.f32.mrb[0].mxu0
    %v14449 = vadd.f32 %v14376, %v14448
    %v14450 = vpop.f32.mrb[0].mxu0
    %v14451 = vadd.f32 %v14378, %v14450
    %14452 = vmatprep.mubr.bf16.mxu0 %v8058
    %14453 = vmatmul.mubr.bf16.gmra.mrb[0].mxu0 %v8057
    %v14454 = vpop.f32.mrb[0].mxu0
    %v14455 = vadd.f32 %v14382, %v14454
    %v14456 = vpop.f32.mrb[0].mxu0
    %v14457 = vadd.f32 %v14384, %v14456
    %v14458 = vpop.f32.mrb[0].mxu0
    %v14459 = vadd.f32 %v14386, %v14458
    %v14460 = vpop.f32.mrb[0].mxu0
    %v14461 = vadd.f32 %v14388, %v14460
    %14462 = vmatprep.mubr.bf16.mxu0 %v8070
    %14463 = vmatmul.mubr.bf16.gmra.mrb[0].mxu0 %v8069
    %v14464 = vpop.f32.mrb[0].mxu0
    %v14465 = vadd.f32 %v14392, %v14464
    %v14466 = vpop.f32.mrb[0].mxu0
    %v14467 = vadd.f32 %v14394, %v14466
    %v14468 = vpop.f32.mrb[0].mxu0
    %v14469 = vadd.f32 %v14396, %v14468
    %v14470 = vpop.f32.mrb[0].mxu0
    %v14471 = vadd.f32 %v14398, %v14470
    %14472 = vdwg.mxu0
    %v14473 = vtanh.pop %v13121
    %v14474 = vtanh.pop %v13123
    %v14475 = vtanh.pop %v13559
    %v14476 = vtanh.pop %v13561
    %v14477 = vtanh.pop %v13997
    %v14478 = vtanh.pop %v13999
    %v14479 = vtanh.pop %v14435
    %v14480 = vtanh.pop %v14437
    %v14481 = vtanh.pop %v13125
    %v14482 = vtanh.pop %v13127
    %v14483 = vtanh.pop %v13563
    %v14484 = vtanh.pop %v13565
    %v14485 = vtanh.pop %v14001
    %v14486 = vtanh.pop %v14003
    %v14487 = vtanh.pop %v14439
    %v14488 = vtanh.pop %v14441
    %v14489 = vtanh.pop %v13131
    %v14490 = vtanh.pop %v13133
    %v14491 = vtanh.pop %v13569
    %v14492 = vtanh.pop %v13571
    %v14493 = vtanh.pop %v14007
    %v14494 = vtanh.pop %v14009
    %v14495 = vtanh.pop %v14445
    %v14496 = vtanh.pop %v14447
    %v14497 = vtanh.pop %v13135
    %v14498 = vtanh.pop %v13137
    %v14499 = vtanh.pop %v13573
    %v14500 = vtanh.pop %v13575
    %v14501 = vtanh.pop %v14011
    %v14502 = vtanh.pop %v14013
    %v14503 = vtanh.pop %v14449
    %v14504 = vtanh.pop %v14451
    %v14505 = vtanh.pop %v13141
    %v14506 = vtanh.pop %v13143
    %v14507 = vtanh.pop %v13579
    %v14508 = vtanh.pop %v13581
    %v14509 = vtanh.pop %v14017
    %v14510 = vtanh.pop %v14019
    %v14511 = vtanh.pop %v14455
    %v14512 = vtanh.pop %v14457
    %v14513 = vtanh.pop %v13145
    %v14514 = vtanh.pop %v13147
    %v14515 = vtanh.pop %v13583
    %v14516 = vtanh.pop %v13585
    %v14517 = vtanh.pop %v14021
    %v14518 = vtanh.pop %v14023
    %v14519 = vtanh.pop %v14459
    %v14520 = vtanh.pop %v14461
    %v14521 = vtanh.pop %v13151
    %v14522 = vtanh.pop %v13153
    %v14523 = vtanh.pop %v13589
    %v14524 = vtanh.pop %v13591
    %v14525 = vtanh.pop %v14027
    %v14526 = vtanh.pop %v14029
    %v14527 = vtanh.pop %v14465
    %v14528 = vtanh.pop %v14467
    %v14529 = vtanh.pop %v13155
    %v14530 = vtanh.pop %v13157
    %v14531 = vtanh.pop %v13593
    %v14532 = vtanh.pop %v13595
    %v14533 = vtanh.pop %v14031
    %v14534 = vtanh.pop %v14033
    %v14535 = vtanh.pop %v14469
    %v14536 = vtanh.pop %v14471
    %14537 = vst [vmem:[#allocation10] sm:$0xff] %v14473
    %14538 = vst [vmem:[#allocation10 + $0x8] sm:$0xff] %v14474
    %14539 = vst [vmem:[#allocation10 + $0x10] sm:$0xff] %v14475
    %14540 = vst [vmem:[#allocation10 + $0x18] sm:$0xff] %v14476
    %14541 = vst [vmem:[#allocation10 + $0x20] sm:$0xff] %v14477
    %14542 = vst [vmem:[#allocation10 + $0x28] sm:$0xff] %v14478
    %14543 = vst [vmem:[#allocation10 + $0x30] sm:$0xff] %v14479
    %14544 = vst [vmem:[#allocation10 + $0x38] sm:$0xff] %v14480
    %14545 = vst [vmem:[#allocation10 + $0x40] sm:$0xff] %v14481
    %14546 = vst [vmem:[#allocation10 + $0x48] sm:$0xff] %v14482
    %14547 = vst [vmem:[#allocation10 + $0x50] sm:$0xff] %v14483
    %14548 = vst [vmem:[#allocation10 + $0x58] sm:$0xff] %v14484
    %14549 = vst [vmem:[#allocation10 + $0x60] sm:$0xff] %v14485
    %14550 = vst [vmem:[#allocation10 + $0x68] sm:$0xff] %v14486
    %14551 = vst [vmem:[#allocation10 + $0x70] sm:$0xff] %v14487
    %14552 = vst [vmem:[#allocation10 + $0x78] sm:$0xff] %v14488
    %14553 = vst [vmem:[#allocation10 + $0x80] sm:$0xff] %v14489
    %14554 = vst [vmem:[#allocation10 + $0x88] sm:$0xff] %v14490
    %14555 = vst [vmem:[#allocation10 + $0x90] sm:$0xff] %v14491
    %14556 = vst [vmem:[#allocation10 + $0x98] sm:$0xff] %v14492
    %14557 = vst [vmem:[#allocation10 + $0xa0] sm:$0xff] %v14493
    %14558 = vst [vmem:[#allocation10 + $0xa8] sm:$0xff] %v14494
    %14559 = vst [vmem:[#allocation10 + $0xb0] sm:$0xff] %v14495
    %14560 = vst [vmem:[#allocation10 + $0xb8] sm:$0xff] %v14496
    %14561 = vst [vmem:[#allocation10 + $0xc0] sm:$0xff] %v14497
    %14562 = vst [vmem:[#allocation10 + $0xc8] sm:$0xff] %v14498
    %14563 = vst [vmem:[#allocation10 + $0xd0] sm:$0xff] %v14499
    %14564 = vst [vmem:[#allocation10 + $0xd8] sm:$0xff] %v14500
    %14565 = vst [vmem:[#allocation10 + $0xe0] sm:$0xff] %v14501
    %14566 = vst [vmem:[#allocation10 + $0xe8] sm:$0xff] %v14502
    %14567 = vst [vmem:[#allocation10 + $0xf0] sm:$0xff] %v14503
    %14568 = vst [vmem:[#allocation10 + $0xf8] sm:$0xff] %v14504
    %14569 = vst [vmem:[#allocation10 + $0x100] sm:$0xff] %v14505
    %14570 = vst [vmem:[#allocation10 + $0x108] sm:$0xff] %v14506
    %14571 = vst [vmem:[#allocation10 + $0x110] sm:$0xff] %v14507
    %14572 = vst [vmem:[#allocation10 + $0x118] sm:$0xff] %v14508
    %14573 = vst [vmem:[#allocation10 + $0x120] sm:$0xff] %v14509
    %14574 = vst [vmem:[#allocation10 + $0x128] sm:$0xff] %v14510
    %14575 = vst [vmem:[#allocation10 + $0x130] sm:$0xff] %v14511
    %14576 = vst [vmem:[#allocation10 + $0x138] sm:$0xff] %v14512
    %14577 = vst [vmem:[#allocation10 + $0x140] sm:$0xff] %v14513
    %14578 = vst [vmem:[#allocation10 + $0x148] sm:$0xff] %v14514
    %14579 = vst [vmem:[#allocation10 + $0x150] sm:$0xff] %v14515
    %14580 = vst [vmem:[#allocation10 + $0x158] sm:$0xff] %v14516
    %14581 = vst [vmem:[#allocation10 + $0x160] sm:$0xff] %v14517
    %14582 = vst [vmem:[#allocation10 + $0x168] sm:$0xff] %v14518
    %14583 = vst [vmem:[#allocation10 + $0x170] sm:$0xff] %v14519
    %14584 = vst [vmem:[#allocation10 + $0x178] sm:$0xff] %v14520
    %14585 = vst [vmem:[#allocation10 + $0x180] sm:$0xff] %v14521
    %14586 = vst [vmem:[#allocation10 + $0x188] sm:$0xff] %v14522
    %14587 = vst [vmem:[#allocation10 + $0x190] sm:$0xff] %v14523
    %14588 = vst [vmem:[#allocation10 + $0x198] sm:$0xff] %v14524
    %14589 = vst [vmem:[#allocation10 + $0x1a0] sm:$0xff] %v14525
    %14590 = vst [vmem:[#allocation10 + $0x1a8] sm:$0xff] %v14526
    %14591 = vst [vmem:[#allocation10 + $0x1b0] sm:$0xff] %v14527
    %14592 = vst [vmem:[#allocation10 + $0x1b8] sm:$0xff] %v14528
    %14593 = vst [vmem:[#allocation10 + $0x1c0] sm:$0xff] %v14529
    %14594 = vst [vmem:[#allocation10 + $0x1c8] sm:$0xff] %v14530
    %14595 = vst [vmem:[#allocation10 + $0x1d0] sm:$0xff] %v14531
    %14596 = vst [vmem:[#allocation10 + $0x1d8] sm:$0xff] %v14532
    %14597 = vst [vmem:[#allocation10 + $0x1e0] sm:$0xff] %v14533
    %14598 = vst [vmem:[#allocation10 + $0x1e8] sm:$0xff] %v14534
    %14599 = vst [vmem:[#allocation10 + $0x1f0] sm:$0xff] %v14535
    %14600 = vst [vmem:[#allocation10 + $0x1f8] sm:$0xff] %v14536
    // Predicated region
    $region38: #{netg_forward.1} parent=1 // pred_check
      _
    $region39: #{netg_forward.1} parent=1 // pred_check_branch
      %14602 = sbr.rel (0) target = $region41
    $region40: #{netg_forward.1} parent=1 // pred_region
      %s14604 = ssub.s32 8192, 8192
      %14605 = vsyncadd [#allocation4], %s14604
      %s14606 = sshll.u32 [#allocation10], 4
      %s14607 = int_to_ptr.vmem [resolvable:$true] %s14606
      %14612 = dma.vmem_to_hbm [thread:$0]  %s14607, 8192, %s5, [#allocation4], 1024, 1024, 64
    $region41: #{netg_forward.1} parent=1 // pred_fallthru
      _
    // Predicated region
    $region42: #{netg_forward.1} parent=1 // pred_check
      _
    $region43: #{netg_forward.1} parent=1 // pred_check_branch
      %14614 = sbr.rel (0) target = $region45
    $region44: #{netg_forward.1} parent=1 // pred_region
      %14615 = dma.done [#allocation4], 8192
    $region45: #{netg_forward.1} parent=1 // pred_fallthru
      _
    %14616 = vsyncpa [#allocation3], 1
    %14617 = vsyncpa [#allocation6], 1
    %14618 = vsyncpa [#allocation9], 1
    %14619 = vsyncpa [#allocation4], 1

</llo_original>
